<compile_context>
chip_gen: v6e
topology: v6e:2x2x1
jax: 0.10.0
libtpu: 0.0.40
codegen_flags: <defaults>
</compile_context>

<pallas_src>
import math

import numpy as np
import jax
import jax.numpy as jnp
from jax.experimental import pallas as pl
from jax.experimental.pallas import tpu as pltpu

ACT_SLOPE = 0.01   # LeakyReLU negative slope (PyTorch default)
KSZ = 5            # kernel size (builders assume k=5, p=2)


# ---------------------------------------------------------------------------
# Fused kernel: every conv is   y = leaky( concat_lanes_t(R_t @ x) @ M + b )
#   R_t : (n_taps, NB*H_out, NB*H_in) 0/1 bf16 block-diagonal row operator
#         (circular row taps + H stride / H upsampling + batch fold)
#   M   : (n_taps*W_in*Cin, W_out*Cout) bf16 stacked banded matrix
#         (kx taps + circular W wrap + W stride / upsampling + channel mixing)
#   b   : (1, W_out*Cout) f32 lane-tiled bias
# ---------------------------------------------------------------------------
def _cae_fused_kernel(x_ref, *refs):
    o_ref = refs[-1]
    wrefs = refs[:-1]
    n_convs = len(wrefs) // 3

    x = x_ref[...].astype(jnp.bfloat16)
    for ci in range(n_convs):
        r_ref = wrefs[3 * ci]
        m_ref = wrefs[3 * ci + 1]
        b_ref = wrefs[3 * ci + 2]
        n_taps = r_ref.shape[0]
        # Row-gather matmuls (0/1 operators -> exact in bf16), stacked on lanes.
        taps = [jnp.dot(r_ref[t], x, preferred_element_type=jnp.float32)
                .astype(jnp.bfloat16) for t in range(n_taps)]
        xcat = jnp.concatenate(taps, axis=1) if n_taps > 1 else taps[0]
        acc = jnp.dot(xcat, m_ref[...], preferred_element_type=jnp.float32)
        acc = acc + b_ref[...]
        act = jnp.where(acc >= 0.0, acc, ACT_SLOPE * acc)
        if ci + 1 == n_convs:
            o_ref[...] = act                      # the only HBM store (f32)
        else:
            x = act.astype(jnp.bfloat16)          # stays in VMEM / vregs


# ---------------------------------------------------------------------------
# Constant 0/1 tap operators (shared for the H and W directions).
#   kind 's1': stride-1 periodic conv,  kind 's2': stride-2 periodic conv,
#   kind 't2': transposed stride-2 (exact adjoint), output = 2x size.
# Returned as T[tap, out, in].
# ---------------------------------------------------------------------------
def _tap_op(kind, n_in, k=KSZ):
    p = (k - 1) // 2
    if kind == 's1':
        n_out = n_in
    elif kind == 's2':
        n_out = n_in // 2
    else:                       # 't2'
        n_out = 2 * n_in
    t = np.zeros((k, n_out, n_in), np.float32)
    for kt in range(k):
        for o in range(n_out):
            if kind == 's1':
                t[kt, o, (o + kt - p) % n_in] = 1.0
            elif kind == 's2':
                t[kt, o, (2 * o + kt - p) % n_in] = 1.0
            else:
                if (kt - o) % 2 == 0:             # parity of the zero-upsample
                    t[kt, o, ((o + p - kt) // 2) % n_in] = 1.0
    return t


def _make_conv(kind, h, w, wt, bias, nb):
    """Build (R, Mstack, bias_tiled, h_out, w_out) for one conv."""
    k = wt.shape[0]
    cin, cout = wt.shape[2], wt.shape[3]
    rop = _tap_op(kind, h, k)                         # (k, h_out, h)
    wop = _tap_op(kind, w, k)                         # (k, w_out, w)
    h_out, w_out = rop.shape[1], wop.shape[1]
    eye = np.eye(nb, dtype=np.float32)
    r = np.stack([np.kron(eye, rop[t]) for t in range(k)])   # block-diag / batch
    # sel[kx, i(=input w pos), j(=output w pos)]
    sel = jnp.asarray(wop.transpose(0, 2, 1))
    m = jnp.einsum('xij,yxcd->yicjd', sel, wt.astype(jnp.float32))
    m = m.reshape(k * w * cin, w_out * cout)
    b = jnp.tile(bias.astype(jnp.float32), w_out)[None, :]
    return (jnp.asarray(r, jnp.bfloat16), m.astype(jnp.bfloat16), b,
            h_out, w_out)


def prepare_cae(blocks, height, width, nb):
    convs = []
    h, w = height, width
    for blk in blocks:
        k1 = 's2' if blk['kind'] == 'enc' else 's1'
        k2 = 's1' if blk['kind'] == 'enc' else 't2'
        r, m, b, h, w = _make_conv(k1, h, w, blk['w1'], blk['b1'], nb)
        convs.append((r, m, b))
        r, m, b, h, w = _make_conv(k2, h, w, blk['w2'], blk['b2'], nb)
        convs.append((r, m, b))
    return convs, h, w


# ---------------------------------------------------------------------------
# Synthetic (deterministic) parameters, matching the CNNblock wiring.
# ---------------------------------------------------------------------------
def init_cae_blocks(key, state_channels, hidden_channels=16, latent_channels=8,
                    kernel_size=KSZ, depth=3):
    k = kernel_size
    enc_io = ([(state_channels, hidden_channels)]
              + [(hidden_channels, hidden_channels)] * (depth - 2)
              + [(hidden_channels, latent_channels)])
    dec_io = ([(latent_channels, hidden_channels)]
              + [(hidden_channels, hidden_channels)] * (depth - 2)
              + [(hidden_channels, state_channels)])
    keys = jax.random.split(key, 4 * (len(enc_io) + len(dec_io)))
    ki = iter(range(len(keys)))

    def conv_params(cin, cout):
        bound = 1.0 / math.sqrt(cin * k * k)
        wgt = jax.random.uniform(keys[next(ki)], (k, k, cin, cout), jnp.float32,
                                 -bound, bound)
        b = jax.random.uniform(keys[next(ki)], (cout,), jnp.float32,
                               -bound, bound)
        return wgt, b

    blocks = []
    for cin, cout in enc_io:                   # encoder CNNblocks
        w1, b1 = conv_params(cin, cin)         # conv1: stride-2, cin -> cin
        w2, b2 = conv_params(cin, cout)        # conv2: stride-1, cin -> cout
        blocks.append(dict(kind='enc', w1=w1, b1=b1, w2=w2, b2=b2))
    for cin, cout in dec_io:                   # decoder CNNblocks (transpose)
        w1, b1 = conv_params(cin, cout)        # conv1: stride-1, cin -> cout
        w2, b2 = conv_params(cout, cout)       # conv2: transposed stride-2
        blocks.append(dict(kind='dec', w1=w1, b1=b1, w2=w2, b2=b2))
    return blocks


# ---------------------------------------------------------------------------
# Build the fused forward (one pallas_call) + its flat parameter tuple.
# ---------------------------------------------------------------------------
def build_cae_forward(blocks, n, height, width, chan, batch_tile=None):
    nb = batch_tile if batch_tile is not None else max(1, min(n, 128 // height))
    while n % nb:
        nb -= 1
    convs, h_fin, w_fin = prepare_cae(blocks, height, width, nb)
    assert (h_fin, w_fin) == (height, width), "depth/spatial mismatch"

    lanes_in = width * chan
    lanes_out = convs[-1][1].shape[-1]          # == width * state_channels
    rows_blk = nb * height
    grid = (n // nb,)

    in_specs = [pl.BlockSpec((rows_blk, lanes_in), lambda i: (i, 0))]
    params = []
    for (r, m, b) in convs:
        params += [r, m, b]
        in_specs.append(pl.BlockSpec(r.shape, lambda i: (0, 0, 0)))
        in_specs.append(pl.BlockSpec(m.shape, lambda i: (0, 0)))
        in_specs.append(pl.BlockSpec(b.shape, lambda i: (0, 0)))

    flops = 0
    wbytes = 0
    for (r, m, b) in convs:
        kt, hob, hib = r.shape
        kk, ll = m.shape
        flops += 2 * hob * hib * kk + 2 * hob * kk * ll
        wbytes += 2 * r.size + 2 * m.size + 4 * b.size
    flops *= grid[0]
    bytes_acc = wbytes + 4 * n * height * (lanes_in + lanes_out)

    call = pl.pallas_call(
        _cae_fused_kernel,
        out_shape=jax.ShapeDtypeStruct((n * height, lanes_out), jnp.float32),
        grid_spec=pltpu.PrefetchScalarGridSpec(
            num_scalar_prefetch=0,
            grid=grid,
            in_specs=in_specs,
            out_specs=pl.BlockSpec((rows_blk, lanes_out), lambda i: (i, 0)),
        ),
        compiler_params=pltpu.CompilerParams(
            dimension_semantics=("parallel",)),
        cost_estimate=pl.CostEstimate(flops=int(flops), transcendentals=0,
                                      bytes_accessed=int(bytes_acc)),
    )

    def forward(cae_params, x_nhwc):
        nn, hh, ww, cc = x_nhwc.shape
        x2 = x_nhwc.reshape(nn * hh, ww * cc)     # free row-major reshape
        y2 = call(x2, *cae_params)
        return y2.reshape(nn, hh, ww, cc)

    return forward, tuple(params)


# ---------------------------------------------------------------------------
# Pure-JAX f32 reference with the SAME assumed semantics (circular 'same'
# padding; transposed conv = exact adjoint of the stride-2 correlation).
# ---------------------------------------------------------------------------
def _leaky_ref(x):
    return jnp.where(x >= 0.0, x, ACT_SLOPE * x)


def _ref_conv(x, w, b, kind):
    k = w.shape[0]
    p = (k - 1) // 2
    n, h, ww, _ = x.shape
    co = w.shape[3]
    if kind == 't2':
        y = jnp.zeros((n, 2 * h, 2 * ww, co), jnp.float32) + b
        for ky in range(k):
            for kx in range(k):
                a, bb = ky % 2, kx % 2
                dy = 1 - (ky - a) // 2
                dx = 1 - (kx - bb) // 2
                xr = jnp.roll(x, shift=(-dy, -dx), axis=(1, 2))
                y = y.at[:, a::2, bb::2, :].add(
                    jnp.einsum('nhwc,cd->nhwd', xr, w[ky, kx]))
        return y
    s = 2 if kind == 's2' else 1
    y = jnp.zeros((n, h // s, ww // s, co), jnp.float32) + b
    for ky in range(k):
        for kx in range(k):
            xr = jnp.roll(x, shift=(p - ky, p - kx), axis=(1, 2))
            y = y + jnp.einsum('nhwc,cd->nhwd', xr[:, ::s, ::s, :], w[ky, kx])
    return y


def _ref_forward(blocks, x_nhwc):
    x = x_nhwc.astype(jnp.float32)
    for blk in blocks:
        if blk['kind'] == 'enc':
            x = _leaky_ref(_ref_conv(x, blk['w1'], blk['b1'], 's2'))
            x = _leaky_ref(_ref_conv(x, blk['w2'], blk['b2'], 's1'))
        else:
            x = _leaky_ref(_ref_conv(x, blk['w1'], blk['b1'], 's1'))
            x = _leaky_ref(_ref_conv(x, blk['w2'], blk['b2'], 't2'))
    return x


if __name__ == "__main__":
    # Small, CAE-consistent shapes: batch=2, state_channels=3, spatial=32
    # (divisible by 2^depth), hidden=8, latent=4, kernel=5, depth=3.
    N, C, H, W = 2, 3, 32, 32
    hidden, latent, depth = 8, 4, 3

    key = jax.random.PRNGKey(0)
    kx_, kp_ = jax.random.split(key)
    x_nchw = jax.random.normal(kx_, (N, C, H, W), jnp.float32)   # PyTorch NCHW

    blocks = init_cae_blocks(kp_, state_channels=C, hidden_channels=hidden,
                             latent_channels=latent, kernel_size=KSZ,
                             depth=depth)
    forward, cae_params = build_cae_forward(blocks, N, H, W, C)
    forward = jax.jit(forward)

    x_nhwc = jnp.transpose(x_nchw, (0, 2, 3, 1))       # NCHW -> NHWC
    y_nhwc = forward(cae_params, x_nhwc)
    jax.block_until_ready(y_nhwc)
    y_nchw = jnp.transpose(y_nhwc, (0, 3, 1, 2))        # NHWC -> NCHW

    assert y_nchw.shape == x_nchw.shape, (y_nchw.shape, x_nchw.shape)
    assert bool(jnp.all(jnp.isfinite(y_nchw)))

    # Correctness vs. a pure-JAX f32 reference of the same assumed semantics
    # (bf16 MXU operands -> expect ~1e-2 relative max-norm error).
    y_ref = jax.jit(lambda xx: _ref_forward(blocks, xx))(x_nhwc)
    y_ref = jnp.transpose(y_ref, (0, 3, 1, 2))
    err = float(jnp.max(jnp.abs(y_nchw - y_ref))
                / (jnp.max(jnp.abs(y_ref)) + 1e-12))
    assert err < 0.1, f"max relative error {err:.4f}"

    print("KERNEL_OK")
</pallas_src>

<mosaic_0001>
module attributes {stable_mosaic.version = 11 : i64} {
  func.func @_cae_fused_kernel(%arg0: i32, %arg1: memref<64x96xf32, #tpu.memory_space<vmem>>, %arg2: memref<5x32x64xbf16, #tpu.memory_space<vmem>>, %arg3: memref<480x48xbf16, #tpu.memory_space<vmem>>, %arg4: memref<1x48xf32, #tpu.memory_space<vmem>>, %arg5: memref<5x32x32xbf16, #tpu.memory_space<vmem>>, %arg6: memref<240x128xbf16, #tpu.memory_space<vmem>>, %arg7: memref<1x128xf32, #tpu.memory_space<vmem>>, %arg8: memref<5x16x32xbf16, #tpu.memory_space<vmem>>, %arg9: memref<640x64xbf16, #tpu.memory_space<vmem>>, %arg10: memref<1x64xf32, #tpu.memory_space<vmem>>, %arg11: memref<5x16x16xbf16, #tpu.memory_space<vmem>>, %arg12: memref<320x64xbf16, #tpu.memory_space<vmem>>, %arg13: memref<1x64xf32, #tpu.memory_space<vmem>>, %arg14: memref<5x8x16xbf16, #tpu.memory_space<vmem>>, %arg15: memref<320x32xbf16, #tpu.memory_space<vmem>>, %arg16: memref<1x32xf32, #tpu.memory_space<vmem>>, %arg17: memref<5x8x8xbf16, #tpu.memory_space<vmem>>, %arg18: memref<160x16xbf16, #tpu.memory_space<vmem>>, %arg19: memref<1x16xf32, #tpu.memory_space<vmem>>, %arg20: memref<5x8x8xbf16, #tpu.memory_space<vmem>>, %arg21: memref<80x32xbf16, #tpu.memory_space<vmem>>, %arg22: memref<1x32xf32, #tpu.memory_space<vmem>>, %arg23: memref<5x16x8xbf16, #tpu.memory_space<vmem>>, %arg24: memref<160x64xbf16, #tpu.memory_space<vmem>>, %arg25: memref<1x64xf32, #tpu.memory_space<vmem>>, %arg26: memref<5x16x16xbf16, #tpu.memory_space<vmem>>, %arg27: memref<320x64xbf16, #tpu.memory_space<vmem>>, %arg28: memref<1x64xf32, #tpu.memory_space<vmem>>, %arg29: memref<5x32x16xbf16, #tpu.memory_space<vmem>>, %arg30: memref<320x128xbf16, #tpu.memory_space<vmem>>, %arg31: memref<1x128xf32, #tpu.memory_space<vmem>>, %arg32: memref<5x32x32xbf16, #tpu.memory_space<vmem>>, %arg33: memref<640x48xbf16, #tpu.memory_space<vmem>>, %arg34: memref<1x48xf32, #tpu.memory_space<vmem>>, %arg35: memref<5x64x32xbf16, #tpu.memory_space<vmem>>, %arg36: memref<240x96xbf16, #tpu.memory_space<vmem>>, %arg37: memref<1x96xf32, #tpu.memory_space<vmem>>, %arg38: memref<64x96xf32, #tpu.memory_space<vmem>>) attributes {dimension_semantics = [#tpu.dimension_semantics<parallel>], iteration_bounds = array<i64: 1>, scalar_prefetch = 0 : i64, scratch_operands = 0 : i64, tpu.core_type = #tpu.core_type<tc>, window_params = [{transform_indices = @transform_0, window_bounds = array<i64: 64, 96>}, {pipeline_mode = #tpu.pipeline_mode<synchronous>, transform_indices = @transform_1, window_bounds = array<i64: 5, 32, 64>}, {pipeline_mode = #tpu.pipeline_mode<synchronous>, transform_indices = @transform_2, window_bounds = array<i64: 480, 48>}, {pipeline_mode = #tpu.pipeline_mode<synchronous>, transform_indices = @transform_3, window_bounds = array<i64: 1, 48>}, {pipeline_mode = #tpu.pipeline_mode<synchronous>, transform_indices = @transform_4, window_bounds = array<i64: 5, 32, 32>}, {pipeline_mode = #tpu.pipeline_mode<synchronous>, transform_indices = @transform_5, window_bounds = array<i64: 240, 128>}, {pipeline_mode = #tpu.pipeline_mode<synchronous>, transform_indices = @transform_6, window_bounds = array<i64: 1, 128>}, {pipeline_mode = #tpu.pipeline_mode<synchronous>, transform_indices = @transform_7, window_bounds = array<i64: 5, 16, 32>}, {pipeline_mode = #tpu.pipeline_mode<synchronous>, transform_indices = @transform_8, window_bounds = array<i64: 640, 64>}, {pipeline_mode = #tpu.pipeline_mode<synchronous>, transform_indices = @transform_9, window_bounds = array<i64: 1, 64>}, {pipeline_mode = #tpu.pipeline_mode<synchronous>, transform_indices = @transform_10, window_bounds = array<i64: 5, 16, 16>}, {pipeline_mode = #tpu.pipeline_mode<synchronous>, transform_indices = @transform_11, window_bounds = array<i64: 320, 64>}, {pipeline_mode = #tpu.pipeline_mode<synchronous>, transform_indices = @transform_12, window_bounds = array<i64: 1, 64>}, {pipeline_mode = #tpu.pipeline_mode<synchronous>, transform_indices = @transform_13, window_bounds = array<i64: 5, 8, 16>}, {pipeline_mode = #tpu.pipeline_mode<synchronous>, transform_indices = @transform_14, window_bounds = array<i64: 320, 32>}, {pipeline_mode = #tpu.pipeline_mode<synchronous>, transform_indices = @transform_15, window_bounds = array<i64: 1, 32>}, {pipeline_mode = #tpu.pipeline_mode<synchronous>, transform_indices = @transform_16, window_bounds = array<i64: 5, 8, 8>}, {pipeline_mode = #tpu.pipeline_mode<synchronous>, transform_indices = @transform_17, window_bounds = array<i64: 160, 16>}, {pipeline_mode = #tpu.pipeline_mode<synchronous>, transform_indices = @transform_18, window_bounds = array<i64: 1, 16>}, {pipeline_mode = #tpu.pipeline_mode<synchronous>, transform_indices = @transform_19, window_bounds = array<i64: 5, 8, 8>}, {pipeline_mode = #tpu.pipeline_mode<synchronous>, transform_indices = @transform_20, window_bounds = array<i64: 80, 32>}, {pipeline_mode = #tpu.pipeline_mode<synchronous>, transform_indices = @transform_21, window_bounds = array<i64: 1, 32>}, {pipeline_mode = #tpu.pipeline_mode<synchronous>, transform_indices = @transform_22, window_bounds = array<i64: 5, 16, 8>}, {pipeline_mode = #tpu.pipeline_mode<synchronous>, transform_indices = @transform_23, window_bounds = array<i64: 160, 64>}, {pipeline_mode = #tpu.pipeline_mode<synchronous>, transform_indices = @transform_24, window_bounds = array<i64: 1, 64>}, {pipeline_mode = #tpu.pipeline_mode<synchronous>, transform_indices = @transform_25, window_bounds = array<i64: 5, 16, 16>}, {pipeline_mode = #tpu.pipeline_mode<synchronous>, transform_indices = @transform_26, window_bounds = array<i64: 320, 64>}, {pipeline_mode = #tpu.pipeline_mode<synchronous>, transform_indices = @transform_27, window_bounds = array<i64: 1, 64>}, {pipeline_mode = #tpu.pipeline_mode<synchronous>, transform_indices = @transform_28, window_bounds = array<i64: 5, 32, 16>}, {pipeline_mode = #tpu.pipeline_mode<synchronous>, transform_indices = @transform_29, window_bounds = array<i64: 320, 128>}, {pipeline_mode = #tpu.pipeline_mode<synchronous>, transform_indices = @transform_30, window_bounds = array<i64: 1, 128>}, {pipeline_mode = #tpu.pipeline_mode<synchronous>, transform_indices = @transform_31, window_bounds = array<i64: 5, 32, 32>}, {pipeline_mode = #tpu.pipeline_mode<synchronous>, transform_indices = @transform_32, window_bounds = array<i64: 640, 48>}, {pipeline_mode = #tpu.pipeline_mode<synchronous>, transform_indices = @transform_33, window_bounds = array<i64: 1, 48>}, {pipeline_mode = #tpu.pipeline_mode<synchronous>, transform_indices = @transform_34, window_bounds = array<i64: 5, 64, 32>}, {pipeline_mode = #tpu.pipeline_mode<synchronous>, transform_indices = @transform_35, window_bounds = array<i64: 240, 96>}, {pipeline_mode = #tpu.pipeline_mode<synchronous>, transform_indices = @transform_36, window_bounds = array<i64: 1, 96>}, {transform_indices = @transform_37, window_bounds = array<i64: 64, 96>}]} {
    %c0 = arith.constant 0 : index
    %c0_0 = arith.constant 0 : index
    %0 = vector.load %arg1[%c0, %c0_0] : memref<64x96xf32, #tpu.memory_space<vmem>>, vector<64x96xf32>
    %1 = arith.truncf %0 : vector<64x96xf32> to vector<64x96xbf16>
    %c0_1 = arith.constant 0 : index
    %c0_2 = arith.constant 0 : index
    %c0_3 = arith.constant 0 : index
    %2 = vector.load %arg2[%c0_1, %c0_2, %c0_3] : memref<5x32x64xbf16, #tpu.memory_space<vmem>>, vector<1x32x64xbf16>
    %3 = vector.shape_cast %2 : vector<1x32x64xbf16> to vector<32x64xbf16>
    %cst = arith.constant dense<0.000000e+00> : vector<32x96xf32>
    %4 = tpu.matmul %3, %1, %cst {dimension_numbers = #tpu.dot_dimension_numbers<[1], [0], [0], [1], [0, 0, 1, 1], [], []>} : vector<32x64xbf16>, vector<64x96xbf16>, vector<32x96xf32> -> vector<32x96xf32>
    %5 = arith.truncf %4 : vector<32x96xf32> to vector<32x96xbf16>
    %c1 = arith.constant 1 : index
    %c0_4 = arith.constant 0 : index
    %c0_5 = arith.constant 0 : index
    %6 = vector.load %arg2[%c1, %c0_4, %c0_5] : memref<5x32x64xbf16, #tpu.memory_space<vmem>>, vector<1x32x64xbf16>
    %7 = vector.shape_cast %6 : vector<1x32x64xbf16> to vector<32x64xbf16>
    %cst_6 = arith.constant dense<0.000000e+00> : vector<32x96xf32>
    %8 = tpu.matmul %7, %1, %cst_6 {dimension_numbers = #tpu.dot_dimension_numbers<[1], [0], [0], [1], [0, 0, 1, 1], [], []>} : vector<32x64xbf16>, vector<64x96xbf16>, vector<32x96xf32> -> vector<32x96xf32>
    %9 = arith.truncf %8 : vector<32x96xf32> to vector<32x96xbf16>
    %c2 = arith.constant 2 : index
    %c0_7 = arith.constant 0 : index
    %c0_8 = arith.constant 0 : index
    %10 = vector.load %arg2[%c2, %c0_7, %c0_8] : memref<5x32x64xbf16, #tpu.memory_space<vmem>>, vector<1x32x64xbf16>
    %11 = vector.shape_cast %10 : vector<1x32x64xbf16> to vector<32x64xbf16>
    %cst_9 = arith.constant dense<0.000000e+00> : vector<32x96xf32>
    %12 = tpu.matmul %11, %1, %cst_9 {dimension_numbers = #tpu.dot_dimension_numbers<[1], [0], [0], [1], [0, 0, 1, 1], [], []>} : vector<32x64xbf16>, vector<64x96xbf16>, vector<32x96xf32> -> vector<32x96xf32>
    %13 = arith.truncf %12 : vector<32x96xf32> to vector<32x96xbf16>
    %c3 = arith.constant 3 : index
    %c0_10 = arith.constant 0 : index
    %c0_11 = arith.constant 0 : index
    %14 = vector.load %arg2[%c3, %c0_10, %c0_11] : memref<5x32x64xbf16, #tpu.memory_space<vmem>>, vector<1x32x64xbf16>
    %15 = vector.shape_cast %14 : vector<1x32x64xbf16> to vector<32x64xbf16>
    %cst_12 = arith.constant dense<0.000000e+00> : vector<32x96xf32>
    %16 = tpu.matmul %15, %1, %cst_12 {dimension_numbers = #tpu.dot_dimension_numbers<[1], [0], [0], [1], [0, 0, 1, 1], [], []>} : vector<32x64xbf16>, vector<64x96xbf16>, vector<32x96xf32> -> vector<32x96xf32>
    %17 = arith.truncf %16 : vector<32x96xf32> to vector<32x96xbf16>
    %c4 = arith.constant 4 : index
    %c0_13 = arith.constant 0 : index
    %c0_14 = arith.constant 0 : index
    %18 = vector.load %arg2[%c4, %c0_13, %c0_14] : memref<5x32x64xbf16, #tpu.memory_space<vmem>>, vector<1x32x64xbf16>
    %19 = vector.shape_cast %18 : vector<1x32x64xbf16> to vector<32x64xbf16>
    %cst_15 = arith.constant dense<0.000000e+00> : vector<32x96xf32>
    %20 = tpu.matmul %19, %1, %cst_15 {dimension_numbers = #tpu.dot_dimension_numbers<[1], [0], [0], [1], [0, 0, 1, 1], [], []>} : vector<32x64xbf16>, vector<64x96xbf16>, vector<32x96xf32> -> vector<32x96xf32>
    %21 = arith.truncf %20 : vector<32x96xf32> to vector<32x96xbf16>
    %22 = tpu.concatenate %5, %9, %13, %17, %21 in 1 : vector<32x96xbf16>, vector<32x96xbf16>, vector<32x96xbf16>, vector<32x96xbf16>, vector<32x96xbf16> -> vector<32x480xbf16>
    %c0_16 = arith.constant 0 : index
    %c0_17 = arith.constant 0 : index
    %23 = vector.load %arg3[%c0_16, %c0_17] : memref<480x48xbf16, #tpu.memory_space<vmem>>, vector<480x48xbf16>
    %cst_18 = arith.constant dense<0.000000e+00> : vector<32x48xf32>
    %24 = tpu.matmul %22, %23, %cst_18 {dimension_numbers = #tpu.dot_dimension_numbers<[1], [0], [0], [1], [0, 0, 1, 1], [], []>} : vector<32x480xbf16>, vector<480x48xbf16>, vector<32x48xf32> -> vector<32x48xf32>
    %c0_19 = arith.constant 0 : index
    %c0_20 = arith.constant 0 : index
    %25 = vector.load %arg4[%c0_19, %c0_20] : memref<1x48xf32, #tpu.memory_space<vmem>>, vector<1x48xf32>
    %26 = vector.broadcast %25 : vector<1x48xf32> to vector<32x48xf32>
    %27 = arith.addf %24, %26 : vector<32x48xf32>
    %cst_21 = arith.constant 0.000000e+00 : f32
    %28 = vector.broadcast %cst_21 : f32 to vector<32x48xf32>
    %29 = arith.cmpf oge, %27, %28 : vector<32x48xf32>
    %cst_22 = arith.constant 0.00999999977 : f32
    %30 = vector.broadcast %cst_22 : f32 to vector<32x48xf32>
    %31 = arith.mulf %30, %27 : vector<32x48xf32>
    %32 = arith.select %29, %27, %31 : vector<32x48xi1>, vector<32x48xf32>
    %33 = arith.truncf %32 : vector<32x48xf32> to vector<32x48xbf16>
    %c0_23 = arith.constant 0 : index
    %c0_24 = arith.constant 0 : index
    %c0_25 = arith.constant 0 : index
    %34 = vector.load %arg5[%c0_23, %c0_24, %c0_25] : memref<5x32x32xbf16, #tpu.memory_space<vmem>>, vector<1x32x32xbf16>
    %35 = vector.shape_cast %34 : vector<1x32x32xbf16> to vector<32x32xbf16>
    %cst_26 = arith.constant dense<0.000000e+00> : vector<32x48xf32>
    %36 = tpu.matmul %35, %33, %cst_26 {dimension_numbers = #tpu.dot_dimension_numbers<[1], [0], [0], [1], [0, 0, 1, 1], [], []>} : vector<32x32xbf16>, vector<32x48xbf16>, vector<32x48xf32> -> vector<32x48xf32>
    %37 = arith.truncf %36 : vector<32x48xf32> to vector<32x48xbf16>
    %c1_27 = arith.constant 1 : index
    %c0_28 = arith.constant 0 : index
    %c0_29 = arith.constant 0 : index
    %38 = vector.load %arg5[%c1_27, %c0_28, %c0_29] : memref<5x32x32xbf16, #tpu.memory_space<vmem>>, vector<1x32x32xbf16>
    %39 = vector.shape_cast %38 : vector<1x32x32xbf16> to vector<32x32xbf16>
    %cst_30 = arith.constant dense<0.000000e+00> : vector<32x48xf32>
    %40 = tpu.matmul %39, %33, %cst_30 {dimension_numbers = #tpu.dot_dimension_numbers<[1], [0], [0], [1], [0, 0, 1, 1], [], []>} : vector<32x32xbf16>, vector<32x48xbf16>, vector<32x48xf32> -> vector<32x48xf32>
    %41 = arith.truncf %40 : vector<32x48xf32> to vector<32x48xbf16>
    %c2_31 = arith.constant 2 : index
    %c0_32 = arith.constant 0 : index
    %c0_33 = arith.constant 0 : index
    %42 = vector.load %arg5[%c2_31, %c0_32, %c0_33] : memref<5x32x32xbf16, #tpu.memory_space<vmem>>, vector<1x32x32xbf16>
    %43 = vector.shape_cast %42 : vector<1x32x32xbf16> to vector<32x32xbf16>
    %cst_34 = arith.constant dense<0.000000e+00> : vector<32x48xf32>
    %44 = tpu.matmul %43, %33, %cst_34 {dimension_numbers = #tpu.dot_dimension_numbers<[1], [0], [0], [1], [0, 0, 1, 1], [], []>} : vector<32x32xbf16>, vector<32x48xbf16>, vector<32x48xf32> -> vector<32x48xf32>
    %45 = arith.truncf %44 : vector<32x48xf32> to vector<32x48xbf16>
    %c3_35 = arith.constant 3 : index
    %c0_36 = arith.constant 0 : index
    %c0_37 = arith.constant 0 : index
    %46 = vector.load %arg5[%c3_35, %c0_36, %c0_37] : memref<5x32x32xbf16, #tpu.memory_space<vmem>>, vector<1x32x32xbf16>
    %47 = vector.shape_cast %46 : vector<1x32x32xbf16> to vector<32x32xbf16>
    %cst_38 = arith.constant dense<0.000000e+00> : vector<32x48xf32>
    %48 = tpu.matmul %47, %33, %cst_38 {dimension_numbers = #tpu.dot_dimension_numbers<[1], [0], [0], [1], [0, 0, 1, 1], [], []>} : vector<32x32xbf16>, vector<32x48xbf16>, vector<32x48xf32> -> vector<32x48xf32>
    %49 = arith.truncf %48 : vector<32x48xf32> to vector<32x48xbf16>
    %c4_39 = arith.constant 4 : index
    %c0_40 = arith.constant 0 : index
    %c0_41 = arith.constant 0 : index
    %50 = vector.load %arg5[%c4_39, %c0_40, %c0_41] : memref<5x32x32xbf16, #tpu.memory_space<vmem>>, vector<1x32x32xbf16>
    %51 = vector.shape_cast %50 : vector<1x32x32xbf16> to vector<32x32xbf16>
    %cst_42 = arith.constant dense<0.000000e+00> : vector<32x48xf32>
    %52 = tpu.matmul %51, %33, %cst_42 {dimension_numbers = #tpu.dot_dimension_numbers<[1], [0], [0], [1], [0, 0, 1, 1], [], []>} : vector<32x32xbf16>, vector<32x48xbf16>, vector<32x48xf32> -> vector<32x48xf32>
    %53 = arith.truncf %52 : vector<32x48xf32> to vector<32x48xbf16>
    %54 = tpu.concatenate %37, %41, %45, %49, %53 in 1 : vector<32x48xbf16>, vector<32x48xbf16>, vector<32x48xbf16>, vector<32x48xbf16>, vector<32x48xbf16> -> vector<32x240xbf16>
    %c0_43 = arith.constant 0 : index
    %c0_44 = arith.constant 0 : index
    %55 = vector.load %arg6[%c0_43, %c0_44] : memref<240x128xbf16, #tpu.memory_space<vmem>>, vector<240x128xbf16>
    %cst_45 = arith.constant dense<0.000000e+00> : vector<32x128xf32>
    %56 = tpu.matmul %54, %55, %cst_45 {dimension_numbers = #tpu.dot_dimension_numbers<[1], [0], [0], [1], [0, 0, 1, 1], [], []>} : vector<32x240xbf16>, vector<240x128xbf16>, vector<32x128xf32> -> vector<32x128xf32>
    %c0_46 = arith.constant 0 : index
    %c0_47 = arith.constant 0 : index
    %57 = vector.load %arg7[%c0_46, %c0_47] : memref<1x128xf32, #tpu.memory_space<vmem>>, vector<1x128xf32>
    %58 = vector.broadcast %57 : vector<1x128xf32> to vector<32x128xf32>
    %59 = arith.addf %56, %58 : vector<32x128xf32>
    %cst_48 = arith.constant 0.000000e+00 : f32
    %60 = vector.broadcast %cst_48 : f32 to vector<32x128xf32>
    %61 = arith.cmpf oge, %59, %60 : vector<32x128xf32>
    %cst_49 = arith.constant 0.00999999977 : f32
    %62 = vector.broadcast %cst_49 : f32 to vector<32x128xf32>
    %63 = arith.mulf %62, %59 : vector<32x128xf32>
    %64 = arith.select %61, %59, %63 : vector<32x128xi1>, vector<32x128xf32>
    %65 = arith.truncf %64 : vector<32x128xf32> to vector<32x128xbf16>
    %c0_50 = arith.constant 0 : index
    %c0_51 = arith.constant 0 : index
    %c0_52 = arith.constant 0 : index
    %66 = vector.load %arg8[%c0_50, %c0_51, %c0_52] : memref<5x16x32xbf16, #tpu.memory_space<vmem>>, vector<1x16x32xbf16>
    %67 = vector.shape_cast %66 : vector<1x16x32xbf16> to vector<16x32xbf16>
    %cst_53 = arith.constant dense<0.000000e+00> : vector<16x128xf32>
    %68 = tpu.matmul %67, %65, %cst_53 {dimension_numbers = #tpu.dot_dimension_numbers<[1], [0], [0], [1], [0, 0, 1, 1], [], []>} : vector<16x32xbf16>, vector<32x128xbf16>, vector<16x128xf32> -> vector<16x128xf32>
    %69 = arith.truncf %68 : vector<16x128xf32> to vector<16x128xbf16>
    %c1_54 = arith.constant 1 : index
    %c0_55 = arith.constant 0 : index
    %c0_56 = arith.constant 0 : index
    %70 = vector.load %arg8[%c1_54, %c0_55, %c0_56] : memref<5x16x32xbf16, #tpu.memory_space<vmem>>, vector<1x16x32xbf16>
    %71 = vector.shape_cast %70 : vector<1x16x32xbf16> to vector<16x32xbf16>
    %cst_57 = arith.constant dense<0.000000e+00> : vector<16x128xf32>
    %72 = tpu.matmul %71, %65, %cst_57 {dimension_numbers = #tpu.dot_dimension_numbers<[1], [0], [0], [1], [0, 0, 1, 1], [], []>} : vector<16x32xbf16>, vector<32x128xbf16>, vector<16x128xf32> -> vector<16x128xf32>
    %73 = arith.truncf %72 : vector<16x128xf32> to vector<16x128xbf16>
    %c2_58 = arith.constant 2 : index
    %c0_59 = arith.constant 0 : index
    %c0_60 = arith.constant 0 : index
    %74 = vector.load %arg8[%c2_58, %c0_59, %c0_60] : memref<5x16x32xbf16, #tpu.memory_space<vmem>>, vector<1x16x32xbf16>
    %75 = vector.shape_cast %74 : vector<1x16x32xbf16> to vector<16x32xbf16>
    %cst_61 = arith.constant dense<0.000000e+00> : vector<16x128xf32>
    %76 = tpu.matmul %75, %65, %cst_61 {dimension_numbers = #tpu.dot_dimension_numbers<[1], [0], [0], [1], [0, 0, 1, 1], [], []>} : vector<16x32xbf16>, vector<32x128xbf16>, vector<16x128xf32> -> vector<16x128xf32>
    %77 = arith.truncf %76 : vector<16x128xf32> to vector<16x128xbf16>
    %c3_62 = arith.constant 3 : index
    %c0_63 = arith.constant 0 : index
    %c0_64 = arith.constant 0 : index
    %78 = vector.load %arg8[%c3_62, %c0_63, %c0_64] : memref<5x16x32xbf16, #tpu.memory_space<vmem>>, vector<1x16x32xbf16>
    %79 = vector.shape_cast %78 : vector<1x16x32xbf16> to vector<16x32xbf16>
    %cst_65 = arith.constant dense<0.000000e+00> : vector<16x128xf32>
    %80 = tpu.matmul %79, %65, %cst_65 {dimension_numbers = #tpu.dot_dimension_numbers<[1], [0], [0], [1], [0, 0, 1, 1], [], []>} : vector<16x32xbf16>, vector<32x128xbf16>, vector<16x128xf32> -> vector<16x128xf32>
    %81 = arith.truncf %80 : vector<16x128xf32> to vector<16x128xbf16>
    %c4_66 = arith.constant 4 : index
    %c0_67 = arith.constant 0 : index
    %c0_68 = arith.constant 0 : index
    %82 = vector.load %arg8[%c4_66, %c0_67, %c0_68] : memref<5x16x32xbf16, #tpu.memory_space<vmem>>, vector<1x16x32xbf16>
    %83 = vector.shape_cast %82 : vector<1x16x32xbf16> to vector<16x32xbf16>
    %cst_69 = arith.constant dense<0.000000e+00> : vector<16x128xf32>
    %84 = tpu.matmul %83, %65, %cst_69 {dimension_numbers = #tpu.dot_dimension_numbers<[1], [0], [0], [1], [0, 0, 1, 1], [], []>} : vector<16x32xbf16>, vector<32x128xbf16>, vector<16x128xf32> -> vector<16x128xf32>
    %85 = arith.truncf %84 : vector<16x128xf32> to vector<16x128xbf16>
    %86 = tpu.concatenate %69, %73, %77, %81, %85 in 1 : vector<16x128xbf16>, vector<16x128xbf16>, vector<16x128xbf16>, vector<16x128xbf16>, vector<16x128xbf16> -> vector<16x640xbf16>
    %c0_70 = arith.constant 0 : index
    %c0_71 = arith.constant 0 : index
    %87 = vector.load %arg9[%c0_70, %c0_71] : memref<640x64xbf16, #tpu.memory_space<vmem>>, vector<640x64xbf16>
    %cst_72 = arith.constant dense<0.000000e+00> : vector<16x64xf32>
    %88 = tpu.matmul %86, %87, %cst_72 {dimension_numbers = #tpu.dot_dimension_numbers<[1], [0], [0], [1], [0, 0, 1, 1], [], []>} : vector<16x640xbf16>, vector<640x64xbf16>, vector<16x64xf32> -> vector<16x64xf32>
    %c0_73 = arith.constant 0 : index
    %c0_74 = arith.constant 0 : index
    %89 = vector.load %arg10[%c0_73, %c0_74] : memref<1x64xf32, #tpu.memory_space<vmem>>, vector<1x64xf32>
    %90 = vector.broadcast %89 : vector<1x64xf32> to vector<16x64xf32>
    %91 = arith.addf %88, %90 : vector<16x64xf32>
    %cst_75 = arith.constant 0.000000e+00 : f32
    %92 = vector.broadcast %cst_75 : f32 to vector<16x64xf32>
    %93 = arith.cmpf oge, %91, %92 : vector<16x64xf32>
    %cst_76 = arith.constant 0.00999999977 : f32
    %94 = vector.broadcast %cst_76 : f32 to vector<16x64xf32>
    %95 = arith.mulf %94, %91 : vector<16x64xf32>
    %96 = arith.select %93, %91, %95 : vector<16x64xi1>, vector<16x64xf32>
    %97 = arith.truncf %96 : vector<16x64xf32> to vector<16x64xbf16>
    %c0_77 = arith.constant 0 : index
    %c0_78 = arith.constant 0 : index
    %c0_79 = arith.constant 0 : index
    %98 = vector.load %arg11[%c0_77, %c0_78, %c0_79] : memref<5x16x16xbf16, #tpu.memory_space<vmem>>, vector<1x16x16xbf16>
    %99 = vector.shape_cast %98 : vector<1x16x16xbf16> to vector<16x16xbf16>
    %cst_80 = arith.constant dense<0.000000e+00> : vector<16x64xf32>
    %100 = tpu.matmul %99, %97, %cst_80 {dimension_numbers = #tpu.dot_dimension_numbers<[1], [0], [0], [1], [0, 0, 1, 1], [], []>} : vector<16x16xbf16>, vector<16x64xbf16>, vector<16x64xf32> -> vector<16x64xf32>
    %101 = arith.truncf %100 : vector<16x64xf32> to vector<16x64xbf16>
    %c1_81 = arith.constant 1 : index
    %c0_82 = arith.constant 0 : index
    %c0_83 = arith.constant 0 : index
    %102 = vector.load %arg11[%c1_81, %c0_82, %c0_83] : memref<5x16x16xbf16, #tpu.memory_space<vmem>>, vector<1x16x16xbf16>
    %103 = vector.shape_cast %102 : vector<1x16x16xbf16> to vector<16x16xbf16>
    %cst_84 = arith.constant dense<0.000000e+00> : vector<16x64xf32>
    %104 = tpu.matmul %103, %97, %cst_84 {dimension_numbers = #tpu.dot_dimension_numbers<[1], [0], [0], [1], [0, 0, 1, 1], [], []>} : vector<16x16xbf16>, vector<16x64xbf16>, vector<16x64xf32> -> vector<16x64xf32>
    %105 = arith.truncf %104 : vector<16x64xf32> to vector<16x64xbf16>
    %c2_85 = arith.constant 2 : index
    %c0_86 = arith.constant 0 : index
    %c0_87 = arith.constant 0 : index
    %106 = vector.load %arg11[%c2_85, %c0_86, %c0_87] : memref<5x16x16xbf16, #tpu.memory_space<vmem>>, vector<1x16x16xbf16>
    %107 = vector.shape_cast %106 : vector<1x16x16xbf16> to vector<16x16xbf16>
    %cst_88 = arith.constant dense<0.000000e+00> : vector<16x64xf32>
    %108 = tpu.matmul %107, %97, %cst_88 {dimension_numbers = #tpu.dot_dimension_numbers<[1], [0], [0], [1], [0, 0, 1, 1], [], []>} : vector<16x16xbf16>, vector<16x64xbf16>, vector<16x64xf32> -> vector<16x64xf32>
    %109 = arith.truncf %108 : vector<16x64xf32> to vector<16x64xbf16>
    %c3_89 = arith.constant 3 : index
    %c0_90 = arith.constant 0 : index
    %c0_91 = arith.constant 0 : index
    %110 = vector.load %arg11[%c3_89, %c0_90, %c0_91] : memref<5x16x16xbf16, #tpu.memory_space<vmem>>, vector<1x16x16xbf16>
    %111 = vector.shape_cast %110 : vector<1x16x16xbf16> to vector<16x16xbf16>
    %cst_92 = arith.constant dense<0.000000e+00> : vector<16x64xf32>
    %112 = tpu.matmul %111, %97, %cst_92 {dimension_numbers = #tpu.dot_dimension_numbers<[1], [0], [0], [1], [0, 0, 1, 1], [], []>} : vector<16x16xbf16>, vector<16x64xbf16>, vector<16x64xf32> -> vector<16x64xf32>
    %113 = arith.truncf %112 : vector<16x64xf32> to vector<16x64xbf16>
    %c4_93 = arith.constant 4 : index
    %c0_94 = arith.constant 0 : index
    %c0_95 = arith.constant 0 : index
    %114 = vector.load %arg11[%c4_93, %c0_94, %c0_95] : memref<5x16x16xbf16, #tpu.memory_space<vmem>>, vector<1x16x16xbf16>
    %115 = vector.shape_cast %114 : vector<1x16x16xbf16> to vector<16x16xbf16>
    %cst_96 = arith.constant dense<0.000000e+00> : vector<16x64xf32>
    %116 = tpu.matmul %115, %97, %cst_96 {dimension_numbers = #tpu.dot_dimension_numbers<[1], [0], [0], [1], [0, 0, 1, 1], [], []>} : vector<16x16xbf16>, vector<16x64xbf16>, vector<16x64xf32> -> vector<16x64xf32>
    %117 = arith.truncf %116 : vector<16x64xf32> to vector<16x64xbf16>
    %118 = tpu.concatenate %101, %105, %109, %113, %117 in 1 : vector<16x64xbf16>, vector<16x64xbf16>, vector<16x64xbf16>, vector<16x64xbf16>, vector<16x64xbf16> -> vector<16x320xbf16>
    %c0_97 = arith.constant 0 : index
    %c0_98 = arith.constant 0 : index
    %119 = vector.load %arg12[%c0_97, %c0_98] : memref<320x64xbf16, #tpu.memory_space<vmem>>, vector<320x64xbf16>
    %cst_99 = arith.constant dense<0.000000e+00> : vector<16x64xf32>
    %120 = tpu.matmul %118, %119, %cst_99 {dimension_numbers = #tpu.dot_dimension_numbers<[1], [0], [0], [1], [0, 0, 1, 1], [], []>} : vector<16x320xbf16>, vector<320x64xbf16>, vector<16x64xf32> -> vector<16x64xf32>
    %c0_100 = arith.constant 0 : index
    %c0_101 = arith.constant 0 : index
    %121 = vector.load %arg13[%c0_100, %c0_101] : memref<1x64xf32, #tpu.memory_space<vmem>>, vector<1x64xf32>
    %122 = vector.broadcast %121 : vector<1x64xf32> to vector<16x64xf32>
    %123 = arith.addf %120, %122 : vector<16x64xf32>
    %cst_102 = arith.constant 0.000000e+00 : f32
    %124 = vector.broadcast %cst_102 : f32 to vector<16x64xf32>
    %125 = arith.cmpf oge, %123, %124 : vector<16x64xf32>
    %cst_103 = arith.constant 0.00999999977 : f32
    %126 = vector.broadcast %cst_103 : f32 to vector<16x64xf32>
    %127 = arith.mulf %126, %123 : vector<16x64xf32>
    %128 = arith.select %125, %123, %127 : vector<16x64xi1>, vector<16x64xf32>
    %129 = arith.truncf %128 : vector<16x64xf32> to vector<16x64xbf16>
    %c0_104 = arith.constant 0 : index
    %c0_105 = arith.constant 0 : index
    %c0_106 = arith.constant 0 : index
    %130 = vector.load %arg14[%c0_104, %c0_105, %c0_106] : memref<5x8x16xbf16, #tpu.memory_space<vmem>>, vector<1x8x16xbf16>
    %131 = vector.shape_cast %130 : vector<1x8x16xbf16> to vector<8x16xbf16>
    %cst_107 = arith.constant dense<0.000000e+00> : vector<8x64xf32>
    %132 = tpu.matmul %131, %129, %cst_107 {dimension_numbers = #tpu.dot_dimension_numbers<[1], [0], [0], [1], [0, 0, 1, 1], [], []>} : vector<8x16xbf16>, vector<16x64xbf16>, vector<8x64xf32> -> vector<8x64xf32>
    %133 = arith.truncf %132 : vector<8x64xf32> to vector<8x64xbf16>
    %c1_108 = arith.constant 1 : index
    %c0_109 = arith.constant 0 : index
    %c0_110 = arith.constant 0 : index
    %134 = vector.load %arg14[%c1_108, %c0_109, %c0_110] : memref<5x8x16xbf16, #tpu.memory_space<vmem>>, vector<1x8x16xbf16>
    %135 = vector.shape_cast %134 : vector<1x8x16xbf16> to vector<8x16xbf16>
    %cst_111 = arith.constant dense<0.000000e+00> : vector<8x64xf32>
    %136 = tpu.matmul %135, %129, %cst_111 {dimension_numbers = #tpu.dot_dimension_numbers<[1], [0], [0], [1], [0, 0, 1, 1], [], []>} : vector<8x16xbf16>, vector<16x64xbf16>, vector<8x64xf32> -> vector<8x64xf32>
    %137 = arith.truncf %136 : vector<8x64xf32> to vector<8x64xbf16>
    %c2_112 = arith.constant 2 : index
    %c0_113 = arith.constant 0 : index
    %c0_114 = arith.constant 0 : index
    %138 = vector.load %arg14[%c2_112, %c0_113, %c0_114] : memref<5x8x16xbf16, #tpu.memory_space<vmem>>, vector<1x8x16xbf16>
    %139 = vector.shape_cast %138 : vector<1x8x16xbf16> to vector<8x16xbf16>
    %cst_115 = arith.constant dense<0.000000e+00> : vector<8x64xf32>
    %140 = tpu.matmul %139, %129, %cst_115 {dimension_numbers = #tpu.dot_dimension_numbers<[1], [0], [0], [1], [0, 0, 1, 1], [], []>} : vector<8x16xbf16>, vector<16x64xbf16>, vector<8x64xf32> -> vector<8x64xf32>
    %141 = arith.truncf %140 : vector<8x64xf32> to vector<8x64xbf16>
    %c3_116 = arith.constant 3 : index
    %c0_117 = arith.constant 0 : index
    %c0_118 = arith.constant 0 : index
    %142 = vector.load %arg14[%c3_116, %c0_117, %c0_118] : memref<5x8x16xbf16, #tpu.memory_space<vmem>>, vector<1x8x16xbf16>
    %143 = vector.shape_cast %142 : vector<1x8x16xbf16> to vector<8x16xbf16>
    %cst_119 = arith.constant dense<0.000000e+00> : vector<8x64xf32>
    %144 = tpu.matmul %143, %129, %cst_119 {dimension_numbers = #tpu.dot_dimension_numbers<[1], [0], [0], [1], [0, 0, 1, 1], [], []>} : vector<8x16xbf16>, vector<16x64xbf16>, vector<8x64xf32> -> vector<8x64xf32>
    %145 = arith.truncf %144 : vector<8x64xf32> to vector<8x64xbf16>
    %c4_120 = arith.constant 4 : index
    %c0_121 = arith.constant 0 : index
    %c0_122 = arith.constant 0 : index
    %146 = vector.load %arg14[%c4_120, %c0_121, %c0_122] : memref<5x8x16xbf16, #tpu.memory_space<vmem>>, vector<1x8x16xbf16>
    %147 = vector.shape_cast %146 : vector<1x8x16xbf16> to vector<8x16xbf16>
    %cst_123 = arith.constant dense<0.000000e+00> : vector<8x64xf32>
    %148 = tpu.matmul %147, %129, %cst_123 {dimension_numbers = #tpu.dot_dimension_numbers<[1], [0], [0], [1], [0, 0, 1, 1], [], []>} : vector<8x16xbf16>, vector<16x64xbf16>, vector<8x64xf32> -> vector<8x64xf32>
    %149 = arith.truncf %148 : vector<8x64xf32> to vector<8x64xbf16>
    %150 = tpu.concatenate %133, %137, %141, %145, %149 in 1 : vector<8x64xbf16>, vector<8x64xbf16>, vector<8x64xbf16>, vector<8x64xbf16>, vector<8x64xbf16> -> vector<8x320xbf16>
    %c0_124 = arith.constant 0 : index
    %c0_125 = arith.constant 0 : index
    %151 = vector.load %arg15[%c0_124, %c0_125] : memref<320x32xbf16, #tpu.memory_space<vmem>>, vector<320x32xbf16>
    %cst_126 = arith.constant dense<0.000000e+00> : vector<8x32xf32>
    %152 = tpu.matmul %150, %151, %cst_126 {dimension_numbers = #tpu.dot_dimension_numbers<[1], [0], [0], [1], [0, 0, 1, 1], [], []>} : vector<8x320xbf16>, vector<320x32xbf16>, vector<8x32xf32> -> vector<8x32xf32>
    %c0_127 = arith.constant 0 : index
    %c0_128 = arith.constant 0 : index
    %153 = vector.load %arg16[%c0_127, %c0_128] : memref<1x32xf32, #tpu.memory_space<vmem>>, vector<1x32xf32>
    %154 = vector.broadcast %153 : vector<1x32xf32> to vector<8x32xf32>
    %155 = arith.addf %152, %154 : vector<8x32xf32>
    %cst_129 = arith.constant 0.000000e+00 : f32
    %156 = vector.broadcast %cst_129 : f32 to vector<8x32xf32>
    %157 = arith.cmpf oge, %155, %156 : vector<8x32xf32>
    %cst_130 = arith.constant 0.00999999977 : f32
    %158 = vector.broadcast %cst_130 : f32 to vector<8x32xf32>
    %159 = arith.mulf %158, %155 : vector<8x32xf32>
    %160 = arith.select %157, %155, %159 : vector<8x32xi1>, vector<8x32xf32>
    %161 = arith.truncf %160 : vector<8x32xf32> to vector<8x32xbf16>
    %c0_131 = arith.constant 0 : index
    %c0_132 = arith.constant 0 : index
    %c0_133 = arith.constant 0 : index
    %162 = vector.load %arg17[%c0_131, %c0_132, %c0_133] : memref<5x8x8xbf16, #tpu.memory_space<vmem>>, vector<1x8x8xbf16>
    %163 = vector.shape_cast %162 : vector<1x8x8xbf16> to vector<8x8xbf16>
    %cst_134 = arith.constant dense<0.000000e+00> : vector<8x32xf32>
    %164 = tpu.matmul %163, %161, %cst_134 {dimension_numbers = #tpu.dot_dimension_numbers<[1], [0], [0], [1], [0, 0, 1, 1], [], []>} : vector<8x8xbf16>, vector<8x32xbf16>, vector<8x32xf32> -> vector<8x32xf32>
    %165 = arith.truncf %164 : vector<8x32xf32> to vector<8x32xbf16>
    %c1_135 = arith.constant 1 : index
    %c0_136 = arith.constant 0 : index
    %c0_137 = arith.constant 0 : index
    %166 = vector.load %arg17[%c1_135, %c0_136, %c0_137] : memref<5x8x8xbf16, #tpu.memory_space<vmem>>, vector<1x8x8xbf16>
    %167 = vector.shape_cast %166 : vector<1x8x8xbf16> to vector<8x8xbf16>
    %cst_138 = arith.constant dense<0.000000e+00> : vector<8x32xf32>
    %168 = tpu.matmul %167, %161, %cst_138 {dimension_numbers = #tpu.dot_dimension_numbers<[1], [0], [0], [1], [0, 0, 1, 1], [], []>} : vector<8x8xbf16>, vector<8x32xbf16>, vector<8x32xf32> -> vector<8x32xf32>
    %169 = arith.truncf %168 : vector<8x32xf32> to vector<8x32xbf16>
    %c2_139 = arith.constant 2 : index
    %c0_140 = arith.constant 0 : index
    %c0_141 = arith.constant 0 : index
    %170 = vector.load %arg17[%c2_139, %c0_140, %c0_141] : memref<5x8x8xbf16, #tpu.memory_space<vmem>>, vector<1x8x8xbf16>
    %171 = vector.shape_cast %170 : vector<1x8x8xbf16> to vector<8x8xbf16>
    %cst_142 = arith.constant dense<0.000000e+00> : vector<8x32xf32>
    %172 = tpu.matmul %171, %161, %cst_142 {dimension_numbers = #tpu.dot_dimension_numbers<[1], [0], [0], [1], [0, 0, 1, 1], [], []>} : vector<8x8xbf16>, vector<8x32xbf16>, vector<8x32xf32> -> vector<8x32xf32>
    %173 = arith.truncf %172 : vector<8x32xf32> to vector<8x32xbf16>
    %c3_143 = arith.constant 3 : index
    %c0_144 = arith.constant 0 : index
    %c0_145 = arith.constant 0 : index
    %174 = vector.load %arg17[%c3_143, %c0_144, %c0_145] : memref<5x8x8xbf16, #tpu.memory_space<vmem>>, vector<1x8x8xbf16>
    %175 = vector.shape_cast %174 : vector<1x8x8xbf16> to vector<8x8xbf16>
    %cst_146 = arith.constant dense<0.000000e+00> : vector<8x32xf32>
    %176 = tpu.matmul %175, %161, %cst_146 {dimension_numbers = #tpu.dot_dimension_numbers<[1], [0], [0], [1], [0, 0, 1, 1], [], []>} : vector<8x8xbf16>, vector<8x32xbf16>, vector<8x32xf32> -> vector<8x32xf32>
    %177 = arith.truncf %176 : vector<8x32xf32> to vector<8x32xbf16>
    %c4_147 = arith.constant 4 : index
    %c0_148 = arith.constant 0 : index
    %c0_149 = arith.constant 0 : index
    %178 = vector.load %arg17[%c4_147, %c0_148, %c0_149] : memref<5x8x8xbf16, #tpu.memory_space<vmem>>, vector<1x8x8xbf16>
    %179 = vector.shape_cast %178 : vector<1x8x8xbf16> to vector<8x8xbf16>
    %cst_150 = arith.constant dense<0.000000e+00> : vector<8x32xf32>
    %180 = tpu.matmul %179, %161, %cst_150 {dimension_numbers = #tpu.dot_dimension_numbers<[1], [0], [0], [1], [0, 0, 1, 1], [], []>} : vector<8x8xbf16>, vector<8x32xbf16>, vector<8x32xf32> -> vector<8x32xf32>
    %181 = arith.truncf %180 : vector<8x32xf32> to vector<8x32xbf16>
    %182 = tpu.concatenate %165, %169, %173, %177, %181 in 1 : vector<8x32xbf16>, vector<8x32xbf16>, vector<8x32xbf16>, vector<8x32xbf16>, vector<8x32xbf16> -> vector<8x160xbf16>
    %c0_151 = arith.constant 0 : index
    %c0_152 = arith.constant 0 : index
    %183 = vector.load %arg18[%c0_151, %c0_152] : memref<160x16xbf16, #tpu.memory_space<vmem>>, vector<160x16xbf16>
    %cst_153 = arith.constant dense<0.000000e+00> : vector<8x16xf32>
    %184 = tpu.matmul %182, %183, %cst_153 {dimension_numbers = #tpu.dot_dimension_numbers<[1], [0], [0], [1], [0, 0, 1, 1], [], []>} : vector<8x160xbf16>, vector<160x16xbf16>, vector<8x16xf32> -> vector<8x16xf32>
    %c0_154 = arith.constant 0 : index
    %c0_155 = arith.constant 0 : index
    %185 = vector.load %arg19[%c0_154, %c0_155] : memref<1x16xf32, #tpu.memory_space<vmem>>, vector<1x16xf32>
    %186 = vector.broadcast %185 : vector<1x16xf32> to vector<8x16xf32>
    %187 = arith.addf %184, %186 : vector<8x16xf32>
    %cst_156 = arith.constant 0.000000e+00 : f32
    %188 = vector.broadcast %cst_156 : f32 to vector<8x16xf32>
    %189 = arith.cmpf oge, %187, %188 : vector<8x16xf32>
    %cst_157 = arith.constant 0.00999999977 : f32
    %190 = vector.broadcast %cst_157 : f32 to vector<8x16xf32>
    %191 = arith.mulf %190, %187 : vector<8x16xf32>
    %192 = arith.select %189, %187, %191 : vector<8x16xi1>, vector<8x16xf32>
    %193 = arith.truncf %192 : vector<8x16xf32> to vector<8x16xbf16>
    %c0_158 = arith.constant 0 : index
    %c0_159 = arith.constant 0 : index
    %c0_160 = arith.constant 0 : index
    %194 = vector.load %arg20[%c0_158, %c0_159, %c0_160] : memref<5x8x8xbf16, #tpu.memory_space<vmem>>, vector<1x8x8xbf16>
    %195 = vector.shape_cast %194 : vector<1x8x8xbf16> to vector<8x8xbf16>
    %cst_161 = arith.constant dense<0.000000e+00> : vector<8x16xf32>
    %196 = tpu.matmul %195, %193, %cst_161 {dimension_numbers = #tpu.dot_dimension_numbers<[1], [0], [0], [1], [0, 0, 1, 1], [], []>} : vector<8x8xbf16>, vector<8x16xbf16>, vector<8x16xf32> -> vector<8x16xf32>
    %197 = arith.truncf %196 : vector<8x16xf32> to vector<8x16xbf16>
    %c1_162 = arith.constant 1 : index
    %c0_163 = arith.constant 0 : index
    %c0_164 = arith.constant 0 : index
    %198 = vector.load %arg20[%c1_162, %c0_163, %c0_164] : memref<5x8x8xbf16, #tpu.memory_space<vmem>>, vector<1x8x8xbf16>
    %199 = vector.shape_cast %198 : vector<1x8x8xbf16> to vector<8x8xbf16>
    %cst_165 = arith.constant dense<0.000000e+00> : vector<8x16xf32>
    %200 = tpu.matmul %199, %193, %cst_165 {dimension_numbers = #tpu.dot_dimension_numbers<[1], [0], [0], [1], [0, 0, 1, 1], [], []>} : vector<8x8xbf16>, vector<8x16xbf16>, vector<8x16xf32> -> vector<8x16xf32>
    %201 = arith.truncf %200 : vector<8x16xf32> to vector<8x16xbf16>
    %c2_166 = arith.constant 2 : index
    %c0_167 = arith.constant 0 : index
    %c0_168 = arith.constant 0 : index
    %202 = vector.load %arg20[%c2_166, %c0_167, %c0_168] : memref<5x8x8xbf16, #tpu.memory_space<vmem>>, vector<1x8x8xbf16>
    %203 = vector.shape_cast %202 : vector<1x8x8xbf16> to vector<8x8xbf16>
    %cst_169 = arith.constant dense<0.000000e+00> : vector<8x16xf32>
    %204 = tpu.matmul %203, %193, %cst_169 {dimension_numbers = #tpu.dot_dimension_numbers<[1], [0], [0], [1], [0, 0, 1, 1], [], []>} : vector<8x8xbf16>, vector<8x16xbf16>, vector<8x16xf32> -> vector<8x16xf32>
    %205 = arith.truncf %204 : vector<8x16xf32> to vector<8x16xbf16>
    %c3_170 = arith.constant 3 : index
    %c0_171 = arith.constant 0 : index
    %c0_172 = arith.constant 0 : index
    %206 = vector.load %arg20[%c3_170, %c0_171, %c0_172] : memref<5x8x8xbf16, #tpu.memory_space<vmem>>, vector<1x8x8xbf16>
    %207 = vector.shape_cast %206 : vector<1x8x8xbf16> to vector<8x8xbf16>
    %cst_173 = arith.constant dense<0.000000e+00> : vector<8x16xf32>
    %208 = tpu.matmul %207, %193, %cst_173 {dimension_numbers = #tpu.dot_dimension_numbers<[1], [0], [0], [1], [0, 0, 1, 1], [], []>} : vector<8x8xbf16>, vector<8x16xbf16>, vector<8x16xf32> -> vector<8x16xf32>
    %209 = arith.truncf %208 : vector<8x16xf32> to vector<8x16xbf16>
    %c4_174 = arith.constant 4 : index
    %c0_175 = arith.constant 0 : index
    %c0_176 = arith.constant 0 : index
    %210 = vector.load %arg20[%c4_174, %c0_175, %c0_176] : memref<5x8x8xbf16, #tpu.memory_space<vmem>>, vector<1x8x8xbf16>
    %211 = vector.shape_cast %210 : vector<1x8x8xbf16> to vector<8x8xbf16>
    %cst_177 = arith.constant dense<0.000000e+00> : vector<8x16xf32>
    %212 = tpu.matmul %211, %193, %cst_177 {dimension_numbers = #tpu.dot_dimension_numbers<[1], [0], [0], [1], [0, 0, 1, 1], [], []>} : vector<8x8xbf16>, vector<8x16xbf16>, vector<8x16xf32> -> vector<8x16xf32>
    %213 = arith.truncf %212 : vector<8x16xf32> to vector<8x16xbf16>
    %214 = tpu.concatenate %197, %201, %205, %209, %213 in 1 : vector<8x16xbf16>, vector<8x16xbf16>, vector<8x16xbf16>, vector<8x16xbf16>, vector<8x16xbf16> -> vector<8x80xbf16>
    %c0_178 = arith.constant 0 : index
    %c0_179 = arith.constant 0 : index
    %215 = vector.load %arg21[%c0_178, %c0_179] : memref<80x32xbf16, #tpu.memory_space<vmem>>, vector<80x32xbf16>
    %cst_180 = arith.constant dense<0.000000e+00> : vector<8x32xf32>
    %216 = tpu.matmul %214, %215, %cst_180 {dimension_numbers = #tpu.dot_dimension_numbers<[1], [0], [0], [1], [0, 0, 1, 1], [], []>} : vector<8x80xbf16>, vector<80x32xbf16>, vector<8x32xf32> -> vector<8x32xf32>
    %c0_181 = arith.constant 0 : index
    %c0_182 = arith.constant 0 : index
    %217 = vector.load %arg22[%c0_181, %c0_182] : memref<1x32xf32, #tpu.memory_space<vmem>>, vector<1x32xf32>
    %218 = vector.broadcast %217 : vector<1x32xf32> to vector<8x32xf32>
    %219 = arith.addf %216, %218 : vector<8x32xf32>
    %cst_183 = arith.constant 0.000000e+00 : f32
    %220 = vector.broadcast %cst_183 : f32 to vector<8x32xf32>
    %221 = arith.cmpf oge, %219, %220 : vector<8x32xf32>
    %cst_184 = arith.constant 0.00999999977 : f32
    %222 = vector.broadcast %cst_184 : f32 to vector<8x32xf32>
    %223 = arith.mulf %222, %219 : vector<8x32xf32>
    %224 = arith.select %221, %219, %223 : vector<8x32xi1>, vector<8x32xf32>
    %225 = arith.truncf %224 : vector<8x32xf32> to vector<8x32xbf16>
    %c0_185 = arith.constant 0 : index
    %c0_186 = arith.constant 0 : index
    %c0_187 = arith.constant 0 : index
    %226 = vector.load %arg23[%c0_185, %c0_186, %c0_187] : memref<5x16x8xbf16, #tpu.memory_space<vmem>>, vector<1x16x8xbf16>
    %227 = vector.shape_cast %226 : vector<1x16x8xbf16> to vector<16x8xbf16>
    %cst_188 = arith.constant dense<0.000000e+00> : vector<16x32xf32>
    %228 = tpu.matmul %227, %225, %cst_188 {dimension_numbers = #tpu.dot_dimension_numbers<[1], [0], [0], [1], [0, 0, 1, 1], [], []>} : vector<16x8xbf16>, vector<8x32xbf16>, vector<16x32xf32> -> vector<16x32xf32>
    %229 = arith.truncf %228 : vector<16x32xf32> to vector<16x32xbf16>
    %c1_189 = arith.constant 1 : index
    %c0_190 = arith.constant 0 : index
    %c0_191 = arith.constant 0 : index
    %230 = vector.load %arg23[%c1_189, %c0_190, %c0_191] : memref<5x16x8xbf16, #tpu.memory_space<vmem>>, vector<1x16x8xbf16>
    %231 = vector.shape_cast %230 : vector<1x16x8xbf16> to vector<16x8xbf16>
    %cst_192 = arith.constant dense<0.000000e+00> : vector<16x32xf32>
    %232 = tpu.matmul %231, %225, %cst_192 {dimension_numbers = #tpu.dot_dimension_numbers<[1], [0], [0], [1], [0, 0, 1, 1], [], []>} : vector<16x8xbf16>, vector<8x32xbf16>, vector<16x32xf32> -> vector<16x32xf32>
    %233 = arith.truncf %232 : vector<16x32xf32> to vector<16x32xbf16>
    %c2_193 = arith.constant 2 : index
    %c0_194 = arith.constant 0 : index
    %c0_195 = arith.constant 0 : index
    %234 = vector.load %arg23[%c2_193, %c0_194, %c0_195] : memref<5x16x8xbf16, #tpu.memory_space<vmem>>, vector<1x16x8xbf16>
    %235 = vector.shape_cast %234 : vector<1x16x8xbf16> to vector<16x8xbf16>
    %cst_196 = arith.constant dense<0.000000e+00> : vector<16x32xf32>
    %236 = tpu.matmul %235, %225, %cst_196 {dimension_numbers = #tpu.dot_dimension_numbers<[1], [0], [0], [1], [0, 0, 1, 1], [], []>} : vector<16x8xbf16>, vector<8x32xbf16>, vector<16x32xf32> -> vector<16x32xf32>
    %237 = arith.truncf %236 : vector<16x32xf32> to vector<16x32xbf16>
    %c3_197 = arith.constant 3 : index
    %c0_198 = arith.constant 0 : index
    %c0_199 = arith.constant 0 : index
    %238 = vector.load %arg23[%c3_197, %c0_198, %c0_199] : memref<5x16x8xbf16, #tpu.memory_space<vmem>>, vector<1x16x8xbf16>
    %239 = vector.shape_cast %238 : vector<1x16x8xbf16> to vector<16x8xbf16>
    %cst_200 = arith.constant dense<0.000000e+00> : vector<16x32xf32>
    %240 = tpu.matmul %239, %225, %cst_200 {dimension_numbers = #tpu.dot_dimension_numbers<[1], [0], [0], [1], [0, 0, 1, 1], [], []>} : vector<16x8xbf16>, vector<8x32xbf16>, vector<16x32xf32> -> vector<16x32xf32>
    %241 = arith.truncf %240 : vector<16x32xf32> to vector<16x32xbf16>
    %c4_201 = arith.constant 4 : index
    %c0_202 = arith.constant 0 : index
    %c0_203 = arith.constant 0 : index
    %242 = vector.load %arg23[%c4_201, %c0_202, %c0_203] : memref<5x16x8xbf16, #tpu.memory_space<vmem>>, vector<1x16x8xbf16>
    %243 = vector.shape_cast %242 : vector<1x16x8xbf16> to vector<16x8xbf16>
    %cst_204 = arith.constant dense<0.000000e+00> : vector<16x32xf32>
    %244 = tpu.matmul %243, %225, %cst_204 {dimension_numbers = #tpu.dot_dimension_numbers<[1], [0], [0], [1], [0, 0, 1, 1], [], []>} : vector<16x8xbf16>, vector<8x32xbf16>, vector<16x32xf32> -> vector<16x32xf32>
    %245 = arith.truncf %244 : vector<16x32xf32> to vector<16x32xbf16>
    %246 = tpu.concatenate %229, %233, %237, %241, %245 in 1 : vector<16x32xbf16>, vector<16x32xbf16>, vector<16x32xbf16>, vector<16x32xbf16>, vector<16x32xbf16> -> vector<16x160xbf16>
    %c0_205 = arith.constant 0 : index
    %c0_206 = arith.constant 0 : index
    %247 = vector.load %arg24[%c0_205, %c0_206] : memref<160x64xbf16, #tpu.memory_space<vmem>>, vector<160x64xbf16>
    %cst_207 = arith.constant dense<0.000000e+00> : vector<16x64xf32>
    %248 = tpu.matmul %246, %247, %cst_207 {dimension_numbers = #tpu.dot_dimension_numbers<[1], [0], [0], [1], [0, 0, 1, 1], [], []>} : vector<16x160xbf16>, vector<160x64xbf16>, vector<16x64xf32> -> vector<16x64xf32>
    %c0_208 = arith.constant 0 : index
    %c0_209 = arith.constant 0 : index
    %249 = vector.load %arg25[%c0_208, %c0_209] : memref<1x64xf32, #tpu.memory_space<vmem>>, vector<1x64xf32>
    %250 = vector.broadcast %249 : vector<1x64xf32> to vector<16x64xf32>
    %251 = arith.addf %248, %250 : vector<16x64xf32>
    %cst_210 = arith.constant 0.000000e+00 : f32
    %252 = vector.broadcast %cst_210 : f32 to vector<16x64xf32>
    %253 = arith.cmpf oge, %251, %252 : vector<16x64xf32>
    %cst_211 = arith.constant 0.00999999977 : f32
    %254 = vector.broadcast %cst_211 : f32 to vector<16x64xf32>
    %255 = arith.mulf %254, %251 : vector<16x64xf32>
    %256 = arith.select %253, %251, %255 : vector<16x64xi1>, vector<16x64xf32>
    %257 = arith.truncf %256 : vector<16x64xf32> to vector<16x64xbf16>
    %c0_212 = arith.constant 0 : index
    %c0_213 = arith.constant 0 : index
    %c0_214 = arith.constant 0 : index
    %258 = vector.load %arg26[%c0_212, %c0_213, %c0_214] : memref<5x16x16xbf16, #tpu.memory_space<vmem>>, vector<1x16x16xbf16>
    %259 = vector.shape_cast %258 : vector<1x16x16xbf16> to vector<16x16xbf16>
    %cst_215 = arith.constant dense<0.000000e+00> : vector<16x64xf32>
    %260 = tpu.matmul %259, %257, %cst_215 {dimension_numbers = #tpu.dot_dimension_numbers<[1], [0], [0], [1], [0, 0, 1, 1], [], []>} : vector<16x16xbf16>, vector<16x64xbf16>, vector<16x64xf32> -> vector<16x64xf32>
    %261 = arith.truncf %260 : vector<16x64xf32> to vector<16x64xbf16>
    %c1_216 = arith.constant 1 : index
    %c0_217 = arith.constant 0 : index
    %c0_218 = arith.constant 0 : index
    %262 = vector.load %arg26[%c1_216, %c0_217, %c0_218] : memref<5x16x16xbf16, #tpu.memory_space<vmem>>, vector<1x16x16xbf16>
    %263 = vector.shape_cast %262 : vector<1x16x16xbf16> to vector<16x16xbf16>
    %cst_219 = arith.constant dense<0.000000e+00> : vector<16x64xf32>
    %264 = tpu.matmul %263, %257, %cst_219 {dimension_numbers = #tpu.dot_dimension_numbers<[1], [0], [0], [1], [0, 0, 1, 1], [], []>} : vector<16x16xbf16>, vector<16x64xbf16>, vector<16x64xf32> -> vector<16x64xf32>
    %265 = arith.truncf %264 : vector<16x64xf32> to vector<16x64xbf16>
    %c2_220 = arith.constant 2 : index
    %c0_221 = arith.constant 0 : index
    %c0_222 = arith.constant 0 : index
    %266 = vector.load %arg26[%c2_220, %c0_221, %c0_222] : memref<5x16x16xbf16, #tpu.memory_space<vmem>>, vector<1x16x16xbf16>
    %267 = vector.shape_cast %266 : vector<1x16x16xbf16> to vector<16x16xbf16>
    %cst_223 = arith.constant dense<0.000000e+00> : vector<16x64xf32>
    %268 = tpu.matmul %267, %257, %cst_223 {dimension_numbers = #tpu.dot_dimension_numbers<[1], [0], [0], [1], [0, 0, 1, 1], [], []>} : vector<16x16xbf16>, vector<16x64xbf16>, vector<16x64xf32> -> vector<16x64xf32>
    %269 = arith.truncf %268 : vector<16x64xf32> to vector<16x64xbf16>
    %c3_224 = arith.constant 3 : index
    %c0_225 = arith.constant 0 : index
    %c0_226 = arith.constant 0 : index
    %270 = vector.load %arg26[%c3_224, %c0_225, %c0_226] : memref<5x16x16xbf16, #tpu.memory_space<vmem>>, vector<1x16x16xbf16>
    %271 = vector.shape_cast %270 : vector<1x16x16xbf16> to vector<16x16xbf16>
    %cst_227 = arith.constant dense<0.000000e+00> : vector<16x64xf32>
    %272 = tpu.matmul %271, %257, %cst_227 {dimension_numbers = #tpu.dot_dimension_numbers<[1], [0], [0], [1], [0, 0, 1, 1], [], []>} : vector<16x16xbf16>, vector<16x64xbf16>, vector<16x64xf32> -> vector<16x64xf32>
    %273 = arith.truncf %272 : vector<16x64xf32> to vector<16x64xbf16>
    %c4_228 = arith.constant 4 : index
    %c0_229 = arith.constant 0 : index
    %c0_230 = arith.constant 0 : index
    %274 = vector.load %arg26[%c4_228, %c0_229, %c0_230] : memref<5x16x16xbf16, #tpu.memory_space<vmem>>, vector<1x16x16xbf16>
    %275 = vector.shape_cast %274 : vector<1x16x16xbf16> to vector<16x16xbf16>
    %cst_231 = arith.constant dense<0.000000e+00> : vector<16x64xf32>
    %276 = tpu.matmul %275, %257, %cst_231 {dimension_numbers = #tpu.dot_dimension_numbers<[1], [0], [0], [1], [0, 0, 1, 1], [], []>} : vector<16x16xbf16>, vector<16x64xbf16>, vector<16x64xf32> -> vector<16x64xf32>
    %277 = arith.truncf %276 : vector<16x64xf32> to vector<16x64xbf16>
    %278 = tpu.concatenate %261, %265, %269, %273, %277 in 1 : vector<16x64xbf16>, vector<16x64xbf16>, vector<16x64xbf16>, vector<16x64xbf16>, vector<16x64xbf16> -> vector<16x320xbf16>
    %c0_232 = arith.constant 0 : index
    %c0_233 = arith.constant 0 : index
    %279 = vector.load %arg27[%c0_232, %c0_233] : memref<320x64xbf16, #tpu.memory_space<vmem>>, vector<320x64xbf16>
    %cst_234 = arith.constant dense<0.000000e+00> : vector<16x64xf32>
    %280 = tpu.matmul %278, %279, %cst_234 {dimension_numbers = #tpu.dot_dimension_numbers<[1], [0], [0], [1], [0, 0, 1, 1], [], []>} : vector<16x320xbf16>, vector<320x64xbf16>, vector<16x64xf32> -> vector<16x64xf32>
    %c0_235 = arith.constant 0 : index
    %c0_236 = arith.constant 0 : index
    %281 = vector.load %arg28[%c0_235, %c0_236] : memref<1x64xf32, #tpu.memory_space<vmem>>, vector<1x64xf32>
    %282 = vector.broadcast %281 : vector<1x64xf32> to vector<16x64xf32>
    %283 = arith.addf %280, %282 : vector<16x64xf32>
    %cst_237 = arith.constant 0.000000e+00 : f32
    %284 = vector.broadcast %cst_237 : f32 to vector<16x64xf32>
    %285 = arith.cmpf oge, %283, %284 : vector<16x64xf32>
    %cst_238 = arith.constant 0.00999999977 : f32
    %286 = vector.broadcast %cst_238 : f32 to vector<16x64xf32>
    %287 = arith.mulf %286, %283 : vector<16x64xf32>
    %288 = arith.select %285, %283, %287 : vector<16x64xi1>, vector<16x64xf32>
    %289 = arith.truncf %288 : vector<16x64xf32> to vector<16x64xbf16>
    %c0_239 = arith.constant 0 : index
    %c0_240 = arith.constant 0 : index
    %c0_241 = arith.constant 0 : index
    %290 = vector.load %arg29[%c0_239, %c0_240, %c0_241] : memref<5x32x16xbf16, #tpu.memory_space<vmem>>, vector<1x32x16xbf16>
    %291 = vector.shape_cast %290 : vector<1x32x16xbf16> to vector<32x16xbf16>
    %cst_242 = arith.constant dense<0.000000e+00> : vector<32x64xf32>
    %292 = tpu.matmul %291, %289, %cst_242 {dimension_numbers = #tpu.dot_dimension_numbers<[1], [0], [0], [1], [0, 0, 1, 1], [], []>} : vector<32x16xbf16>, vector<16x64xbf16>, vector<32x64xf32> -> vector<32x64xf32>
    %293 = arith.truncf %292 : vector<32x64xf32> to vector<32x64xbf16>
    %c1_243 = arith.constant 1 : index
    %c0_244 = arith.constant 0 : index
    %c0_245 = arith.constant 0 : index
    %294 = vector.load %arg29[%c1_243, %c0_244, %c0_245] : memref<5x32x16xbf16, #tpu.memory_space<vmem>>, vector<1x32x16xbf16>
    %295 = vector.shape_cast %294 : vector<1x32x16xbf16> to vector<32x16xbf16>
    %cst_246 = arith.constant dense<0.000000e+00> : vector<32x64xf32>
    %296 = tpu.matmul %295, %289, %cst_246 {dimension_numbers = #tpu.dot_dimension_numbers<[1], [0], [0], [1], [0, 0, 1, 1], [], []>} : vector<32x16xbf16>, vector<16x64xbf16>, vector<32x64xf32> -> vector<32x64xf32>
    %297 = arith.truncf %296 : vector<32x64xf32> to vector<32x64xbf16>
    %c2_247 = arith.constant 2 : index
    %c0_248 = arith.constant 0 : index
    %c0_249 = arith.constant 0 : index
    %298 = vector.load %arg29[%c2_247, %c0_248, %c0_249] : memref<5x32x16xbf16, #tpu.memory_space<vmem>>, vector<1x32x16xbf16>
    %299 = vector.shape_cast %298 : vector<1x32x16xbf16> to vector<32x16xbf16>
    %cst_250 = arith.constant dense<0.000000e+00> : vector<32x64xf32>
    %300 = tpu.matmul %299, %289, %cst_250 {dimension_numbers = #tpu.dot_dimension_numbers<[1], [0], [0], [1], [0, 0, 1, 1], [], []>} : vector<32x16xbf16>, vector<16x64xbf16>, vector<32x64xf32> -> vector<32x64xf32>
    %301 = arith.truncf %300 : vector<32x64xf32> to vector<32x64xbf16>
    %c3_251 = arith.constant 3 : index
    %c0_252 = arith.constant 0 : index
    %c0_253 = arith.constant 0 : index
    %302 = vector.load %arg29[%c3_251, %c0_252, %c0_253] : memref<5x32x16xbf16, #tpu.memory_space<vmem>>, vector<1x32x16xbf16>
    %303 = vector.shape_cast %302 : vector<1x32x16xbf16> to vector<32x16xbf16>
    %cst_254 = arith.constant dense<0.000000e+00> : vector<32x64xf32>
    %304 = tpu.matmul %303, %289, %cst_254 {dimension_numbers = #tpu.dot_dimension_numbers<[1], [0], [0], [1], [0, 0, 1, 1], [], []>} : vector<32x16xbf16>, vector<16x64xbf16>, vector<32x64xf32> -> vector<32x64xf32>
    %305 = arith.truncf %304 : vector<32x64xf32> to vector<32x64xbf16>
    %c4_255 = arith.constant 4 : index
    %c0_256 = arith.constant 0 : index
    %c0_257 = arith.constant 0 : index
    %306 = vector.load %arg29[%c4_255, %c0_256, %c0_257] : memref<5x32x16xbf16, #tpu.memory_space<vmem>>, vector<1x32x16xbf16>
    %307 = vector.shape_cast %306 : vector<1x32x16xbf16> to vector<32x16xbf16>
    %cst_258 = arith.constant dense<0.000000e+00> : vector<32x64xf32>
    %308 = tpu.matmul %307, %289, %cst_258 {dimension_numbers = #tpu.dot_dimension_numbers<[1], [0], [0], [1], [0, 0, 1, 1], [], []>} : vector<32x16xbf16>, vector<16x64xbf16>, vector<32x64xf32> -> vector<32x64xf32>
    %309 = arith.truncf %308 : vector<32x64xf32> to vector<32x64xbf16>
    %310 = tpu.concatenate %293, %297, %301, %305, %309 in 1 : vector<32x64xbf16>, vector<32x64xbf16>, vector<32x64xbf16>, vector<32x64xbf16>, vector<32x64xbf16> -> vector<32x320xbf16>
    %c0_259 = arith.constant 0 : index
    %c0_260 = arith.constant 0 : index
    %311 = vector.load %arg30[%c0_259, %c0_260] : memref<320x128xbf16, #tpu.memory_space<vmem>>, vector<320x128xbf16>
    %cst_261 = arith.constant dense<0.000000e+00> : vector<32x128xf32>
    %312 = tpu.matmul %310, %311, %cst_261 {dimension_numbers = #tpu.dot_dimension_numbers<[1], [0], [0], [1], [0, 0, 1, 1], [], []>} : vector<32x320xbf16>, vector<320x128xbf16>, vector<32x128xf32> -> vector<32x128xf32>
    %c0_262 = arith.constant 0 : index
    %c0_263 = arith.constant 0 : index
    %313 = vector.load %arg31[%c0_262, %c0_263] : memref<1x128xf32, #tpu.memory_space<vmem>>, vector<1x128xf32>
    %314 = vector.broadcast %313 : vector<1x128xf32> to vector<32x128xf32>
    %315 = arith.addf %312, %314 : vector<32x128xf32>
    %cst_264 = arith.constant 0.000000e+00 : f32
    %316 = vector.broadcast %cst_264 : f32 to vector<32x128xf32>
    %317 = arith.cmpf oge, %315, %316 : vector<32x128xf32>
    %cst_265 = arith.constant 0.00999999977 : f32
    %318 = vector.broadcast %cst_265 : f32 to vector<32x128xf32>
    %319 = arith.mulf %318, %315 : vector<32x128xf32>
    %320 = arith.select %317, %315, %319 : vector<32x128xi1>, vector<32x128xf32>
    %321 = arith.truncf %320 : vector<32x128xf32> to vector<32x128xbf16>
    %c0_266 = arith.constant 0 : index
    %c0_267 = arith.constant 0 : index
    %c0_268 = arith.constant 0 : index
    %322 = vector.load %arg32[%c0_266, %c0_267, %c0_268] : memref<5x32x32xbf16, #tpu.memory_space<vmem>>, vector<1x32x32xbf16>
    %323 = vector.shape_cast %322 : vector<1x32x32xbf16> to vector<32x32xbf16>
    %cst_269 = arith.constant dense<0.000000e+00> : vector<32x128xf32>
    %324 = tpu.matmul %323, %321, %cst_269 {dimension_numbers = #tpu.dot_dimension_numbers<[1], [0], [0], [1], [0, 0, 1, 1], [], []>} : vector<32x32xbf16>, vector<32x128xbf16>, vector<32x128xf32> -> vector<32x128xf32>
    %325 = arith.truncf %324 : vector<32x128xf32> to vector<32x128xbf16>
    %c1_270 = arith.constant 1 : index
    %c0_271 = arith.constant 0 : index
    %c0_272 = arith.constant 0 : index
    %326 = vector.load %arg32[%c1_270, %c0_271, %c0_272] : memref<5x32x32xbf16, #tpu.memory_space<vmem>>, vector<1x32x32xbf16>
    %327 = vector.shape_cast %326 : vector<1x32x32xbf16> to vector<32x32xbf16>
    %cst_273 = arith.constant dense<0.000000e+00> : vector<32x128xf32>
    %328 = tpu.matmul %327, %321, %cst_273 {dimension_numbers = #tpu.dot_dimension_numbers<[1], [0], [0], [1], [0, 0, 1, 1], [], []>} : vector<32x32xbf16>, vector<32x128xbf16>, vector<32x128xf32> -> vector<32x128xf32>
    %329 = arith.truncf %328 : vector<32x128xf32> to vector<32x128xbf16>
    %c2_274 = arith.constant 2 : index
    %c0_275 = arith.constant 0 : index
    %c0_276 = arith.constant 0 : index
    %330 = vector.load %arg32[%c2_274, %c0_275, %c0_276] : memref<5x32x32xbf16, #tpu.memory_space<vmem>>, vector<1x32x32xbf16>
    %331 = vector.shape_cast %330 : vector<1x32x32xbf16> to vector<32x32xbf16>
    %cst_277 = arith.constant dense<0.000000e+00> : vector<32x128xf32>
    %332 = tpu.matmul %331, %321, %cst_277 {dimension_numbers = #tpu.dot_dimension_numbers<[1], [0], [0], [1], [0, 0, 1, 1], [], []>} : vector<32x32xbf16>, vector<32x128xbf16>, vector<32x128xf32> -> vector<32x128xf32>
    %333 = arith.truncf %332 : vector<32x128xf32> to vector<32x128xbf16>
    %c3_278 = arith.constant 3 : index
    %c0_279 = arith.constant 0 : index
    %c0_280 = arith.constant 0 : index
    %334 = vector.load %arg32[%c3_278, %c0_279, %c0_280] : memref<5x32x32xbf16, #tpu.memory_space<vmem>>, vector<1x32x32xbf16>
    %335 = vector.shape_cast %334 : vector<1x32x32xbf16> to vector<32x32xbf16>
    %cst_281 = arith.constant dense<0.000000e+00> : vector<32x128xf32>
    %336 = tpu.matmul %335, %321, %cst_281 {dimension_numbers = #tpu.dot_dimension_numbers<[1], [0], [0], [1], [0, 0, 1, 1], [], []>} : vector<32x32xbf16>, vector<32x128xbf16>, vector<32x128xf32> -> vector<32x128xf32>
    %337 = arith.truncf %336 : vector<32x128xf32> to vector<32x128xbf16>
    %c4_282 = arith.constant 4 : index
    %c0_283 = arith.constant 0 : index
    %c0_284 = arith.constant 0 : index
    %338 = vector.load %arg32[%c4_282, %c0_283, %c0_284] : memref<5x32x32xbf16, #tpu.memory_space<vmem>>, vector<1x32x32xbf16>
    %339 = vector.shape_cast %338 : vector<1x32x32xbf16> to vector<32x32xbf16>
    %cst_285 = arith.constant dense<0.000000e+00> : vector<32x128xf32>
    %340 = tpu.matmul %339, %321, %cst_285 {dimension_numbers = #tpu.dot_dimension_numbers<[1], [0], [0], [1], [0, 0, 1, 1], [], []>} : vector<32x32xbf16>, vector<32x128xbf16>, vector<32x128xf32> -> vector<32x128xf32>
    %341 = arith.truncf %340 : vector<32x128xf32> to vector<32x128xbf16>
    %342 = tpu.concatenate %325, %329, %333, %337, %341 in 1 : vector<32x128xbf16>, vector<32x128xbf16>, vector<32x128xbf16>, vector<32x128xbf16>, vector<32x128xbf16> -> vector<32x640xbf16>
    %c0_286 = arith.constant 0 : index
    %c0_287 = arith.constant 0 : index
    %343 = vector.load %arg33[%c0_286, %c0_287] : memref<640x48xbf16, #tpu.memory_space<vmem>>, vector<640x48xbf16>
    %cst_288 = arith.constant dense<0.000000e+00> : vector<32x48xf32>
    %344 = tpu.matmul %342, %343, %cst_288 {dimension_numbers = #tpu.dot_dimension_numbers<[1], [0], [0], [1], [0, 0, 1, 1], [], []>} : vector<32x640xbf16>, vector<640x48xbf16>, vector<32x48xf32> -> vector<32x48xf32>
    %c0_289 = arith.constant 0 : index
    %c0_290 = arith.constant 0 : index
    %345 = vector.load %arg34[%c0_289, %c0_290] : memref<1x48xf32, #tpu.memory_space<vmem>>, vector<1x48xf32>
    %346 = vector.broadcast %345 : vector<1x48xf32> to vector<32x48xf32>
    %347 = arith.addf %344, %346 : vector<32x48xf32>
    %cst_291 = arith.constant 0.000000e+00 : f32
    %348 = vector.broadcast %cst_291 : f32 to vector<32x48xf32>
    %349 = arith.cmpf oge, %347, %348 : vector<32x48xf32>
    %cst_292 = arith.constant 0.00999999977 : f32
    %350 = vector.broadcast %cst_292 : f32 to vector<32x48xf32>
    %351 = arith.mulf %350, %347 : vector<32x48xf32>
    %352 = arith.select %349, %347, %351 : vector<32x48xi1>, vector<32x48xf32>
    %353 = arith.truncf %352 : vector<32x48xf32> to vector<32x48xbf16>
    %c0_293 = arith.constant 0 : index
    %c0_294 = arith.constant 0 : index
    %c0_295 = arith.constant 0 : index
    %354 = vector.load %arg35[%c0_293, %c0_294, %c0_295] : memref<5x64x32xbf16, #tpu.memory_space<vmem>>, vector<1x64x32xbf16>
    %355 = vector.shape_cast %354 : vector<1x64x32xbf16> to vector<64x32xbf16>
    %cst_296 = arith.constant dense<0.000000e+00> : vector<64x48xf32>
    %356 = tpu.matmul %355, %353, %cst_296 {dimension_numbers = #tpu.dot_dimension_numbers<[1], [0], [0], [1], [0, 0, 1, 1], [], []>} : vector<64x32xbf16>, vector<32x48xbf16>, vector<64x48xf32> -> vector<64x48xf32>
    %357 = arith.truncf %356 : vector<64x48xf32> to vector<64x48xbf16>
    %c1_297 = arith.constant 1 : index
    %c0_298 = arith.constant 0 : index
    %c0_299 = arith.constant 0 : index
    %358 = vector.load %arg35[%c1_297, %c0_298, %c0_299] : memref<5x64x32xbf16, #tpu.memory_space<vmem>>, vector<1x64x32xbf16>
    %359 = vector.shape_cast %358 : vector<1x64x32xbf16> to vector<64x32xbf16>
    %cst_300 = arith.constant dense<0.000000e+00> : vector<64x48xf32>
    %360 = tpu.matmul %359, %353, %cst_300 {dimension_numbers = #tpu.dot_dimension_numbers<[1], [0], [0], [1], [0, 0, 1, 1], [], []>} : vector<64x32xbf16>, vector<32x48xbf16>, vector<64x48xf32> -> vector<64x48xf32>
    %361 = arith.truncf %360 : vector<64x48xf32> to vector<64x48xbf16>
    %c2_301 = arith.constant 2 : index
    %c0_302 = arith.constant 0 : index
    %c0_303 = arith.constant 0 : index
    %362 = vector.load %arg35[%c2_301, %c0_302, %c0_303] : memref<5x64x32xbf16, #tpu.memory_space<vmem>>, vector<1x64x32xbf16>
    %363 = vector.shape_cast %362 : vector<1x64x32xbf16> to vector<64x32xbf16>
    %cst_304 = arith.constant dense<0.000000e+00> : vector<64x48xf32>
    %364 = tpu.matmul %363, %353, %cst_304 {dimension_numbers = #tpu.dot_dimension_numbers<[1], [0], [0], [1], [0, 0, 1, 1], [], []>} : vector<64x32xbf16>, vector<32x48xbf16>, vector<64x48xf32> -> vector<64x48xf32>
    %365 = arith.truncf %364 : vector<64x48xf32> to vector<64x48xbf16>
    %c3_305 = arith.constant 3 : index
    %c0_306 = arith.constant 0 : index
    %c0_307 = arith.constant 0 : index
    %366 = vector.load %arg35[%c3_305, %c0_306, %c0_307] : memref<5x64x32xbf16, #tpu.memory_space<vmem>>, vector<1x64x32xbf16>
    %367 = vector.shape_cast %366 : vector<1x64x32xbf16> to vector<64x32xbf16>
    %cst_308 = arith.constant dense<0.000000e+00> : vector<64x48xf32>
    %368 = tpu.matmul %367, %353, %cst_308 {dimension_numbers = #tpu.dot_dimension_numbers<[1], [0], [0], [1], [0, 0, 1, 1], [], []>} : vector<64x32xbf16>, vector<32x48xbf16>, vector<64x48xf32> -> vector<64x48xf32>
    %369 = arith.truncf %368 : vector<64x48xf32> to vector<64x48xbf16>
    %c4_309 = arith.constant 4 : index
    %c0_310 = arith.constant 0 : index
    %c0_311 = arith.constant 0 : index
    %370 = vector.load %arg35[%c4_309, %c0_310, %c0_311] : memref<5x64x32xbf16, #tpu.memory_space<vmem>>, vector<1x64x32xbf16>
    %371 = vector.shape_cast %370 : vector<1x64x32xbf16> to vector<64x32xbf16>
    %cst_312 = arith.constant dense<0.000000e+00> : vector<64x48xf32>
    %372 = tpu.matmul %371, %353, %cst_312 {dimension_numbers = #tpu.dot_dimension_numbers<[1], [0], [0], [1], [0, 0, 1, 1], [], []>} : vector<64x32xbf16>, vector<32x48xbf16>, vector<64x48xf32> -> vector<64x48xf32>
    %373 = arith.truncf %372 : vector<64x48xf32> to vector<64x48xbf16>
    %374 = tpu.concatenate %357, %361, %365, %369, %373 in 1 : vector<64x48xbf16>, vector<64x48xbf16>, vector<64x48xbf16>, vector<64x48xbf16>, vector<64x48xbf16> -> vector<64x240xbf16>
    %c0_313 = arith.constant 0 : index
    %c0_314 = arith.constant 0 : index
    %375 = vector.load %arg36[%c0_313, %c0_314] : memref<240x96xbf16, #tpu.memory_space<vmem>>, vector<240x96xbf16>
    %cst_315 = arith.constant dense<0.000000e+00> : vector<64x96xf32>
    %376 = tpu.matmul %374, %375, %cst_315 {dimension_numbers = #tpu.dot_dimension_numbers<[1], [0], [0], [1], [0, 0, 1, 1], [], []>} : vector<64x240xbf16>, vector<240x96xbf16>, vector<64x96xf32> -> vector<64x96xf32>
    %c0_316 = arith.constant 0 : index
    %c0_317 = arith.constant 0 : index
    %377 = vector.load %arg37[%c0_316, %c0_317] : memref<1x96xf32, #tpu.memory_space<vmem>>, vector<1x96xf32>
    %378 = vector.broadcast %377 : vector<1x96xf32> to vector<64x96xf32>
    %379 = arith.addf %376, %378 : vector<64x96xf32>
    %cst_318 = arith.constant 0.000000e+00 : f32
    %380 = vector.broadcast %cst_318 : f32 to vector<64x96xf32>
    %381 = arith.cmpf oge, %379, %380 : vector<64x96xf32>
    %cst_319 = arith.constant 0.00999999977 : f32
    %382 = vector.broadcast %cst_319 : f32 to vector<64x96xf32>
    %383 = arith.mulf %382, %379 : vector<64x96xf32>
    %384 = arith.select %381, %379, %383 : vector<64x96xi1>, vector<64x96xf32>
    %c0_320 = arith.constant 0 : index
    %c0_321 = arith.constant 0 : index
    %385 = vector.load %arg38[%c0_320, %c0_321] : memref<64x96xf32, #tpu.memory_space<vmem>>, vector<64x96xf32>
    tpu.vector_store %arg38[%c0_320, %c0_321], %384 {strides = array<i32>} : memref<64x96xf32, #tpu.memory_space<vmem>>, vector<64x96xf32>,
    return
  }
  func.func @transform_0(%arg0: i32) -> (i32, i32) {
    %c0_i32 = arith.constant 0 : i32
    %c0_i32_0 = arith.constant 0 : i32
    return %arg0, %c0_i32 : i32, i32
  }
  func.func @transform_1(%arg0: i32) -> (i32, i32, i32) {
    %c0_i32 = arith.constant 0 : i32
    %c0_i32_0 = arith.constant 0 : i32
    %c0_i32_1 = arith.constant 0 : i32
    %c0_i32_2 = arith.constant 0 : i32
    return %c0_i32, %c0_i32_0, %c0_i32_1 : i32, i32, i32
  }
  func.func @transform_2(%arg0: i32) -> (i32, i32) {
    %c0_i32 = arith.constant 0 : i32
    %c0_i32_0 = arith.constant 0 : i32
    %c0_i32_1 = arith.constant 0 : i32
    return %c0_i32, %c0_i32_0 : i32, i32
  }
  func.func @transform_3(%arg0: i32) -> (i32, i32) {
    %c0_i32 = arith.constant 0 : i32
    %c0_i32_0 = arith.constant 0 : i32
    %c0_i32_1 = arith.constant 0 : i32
    return %c0_i32, %c0_i32_0 : i32, i32
  }
  func.func @transform_4(%arg0: i32) -> (i32, i32, i32) {
    %c0_i32 = arith.constant 0 : i32
    %c0_i32_0 = arith.constant 0 : i32
    %c0_i32_1 = arith.constant 0 : i32
    %c0_i32_2 = arith.constant 0 : i32
    return %c0_i32, %c0_i32_0, %c0_i32_1 : i32, i32, i32
  }
  func.func @transform_5(%arg0: i32) -> (i32, i32) {
    %c0_i32 = arith.constant 0 : i32
    %c0_i32_0 = arith.constant 0 : i32
    %c0_i32_1 = arith.constant 0 : i32
    return %c0_i32, %c0_i32_0 : i32, i32
  }
  func.func @transform_6(%arg0: i32) -> (i32, i32) {
    %c0_i32 = arith.constant 0 : i32
    %c0_i32_0 = arith.constant 0 : i32
    %c0_i32_1 = arith.constant 0 : i32
    return %c0_i32, %c0_i32_0 : i32, i32
  }
  func.func @transform_7(%arg0: i32) -> (i32, i32, i32) {
    %c0_i32 = arith.constant 0 : i32
    %c0_i32_0 = arith.constant 0 : i32
    %c0_i32_1 = arith.constant 0 : i32
    %c0_i32_2 = arith.constant 0 : i32
    return %c0_i32, %c0_i32_0, %c0_i32_1 : i32, i32, i32
  }
  func.func @transform_8(%arg0: i32) -> (i32, i32) {
    %c0_i32 = arith.constant 0 : i32
    %c0_i32_0 = arith.constant 0 : i32
    %c0_i32_1 = arith.constant 0 : i32
    return %c0_i32, %c0_i32_0 : i32, i32
  }
  func.func @transform_9(%arg0: i32) -> (i32, i32) {
    %c0_i32 = arith.constant 0 : i32
    %c0_i32_0 = arith.constant 0 : i32
    %c0_i32_1 = arith.constant 0 : i32
    return %c0_i32, %c0_i32_0 : i32, i32
  }
  func.func @transform_10(%arg0: i32) -> (i32, i32, i32) {
    %c0_i32 = arith.constant 0 : i32
    %c0_i32_0 = arith.constant 0 : i32
    %c0_i32_1 = arith.constant 0 : i32
    %c0_i32_2 = arith.constant 0 : i32
    return %c0_i32, %c0_i32_0, %c0_i32_1 : i32, i32, i32
  }
  func.func @transform_11(%arg0: i32) -> (i32, i32) {
    %c0_i32 = arith.constant 0 : i32
    %c0_i32_0 = arith.constant 0 : i32
    %c0_i32_1 = arith.constant 0 : i32
    return %c0_i32, %c0_i32_0 : i32, i32
  }
  func.func @transform_12(%arg0: i32) -> (i32, i32) {
    %c0_i32 = arith.constant 0 : i32
    %c0_i32_0 = arith.constant 0 : i32
    %c0_i32_1 = arith.constant 0 : i32
    return %c0_i32, %c0_i32_0 : i32, i32
  }
  func.func @transform_13(%arg0: i32) -> (i32, i32, i32) {
    %c0_i32 = arith.constant 0 : i32
    %c0_i32_0 = arith.constant 0 : i32
    %c0_i32_1 = arith.constant 0 : i32
    %c0_i32_2 = arith.constant 0 : i32
    return %c0_i32, %c0_i32_0, %c0_i32_1 : i32, i32, i32
  }
  func.func @transform_14(%arg0: i32) -> (i32, i32) {
    %c0_i32 = arith.constant 0 : i32
    %c0_i32_0 = arith.constant 0 : i32
    %c0_i32_1 = arith.constant 0 : i32
    return %c0_i32, %c0_i32_0 : i32, i32
  }
  func.func @transform_15(%arg0: i32) -> (i32, i32) {
    %c0_i32 = arith.constant 0 : i32
    %c0_i32_0 = arith.constant 0 : i32
    %c0_i32_1 = arith.constant 0 : i32
    return %c0_i32, %c0_i32_0 : i32, i32
  }
  func.func @transform_16(%arg0: i32) -> (i32, i32, i32) {
    %c0_i32 = arith.constant 0 : i32
    %c0_i32_0 = arith.constant 0 : i32
    %c0_i32_1 = arith.constant 0 : i32
    %c0_i32_2 = arith.constant 0 : i32
    return %c0_i32, %c0_i32_0, %c0_i32_1 : i32, i32, i32
  }
  func.func @transform_17(%arg0: i32) -> (i32, i32) {
    %c0_i32 = arith.constant 0 : i32
    %c0_i32_0 = arith.constant 0 : i32
    %c0_i32_1 = arith.constant 0 : i32
    return %c0_i32, %c0_i32_0 : i32, i32
  }
  func.func @transform_18(%arg0: i32) -> (i32, i32) {
    %c0_i32 = arith.constant 0 : i32
    %c0_i32_0 = arith.constant 0 : i32
    %c0_i32_1 = arith.constant 0 : i32
    return %c0_i32, %c0_i32_0 : i32, i32
  }
  func.func @transform_19(%arg0: i32) -> (i32, i32, i32) {
    %c0_i32 = arith.constant 0 : i32
    %c0_i32_0 = arith.constant 0 : i32
    %c0_i32_1 = arith.constant 0 : i32
    %c0_i32_2 = arith.constant 0 : i32
    return %c0_i32, %c0_i32_0, %c0_i32_1 : i32, i32, i32
  }
  func.func @transform_20(%arg0: i32) -> (i32, i32) {
    %c0_i32 = arith.constant 0 : i32
    %c0_i32_0 = arith.constant 0 : i32
    %c0_i32_1 = arith.constant 0 : i32
    return %c0_i32, %c0_i32_0 : i32, i32
  }
  func.func @transform_21(%arg0: i32) -> (i32, i32) {
    %c0_i32 = arith.constant 0 : i32
    %c0_i32_0 = arith.constant 0 : i32
    %c0_i32_1 = arith.constant 0 : i32
    return %c0_i32, %c0_i32_0 : i32, i32
  }
  func.func @transform_22(%arg0: i32) -> (i32, i32, i32) {
    %c0_i32 = arith.constant 0 : i32
    %c0_i32_0 = arith.constant 0 : i32
    %c0_i32_1 = arith.constant 0 : i32
    %c0_i32_2 = arith.constant 0 : i32
    return %c0_i32, %c0_i32_0, %c0_i32_1 : i32, i32, i32
  }
  func.func @transform_23(%arg0: i32) -> (i32, i32) {
    %c0_i32 = arith.constant 0 : i32
    %c0_i32_0 = arith.constant 0 : i32
    %c0_i32_1 = arith.constant 0 : i32
    return %c0_i32, %c0_i32_0 : i32, i32
  }
  func.func @transform_24(%arg0: i32) -> (i32, i32) {
    %c0_i32 = arith.constant 0 : i32
    %c0_i32_0 = arith.constant 0 : i32
    %c0_i32_1 = arith.constant 0 : i32
    return %c0_i32, %c0_i32_0 : i32, i32
  }
  func.func @transform_25(%arg0: i32) -> (i32, i32, i32) {
    %c0_i32 = arith.constant 0 : i32
    %c0_i32_0 = arith.constant 0 : i32
    %c0_i32_1 = arith.constant 0 : i32
    %c0_i32_2 = arith.constant 0 : i32
    return %c0_i32, %c0_i32_0, %c0_i32_1 : i32, i32, i32
  }
  func.func @transform_26(%arg0: i32) -> (i32, i32) {
    %c0_i32 = arith.constant 0 : i32
    %c0_i32_0 = arith.constant 0 : i32
    %c0_i32_1 = arith.constant 0 : i32
    return %c0_i32, %c0_i32_0 : i32, i32
  }
  func.func @transform_27(%arg0: i32) -> (i32, i32) {
    %c0_i32 = arith.constant 0 : i32
    %c0_i32_0 = arith.constant 0 : i32
    %c0_i32_1 = arith.constant 0 : i32
    return %c0_i32, %c0_i32_0 : i32, i32
  }
  func.func @transform_28(%arg0: i32) -> (i32, i32, i32) {
    %c0_i32 = arith.constant 0 : i32
    %c0_i32_0 = arith.constant 0 : i32
    %c0_i32_1 = arith.constant 0 : i32
    %c0_i32_2 = arith.constant 0 : i32
    return %c0_i32, %c0_i32_0, %c0_i32_1 : i32, i32, i32
  }
  func.func @transform_29(%arg0: i32) -> (i32, i32) {
    %c0_i32 = arith.constant 0 : i32
    %c0_i32_0 = arith.constant 0 : i32
    %c0_i32_1 = arith.constant 0 : i32
    return %c0_i32, %c0_i32_0 : i32, i32
  }
  func.func @transform_30(%arg0: i32) -> (i32, i32) {
    %c0_i32 = arith.constant 0 : i32
    %c0_i32_0 = arith.constant 0 : i32
    %c0_i32_1 = arith.constant 0 : i32
    return %c0_i32, %c0_i32_0 : i32, i32
  }
  func.func @transform_31(%arg0: i32) -> (i32, i32, i32) {
    %c0_i32 = arith.constant 0 : i32
    %c0_i32_0 = arith.constant 0 : i32
    %c0_i32_1 = arith.constant 0 : i32
    %c0_i32_2 = arith.constant 0 : i32
    return %c0_i32, %c0_i32_0, %c0_i32_1 : i32, i32, i32
  }
  func.func @transform_32(%arg0: i32) -> (i32, i32) {
    %c0_i32 = arith.constant 0 : i32
    %c0_i32_0 = arith.constant 0 : i32
    %c0_i32_1 = arith.constant 0 : i32
    return %c0_i32, %c0_i32_0 : i32, i32
  }
  func.func @transform_33(%arg0: i32) -> (i32, i32) {
    %c0_i32 = arith.constant 0 : i32
    %c0_i32_0 = arith.constant 0 : i32
    %c0_i32_1 = arith.constant 0 : i32
    return %c0_i32, %c0_i32_0 : i32, i32
  }
  func.func @transform_34(%arg0: i32) -> (i32, i32, i32) {
    %c0_i32 = arith.constant 0 : i32
    %c0_i32_0 = arith.constant 0 : i32
    %c0_i32_1 = arith.constant 0 : i32
    %c0_i32_2 = arith.constant 0 : i32
    return %c0_i32, %c0_i32_0, %c0_i32_1 : i32, i32, i32
  }
  func.func @transform_35(%arg0: i32) -> (i32, i32) {
    %c0_i32 = arith.constant 0 : i32
    %c0_i32_0 = arith.constant 0 : i32
    %c0_i32_1 = arith.constant 0 : i32
    return %c0_i32, %c0_i32_0 : i32, i32
  }
  func.func @transform_36(%arg0: i32) -> (i32, i32) {
    %c0_i32 = arith.constant 0 : i32
    %c0_i32_0 = arith.constant 0 : i32
    %c0_i32_1 = arith.constant 0 : i32
    return %c0_i32, %c0_i32_0 : i32, i32
  }
  func.func @transform_37(%arg0: i32) -> (i32, i32) {
    %c0_i32 = arith.constant 0 : i32
    %c0_i32_0 = arith.constant 0 : i32
    return %arg0, %c0_i32 : i32, i32
  }
}

</mosaic_0001>

<llo_original>
// kernel: forward.1
$region0: #{forward.1}
  #allocation0 [shape = 'u32[]', space=smem, size = 0x4, offset = 0x4, fixed_abs, tag = 'smem constant byte address 0x4 - core index']
  #allocation1 [shape = 'u32[144,128]{1,0:T(1,128)}', space=vmem, size = 0x12000, scoped, tag = 'internal scratch']
  %s0 = inlined_call_operand.smem [shape: u32[38], index: -1, kind: input, shape index: {}]
  %s1 = sld [smem:[%s0]]
  %s2 = scalar_lea.smem %s0, 1
  %s3 = sld [smem:[%s2]]
  %s4 = scalar_lea.smem %s0, 2
  %s5 = sld [smem:[%s4]]
  %s6 = scalar_lea.smem %s0, 3
  %s7 = sld [smem:[%s6]]
  %s8 = scalar_lea.smem %s0, 4
  %s9 = sld [smem:[%s8]]
  %s10 = scalar_lea.smem %s0, 5
  %s11 = sld [smem:[%s10]]
  %s12 = scalar_lea.smem %s0, 6
  %s13 = sld [smem:[%s12]]
  %s14 = scalar_lea.smem %s0, 7
  %s15 = sld [smem:[%s14]]
  %s16 = scalar_lea.smem %s0, 8
  %s17 = sld [smem:[%s16]]
  %s18 = scalar_lea.smem %s0, 9
  %s19 = sld [smem:[%s18]]
  %s20 = scalar_lea.smem %s0, 10
  %s21 = sld [smem:[%s20]]
  %s22 = scalar_lea.smem %s0, 11
  %s23 = sld [smem:[%s22]]
  %s24 = scalar_lea.smem %s0, 12
  %s25 = sld [smem:[%s24]]
  %s26 = scalar_lea.smem %s0, 13
  %s27 = sld [smem:[%s26]]
  %s28 = scalar_lea.smem %s0, 14
  %s29 = sld [smem:[%s28]]
  %s30 = scalar_lea.smem %s0, 15
  %s31 = sld [smem:[%s30]]
  %s32 = scalar_lea.smem %s0, 16
  %s33 = sld [smem:[%s32]]
  %s34 = scalar_lea.smem %s0, 17
  %s35 = sld [smem:[%s34]]
  %s36 = scalar_lea.smem %s0, 18
  %s37 = sld [smem:[%s36]]
  %s38 = scalar_lea.smem %s0, 19
  %s39 = sld [smem:[%s38]]
  %s40 = scalar_lea.smem %s0, 20
  %s41 = sld [smem:[%s40]]
  %s42 = scalar_lea.smem %s0, 21
  %s43 = sld [smem:[%s42]]
  %s44 = scalar_lea.smem %s0, 22
  %s45 = sld [smem:[%s44]]
  %s46 = scalar_lea.smem %s0, 23
  %s47 = sld [smem:[%s46]]
  %s48 = scalar_lea.smem %s0, 24
  %s49 = sld [smem:[%s48]]
  %s50 = scalar_lea.smem %s0, 25
  %s51 = sld [smem:[%s50]]
  %s52 = scalar_lea.smem %s0, 26
  %s53 = sld [smem:[%s52]]
  %s54 = scalar_lea.smem %s0, 27
  %s55 = sld [smem:[%s54]]
  %s56 = scalar_lea.smem %s0, 28
  %s57 = sld [smem:[%s56]]
  %s58 = scalar_lea.smem %s0, 29
  %s59 = sld [smem:[%s58]]
  %s60 = scalar_lea.smem %s0, 30
  %s61 = sld [smem:[%s60]]
  %s62 = scalar_lea.smem %s0, 31
  %s63 = sld [smem:[%s62]]
  %s64 = scalar_lea.smem %s0, 32
  %s65 = sld [smem:[%s64]]
  %s66 = scalar_lea.smem %s0, 33
  %s67 = sld [smem:[%s66]]
  %s68 = scalar_lea.smem %s0, 34
  %s69 = sld [smem:[%s68]]
  %s70 = scalar_lea.smem %s0, 35
  %s71 = sld [smem:[%s70]]
  %s72 = scalar_lea.smem %s0, 36
  %s73 = sld [smem:[%s72]]
  %s74 = scalar_lea.smem %s0, 37
  %s75 = sld [smem:[%s74]]
  %s76 = sld [smem:[#allocation0]]
  $region158: #{forward.1} parent=0
    _
  %s78 = ssub.s32 1, %s76
  %s79 = scalar_select 0, %s78, %s76
  // Predicated region
  $region2: #{forward.1} parent=0 // pred_check
    _
  $region3: #{forward.1} parent=0 // pred_check_branch
    %81 = sbr.rel (0) target = $region5
  $region4: #{forward.1} parent=0 // pred_region
    _
  $region5: #{forward.1} parent=0 // pred_fallthru
    _
  // Predicated region
  $region6: #{forward.1} parent=0 // pred_check
    _
  $region7: #{forward.1} parent=0 // pred_check_branch
    %83 = sbr.rel (0) target = $region9
  $region8: #{forward.1} parent=0 // pred_region
    _
  $region9: #{forward.1} parent=0 // pred_fallthru
    _
  // Predicated region
  $region10: #{forward.1} parent=0 // pred_check
    _
  $region11: #{forward.1} parent=0 // pred_check_branch
    %85 = sbr.rel (0) target = $region13
  $region12: #{forward.1} parent=0 // pred_region
    _
  $region13: #{forward.1} parent=0 // pred_fallthru
    _
  // Predicated region
  $region14: #{forward.1} parent=0 // pred_check
    _
  $region15: #{forward.1} parent=0 // pred_check_branch
    %87 = sbr.rel (0) target = $region17
  $region16: #{forward.1} parent=0 // pred_region
    _
  $region17: #{forward.1} parent=0 // pred_fallthru
    _
  // Predicated region
  $region18: #{forward.1} parent=0 // pred_check
    _
  $region19: #{forward.1} parent=0 // pred_check_branch
    %89 = sbr.rel (0) target = $region21
  $region20: #{forward.1} parent=0 // pred_region
    _
  $region21: #{forward.1} parent=0 // pred_fallthru
    _
  // Predicated region
  $region22: #{forward.1} parent=0 // pred_check
    _
  $region23: #{forward.1} parent=0 // pred_check_branch
    %91 = sbr.rel (0) target = $region25
  $region24: #{forward.1} parent=0 // pred_region
    _
  $region25: #{forward.1} parent=0 // pred_fallthru
    _
  // Predicated region
  $region26: #{forward.1} parent=0 // pred_check
    _
  $region27: #{forward.1} parent=0 // pred_check_branch
    %93 = sbr.rel (0) target = $region29
  $region28: #{forward.1} parent=0 // pred_region
    _
  $region29: #{forward.1} parent=0 // pred_fallthru
    _
  // Predicated region
  $region30: #{forward.1} parent=0 // pred_check
    _
  $region31: #{forward.1} parent=0 // pred_check_branch
    %95 = sbr.rel (0) target = $region33
  $region32: #{forward.1} parent=0 // pred_region
    _
  $region33: #{forward.1} parent=0 // pred_fallthru
    _
  // Predicated region
  $region34: #{forward.1} parent=0 // pred_check
    _
  $region35: #{forward.1} parent=0 // pred_check_branch
    %97 = sbr.rel (0) target = $region37
  $region36: #{forward.1} parent=0 // pred_region
    _
  $region37: #{forward.1} parent=0 // pred_fallthru
    _
  // Predicated region
  $region38: #{forward.1} parent=0 // pred_check
    _
  $region39: #{forward.1} parent=0 // pred_check_branch
    %99 = sbr.rel (0) target = $region41
  $region40: #{forward.1} parent=0 // pred_region
    _
  $region41: #{forward.1} parent=0 // pred_fallthru
    _
  // Predicated region
  $region42: #{forward.1} parent=0 // pred_check
    _
  $region43: #{forward.1} parent=0 // pred_check_branch
    %101 = sbr.rel (0) target = $region45
  $region44: #{forward.1} parent=0 // pred_region
    _
  $region45: #{forward.1} parent=0 // pred_fallthru
    _
  // Predicated region
  $region46: #{forward.1} parent=0 // pred_check
    _
  $region47: #{forward.1} parent=0 // pred_check_branch
    %103 = sbr.rel (0) target = $region49
  $region48: #{forward.1} parent=0 // pred_region
    _
  $region49: #{forward.1} parent=0 // pred_fallthru
    _
  // Predicated region
  $region50: #{forward.1} parent=0 // pred_check
    _
  $region51: #{forward.1} parent=0 // pred_check_branch
    %105 = sbr.rel (0) target = $region53
  $region52: #{forward.1} parent=0 // pred_region
    _
  $region53: #{forward.1} parent=0 // pred_fallthru
    _
  // Predicated region
  $region54: #{forward.1} parent=0 // pred_check
    _
  $region55: #{forward.1} parent=0 // pred_check_branch
    %107 = sbr.rel (0) target = $region57
  $region56: #{forward.1} parent=0 // pred_region
    _
  $region57: #{forward.1} parent=0 // pred_fallthru
    _
  // Predicated region
  $region58: #{forward.1} parent=0 // pred_check
    _
  $region59: #{forward.1} parent=0 // pred_check_branch
    %109 = sbr.rel (0) target = $region61
  $region60: #{forward.1} parent=0 // pred_region
    _
  $region61: #{forward.1} parent=0 // pred_fallthru
    _
  // Predicated region
  $region62: #{forward.1} parent=0 // pred_check
    _
  $region63: #{forward.1} parent=0 // pred_check_branch
    %111 = sbr.rel (0) target = $region65
  $region64: #{forward.1} parent=0 // pred_region
    _
  $region65: #{forward.1} parent=0 // pred_fallthru
    _
  // Predicated region
  $region66: #{forward.1} parent=0 // pred_check
    _
  $region67: #{forward.1} parent=0 // pred_check_branch
    %113 = sbr.rel (0) target = $region69
  $region68: #{forward.1} parent=0 // pred_region
    _
  $region69: #{forward.1} parent=0 // pred_fallthru
    _
  // Predicated region
  $region70: #{forward.1} parent=0 // pred_check
    _
  $region71: #{forward.1} parent=0 // pred_check_branch
    %115 = sbr.rel (0) target = $region73
  $region72: #{forward.1} parent=0 // pred_region
    _
  $region73: #{forward.1} parent=0 // pred_fallthru
    _
  // Predicated region
  $region74: #{forward.1} parent=0 // pred_check
    _
  $region75: #{forward.1} parent=0 // pred_check_branch
    %117 = sbr.rel (0) target = $region77
  $region76: #{forward.1} parent=0 // pred_region
    _
  $region77: #{forward.1} parent=0 // pred_fallthru
    _
  // Predicated region
  $region78: #{forward.1} parent=0 // pred_check
    _
  $region79: #{forward.1} parent=0 // pred_check_branch
    %119 = sbr.rel (0) target = $region81
  $region80: #{forward.1} parent=0 // pred_region
    _
  $region81: #{forward.1} parent=0 // pred_fallthru
    _
  // Predicated region
  $region82: #{forward.1} parent=0 // pred_check
    _
  $region83: #{forward.1} parent=0 // pred_check_branch
    %121 = sbr.rel (0) target = $region85
  $region84: #{forward.1} parent=0 // pred_region
    _
  $region85: #{forward.1} parent=0 // pred_fallthru
    _
  // Predicated region
  $region86: #{forward.1} parent=0 // pred_check
    _
  $region87: #{forward.1} parent=0 // pred_check_branch
    %123 = sbr.rel (0) target = $region89
  $region88: #{forward.1} parent=0 // pred_region
    _
  $region89: #{forward.1} parent=0 // pred_fallthru
    _
  // Predicated region
  $region90: #{forward.1} parent=0 // pred_check
    _
  $region91: #{forward.1} parent=0 // pred_check_branch
    %125 = sbr.rel (0) target = $region93
  $region92: #{forward.1} parent=0 // pred_region
    _
  $region93: #{forward.1} parent=0 // pred_fallthru
    _
  // Predicated region
  $region94: #{forward.1} parent=0 // pred_check
    _
  $region95: #{forward.1} parent=0 // pred_check_branch
    %127 = sbr.rel (0) target = $region97
  $region96: #{forward.1} parent=0 // pred_region
    _
  $region97: #{forward.1} parent=0 // pred_fallthru
    _
  // Predicated region
  $region98: #{forward.1} parent=0 // pred_check
    _
  $region99: #{forward.1} parent=0 // pred_check_branch
    %129 = sbr.rel (0) target = $region101
  $region100: #{forward.1} parent=0 // pred_region
    _
  $region101: #{forward.1} parent=0 // pred_fallthru
    _
  // Predicated region
  $region102: #{forward.1} parent=0 // pred_check
    _
  $region103: #{forward.1} parent=0 // pred_check_branch
    %131 = sbr.rel (0) target = $region105
  $region104: #{forward.1} parent=0 // pred_region
    _
  $region105: #{forward.1} parent=0 // pred_fallthru
    _
  // Predicated region
  $region106: #{forward.1} parent=0 // pred_check
    _
  $region107: #{forward.1} parent=0 // pred_check_branch
    %133 = sbr.rel (0) target = $region109
  $region108: #{forward.1} parent=0 // pred_region
    _
  $region109: #{forward.1} parent=0 // pred_fallthru
    _
  // Predicated region
  $region110: #{forward.1} parent=0 // pred_check
    _
  $region111: #{forward.1} parent=0 // pred_check_branch
    %135 = sbr.rel (0) target = $region113
  $region112: #{forward.1} parent=0 // pred_region
    _
  $region113: #{forward.1} parent=0 // pred_fallthru
    _
  // Predicated region
  $region114: #{forward.1} parent=0 // pred_check
    _
  $region115: #{forward.1} parent=0 // pred_check_branch
    %137 = sbr.rel (0) target = $region117
  $region116: #{forward.1} parent=0 // pred_region
    _
  $region117: #{forward.1} parent=0 // pred_fallthru
    _
  // Predicated region
  $region118: #{forward.1} parent=0 // pred_check
    _
  $region119: #{forward.1} parent=0 // pred_check_branch
    %139 = sbr.rel (0) target = $region121
  $region120: #{forward.1} parent=0 // pred_region
    _
  $region121: #{forward.1} parent=0 // pred_fallthru
    _
  // Predicated region
  $region122: #{forward.1} parent=0 // pred_check
    _
  $region123: #{forward.1} parent=0 // pred_check_branch
    %141 = sbr.rel (0) target = $region125
  $region124: #{forward.1} parent=0 // pred_region
    _
  $region125: #{forward.1} parent=0 // pred_fallthru
    _
  // Predicated region
  $region126: #{forward.1} parent=0 // pred_check
    _
  $region127: #{forward.1} parent=0 // pred_check_branch
    %143 = sbr.rel (0) target = $region129
  $region128: #{forward.1} parent=0 // pred_region
    _
  $region129: #{forward.1} parent=0 // pred_fallthru
    _
  // Predicated region
  $region130: #{forward.1} parent=0 // pred_check
    _
  $region131: #{forward.1} parent=0 // pred_check_branch
    %145 = sbr.rel (0) target = $region133
  $region132: #{forward.1} parent=0 // pred_region
    _
  $region133: #{forward.1} parent=0 // pred_fallthru
    _
  // Predicated region
  $region134: #{forward.1} parent=0 // pred_check
    _
  $region135: #{forward.1} parent=0 // pred_check_branch
    %147 = sbr.rel (0) target = $region137
  $region136: #{forward.1} parent=0 // pred_region
    _
  $region137: #{forward.1} parent=0 // pred_fallthru
    _
  // Predicated region
  $region138: #{forward.1} parent=0 // pred_check
    _
  $region139: #{forward.1} parent=0 // pred_check_branch
    %149 = sbr.rel (0) target = $region141
  $region140: #{forward.1} parent=0 // pred_region
    _
  $region141: #{forward.1} parent=0 // pred_fallthru
    _
  // Predicated region
  $region142: #{forward.1} parent=0 // pred_check
    _
  $region143: #{forward.1} parent=0 // pred_check_branch
    %151 = sbr.rel (0) target = $region145
  $region144: #{forward.1} parent=0 // pred_region
    _
  $region145: #{forward.1} parent=0 // pred_fallthru
    _
  // Predicated region
  $region146: #{forward.1} parent=0 // pred_check
    _
  $region147: #{forward.1} parent=0 // pred_check_branch
    %153 = sbr.rel (0) target = $region149
  $region148: #{forward.1} parent=0 // pred_region
    _
  $region149: #{forward.1} parent=0 // pred_fallthru
    _
  %v155 = vld [vmem:[%s1] sm:$0xff]
  %v156 = vld [vmem:[%s1 + $0x8] sm:$0xff]
  %v157 = vld [vmem:[%s1 + $0x10] sm:$0xff]
  %v158 = vld [vmem:[%s1 + $0x18] sm:$0xff]
  %v159 = vld [vmem:[%s1 + $0x20] sm:$0xff]
  %v160 = vld [vmem:[%s1 + $0x28] sm:$0xff]
  %v161 = vld [vmem:[%s1 + $0x30] sm:$0xff]
  %v162 = vld [vmem:[%s1 + $0x38] sm:$0xff]
  %v163 = vpack.c.bf16 %v156, %v155
  %v164 = vpack.c.bf16 %v158, %v157
  %v165 = vpack.c.bf16 %v160, %v159
  %v166 = vpack.c.bf16 %v162, %v161
  %v167 = vld [vmem:[%s3] sm:$0xf]
  %v168 = vld [vmem:[%s3 + $0x4] sm:$0xf]
  %v169 = vld [vmem:[%s3 + $0x8] sm:$0xf]
  %v170 = vld [vmem:[%s3 + $0xc] sm:$0xf]
  %v175 = vunpack.c.l.b16 %v167
  %v176 = vunpack.c.l.b16 %v168
  %v177 = vunpack.c.l.b16 %v169
  %v178 = vunpack.c.l.b16 %v170
  %v179 = vpack.c.b16 %v176, %v175
  %v180 = vpack.c.b16 %v178, %v177
  %vm181 = vcmask 523264
  %v183 = vsel %vm181, %v179, 0
  %v186 = vsel %vm181, %v180, 0
  %188 = vmatprep.subr.bf16.mxu0 0
  %189 = vmatpush1.bf16.msra.mxu0 0
  %190 = vmatprep.subr.bf16.mxu0 0
  %191 = vmatpush1.bf16.msra.mxu0 0
  %192 = vmatprep.subr.bf16.mxu0 0
  %193 = vmatpush1.bf16.msra.mxu0 0
  %194 = vmatprep.subr.bf16.mxu0 0
  %195 = vmatpush1.bf16.msra.mxu0 0
  %196 = vmatprep.subr.bf16.mxu0 0
  %197 = vmatpush1.bf16.msra.mxu0 %v166
  %198 = vmatprep.subr.bf16.mxu0 0
  %199 = vmatpush1.bf16.msra.mxu0 %v165
  %200 = vmatprep.subr.bf16.mxu0 0
  %201 = vmatpush1.bf16.msra.mxu0 %v164
  %202 = vmatprep.subr.bf16.mxu0 0
  %203 = vmatpush1.bf16.msra.mxu0 %v163
  %204 = vmatprep.subr.bf16.mxu0 0
  %205 = vmatpush2.bf16.msra.mxu0 0
  %206 = vmatprep.subr.bf16.mxu0 0
  %207 = vmatpush2.bf16.msra.mxu0 0
  %208 = vmatprep.subr.bf16.mxu0 0
  %209 = vmatpush2.bf16.msra.mxu0 0
  %210 = vmatprep.subr.bf16.mxu0 0
  %211 = vmatpush2.bf16.msra.mxu0 0
  %212 = vmatprep.subr.bf16.mxu0 0
  %213 = vmatpush2.bf16.msra.mxu0 0
  %214 = vmatprep.subr.bf16.mxu0 0
  %215 = vmatpush2.bf16.msra.mxu0 0
  %216 = vmatprep.subr.bf16.mxu0 0
  %217 = vmatpush2.bf16.msra.mxu0 0
  %218 = vmatprep.subr.bf16.mxu0 0
  %219 = vmatpush2.bf16.msra.mxu0 0
  %220 = vmatprep.mubr.bf16.mxu0 0
  %221 = vmatmul.mubr.bf16.gmra.mxu0 %v183
  %v222 = vpop.f32.mrf.mxu0
  %v223 = vadd.f32 0.0, %v222
  %v224 = vpop.f32.mrf.mxu0
  %v225 = vpop.f32.mrf.mxu0
  %v226 = vadd.f32 0.0, %v225
  %v227 = vpop.f32.mrf.mxu0
  %228 = vmatprep.mubr.bf16.mxu0 0
  %229 = vmatmul.mubr.bf16.gmra.mxu0 %v186
  %v230 = vpop.f32.mrf.mxu0
  %v231 = vadd.f32 0.0, %v230
  %v232 = vpop.f32.mrf.mxu0
  %v233 = vpop.f32.mrf.mxu0
  %v234 = vadd.f32 0.0, %v233
  %v235 = vpop.f32.mrf.mxu0
  %236 = vdwg.mxu0
  %v237 = vpack.c.bf16 %v226, %v223
  %v238 = vpack.c.bf16 %v234, %v231
  %s239 = scalar_lea.vmem %s3, 16
  %v240 = vld [vmem:[%s239] sm:$0xf]
  %v241 = vld [vmem:[%s239 + $0x4] sm:$0xf]
  %v242 = vld [vmem:[%s239 + $0x8] sm:$0xf]
  %v243 = vld [vmem:[%s239 + $0xc] sm:$0xf]
  %v248 = vunpack.c.l.b16 %v240
  %v249 = vunpack.c.l.b16 %v241
  %v250 = vunpack.c.l.b16 %v242
  %v251 = vunpack.c.l.b16 %v243
  %v252 = vpack.c.b16 %v249, %v248
  %v253 = vpack.c.b16 %v251, %v250
  %v255 = vsel %vm181, %v252, 0
  %v258 = vsel %vm181, %v253, 0
  %260 = vmatprep.subr.bf16.mxu0 0
  %261 = vmatpush1.bf16.msra.mxu0 0
  %262 = vmatprep.subr.bf16.mxu0 0
  %263 = vmatpush1.bf16.msra.mxu0 0
  %264 = vmatprep.subr.bf16.mxu0 0
  %265 = vmatpush1.bf16.msra.mxu0 0
  %266 = vmatprep.subr.bf16.mxu0 0
  %267 = vmatpush1.bf16.msra.mxu0 0
  %268 = vmatprep.subr.bf16.mxu0 0
  %269 = vmatpush1.bf16.msra.mxu0 %v166
  %270 = vmatprep.subr.bf16.mxu0 0
  %271 = vmatpush1.bf16.msra.mxu0 %v165
  %272 = vmatprep.subr.bf16.mxu0 0
  %273 = vmatpush1.bf16.msra.mxu0 %v164
  %274 = vmatprep.subr.bf16.mxu0 0
  %275 = vmatpush1.bf16.msra.mxu0 %v163
  %276 = vmatprep.subr.bf16.mxu0 0
  %277 = vmatpush2.bf16.msra.mxu0 0
  %278 = vmatprep.subr.bf16.mxu0 0
  %279 = vmatpush2.bf16.msra.mxu0 0
  %280 = vmatprep.subr.bf16.mxu0 0
  %281 = vmatpush2.bf16.msra.mxu0 0
  %282 = vmatprep.subr.bf16.mxu0 0
  %283 = vmatpush2.bf16.msra.mxu0 0
  %284 = vmatprep.subr.bf16.mxu0 0
  %285 = vmatpush2.bf16.msra.mxu0 0
  %286 = vmatprep.subr.bf16.mxu0 0
  %287 = vmatpush2.bf16.msra.mxu0 0
  %288 = vmatprep.subr.bf16.mxu0 0
  %289 = vmatpush2.bf16.msra.mxu0 0
  %290 = vmatprep.subr.bf16.mxu0 0
  %291 = vmatpush2.bf16.msra.mxu0 0
  %292 = vmatprep.mubr.bf16.mxu0 0
  %293 = vmatmul.mubr.bf16.gmra.mxu0 %v255
  %v294 = vpop.f32.mrf.mxu0
  %v295 = vadd.f32 0.0, %v294
  %v296 = vpop.f32.mrf.mxu0
  %v297 = vpop.f32.mrf.mxu0
  %v298 = vadd.f32 0.0, %v297
  %v299 = vpop.f32.mrf.mxu0
  %300 = vmatprep.mubr.bf16.mxu0 0
  %301 = vmatmul.mubr.bf16.gmra.mxu0 %v258
  %v302 = vpop.f32.mrf.mxu0
  %v303 = vadd.f32 0.0, %v302
  %v304 = vpop.f32.mrf.mxu0
  %v305 = vpop.f32.mrf.mxu0
  %v306 = vadd.f32 0.0, %v305
  %v307 = vpop.f32.mrf.mxu0
  %308 = vdwg.mxu0
  %v309 = vpack.c.bf16 %v298, %v295
  %v310 = vpack.c.bf16 %v306, %v303
  %s311 = scalar_lea.vmem %s3, 32
  %v312 = vld [vmem:[%s311] sm:$0xf]
  %v313 = vld [vmem:[%s311 + $0x4] sm:$0xf]
  %v314 = vld [vmem:[%s311 + $0x8] sm:$0xf]
  %v315 = vld [vmem:[%s311 + $0xc] sm:$0xf]
  %v320 = vunpack.c.l.b16 %v312
  %v321 = vunpack.c.l.b16 %v313
  %v322 = vunpack.c.l.b16 %v314
  %v323 = vunpack.c.l.b16 %v315
  %v324 = vpack.c.b16 %v321, %v320
  %v325 = vpack.c.b16 %v323, %v322
  %v327 = vsel %vm181, %v324, 0
  %v330 = vsel %vm181, %v325, 0
  %332 = vmatprep.subr.bf16.mxu0 0
  %333 = vmatpush1.bf16.msra.mxu0 0
  %334 = vmatprep.subr.bf16.mxu0 0
  %335 = vmatpush1.bf16.msra.mxu0 0
  %336 = vmatprep.subr.bf16.mxu0 0
  %337 = vmatpush1.bf16.msra.mxu0 0
  %338 = vmatprep.subr.bf16.mxu0 0
  %339 = vmatpush1.bf16.msra.mxu0 0
  %340 = vmatprep.subr.bf16.mxu0 0
  %341 = vmatpush1.bf16.msra.mxu0 %v166
  %342 = vmatprep.subr.bf16.mxu0 0
  %343 = vmatpush1.bf16.msra.mxu0 %v165
  %344 = vmatprep.subr.bf16.mxu0 0
  %345 = vmatpush1.bf16.msra.mxu0 %v164
  %346 = vmatprep.subr.bf16.mxu0 0
  %347 = vmatpush1.bf16.msra.mxu0 %v163
  %348 = vmatprep.subr.bf16.mxu0 0
  %349 = vmatpush2.bf16.msra.mxu0 0
  %350 = vmatprep.subr.bf16.mxu0 0
  %351 = vmatpush2.bf16.msra.mxu0 0
  %352 = vmatprep.subr.bf16.mxu0 0
  %353 = vmatpush2.bf16.msra.mxu0 0
  %354 = vmatprep.subr.bf16.mxu0 0
  %355 = vmatpush2.bf16.msra.mxu0 0
  %356 = vmatprep.subr.bf16.mxu0 0
  %357 = vmatpush2.bf16.msra.mxu0 0
  %358 = vmatprep.subr.bf16.mxu0 0
  %359 = vmatpush2.bf16.msra.mxu0 0
  %360 = vmatprep.subr.bf16.mxu0 0
  %361 = vmatpush2.bf16.msra.mxu0 0
  %362 = vmatprep.subr.bf16.mxu0 0
  %363 = vmatpush2.bf16.msra.mxu0 0
  %364 = vmatprep.mubr.bf16.mxu0 0
  %365 = vmatmul.mubr.bf16.gmra.mxu0 %v327
  %v366 = vpop.f32.mrf.mxu0
  %v367 = vadd.f32 0.0, %v366
  %v368 = vpop.f32.mrf.mxu0
  %v369 = vpop.f32.mrf.mxu0
  %v370 = vadd.f32 0.0, %v369
  %v371 = vpop.f32.mrf.mxu0
  %372 = vmatprep.mubr.bf16.mxu0 0
  %373 = vmatmul.mubr.bf16.gmra.mxu0 %v330
  %v374 = vpop.f32.mrf.mxu0
  %v375 = vadd.f32 0.0, %v374
  %v376 = vpop.f32.mrf.mxu0
  %v377 = vpop.f32.mrf.mxu0
  %v378 = vadd.f32 0.0, %v377
  %v379 = vpop.f32.mrf.mxu0
  %380 = vdwg.mxu0
  %v381 = vpack.c.bf16 %v370, %v367
  %v382 = vpack.c.bf16 %v378, %v375
  %s383 = scalar_lea.vmem %s3, 48
  %v384 = vld [vmem:[%s383] sm:$0xf]
  %v385 = vld [vmem:[%s383 + $0x4] sm:$0xf]
  %v386 = vld [vmem:[%s383 + $0x8] sm:$0xf]
  %v387 = vld [vmem:[%s383 + $0xc] sm:$0xf]
  %v392 = vunpack.c.l.b16 %v384
  %v393 = vunpack.c.l.b16 %v385
  %v394 = vunpack.c.l.b16 %v386
  %v395 = vunpack.c.l.b16 %v387
  %v396 = vpack.c.b16 %v393, %v392
  %v397 = vpack.c.b16 %v395, %v394
  %v399 = vsel %vm181, %v396, 0
  %v402 = vsel %vm181, %v397, 0
  %404 = vmatprep.subr.bf16.mxu0 0
  %405 = vmatpush1.bf16.msra.mxu0 0
  %406 = vmatprep.subr.bf16.mxu0 0
  %407 = vmatpush1.bf16.msra.mxu0 0
  %408 = vmatprep.subr.bf16.mxu0 0
  %409 = vmatpush1.bf16.msra.mxu0 0
  %410 = vmatprep.subr.bf16.mxu0 0
  %411 = vmatpush1.bf16.msra.mxu0 0
  %412 = vmatprep.subr.bf16.mxu0 0
  %413 = vmatpush1.bf16.msra.mxu0 %v166
  %414 = vmatprep.subr.bf16.mxu0 0
  %415 = vmatpush1.bf16.msra.mxu0 %v165
  %416 = vmatprep.subr.bf16.mxu0 0
  %417 = vmatpush1.bf16.msra.mxu0 %v164
  %418 = vmatprep.subr.bf16.mxu0 0
  %419 = vmatpush1.bf16.msra.mxu0 %v163
  %420 = vmatprep.subr.bf16.mxu0 0
  %421 = vmatpush2.bf16.msra.mxu0 0
  %422 = vmatprep.subr.bf16.mxu0 0
  %423 = vmatpush2.bf16.msra.mxu0 0
  %424 = vmatprep.subr.bf16.mxu0 0
  %425 = vmatpush2.bf16.msra.mxu0 0
  %426 = vmatprep.subr.bf16.mxu0 0
  %427 = vmatpush2.bf16.msra.mxu0 0
  %428 = vmatprep.subr.bf16.mxu0 0
  %429 = vmatpush2.bf16.msra.mxu0 0
  %430 = vmatprep.subr.bf16.mxu0 0
  %431 = vmatpush2.bf16.msra.mxu0 0
  %432 = vmatprep.subr.bf16.mxu0 0
  %433 = vmatpush2.bf16.msra.mxu0 0
  %434 = vmatprep.subr.bf16.mxu0 0
  %435 = vmatpush2.bf16.msra.mxu0 0
  %436 = vmatprep.mubr.bf16.mxu0 0
  %437 = vmatmul.mubr.bf16.gmra.mxu0 %v399
  %v438 = vpop.f32.mrf.mxu0
  %v439 = vadd.f32 0.0, %v438
  %v440 = vpop.f32.mrf.mxu0
  %v441 = vpop.f32.mrf.mxu0
  %v442 = vadd.f32 0.0, %v441
  %v443 = vpop.f32.mrf.mxu0
  %444 = vmatprep.mubr.bf16.mxu0 0
  %445 = vmatmul.mubr.bf16.gmra.mxu0 %v402
  %v446 = vpop.f32.mrf.mxu0
  %v447 = vadd.f32 0.0, %v446
  %v448 = vpop.f32.mrf.mxu0
  %v449 = vpop.f32.mrf.mxu0
  %v450 = vadd.f32 0.0, %v449
  %v451 = vpop.f32.mrf.mxu0
  %452 = vdwg.mxu0
  %v453 = vpack.c.bf16 %v442, %v439
  %v454 = vpack.c.bf16 %v450, %v447
  %s455 = scalar_lea.vmem %s3, 64
  %v456 = vld [vmem:[%s455] sm:$0xf]
  %v457 = vld [vmem:[%s455 + $0x4] sm:$0xf]
  %v458 = vld [vmem:[%s455 + $0x8] sm:$0xf]
  %v459 = vld [vmem:[%s455 + $0xc] sm:$0xf]
  %v464 = vunpack.c.l.b16 %v456
  %v465 = vunpack.c.l.b16 %v457
  %v466 = vunpack.c.l.b16 %v458
  %v467 = vunpack.c.l.b16 %v459
  %v468 = vpack.c.b16 %v465, %v464
  %v469 = vpack.c.b16 %v467, %v466
  %v471 = vsel %vm181, %v468, 0
  %v474 = vsel %vm181, %v469, 0
  %476 = vmatprep.subr.bf16.mxu0 0
  %477 = vmatpush1.bf16.msra.mxu0 0
  %478 = vmatprep.subr.bf16.mxu0 0
  %479 = vmatpush1.bf16.msra.mxu0 0
  %480 = vmatprep.subr.bf16.mxu0 0
  %481 = vmatpush1.bf16.msra.mxu0 0
  %482 = vmatprep.subr.bf16.mxu0 0
  %483 = vmatpush1.bf16.msra.mxu0 0
  %484 = vmatprep.subr.bf16.mxu0 0
  %485 = vmatpush1.bf16.msra.mxu0 %v166
  %486 = vmatprep.subr.bf16.mxu0 0
  %487 = vmatpush1.bf16.msra.mxu0 %v165
  %488 = vmatprep.subr.bf16.mxu0 0
  %489 = vmatpush1.bf16.msra.mxu0 %v164
  %490 = vmatprep.subr.bf16.mxu0 0
  %491 = vmatpush1.bf16.msra.mxu0 %v163
  %492 = vmatprep.subr.bf16.mxu0 0
  %493 = vmatpush2.bf16.msra.mxu0 0
  %494 = vmatprep.subr.bf16.mxu0 0
  %495 = vmatpush2.bf16.msra.mxu0 0
  %496 = vmatprep.subr.bf16.mxu0 0
  %497 = vmatpush2.bf16.msra.mxu0 0
  %498 = vmatprep.subr.bf16.mxu0 0
  %499 = vmatpush2.bf16.msra.mxu0 0
  %500 = vmatprep.subr.bf16.mxu0 0
  %501 = vmatpush2.bf16.msra.mxu0 0
  %502 = vmatprep.subr.bf16.mxu0 0
  %503 = vmatpush2.bf16.msra.mxu0 0
  %504 = vmatprep.subr.bf16.mxu0 0
  %505 = vmatpush2.bf16.msra.mxu0 0
  %506 = vmatprep.subr.bf16.mxu0 0
  %507 = vmatpush2.bf16.msra.mxu0 0
  %508 = vmatprep.mubr.bf16.mxu0 0
  %509 = vmatmul.mubr.bf16.gmra.mxu0 %v471
  %v510 = vpop.f32.mrf.mxu0
  %v511 = vadd.f32 0.0, %v510
  %v512 = vpop.f32.mrf.mxu0
  %v513 = vpop.f32.mrf.mxu0
  %v514 = vadd.f32 0.0, %v513
  %v515 = vpop.f32.mrf.mxu0
  %516 = vmatprep.mubr.bf16.mxu0 0
  %517 = vmatmul.mubr.bf16.gmra.mxu0 %v474
  %v518 = vpop.f32.mrf.mxu0
  %v519 = vadd.f32 0.0, %v518
  %v520 = vpop.f32.mrf.mxu0
  %v521 = vpop.f32.mrf.mxu0
  %v522 = vadd.f32 0.0, %v521
  %v523 = vpop.f32.mrf.mxu0
  %524 = vdwg.mxu0
  %v525 = vpack.c.bf16 %v514, %v511
  %v526 = vpack.c.bf16 %v522, %v519
  %529 = vrot.lane.b32.xlu0 %v309, 96
  %v530 = vpop.permute.xlu0 %529
  %531 = vrot.lane.b32.xlu0 %v310, 96
  %v532 = vpop.permute.xlu0 %531
  %535 = vrot.lane.b32.xlu0 %v381, 64
  %v536 = vpop.permute.xlu0 %535
  %537 = vrot.lane.b32.xlu0 %v382, 64
  %v538 = vpop.permute.xlu0 %537
  %541 = vrot.lane.b32.xlu0 %v453, 32
  %v542 = vpop.permute.xlu0 %541
  %543 = vrot.lane.b32.xlu0 %v454, 32
  %v544 = vpop.permute.xlu0 %543
  %vm545 = vcmask 785408
  %v548 = vsel %vm545, %v237, %v530
  %v552 = vsel %vm545, %v238, %v532
  %v555 = vsel %vm181, %v530, %v536
  %v558 = vsel %vm181, %v532, %v538
  %vm560 = vcmask 261120
  %v562 = vsel %vm560, %v536, %v542
  %v565 = vsel %vm560, %v538, %v544
  %v567 = vld [vmem:[%s5] sm:$0xf]
  %v568 = vld [vmem:[%s5 + $0x4] sm:$0xf]
  %v569 = vld [vmem:[%s5 + $0x8] sm:$0xf]
  %v570 = vld [vmem:[%s5 + $0xc] sm:$0xf]
  %v571 = vld [vmem:[%s5 + $0x10] sm:$0xf]
  %v572 = vld [vmem:[%s5 + $0x14] sm:$0xf]
  %v573 = vld [vmem:[%s5 + $0x18] sm:$0xf]
  %v574 = vld [vmem:[%s5 + $0x1c] sm:$0xf]
  %v575 = vld [vmem:[%s5 + $0x20] sm:$0xf]
  %v576 = vld [vmem:[%s5 + $0x24] sm:$0xf]
  %v577 = vld [vmem:[%s5 + $0x28] sm:$0xf]
  %v578 = vld [vmem:[%s5 + $0x2c] sm:$0xf]
  %v579 = vld [vmem:[%s5 + $0x30] sm:$0xf]
  %v580 = vld [vmem:[%s5 + $0x34] sm:$0xf]
  %v581 = vld [vmem:[%s5 + $0x38] sm:$0xf]
  %v582 = vld [vmem:[%s5 + $0x3c] sm:$0xf]
  %v583 = vld [vmem:[%s5 + $0x40] sm:$0xf]
  %v584 = vld [vmem:[%s5 + $0x44] sm:$0xf]
  %v585 = vld [vmem:[%s5 + $0x48] sm:$0xf]
  %v586 = vld [vmem:[%s5 + $0x4c] sm:$0xf]
  %v587 = vld [vmem:[%s5 + $0x50] sm:$0xf]
  %v588 = vld [vmem:[%s5 + $0x54] sm:$0xf]
  %v589 = vld [vmem:[%s5 + $0x58] sm:$0xf]
  %v590 = vld [vmem:[%s5 + $0x5c] sm:$0xf]
  %v591 = vld [vmem:[%s5 + $0x60] sm:$0xf]
  %v592 = vld [vmem:[%s5 + $0x64] sm:$0xf]
  %v593 = vld [vmem:[%s5 + $0x68] sm:$0xf]
  %v594 = vld [vmem:[%s5 + $0x6c] sm:$0xf]
  %v595 = vld [vmem:[%s5 + $0x70] sm:$0xf]
  %v596 = vld [vmem:[%s5 + $0x74] sm:$0xf]
  %v597 = vld [vmem:[%s5 + $0x78] sm:$0xf]
  %v598 = vld [vmem:[%s5 + $0x7c] sm:$0xf]
  %v599 = vld [vmem:[%s5 + $0x80] sm:$0xf]
  %v600 = vld [vmem:[%s5 + $0x84] sm:$0xf]
  %v601 = vld [vmem:[%s5 + $0x88] sm:$0xf]
  %v602 = vld [vmem:[%s5 + $0x8c] sm:$0xf]
  %v603 = vld [vmem:[%s5 + $0x90] sm:$0xf]
  %v604 = vld [vmem:[%s5 + $0x94] sm:$0xf]
  %v605 = vld [vmem:[%s5 + $0x98] sm:$0xf]
  %v606 = vld [vmem:[%s5 + $0x9c] sm:$0xf]
  %v607 = vld [vmem:[%s5 + $0xa0] sm:$0xf]
  %v608 = vld [vmem:[%s5 + $0xa4] sm:$0xf]
  %v609 = vld [vmem:[%s5 + $0xa8] sm:$0xf]
  %v610 = vld [vmem:[%s5 + $0xac] sm:$0xf]
  %v611 = vld [vmem:[%s5 + $0xb0] sm:$0xf]
  %v612 = vld [vmem:[%s5 + $0xb4] sm:$0xf]
  %v613 = vld [vmem:[%s5 + $0xb8] sm:$0xf]
  %v614 = vld [vmem:[%s5 + $0xbc] sm:$0xf]
  %v615 = vld [vmem:[%s5 + $0xc0] sm:$0xf]
  %v616 = vld [vmem:[%s5 + $0xc4] sm:$0xf]
  %v617 = vld [vmem:[%s5 + $0xc8] sm:$0xf]
  %v618 = vld [vmem:[%s5 + $0xcc] sm:$0xf]
  %v619 = vld [vmem:[%s5 + $0xd0] sm:$0xf]
  %v620 = vld [vmem:[%s5 + $0xd4] sm:$0xf]
  %v621 = vld [vmem:[%s5 + $0xd8] sm:$0xf]
  %v622 = vld [vmem:[%s5 + $0xdc] sm:$0xf]
  %v623 = vld [vmem:[%s5 + $0xe0] sm:$0xf]
  %v624 = vld [vmem:[%s5 + $0xe4] sm:$0xf]
  %v625 = vld [vmem:[%s5 + $0xe8] sm:$0xf]
  %v626 = vld [vmem:[%s5 + $0xec] sm:$0xf]
  %v627 = vld [vmem:[%s7] sm:$0x1]
  %v629 = vlaneseq
  %v630 = vshrl.u32 %v629, 7
  %v631 = vsub.s32 0, %v630
  %v632 = vrot.slane %v627, %v631
  %v694 = vunpack.c.l.b16 %v567
  %v695 = vunpack.c.l.b16 %v568
  %v696 = vunpack.c.l.b16 %v569
  %v697 = vunpack.c.l.b16 %v570
  %v698 = vunpack.c.l.b16 %v571
  %v699 = vunpack.c.l.b16 %v572
  %v700 = vunpack.c.l.b16 %v573
  %v701 = vunpack.c.l.b16 %v574
  %v702 = vunpack.c.l.b16 %v575
  %v703 = vunpack.c.l.b16 %v576
  %v704 = vunpack.c.l.b16 %v577
  %v705 = vunpack.c.l.b16 %v578
  %v706 = vunpack.c.l.b16 %v579
  %v707 = vunpack.c.l.b16 %v580
  %v708 = vunpack.c.l.b16 %v581
  %v709 = vunpack.c.l.b16 %v582
  %v710 = vunpack.c.l.b16 %v583
  %v711 = vunpack.c.l.b16 %v584
  %v712 = vunpack.c.l.b16 %v585
  %v713 = vunpack.c.l.b16 %v586
  %v714 = vunpack.c.l.b16 %v587
  %v715 = vunpack.c.l.b16 %v588
  %v716 = vunpack.c.l.b16 %v589
  %v717 = vunpack.c.l.b16 %v590
  %v718 = vunpack.c.l.b16 %v591
  %v719 = vunpack.c.l.b16 %v592
  %v720 = vunpack.c.l.b16 %v593
  %v721 = vunpack.c.l.b16 %v594
  %v722 = vunpack.c.l.b16 %v595
  %v723 = vunpack.c.l.b16 %v596
  %v724 = vunpack.c.l.b16 %v597
  %v725 = vunpack.c.l.b16 %v598
  %v726 = vunpack.c.l.b16 %v599
  %v727 = vunpack.c.l.b16 %v600
  %v728 = vunpack.c.l.b16 %v601
  %v729 = vunpack.c.l.b16 %v602
  %v730 = vunpack.c.l.b16 %v603
  %v731 = vunpack.c.l.b16 %v604
  %v732 = vunpack.c.l.b16 %v605
  %v733 = vunpack.c.l.b16 %v606
  %v734 = vunpack.c.l.b16 %v607
  %v735 = vunpack.c.l.b16 %v608
  %v736 = vunpack.c.l.b16 %v609
  %v737 = vunpack.c.l.b16 %v610
  %v738 = vunpack.c.l.b16 %v611
  %v739 = vunpack.c.l.b16 %v612
  %v740 = vunpack.c.l.b16 %v613
  %v741 = vunpack.c.l.b16 %v614
  %v742 = vunpack.c.l.b16 %v615
  %v743 = vunpack.c.l.b16 %v616
  %v744 = vunpack.c.l.b16 %v617
  %v745 = vunpack.c.l.b16 %v618
  %v746 = vunpack.c.l.b16 %v619
  %v747 = vunpack.c.l.b16 %v620
  %v748 = vunpack.c.l.b16 %v621
  %v749 = vunpack.c.l.b16 %v622
  %v750 = vunpack.c.l.b16 %v623
  %v751 = vunpack.c.l.b16 %v624
  %v752 = vunpack.c.l.b16 %v625
  %v753 = vunpack.c.l.b16 %v626
  %v754 = vpack.c.b16 %v695, %v694
  %v755 = vpack.c.b16 %v697, %v696
  %v756 = vpack.c.b16 %v699, %v698
  %v757 = vpack.c.b16 %v701, %v700
  %v758 = vpack.c.b16 %v703, %v702
  %v759 = vpack.c.b16 %v705, %v704
  %v760 = vpack.c.b16 %v707, %v706
  %v761 = vpack.c.b16 %v709, %v708
  %v762 = vpack.c.b16 %v711, %v710
  %v763 = vpack.c.b16 %v713, %v712
  %v764 = vpack.c.b16 %v715, %v714
  %v765 = vpack.c.b16 %v717, %v716
  %v766 = vpack.c.b16 %v719, %v718
  %v767 = vpack.c.b16 %v721, %v720
  %v768 = vpack.c.b16 %v723, %v722
  %v769 = vpack.c.b16 %v725, %v724
  %v770 = vpack.c.b16 %v727, %v726
  %v771 = vpack.c.b16 %v729, %v728
  %v772 = vpack.c.b16 %v731, %v730
  %v773 = vpack.c.b16 %v733, %v732
  %v774 = vpack.c.b16 %v735, %v734
  %v775 = vpack.c.b16 %v737, %v736
  %v776 = vpack.c.b16 %v739, %v738
  %v777 = vpack.c.b16 %v741, %v740
  %v778 = vpack.c.b16 %v743, %v742
  %v779 = vpack.c.b16 %v745, %v744
  %v780 = vpack.c.b16 %v747, %v746
  %v781 = vpack.c.b16 %v749, %v748
  %v782 = vpack.c.b16 %v751, %v750
  %v783 = vpack.c.b16 %v753, %v752
  %v815 = vsel %vm545, %v525, 0
  %v818 = vsel %vm545, %v526, 0
  %820 = vmatprep.subr.bf16.mxu0 0
  %821 = vmatpush1.bf16.msra.mxu0 %v761
  %822 = vmatprep.subr.bf16.mxu0 0
  %823 = vmatpush1.bf16.msra.mxu0 %v760
  %824 = vmatprep.subr.bf16.mxu0 0
  %825 = vmatpush1.bf16.msra.mxu0 %v759
  %826 = vmatprep.subr.bf16.mxu0 0
  %827 = vmatpush1.bf16.msra.mxu0 %v758
  %828 = vmatprep.subr.bf16.mxu0 0
  %829 = vmatpush1.bf16.msra.mxu0 %v757
  %830 = vmatprep.subr.bf16.mxu0 0
  %831 = vmatpush1.bf16.msra.mxu0 %v756
  %832 = vmatprep.subr.bf16.mxu0 0
  %833 = vmatpush1.bf16.msra.mxu0 %v755
  %834 = vmatprep.subr.bf16.mxu0 0
  %835 = vmatpush1.bf16.msra.mxu0 %v754
  %836 = vmatprep.subr.bf16.mxu0 0
  %837 = vmatpush2.bf16.msra.mxu0 %v769
  %838 = vmatprep.subr.bf16.mxu0 0
  %839 = vmatpush2.bf16.msra.mxu0 %v768
  %840 = vmatprep.subr.bf16.mxu0 0
  %841 = vmatpush2.bf16.msra.mxu0 %v767
  %842 = vmatprep.subr.bf16.mxu0 0
  %843 = vmatpush2.bf16.msra.mxu0 %v766
  %844 = vmatprep.subr.bf16.mxu0 0
  %845 = vmatpush2.bf16.msra.mxu0 %v765
  %846 = vmatprep.subr.bf16.mxu0 0
  %847 = vmatpush2.bf16.msra.mxu0 %v764
  %848 = vmatprep.subr.bf16.mxu0 0
  %849 = vmatpush2.bf16.msra.mxu0 %v763
  %850 = vmatprep.subr.bf16.mxu0 0
  %851 = vmatpush2.bf16.msra.mxu0 %v762
  %852 = vmatprep.mubr.bf16.mxu0 %v555
  %853 = vmatmul.mubr.bf16.gmra.mxu0 %v548
  %v854 = vpop.f32.mrf.mxu0
  %v855 = vadd.f32 %v632, %v854
  %v856 = vpop.f32.mrf.mxu0
  %v857 = vpop.f32.mrf.mxu0
  %v858 = vadd.f32 %v632, %v857
  %v859 = vpop.f32.mrf.mxu0
  %860 = vmatprep.mubr.bf16.mxu0 %v558
  %861 = vmatmul.mubr.bf16.gmra.mxu0 %v552
  %v862 = vpop.f32.mrf.mxu0
  %v863 = vadd.f32 %v632, %v862
  %v864 = vpop.f32.mrf.mxu0
  %v865 = vpop.f32.mrf.mxu0
  %v866 = vadd.f32 %v632, %v865
  %v867 = vpop.f32.mrf.mxu0
  %868 = vdwg.mxu0
  %869 = vmatprep.subr.bf16.mxu0 0
  %870 = vmatpush1.bf16.msra.mxu0 %v777
  %871 = vmatprep.subr.bf16.mxu0 0
  %872 = vmatpush1.bf16.msra.mxu0 %v776
  %873 = vmatprep.subr.bf16.mxu0 0
  %874 = vmatpush1.bf16.msra.mxu0 %v775
  %875 = vmatprep.subr.bf16.mxu0 0
  %876 = vmatpush1.bf16.msra.mxu0 %v774
  %877 = vmatprep.subr.bf16.mxu0 0
  %878 = vmatpush1.bf16.msra.mxu0 %v773
  %879 = vmatprep.subr.bf16.mxu0 0
  %880 = vmatpush1.bf16.msra.mxu0 %v772
  %881 = vmatprep.subr.bf16.mxu0 0
  %882 = vmatpush1.bf16.msra.mxu0 %v771
  %883 = vmatprep.subr.bf16.mxu0 0
  %884 = vmatpush1.bf16.msra.mxu0 %v770
  %885 = vmatprep.subr.bf16.mxu0 0
  %886 = vmatpush2.bf16.msra.mxu0 0
  %887 = vmatprep.subr.bf16.mxu0 0
  %888 = vmatpush2.bf16.msra.mxu0 0
  %889 = vmatprep.subr.bf16.mxu0 0
  %890 = vmatpush2.bf16.msra.mxu0 %v783
  %891 = vmatprep.subr.bf16.mxu0 0
  %892 = vmatpush2.bf16.msra.mxu0 %v782
  %893 = vmatprep.subr.bf16.mxu0 0
  %894 = vmatpush2.bf16.msra.mxu0 %v781
  %895 = vmatprep.subr.bf16.mxu0 0
  %896 = vmatpush2.bf16.msra.mxu0 %v780
  %897 = vmatprep.subr.bf16.mxu0 0
  %898 = vmatpush2.bf16.msra.mxu0 %v779
  %899 = vmatprep.subr.bf16.mxu0 0
  %900 = vmatpush2.bf16.msra.mxu0 %v778
  %901 = vmatprep.mubr.bf16.mxu0 %v815
  %902 = vmatmul.mubr.bf16.gmra.mxu0 %v562
  %v903 = vpop.f32.mrf.mxu0
  %v904 = vadd.f32 %v855, %v903
  %v905 = vpop.f32.mrf.mxu0
  %v906 = vpop.f32.mrf.mxu0
  %v907 = vadd.f32 %v858, %v906
  %v908 = vpop.f32.mrf.mxu0
  %909 = vmatprep.mubr.bf16.mxu0 %v818
  %910 = vmatmul.mubr.bf16.gmra.mxu0 %v565
  %v911 = vpop.f32.mrf.mxu0
  %v912 = vadd.f32 %v863, %v911
  %v913 = vpop.f32.mrf.mxu0
  %v914 = vpop.f32.mrf.mxu0
  %v915 = vadd.f32 %v866, %v914
  %v916 = vpop.f32.mrf.mxu0
  %917 = vdwg.mxu0
  %vm918 = vcmp.ge.f32.partialorder %v904, 0.0
  %vm919 = vcmp.ge.f32.partialorder %v907, 0.0
  %vm920 = vcmp.ge.f32.partialorder %v912, 0.0
  %vm921 = vcmp.ge.f32.partialorder %v915, 0.0
  %v922 = vmul.f32 %v904, 0.01
  %v923 = vmul.f32 %v907, 0.01
  %v924 = vmul.f32 %v912, 0.01
  %v925 = vmul.f32 %v915, 0.01
  %v926 = vsel %vm918, %v904, %v922
  %v927 = vsel %vm919, %v907, %v923
  %v928 = vsel %vm920, %v912, %v924
  %v929 = vsel %vm921, %v915, %v925
  %v930 = vpack.c.bf16 %v927, %v926
  %v931 = vpack.c.bf16 %v929, %v928
  %v932 = vld [vmem:[%s9] sm:$0xf]
  %v933 = vld [vmem:[%s9 + $0x4] sm:$0xf]
  %v934 = vld [vmem:[%s9 + $0x8] sm:$0xf]
  %v935 = vld [vmem:[%s9 + $0xc] sm:$0xf]
  %v940 = vunpack.c.l.b16 %v932
  %v941 = vunpack.c.l.b16 %v933
  %v942 = vunpack.c.l.b16 %v934
  %v943 = vunpack.c.l.b16 %v935
  %v944 = vpack.c.b16 %v941, %v940
  %v945 = vpack.c.b16 %v943, %v942
  %v947 = vsel %vm560, %v944, 0
  %v950 = vsel %vm560, %v945, 0
  %952 = vmatprep.subr.bf16.mxu0 0
  %953 = vmatpush1.bf16.msra.mxu0 0
  %954 = vmatprep.subr.bf16.mxu0 0
  %955 = vmatpush1.bf16.msra.mxu0 0
  %956 = vmatprep.subr.bf16.mxu0 0
  %957 = vmatpush1.bf16.msra.mxu0 0
  %958 = vmatprep.subr.bf16.mxu0 0
  %959 = vmatpush1.bf16.msra.mxu0 0
  %960 = vmatprep.subr.bf16.mxu0 0
  %961 = vmatpush1.bf16.msra.mxu0 0
  %962 = vmatprep.subr.bf16.mxu0 0
  %963 = vmatpush1.bf16.msra.mxu0 0
  %964 = vmatprep.subr.bf16.mxu0 0
  %965 = vmatpush1.bf16.msra.mxu0 %v931
  %966 = vmatprep.subr.bf16.mxu0 0
  %967 = vmatpush1.bf16.msra.mxu0 %v930
  %968 = vmatprep.subr.bf16.mxu0 0
  %969 = vmatpush2.bf16.msra.mxu0 0
  %970 = vmatprep.subr.bf16.mxu0 0
  %971 = vmatpush2.bf16.msra.mxu0 0
  %972 = vmatprep.subr.bf16.mxu0 0
  %973 = vmatpush2.bf16.msra.mxu0 0
  %974 = vmatprep.subr.bf16.mxu0 0
  %975 = vmatpush2.bf16.msra.mxu0 0
  %976 = vmatprep.subr.bf16.mxu0 0
  %977 = vmatpush2.bf16.msra.mxu0 0
  %978 = vmatprep.subr.bf16.mxu0 0
  %979 = vmatpush2.bf16.msra.mxu0 0
  %980 = vmatprep.subr.bf16.mxu0 0
  %981 = vmatpush2.bf16.msra.mxu0 0
  %982 = vmatprep.subr.bf16.mxu0 0
  %983 = vmatpush2.bf16.msra.mxu0 0
  %984 = vmatprep.mubr.bf16.mxu0 0
  %985 = vmatmul.mubr.bf16.gmra.mxu0 %v947
  %v986 = vpop.f32.mrf.mxu0
  %v987 = vadd.f32 0.0, %v986
  %v988 = vpop.f32.mrf.mxu0
  %v989 = vpop.f32.mrf.mxu0
  %v990 = vadd.f32 0.0, %v989
  %v991 = vpop.f32.mrf.mxu0
  %992 = vmatprep.mubr.bf16.mxu0 0
  %993 = vmatmul.mubr.bf16.gmra.mxu0 %v950
  %v994 = vpop.f32.mrf.mxu0
  %v995 = vadd.f32 0.0, %v994
  %v996 = vpop.f32.mrf.mxu0
  %v997 = vpop.f32.mrf.mxu0
  %v998 = vadd.f32 0.0, %v997
  %v999 = vpop.f32.mrf.mxu0
  %1000 = vdwg.mxu0
  %v1001 = vpack.c.bf16 %v990, %v987
  %v1002 = vpack.c.bf16 %v998, %v995
  %s1003 = scalar_lea.vmem %s9, 16
  %v1004 = vld [vmem:[%s1003] sm:$0xf]
  %v1005 = vld [vmem:[%s1003 + $0x4] sm:$0xf]
  %v1006 = vld [vmem:[%s1003 + $0x8] sm:$0xf]
  %v1007 = vld [vmem:[%s1003 + $0xc] sm:$0xf]
  %v1012 = vunpack.c.l.b16 %v1004
  %v1013 = vunpack.c.l.b16 %v1005
  %v1014 = vunpack.c.l.b16 %v1006
  %v1015 = vunpack.c.l.b16 %v1007
  %v1016 = vpack.c.b16 %v1013, %v1012
  %v1017 = vpack.c.b16 %v1015, %v1014
  %v1019 = vsel %vm560, %v1016, 0
  %v1022 = vsel %vm560, %v1017, 0
  %1024 = vmatprep.subr.bf16.mxu0 0
  %1025 = vmatpush1.bf16.msra.mxu0 0
  %1026 = vmatprep.subr.bf16.mxu0 0
  %1027 = vmatpush1.bf16.msra.mxu0 0
  %1028 = vmatprep.subr.bf16.mxu0 0
  %1029 = vmatpush1.bf16.msra.mxu0 0
  %1030 = vmatprep.subr.bf16.mxu0 0
  %1031 = vmatpush1.bf16.msra.mxu0 0
  %1032 = vmatprep.subr.bf16.mxu0 0
  %1033 = vmatpush1.bf16.msra.mxu0 0
  %1034 = vmatprep.subr.bf16.mxu0 0
  %1035 = vmatpush1.bf16.msra.mxu0 0
  %1036 = vmatprep.subr.bf16.mxu0 0
  %1037 = vmatpush1.bf16.msra.mxu0 %v931
  %1038 = vmatprep.subr.bf16.mxu0 0
  %1039 = vmatpush1.bf16.msra.mxu0 %v930
  %1040 = vmatprep.subr.bf16.mxu0 0
  %1041 = vmatpush2.bf16.msra.mxu0 0
  %1042 = vmatprep.subr.bf16.mxu0 0
  %1043 = vmatpush2.bf16.msra.mxu0 0
  %1044 = vmatprep.subr.bf16.mxu0 0
  %1045 = vmatpush2.bf16.msra.mxu0 0
  %1046 = vmatprep.subr.bf16.mxu0 0
  %1047 = vmatpush2.bf16.msra.mxu0 0
  %1048 = vmatprep.subr.bf16.mxu0 0
  %1049 = vmatpush2.bf16.msra.mxu0 0
  %1050 = vmatprep.subr.bf16.mxu0 0
  %1051 = vmatpush2.bf16.msra.mxu0 0
  %1052 = vmatprep.subr.bf16.mxu0 0
  %1053 = vmatpush2.bf16.msra.mxu0 0
  %1054 = vmatprep.subr.bf16.mxu0 0
  %1055 = vmatpush2.bf16.msra.mxu0 0
  %1056 = vmatprep.mubr.bf16.mxu0 0
  %1057 = vmatmul.mubr.bf16.gmra.mxu0 %v1019
  %v1058 = vpop.f32.mrf.mxu0
  %v1059 = vadd.f32 0.0, %v1058
  %v1060 = vpop.f32.mrf.mxu0
  %v1061 = vpop.f32.mrf.mxu0
  %v1062 = vadd.f32 0.0, %v1061
  %v1063 = vpop.f32.mrf.mxu0
  %1064 = vmatprep.mubr.bf16.mxu0 0
  %1065 = vmatmul.mubr.bf16.gmra.mxu0 %v1022
  %v1066 = vpop.f32.mrf.mxu0
  %v1067 = vadd.f32 0.0, %v1066
  %v1068 = vpop.f32.mrf.mxu0
  %v1069 = vpop.f32.mrf.mxu0
  %v1070 = vadd.f32 0.0, %v1069
  %v1071 = vpop.f32.mrf.mxu0
  %1072 = vdwg.mxu0
  %v1073 = vpack.c.bf16 %v1062, %v1059
  %v1074 = vpack.c.bf16 %v1070, %v1067
  %s1075 = scalar_lea.vmem %s9, 32
  %v1076 = vld [vmem:[%s1075] sm:$0xf]
  %v1077 = vld [vmem:[%s1075 + $0x4] sm:$0xf]
  %v1078 = vld [vmem:[%s1075 + $0x8] sm:$0xf]
  %v1079 = vld [vmem:[%s1075 + $0xc] sm:$0xf]
  %v1084 = vunpack.c.l.b16 %v1076
  %v1085 = vunpack.c.l.b16 %v1077
  %v1086 = vunpack.c.l.b16 %v1078
  %v1087 = vunpack.c.l.b16 %v1079
  %v1088 = vpack.c.b16 %v1085, %v1084
  %v1089 = vpack.c.b16 %v1087, %v1086
  %v1091 = vsel %vm560, %v1088, 0
  %v1094 = vsel %vm560, %v1089, 0
  %1096 = vmatprep.subr.bf16.mxu0 0
  %1097 = vmatpush1.bf16.msra.mxu0 0
  %1098 = vmatprep.subr.bf16.mxu0 0
  %1099 = vmatpush1.bf16.msra.mxu0 0
  %1100 = vmatprep.subr.bf16.mxu0 0
  %1101 = vmatpush1.bf16.msra.mxu0 0
  %1102 = vmatprep.subr.bf16.mxu0 0
  %1103 = vmatpush1.bf16.msra.mxu0 0
  %1104 = vmatprep.subr.bf16.mxu0 0
  %1105 = vmatpush1.bf16.msra.mxu0 0
  %1106 = vmatprep.subr.bf16.mxu0 0
  %1107 = vmatpush1.bf16.msra.mxu0 0
  %1108 = vmatprep.subr.bf16.mxu0 0
  %1109 = vmatpush1.bf16.msra.mxu0 %v931
  %1110 = vmatprep.subr.bf16.mxu0 0
  %1111 = vmatpush1.bf16.msra.mxu0 %v930
  %1112 = vmatprep.subr.bf16.mxu0 0
  %1113 = vmatpush2.bf16.msra.mxu0 0
  %1114 = vmatprep.subr.bf16.mxu0 0
  %1115 = vmatpush2.bf16.msra.mxu0 0
  %1116 = vmatprep.subr.bf16.mxu0 0
  %1117 = vmatpush2.bf16.msra.mxu0 0
  %1118 = vmatprep.subr.bf16.mxu0 0
  %1119 = vmatpush2.bf16.msra.mxu0 0
  %1120 = vmatprep.subr.bf16.mxu0 0
  %1121 = vmatpush2.bf16.msra.mxu0 0
  %1122 = vmatprep.subr.bf16.mxu0 0
  %1123 = vmatpush2.bf16.msra.mxu0 0
  %1124 = vmatprep.subr.bf16.mxu0 0
  %1125 = vmatpush2.bf16.msra.mxu0 0
  %1126 = vmatprep.subr.bf16.mxu0 0
  %1127 = vmatpush2.bf16.msra.mxu0 0
  %1128 = vmatprep.mubr.bf16.mxu0 0
  %1129 = vmatmul.mubr.bf16.gmra.mxu0 %v1091
  %v1130 = vpop.f32.mrf.mxu0
  %v1131 = vadd.f32 0.0, %v1130
  %v1132 = vpop.f32.mrf.mxu0
  %v1133 = vpop.f32.mrf.mxu0
  %v1134 = vadd.f32 0.0, %v1133
  %v1135 = vpop.f32.mrf.mxu0
  %1136 = vmatprep.mubr.bf16.mxu0 0
  %1137 = vmatmul.mubr.bf16.gmra.mxu0 %v1094
  %v1138 = vpop.f32.mrf.mxu0
  %v1139 = vadd.f32 0.0, %v1138
  %v1140 = vpop.f32.mrf.mxu0
  %v1141 = vpop.f32.mrf.mxu0
  %v1142 = vadd.f32 0.0, %v1141
  %v1143 = vpop.f32.mrf.mxu0
  %1144 = vdwg.mxu0
  %v1145 = vpack.c.bf16 %v1134, %v1131
  %v1146 = vpack.c.bf16 %v1142, %v1139
  %s1147 = scalar_lea.vmem %s9, 48
  %v1148 = vld [vmem:[%s1147] sm:$0xf]
  %v1149 = vld [vmem:[%s1147 + $0x4] sm:$0xf]
  %v1150 = vld [vmem:[%s1147 + $0x8] sm:$0xf]
  %v1151 = vld [vmem:[%s1147 + $0xc] sm:$0xf]
  %v1156 = vunpack.c.l.b16 %v1148
  %v1157 = vunpack.c.l.b16 %v1149
  %v1158 = vunpack.c.l.b16 %v1150
  %v1159 = vunpack.c.l.b16 %v1151
  %v1160 = vpack.c.b16 %v1157, %v1156
  %v1161 = vpack.c.b16 %v1159, %v1158
  %v1163 = vsel %vm560, %v1160, 0
  %v1166 = vsel %vm560, %v1161, 0
  %1168 = vmatprep.subr.bf16.mxu0 0
  %1169 = vmatpush1.bf16.msra.mxu0 0
  %1170 = vmatprep.subr.bf16.mxu0 0
  %1171 = vmatpush1.bf16.msra.mxu0 0
  %1172 = vmatprep.subr.bf16.mxu0 0
  %1173 = vmatpush1.bf16.msra.mxu0 0
  %1174 = vmatprep.subr.bf16.mxu0 0
  %1175 = vmatpush1.bf16.msra.mxu0 0
  %1176 = vmatprep.subr.bf16.mxu0 0
  %1177 = vmatpush1.bf16.msra.mxu0 0
  %1178 = vmatprep.subr.bf16.mxu0 0
  %1179 = vmatpush1.bf16.msra.mxu0 0
  %1180 = vmatprep.subr.bf16.mxu0 0
  %1181 = vmatpush1.bf16.msra.mxu0 %v931
  %1182 = vmatprep.subr.bf16.mxu0 0
  %1183 = vmatpush1.bf16.msra.mxu0 %v930
  %1184 = vmatprep.subr.bf16.mxu0 0
  %1185 = vmatpush2.bf16.msra.mxu0 0
  %1186 = vmatprep.subr.bf16.mxu0 0
  %1187 = vmatpush2.bf16.msra.mxu0 0
  %1188 = vmatprep.subr.bf16.mxu0 0
  %1189 = vmatpush2.bf16.msra.mxu0 0
  %1190 = vmatprep.subr.bf16.mxu0 0
  %1191 = vmatpush2.bf16.msra.mxu0 0
  %1192 = vmatprep.subr.bf16.mxu0 0
  %1193 = vmatpush2.bf16.msra.mxu0 0
  %1194 = vmatprep.subr.bf16.mxu0 0
  %1195 = vmatpush2.bf16.msra.mxu0 0
  %1196 = vmatprep.subr.bf16.mxu0 0
  %1197 = vmatpush2.bf16.msra.mxu0 0
  %1198 = vmatprep.subr.bf16.mxu0 0
  %1199 = vmatpush2.bf16.msra.mxu0 0
  %1200 = vmatprep.mubr.bf16.mxu0 0
  %1201 = vmatmul.mubr.bf16.gmra.mxu0 %v1163
  %v1202 = vpop.f32.mrf.mxu0
  %v1203 = vadd.f32 0.0, %v1202
  %v1204 = vpop.f32.mrf.mxu0
  %v1205 = vpop.f32.mrf.mxu0
  %v1206 = vadd.f32 0.0, %v1205
  %v1207 = vpop.f32.mrf.mxu0
  %1208 = vmatprep.mubr.bf16.mxu0 0
  %1209 = vmatmul.mubr.bf16.gmra.mxu0 %v1166
  %v1210 = vpop.f32.mrf.mxu0
  %v1211 = vadd.f32 0.0, %v1210
  %v1212 = vpop.f32.mrf.mxu0
  %v1213 = vpop.f32.mrf.mxu0
  %v1214 = vadd.f32 0.0, %v1213
  %v1215 = vpop.f32.mrf.mxu0
  %1216 = vdwg.mxu0
  %v1217 = vpack.c.bf16 %v1206, %v1203
  %v1218 = vpack.c.bf16 %v1214, %v1211
  %s1219 = scalar_lea.vmem %s9, 64
  %v1220 = vld [vmem:[%s1219] sm:$0xf]
  %v1221 = vld [vmem:[%s1219 + $0x4] sm:$0xf]
  %v1222 = vld [vmem:[%s1219 + $0x8] sm:$0xf]
  %v1223 = vld [vmem:[%s1219 + $0xc] sm:$0xf]
  %v1228 = vunpack.c.l.b16 %v1220
  %v1229 = vunpack.c.l.b16 %v1221
  %v1230 = vunpack.c.l.b16 %v1222
  %v1231 = vunpack.c.l.b16 %v1223
  %v1232 = vpack.c.b16 %v1229, %v1228
  %v1233 = vpack.c.b16 %v1231, %v1230
  %v1235 = vsel %vm560, %v1232, 0
  %v1238 = vsel %vm560, %v1233, 0
  %1240 = vmatprep.subr.bf16.mxu0 0
  %1241 = vmatpush1.bf16.msra.mxu0 0
  %1242 = vmatprep.subr.bf16.mxu0 0
  %1243 = vmatpush1.bf16.msra.mxu0 0
  %1244 = vmatprep.subr.bf16.mxu0 0
  %1245 = vmatpush1.bf16.msra.mxu0 0
  %1246 = vmatprep.subr.bf16.mxu0 0
  %1247 = vmatpush1.bf16.msra.mxu0 0
  %1248 = vmatprep.subr.bf16.mxu0 0
  %1249 = vmatpush1.bf16.msra.mxu0 0
  %1250 = vmatprep.subr.bf16.mxu0 0
  %1251 = vmatpush1.bf16.msra.mxu0 0
  %1252 = vmatprep.subr.bf16.mxu0 0
  %1253 = vmatpush1.bf16.msra.mxu0 %v931
  %1254 = vmatprep.subr.bf16.mxu0 0
  %1255 = vmatpush1.bf16.msra.mxu0 %v930
  %1256 = vmatprep.subr.bf16.mxu0 0
  %1257 = vmatpush2.bf16.msra.mxu0 0
  %1258 = vmatprep.subr.bf16.mxu0 0
  %1259 = vmatpush2.bf16.msra.mxu0 0
  %1260 = vmatprep.subr.bf16.mxu0 0
  %1261 = vmatpush2.bf16.msra.mxu0 0
  %1262 = vmatprep.subr.bf16.mxu0 0
  %1263 = vmatpush2.bf16.msra.mxu0 0
  %1264 = vmatprep.subr.bf16.mxu0 0
  %1265 = vmatpush2.bf16.msra.mxu0 0
  %1266 = vmatprep.subr.bf16.mxu0 0
  %1267 = vmatpush2.bf16.msra.mxu0 0
  %1268 = vmatprep.subr.bf16.mxu0 0
  %1269 = vmatpush2.bf16.msra.mxu0 0
  %1270 = vmatprep.subr.bf16.mxu0 0
  %1271 = vmatpush2.bf16.msra.mxu0 0
  %1272 = vmatprep.mubr.bf16.mxu0 0
  %1273 = vmatmul.mubr.bf16.gmra.mxu0 %v1235
  %v1274 = vpop.f32.mrf.mxu0
  %v1275 = vadd.f32 0.0, %v1274
  %v1276 = vpop.f32.mrf.mxu0
  %v1277 = vpop.f32.mrf.mxu0
  %v1278 = vadd.f32 0.0, %v1277
  %v1279 = vpop.f32.mrf.mxu0
  %1280 = vmatprep.mubr.bf16.mxu0 0
  %1281 = vmatmul.mubr.bf16.gmra.mxu0 %v1238
  %v1282 = vpop.f32.mrf.mxu0
  %v1283 = vadd.f32 0.0, %v1282
  %v1284 = vpop.f32.mrf.mxu0
  %v1285 = vpop.f32.mrf.mxu0
  %v1286 = vadd.f32 0.0, %v1285
  %v1287 = vpop.f32.mrf.mxu0
  %1288 = vdwg.mxu0
  %v1289 = vpack.c.bf16 %v1278, %v1275
  %v1290 = vpack.c.bf16 %v1286, %v1283
  %1293 = vrot.lane.b32.xlu0 %v1073, 48
  %v1294 = vpop.permute.xlu0 %1293
  %1295 = vrot.lane.b32.xlu0 %v1074, 48
  %v1296 = vpop.permute.xlu0 %1295
  %1299 = vrot.lane.b32.xlu0 %v1145, 96
  %v1300 = vpop.permute.xlu0 %1299
  %1301 = vrot.lane.b32.xlu0 %v1146, 96
  %v1302 = vpop.permute.xlu0 %1301
  %1305 = vrot.lane.b32.xlu0 %v1217, 16
  %v1306 = vpop.permute.xlu0 %1305
  %1307 = vrot.lane.b32.xlu0 %v1218, 16
  %v1308 = vpop.permute.xlu0 %1307
  %1311 = vrot.lane.b32.xlu0 %v1289, 64
  %v1312 = vpop.permute.xlu0 %1311
  %1313 = vrot.lane.b32.xlu0 %v1290, 64
  %v1314 = vpop.permute.xlu0 %1313
  %vm1315 = vcmask 392192
  %v1318 = vsel %vm1315, %v1001, %v1294
  %v1321 = vsel %vm1315, %v1002, %v1296
  %v1323 = vsel %vm545, %v1318, %v1300
  %v1326 = vsel %vm545, %v1321, %v1302
  %vm1328 = vcmask 130048
  %v1330 = vsel %vm1328, %v1300, %v1306
  %v1332 = vsel %vm1328, %v1302, %v1308
  %v1334 = vsel %vm181, %v1330, %v1312
  %v1336 = vsel %vm181, %v1332, %v1314
  %v1337 = vld [vmem:[%s11] sm:$0xf]
  %v1338 = vld [vmem:[%s11 + $0x4] sm:$0xf]
  %v1339 = vld [vmem:[%s11 + $0x8] sm:$0xf]
  %v1340 = vld [vmem:[%s11 + $0xc] sm:$0xf]
  %v1341 = vld [vmem:[%s11 + $0x10] sm:$0xf]
  %v1342 = vld [vmem:[%s11 + $0x14] sm:$0xf]
  %v1343 = vld [vmem:[%s11 + $0x18] sm:$0xf]
  %v1344 = vld [vmem:[%s11 + $0x1c] sm:$0xf]
  %v1345 = vld [vmem:[%s11 + $0x20] sm:$0xf]
  %v1346 = vld [vmem:[%s11 + $0x24] sm:$0xf]
  %v1347 = vld [vmem:[%s11 + $0x28] sm:$0xf]
  %v1348 = vld [vmem:[%s11 + $0x2c] sm:$0xf]
  %v1349 = vld [vmem:[%s11 + $0x30] sm:$0xf]
  %v1350 = vld [vmem:[%s11 + $0x34] sm:$0xf]
  %v1351 = vld [vmem:[%s11 + $0x38] sm:$0xf]
  %v1352 = vld [vmem:[%s11 + $0x3c] sm:$0xf]
  %v1353 = vld [vmem:[%s11 + $0x40] sm:$0xf]
  %v1354 = vld [vmem:[%s11 + $0x44] sm:$0xf]
  %v1355 = vld [vmem:[%s11 + $0x48] sm:$0xf]
  %v1356 = vld [vmem:[%s11 + $0x4c] sm:$0xf]
  %v1357 = vld [vmem:[%s11 + $0x50] sm:$0xf]
  %v1358 = vld [vmem:[%s11 + $0x54] sm:$0xf]
  %v1359 = vld [vmem:[%s11 + $0x58] sm:$0xf]
  %v1360 = vld [vmem:[%s11 + $0x5c] sm:$0xf]
  %v1361 = vld [vmem:[%s11 + $0x60] sm:$0xf]
  %v1362 = vld [vmem:[%s11 + $0x64] sm:$0xf]
  %v1363 = vld [vmem:[%s11 + $0x68] sm:$0xf]
  %v1364 = vld [vmem:[%s11 + $0x6c] sm:$0xf]
  %v1365 = vld [vmem:[%s11 + $0x70] sm:$0xf]
  %v1366 = vld [vmem:[%s11 + $0x74] sm:$0xf]
  %v1367 = vld [vmem:[%s13] sm:$0x1]
  %v1369 = vlaneseq
  %v1370 = vshrl.u32 %v1369, 7
  %v1371 = vsub.s32 0, %v1370
  %v1372 = vrot.slane %v1367, %v1371
  %v1404 = vunpack.c.l.b16 %v1337
  %v1405 = vunpack.c.l.b16 %v1338
  %v1406 = vunpack.c.l.b16 %v1339
  %v1407 = vunpack.c.l.b16 %v1340
  %v1408 = vunpack.c.l.b16 %v1341
  %v1409 = vunpack.c.l.b16 %v1342
  %v1410 = vunpack.c.l.b16 %v1343
  %v1411 = vunpack.c.l.b16 %v1344
  %v1412 = vunpack.c.l.b16 %v1345
  %v1413 = vunpack.c.l.b16 %v1346
  %v1414 = vunpack.c.l.b16 %v1347
  %v1415 = vunpack.c.l.b16 %v1348
  %v1416 = vunpack.c.l.b16 %v1349
  %v1417 = vunpack.c.l.b16 %v1350
  %v1418 = vunpack.c.l.b16 %v1351
  %v1419 = vunpack.c.l.b16 %v1352
  %v1420 = vunpack.c.l.b16 %v1353
  %v1421 = vunpack.c.l.b16 %v1354
  %v1422 = vunpack.c.l.b16 %v1355
  %v1423 = vunpack.c.l.b16 %v1356
  %v1424 = vunpack.c.l.b16 %v1357
  %v1425 = vunpack.c.l.b16 %v1358
  %v1426 = vunpack.c.l.b16 %v1359
  %v1427 = vunpack.c.l.b16 %v1360
  %v1428 = vunpack.c.l.b16 %v1361
  %v1429 = vunpack.c.l.b16 %v1362
  %v1430 = vunpack.c.l.b16 %v1363
  %v1431 = vunpack.c.l.b16 %v1364
  %v1432 = vunpack.c.l.b16 %v1365
  %v1433 = vunpack.c.l.b16 %v1366
  %v1434 = vpack.c.b16 %v1405, %v1404
  %v1435 = vpack.c.b16 %v1407, %v1406
  %v1436 = vpack.c.b16 %v1409, %v1408
  %v1437 = vpack.c.b16 %v1411, %v1410
  %v1438 = vpack.c.b16 %v1413, %v1412
  %v1439 = vpack.c.b16 %v1415, %v1414
  %v1440 = vpack.c.b16 %v1417, %v1416
  %v1441 = vpack.c.b16 %v1419, %v1418
  %v1442 = vpack.c.b16 %v1421, %v1420
  %v1443 = vpack.c.b16 %v1423, %v1422
  %v1444 = vpack.c.b16 %v1425, %v1424
  %v1445 = vpack.c.b16 %v1427, %v1426
  %v1446 = vpack.c.b16 %v1429, %v1428
  %v1447 = vpack.c.b16 %v1431, %v1430
  %v1448 = vpack.c.b16 %v1433, %v1432
  %vm1464 = vcmask 916480
  %v1465 = vsel %vm1464, %v1334, 0
  %v1467 = vsel %vm1464, %v1336, 0
  %1469 = vmatprep.subr.bf16.mxu0 0
  %1470 = vmatpush1.bf16.msra.mxu0 %v1441
  %1471 = vmatprep.subr.bf16.mxu0 0
  %1472 = vmatpush1.bf16.msra.mxu0 %v1440
  %1473 = vmatprep.subr.bf16.mxu0 0
  %1474 = vmatpush1.bf16.msra.mxu0 %v1439
  %1475 = vmatprep.subr.bf16.mxu0 0
  %1476 = vmatpush1.bf16.msra.mxu0 %v1438
  %1477 = vmatprep.subr.bf16.mxu0 0
  %1478 = vmatpush1.bf16.msra.mxu0 %v1437
  %1479 = vmatprep.subr.bf16.mxu0 0
  %1480 = vmatpush1.bf16.msra.mxu0 %v1436
  %1481 = vmatprep.subr.bf16.mxu0 0
  %1482 = vmatpush1.bf16.msra.mxu0 %v1435
  %1483 = vmatprep.subr.bf16.mxu0 0
  %1484 = vmatpush1.bf16.msra.mxu0 %v1434
  %1485 = vmatprep.subr.bf16.mxu0 0
  %1486 = vmatpush2.bf16.msra.mxu0 0
  %1487 = vmatprep.subr.bf16.mxu0 0
  %1488 = vmatpush2.bf16.msra.mxu0 %v1448
  %1489 = vmatprep.subr.bf16.mxu0 0
  %1490 = vmatpush2.bf16.msra.mxu0 %v1447
  %1491 = vmatprep.subr.bf16.mxu0 0
  %1492 = vmatpush2.bf16.msra.mxu0 %v1446
  %1493 = vmatprep.subr.bf16.mxu0 0
  %1494 = vmatpush2.bf16.msra.mxu0 %v1445
  %1495 = vmatprep.subr.bf16.mxu0 0
  %1496 = vmatpush2.bf16.msra.mxu0 %v1444
  %1497 = vmatprep.subr.bf16.mxu0 0
  %1498 = vmatpush2.bf16.msra.mxu0 %v1443
  %1499 = vmatprep.subr.bf16.mxu0 0
  %1500 = vmatpush2.bf16.msra.mxu0 %v1442
  %1501 = vmatprep.mubr.bf16.mxu0 %v1465
  %1502 = vmatmul.mubr.bf16.gmra.mxu0 %v1323
  %v1503 = vpop.f32.mrf.mxu0
  %v1504 = vadd.f32 %v1372, %v1503
  %v1505 = vpop.f32.mrf.mxu0
  %v1506 = vpop.f32.mrf.mxu0
  %v1507 = vadd.f32 %v1372, %v1506
  %v1508 = vpop.f32.mrf.mxu0
  %1509 = vmatprep.mubr.bf16.mxu0 %v1467
  %1510 = vmatmul.mubr.bf16.gmra.mxu0 %v1326
  %v1511 = vpop.f32.mrf.mxu0
  %v1512 = vadd.f32 %v1372, %v1511
  %v1513 = vpop.f32.mrf.mxu0
  %v1514 = vpop.f32.mrf.mxu0
  %v1515 = vadd.f32 %v1372, %v1514
  %v1516 = vpop.f32.mrf.mxu0
  %1517 = vdwg.mxu0
  %vm1518 = vcmp.ge.f32.partialorder %v1504, 0.0
  %vm1519 = vcmp.ge.f32.partialorder %v1507, 0.0
  %vm1520 = vcmp.ge.f32.partialorder %v1512, 0.0
  %vm1521 = vcmp.ge.f32.partialorder %v1515, 0.0
  %v1522 = vmul.f32 %v1504, 0.01
  %v1523 = vmul.f32 %v1507, 0.01
  %v1524 = vmul.f32 %v1512, 0.01
  %v1525 = vmul.f32 %v1515, 0.01
  %v1526 = vsel %vm1518, %v1504, %v1522
  %v1527 = vsel %vm1519, %v1507, %v1523
  %v1528 = vsel %vm1520, %v1512, %v1524
  %v1529 = vsel %vm1521, %v1515, %v1525
  %v1530 = vpack.c.bf16 %v1527, %v1526
  %v1531 = vpack.c.bf16 %v1529, %v1528
  %v1532 = vld [vmem:[%s15] sm:$0xf]
  %v1533 = vld [vmem:[%s15 + $0x4] sm:$0xf]
  %v1536 = vunpack.c.l.b16 %v1532
  %v1537 = vunpack.c.l.b16 %v1533
  %v1538 = vpack.c.b16 %v1537, %v1536
  %v1540 = vsel %vm560, %v1538, 0
  %1542 = vmatprep.subr.bf16.mxu0 0
  %1543 = vmatpush1.bf16.msra.mxu0 0
  %1544 = vmatprep.subr.bf16.mxu0 0
  %1545 = vmatpush1.bf16.msra.mxu0 0
  %1546 = vmatprep.subr.bf16.mxu0 0
  %1547 = vmatpush1.bf16.msra.mxu0 0
  %1548 = vmatprep.subr.bf16.mxu0 0
  %1549 = vmatpush1.bf16.msra.mxu0 0
  %1550 = vmatprep.subr.bf16.mxu0 0
  %1551 = vmatpush1.bf16.msra.mxu0 0
  %1552 = vmatprep.subr.bf16.mxu0 0
  %1553 = vmatpush1.bf16.msra.mxu0 0
  %1554 = vmatprep.subr.bf16.mxu0 0
  %1555 = vmatpush1.bf16.msra.mxu0 %v1531
  %1556 = vmatprep.subr.bf16.mxu0 0
  %1557 = vmatpush1.bf16.msra.mxu0 %v1530
  %1558 = vmatprep.subr.bf16.mxu0 0
  %1559 = vmatpush2.bf16.msra.mxu0 0
  %1560 = vmatprep.subr.bf16.mxu0 0
  %1561 = vmatpush2.bf16.msra.mxu0 0
  %1562 = vmatprep.subr.bf16.mxu0 0
  %1563 = vmatpush2.bf16.msra.mxu0 0
  %1564 = vmatprep.subr.bf16.mxu0 0
  %1565 = vmatpush2.bf16.msra.mxu0 0
  %1566 = vmatprep.subr.bf16.mxu0 0
  %1567 = vmatpush2.bf16.msra.mxu0 0
  %1568 = vmatprep.subr.bf16.mxu0 0
  %1569 = vmatpush2.bf16.msra.mxu0 0
  %1570 = vmatprep.subr.bf16.mxu0 0
  %1571 = vmatpush2.bf16.msra.mxu0 0
  %1572 = vmatprep.subr.bf16.mxu0 0
  %1573 = vmatpush2.bf16.msra.mxu0 0
  %1574 = vmatprep.mubr.bf16.mxu0 0
  %1575 = vmatmul.mubr.bf16.gmra.mxu0 %v1540
  %v1576 = vpop.f32.mrf.mxu0
  %v1577 = vadd.f32 0.0, %v1576
  %v1578 = vpop.f32.mrf.mxu0
  %v1579 = vpop.f32.mrf.mxu0
  %v1580 = vadd.f32 0.0, %v1579
  %v1581 = vpop.f32.mrf.mxu0
  %1582 = vdwg.mxu0
  %v1583 = vpack.c.bf16 %v1580, %v1577
  %s1584 = scalar_lea.vmem %s15, 8
  %v1585 = vld [vmem:[%s1584] sm:$0xf]
  %v1586 = vld [vmem:[%s1584 + $0x4] sm:$0xf]
  %v1589 = vunpack.c.l.b16 %v1585
  %v1590 = vunpack.c.l.b16 %v1586
  %v1591 = vpack.c.b16 %v1590, %v1589
  %v1593 = vsel %vm560, %v1591, 0
  %1595 = vmatprep.subr.bf16.mxu0 0
  %1596 = vmatpush1.bf16.msra.mxu0 0
  %1597 = vmatprep.subr.bf16.mxu0 0
  %1598 = vmatpush1.bf16.msra.mxu0 0
  %1599 = vmatprep.subr.bf16.mxu0 0
  %1600 = vmatpush1.bf16.msra.mxu0 0
  %1601 = vmatprep.subr.bf16.mxu0 0
  %1602 = vmatpush1.bf16.msra.mxu0 0
  %1603 = vmatprep.subr.bf16.mxu0 0
  %1604 = vmatpush1.bf16.msra.mxu0 0
  %1605 = vmatprep.subr.bf16.mxu0 0
  %1606 = vmatpush1.bf16.msra.mxu0 0
  %1607 = vmatprep.subr.bf16.mxu0 0
  %1608 = vmatpush1.bf16.msra.mxu0 %v1531
  %1609 = vmatprep.subr.bf16.mxu0 0
  %1610 = vmatpush1.bf16.msra.mxu0 %v1530
  %1611 = vmatprep.subr.bf16.mxu0 0
  %1612 = vmatpush2.bf16.msra.mxu0 0
  %1613 = vmatprep.subr.bf16.mxu0 0
  %1614 = vmatpush2.bf16.msra.mxu0 0
  %1615 = vmatprep.subr.bf16.mxu0 0
  %1616 = vmatpush2.bf16.msra.mxu0 0
  %1617 = vmatprep.subr.bf16.mxu0 0
  %1618 = vmatpush2.bf16.msra.mxu0 0
  %1619 = vmatprep.subr.bf16.mxu0 0
  %1620 = vmatpush2.bf16.msra.mxu0 0
  %1621 = vmatprep.subr.bf16.mxu0 0
  %1622 = vmatpush2.bf16.msra.mxu0 0
  %1623 = vmatprep.subr.bf16.mxu0 0
  %1624 = vmatpush2.bf16.msra.mxu0 0
  %1625 = vmatprep.subr.bf16.mxu0 0
  %1626 = vmatpush2.bf16.msra.mxu0 0
  %1627 = vmatprep.mubr.bf16.mxu0 0
  %1628 = vmatmul.mubr.bf16.gmra.mxu0 %v1593
  %v1629 = vpop.f32.mrf.mxu0
  %v1630 = vadd.f32 0.0, %v1629
  %v1631 = vpop.f32.mrf.mxu0
  %v1632 = vpop.f32.mrf.mxu0
  %v1633 = vadd.f32 0.0, %v1632
  %v1634 = vpop.f32.mrf.mxu0
  %1635 = vdwg.mxu0
  %v1636 = vpack.c.bf16 %v1633, %v1630
  %s1637 = scalar_lea.vmem %s15, 16
  %v1638 = vld [vmem:[%s1637] sm:$0xf]
  %v1639 = vld [vmem:[%s1637 + $0x4] sm:$0xf]
  %v1642 = vunpack.c.l.b16 %v1638
  %v1643 = vunpack.c.l.b16 %v1639
  %v1644 = vpack.c.b16 %v1643, %v1642
  %v1646 = vsel %vm560, %v1644, 0
  %1648 = vmatprep.subr.bf16.mxu0 0
  %1649 = vmatpush1.bf16.msra.mxu0 0
  %1650 = vmatprep.subr.bf16.mxu0 0
  %1651 = vmatpush1.bf16.msra.mxu0 0
  %1652 = vmatprep.subr.bf16.mxu0 0
  %1653 = vmatpush1.bf16.msra.mxu0 0
  %1654 = vmatprep.subr.bf16.mxu0 0
  %1655 = vmatpush1.bf16.msra.mxu0 0
  %1656 = vmatprep.subr.bf16.mxu0 0
  %1657 = vmatpush1.bf16.msra.mxu0 0
  %1658 = vmatprep.subr.bf16.mxu0 0
  %1659 = vmatpush1.bf16.msra.mxu0 0
  %1660 = vmatprep.subr.bf16.mxu0 0
  %1661 = vmatpush1.bf16.msra.mxu0 %v1531
  %1662 = vmatprep.subr.bf16.mxu0 0
  %1663 = vmatpush1.bf16.msra.mxu0 %v1530
  %1664 = vmatprep.subr.bf16.mxu0 0
  %1665 = vmatpush2.bf16.msra.mxu0 0
  %1666 = vmatprep.subr.bf16.mxu0 0
  %1667 = vmatpush2.bf16.msra.mxu0 0
  %1668 = vmatprep.subr.bf16.mxu0 0
  %1669 = vmatpush2.bf16.msra.mxu0 0
  %1670 = vmatprep.subr.bf16.mxu0 0
  %1671 = vmatpush2.bf16.msra.mxu0 0
  %1672 = vmatprep.subr.bf16.mxu0 0
  %1673 = vmatpush2.bf16.msra.mxu0 0
  %1674 = vmatprep.subr.bf16.mxu0 0
  %1675 = vmatpush2.bf16.msra.mxu0 0
  %1676 = vmatprep.subr.bf16.mxu0 0
  %1677 = vmatpush2.bf16.msra.mxu0 0
  %1678 = vmatprep.subr.bf16.mxu0 0
  %1679 = vmatpush2.bf16.msra.mxu0 0
  %1680 = vmatprep.mubr.bf16.mxu0 0
  %1681 = vmatmul.mubr.bf16.gmra.mxu0 %v1646
  %v1682 = vpop.f32.mrf.mxu0
  %v1683 = vadd.f32 0.0, %v1682
  %v1684 = vpop.f32.mrf.mxu0
  %v1685 = vpop.f32.mrf.mxu0
  %v1686 = vadd.f32 0.0, %v1685
  %v1687 = vpop.f32.mrf.mxu0
  %1688 = vdwg.mxu0
  %v1689 = vpack.c.bf16 %v1686, %v1683
  %s1690 = scalar_lea.vmem %s15, 24
  %v1691 = vld [vmem:[%s1690] sm:$0xf]
  %v1692 = vld [vmem:[%s1690 + $0x4] sm:$0xf]
  %v1695 = vunpack.c.l.b16 %v1691
  %v1696 = vunpack.c.l.b16 %v1692
  %v1697 = vpack.c.b16 %v1696, %v1695
  %v1699 = vsel %vm560, %v1697, 0
  %1701 = vmatprep.subr.bf16.mxu0 0
  %1702 = vmatpush1.bf16.msra.mxu0 0
  %1703 = vmatprep.subr.bf16.mxu0 0
  %1704 = vmatpush1.bf16.msra.mxu0 0
  %1705 = vmatprep.subr.bf16.mxu0 0
  %1706 = vmatpush1.bf16.msra.mxu0 0
  %1707 = vmatprep.subr.bf16.mxu0 0
  %1708 = vmatpush1.bf16.msra.mxu0 0
  %1709 = vmatprep.subr.bf16.mxu0 0
  %1710 = vmatpush1.bf16.msra.mxu0 0
  %1711 = vmatprep.subr.bf16.mxu0 0
  %1712 = vmatpush1.bf16.msra.mxu0 0
  %1713 = vmatprep.subr.bf16.mxu0 0
  %1714 = vmatpush1.bf16.msra.mxu0 %v1531
  %1715 = vmatprep.subr.bf16.mxu0 0
  %1716 = vmatpush1.bf16.msra.mxu0 %v1530
  %1717 = vmatprep.subr.bf16.mxu0 0
  %1718 = vmatpush2.bf16.msra.mxu0 0
  %1719 = vmatprep.subr.bf16.mxu0 0
  %1720 = vmatpush2.bf16.msra.mxu0 0
  %1721 = vmatprep.subr.bf16.mxu0 0
  %1722 = vmatpush2.bf16.msra.mxu0 0
  %1723 = vmatprep.subr.bf16.mxu0 0
  %1724 = vmatpush2.bf16.msra.mxu0 0
  %1725 = vmatprep.subr.bf16.mxu0 0
  %1726 = vmatpush2.bf16.msra.mxu0 0
  %1727 = vmatprep.subr.bf16.mxu0 0
  %1728 = vmatpush2.bf16.msra.mxu0 0
  %1729 = vmatprep.subr.bf16.mxu0 0
  %1730 = vmatpush2.bf16.msra.mxu0 0
  %1731 = vmatprep.subr.bf16.mxu0 0
  %1732 = vmatpush2.bf16.msra.mxu0 0
  %1733 = vmatprep.mubr.bf16.mxu0 0
  %1734 = vmatmul.mubr.bf16.gmra.mxu0 %v1699
  %v1735 = vpop.f32.mrf.mxu0
  %v1736 = vadd.f32 0.0, %v1735
  %v1737 = vpop.f32.mrf.mxu0
  %v1738 = vpop.f32.mrf.mxu0
  %v1739 = vadd.f32 0.0, %v1738
  %v1740 = vpop.f32.mrf.mxu0
  %1741 = vdwg.mxu0
  %v1742 = vpack.c.bf16 %v1739, %v1736
  %s1743 = scalar_lea.vmem %s15, 32
  %v1744 = vld [vmem:[%s1743] sm:$0xf]
  %v1745 = vld [vmem:[%s1743 + $0x4] sm:$0xf]
  %v1748 = vunpack.c.l.b16 %v1744
  %v1749 = vunpack.c.l.b16 %v1745
  %v1750 = vpack.c.b16 %v1749, %v1748
  %v1752 = vsel %vm560, %v1750, 0
  %1754 = vmatprep.subr.bf16.mxu0 0
  %1755 = vmatpush1.bf16.msra.mxu0 0
  %1756 = vmatprep.subr.bf16.mxu0 0
  %1757 = vmatpush1.bf16.msra.mxu0 0
  %1758 = vmatprep.subr.bf16.mxu0 0
  %1759 = vmatpush1.bf16.msra.mxu0 0
  %1760 = vmatprep.subr.bf16.mxu0 0
  %1761 = vmatpush1.bf16.msra.mxu0 0
  %1762 = vmatprep.subr.bf16.mxu0 0
  %1763 = vmatpush1.bf16.msra.mxu0 0
  %1764 = vmatprep.subr.bf16.mxu0 0
  %1765 = vmatpush1.bf16.msra.mxu0 0
  %1766 = vmatprep.subr.bf16.mxu0 0
  %1767 = vmatpush1.bf16.msra.mxu0 %v1531
  %1768 = vmatprep.subr.bf16.mxu0 0
  %1769 = vmatpush1.bf16.msra.mxu0 %v1530
  %1770 = vmatprep.subr.bf16.mxu0 0
  %1771 = vmatpush2.bf16.msra.mxu0 0
  %1772 = vmatprep.subr.bf16.mxu0 0
  %1773 = vmatpush2.bf16.msra.mxu0 0
  %1774 = vmatprep.subr.bf16.mxu0 0
  %1775 = vmatpush2.bf16.msra.mxu0 0
  %1776 = vmatprep.subr.bf16.mxu0 0
  %1777 = vmatpush2.bf16.msra.mxu0 0
  %1778 = vmatprep.subr.bf16.mxu0 0
  %1779 = vmatpush2.bf16.msra.mxu0 0
  %1780 = vmatprep.subr.bf16.mxu0 0
  %1781 = vmatpush2.bf16.msra.mxu0 0
  %1782 = vmatprep.subr.bf16.mxu0 0
  %1783 = vmatpush2.bf16.msra.mxu0 0
  %1784 = vmatprep.subr.bf16.mxu0 0
  %1785 = vmatpush2.bf16.msra.mxu0 0
  %1786 = vmatprep.mubr.bf16.mxu0 0
  %1787 = vmatmul.mubr.bf16.gmra.mxu0 %v1752
  %v1788 = vpop.f32.mrf.mxu0
  %v1789 = vadd.f32 0.0, %v1788
  %v1790 = vpop.f32.mrf.mxu0
  %v1791 = vpop.f32.mrf.mxu0
  %v1792 = vadd.f32 0.0, %v1791
  %v1793 = vpop.f32.mrf.mxu0
  %1794 = vdwg.mxu0
  %v1795 = vpack.c.bf16 %v1792, %v1789
  %v1796 = vld [vmem:[%s17] sm:$0xf]
  %v1797 = vld [vmem:[%s17 + $0x4] sm:$0xf]
  %v1798 = vld [vmem:[%s17 + $0x8] sm:$0xf]
  %v1799 = vld [vmem:[%s17 + $0xc] sm:$0xf]
  %v1800 = vld [vmem:[%s17 + $0x10] sm:$0xf]
  %v1801 = vld [vmem:[%s17 + $0x14] sm:$0xf]
  %v1802 = vld [vmem:[%s17 + $0x18] sm:$0xf]
  %v1803 = vld [vmem:[%s17 + $0x1c] sm:$0xf]
  %v1804 = vld [vmem:[%s17 + $0x20] sm:$0xf]
  %v1805 = vld [vmem:[%s17 + $0x24] sm:$0xf]
  %v1806 = vld [vmem:[%s17 + $0x28] sm:$0xf]
  %v1807 = vld [vmem:[%s17 + $0x2c] sm:$0xf]
  %v1808 = vld [vmem:[%s17 + $0x30] sm:$0xf]
  %v1809 = vld [vmem:[%s17 + $0x34] sm:$0xf]
  %v1810 = vld [vmem:[%s17 + $0x38] sm:$0xf]
  %v1811 = vld [vmem:[%s17 + $0x3c] sm:$0xf]
  %v1812 = vld [vmem:[%s17 + $0x40] sm:$0xf]
  %v1813 = vld [vmem:[%s17 + $0x44] sm:$0xf]
  %v1814 = vld [vmem:[%s17 + $0x48] sm:$0xf]
  %v1815 = vld [vmem:[%s17 + $0x4c] sm:$0xf]
  %v1816 = vld [vmem:[%s17 + $0x50] sm:$0xf]
  %v1817 = vld [vmem:[%s17 + $0x54] sm:$0xf]
  %v1818 = vld [vmem:[%s17 + $0x58] sm:$0xf]
  %v1819 = vld [vmem:[%s17 + $0x5c] sm:$0xf]
  %v1820 = vld [vmem:[%s17 + $0x60] sm:$0xf]
  %v1821 = vld [vmem:[%s17 + $0x64] sm:$0xf]
  %v1822 = vld [vmem:[%s17 + $0x68] sm:$0xf]
  %v1823 = vld [vmem:[%s17 + $0x6c] sm:$0xf]
  %v1824 = vld [vmem:[%s17 + $0x70] sm:$0xf]
  %v1825 = vld [vmem:[%s17 + $0x74] sm:$0xf]
  %v1826 = vld [vmem:[%s17 + $0x78] sm:$0xf]
  %v1827 = vld [vmem:[%s17 + $0x7c] sm:$0xf]
  %v1828 = vld [vmem:[%s17 + $0x80] sm:$0xf]
  %v1829 = vld [vmem:[%s17 + $0x84] sm:$0xf]
  %v1830 = vld [vmem:[%s17 + $0x88] sm:$0xf]
  %v1831 = vld [vmem:[%s17 + $0x8c] sm:$0xf]
  %v1832 = vld [vmem:[%s17 + $0x90] sm:$0xf]
  %v1833 = vld [vmem:[%s17 + $0x94] sm:$0xf]
  %v1834 = vld [vmem:[%s17 + $0x98] sm:$0xf]
  %v1835 = vld [vmem:[%s17 + $0x9c] sm:$0xf]
  %v1836 = vld [vmem:[%s17 + $0xa0] sm:$0xf]
  %v1837 = vld [vmem:[%s17 + $0xa4] sm:$0xf]
  %v1838 = vld [vmem:[%s17 + $0xa8] sm:$0xf]
  %v1839 = vld [vmem:[%s17 + $0xac] sm:$0xf]
  %v1840 = vld [vmem:[%s17 + $0xb0] sm:$0xf]
  %v1841 = vld [vmem:[%s17 + $0xb4] sm:$0xf]
  %v1842 = vld [vmem:[%s17 + $0xb8] sm:$0xf]
  %v1843 = vld [vmem:[%s17 + $0xbc] sm:$0xf]
  %v1844 = vld [vmem:[%s17 + $0xc0] sm:$0xf]
  %v1845 = vld [vmem:[%s17 + $0xc4] sm:$0xf]
  %v1846 = vld [vmem:[%s17 + $0xc8] sm:$0xf]
  %v1847 = vld [vmem:[%s17 + $0xcc] sm:$0xf]
  %v1848 = vld [vmem:[%s17 + $0xd0] sm:$0xf]
  %v1849 = vld [vmem:[%s17 + $0xd4] sm:$0xf]
  %v1850 = vld [vmem:[%s17 + $0xd8] sm:$0xf]
  %v1851 = vld [vmem:[%s17 + $0xdc] sm:$0xf]
  %v1852 = vld [vmem:[%s17 + $0xe0] sm:$0xf]
  %v1853 = vld [vmem:[%s17 + $0xe4] sm:$0xf]
  %v1854 = vld [vmem:[%s17 + $0xe8] sm:$0xf]
  %v1855 = vld [vmem:[%s17 + $0xec] sm:$0xf]
  %v1856 = vld [vmem:[%s17 + $0xf0] sm:$0xf]
  %v1857 = vld [vmem:[%s17 + $0xf4] sm:$0xf]
  %v1858 = vld [vmem:[%s17 + $0xf8] sm:$0xf]
  %v1859 = vld [vmem:[%s17 + $0xfc] sm:$0xf]
  %v1860 = vld [vmem:[%s17 + $0x100] sm:$0xf]
  %v1861 = vld [vmem:[%s17 + $0x104] sm:$0xf]
  %v1862 = vld [vmem:[%s17 + $0x108] sm:$0xf]
  %v1863 = vld [vmem:[%s17 + $0x10c] sm:$0xf]
  %v1864 = vld [vmem:[%s17 + $0x110] sm:$0xf]
  %v1865 = vld [vmem:[%s17 + $0x114] sm:$0xf]
  %v1866 = vld [vmem:[%s17 + $0x118] sm:$0xf]
  %v1867 = vld [vmem:[%s17 + $0x11c] sm:$0xf]
  %v1868 = vld [vmem:[%s17 + $0x120] sm:$0xf]
  %v1869 = vld [vmem:[%s17 + $0x124] sm:$0xf]
  %v1870 = vld [vmem:[%s17 + $0x128] sm:$0xf]
  %v1871 = vld [vmem:[%s17 + $0x12c] sm:$0xf]
  %v1872 = vld [vmem:[%s17 + $0x130] sm:$0xf]
  %v1873 = vld [vmem:[%s17 + $0x134] sm:$0xf]
  %v1874 = vld [vmem:[%s17 + $0x138] sm:$0xf]
  %v1875 = vld [vmem:[%s17 + $0x13c] sm:$0xf]
  %v1876 = vld [vmem:[%s19] sm:$0x1]
  %v1878 = vlaneseq
  %v1879 = vshrl.u32 %v1878, 7
  %v1880 = vsub.s32 0, %v1879
  %v1881 = vrot.slane %v1876, %v1880
  %v1963 = vunpack.c.l.b16 %v1796
  %v1964 = vunpack.c.l.b16 %v1797
  %v1965 = vunpack.c.l.b16 %v1798
  %v1966 = vunpack.c.l.b16 %v1799
  %v1967 = vunpack.c.l.b16 %v1800
  %v1968 = vunpack.c.l.b16 %v1801
  %v1969 = vunpack.c.l.b16 %v1802
  %v1970 = vunpack.c.l.b16 %v1803
  %v1971 = vunpack.c.l.b16 %v1804
  %v1972 = vunpack.c.l.b16 %v1805
  %v1973 = vunpack.c.l.b16 %v1806
  %v1974 = vunpack.c.l.b16 %v1807
  %v1975 = vunpack.c.l.b16 %v1808
  %v1976 = vunpack.c.l.b16 %v1809
  %v1977 = vunpack.c.l.b16 %v1810
  %v1978 = vunpack.c.l.b16 %v1811
  %v1979 = vunpack.c.l.b16 %v1812
  %v1980 = vunpack.c.l.b16 %v1813
  %v1981 = vunpack.c.l.b16 %v1814
  %v1982 = vunpack.c.l.b16 %v1815
  %v1983 = vunpack.c.l.b16 %v1816
  %v1984 = vunpack.c.l.b16 %v1817
  %v1985 = vunpack.c.l.b16 %v1818
  %v1986 = vunpack.c.l.b16 %v1819
  %v1987 = vunpack.c.l.b16 %v1820
  %v1988 = vunpack.c.l.b16 %v1821
  %v1989 = vunpack.c.l.b16 %v1822
  %v1990 = vunpack.c.l.b16 %v1823
  %v1991 = vunpack.c.l.b16 %v1824
  %v1992 = vunpack.c.l.b16 %v1825
  %v1993 = vunpack.c.l.b16 %v1826
  %v1994 = vunpack.c.l.b16 %v1827
  %v1995 = vunpack.c.l.b16 %v1828
  %v1996 = vunpack.c.l.b16 %v1829
  %v1997 = vunpack.c.l.b16 %v1830
  %v1998 = vunpack.c.l.b16 %v1831
  %v1999 = vunpack.c.l.b16 %v1832
  %v2000 = vunpack.c.l.b16 %v1833
  %v2001 = vunpack.c.l.b16 %v1834
  %v2002 = vunpack.c.l.b16 %v1835
  %v2003 = vunpack.c.l.b16 %v1836
  %v2004 = vunpack.c.l.b16 %v1837
  %v2005 = vunpack.c.l.b16 %v1838
  %v2006 = vunpack.c.l.b16 %v1839
  %v2007 = vunpack.c.l.b16 %v1840
  %v2008 = vunpack.c.l.b16 %v1841
  %v2009 = vunpack.c.l.b16 %v1842
  %v2010 = vunpack.c.l.b16 %v1843
  %v2011 = vunpack.c.l.b16 %v1844
  %v2012 = vunpack.c.l.b16 %v1845
  %v2013 = vunpack.c.l.b16 %v1846
  %v2014 = vunpack.c.l.b16 %v1847
  %v2015 = vunpack.c.l.b16 %v1848
  %v2016 = vunpack.c.l.b16 %v1849
  %v2017 = vunpack.c.l.b16 %v1850
  %v2018 = vunpack.c.l.b16 %v1851
  %v2019 = vunpack.c.l.b16 %v1852
  %v2020 = vunpack.c.l.b16 %v1853
  %v2021 = vunpack.c.l.b16 %v1854
  %v2022 = vunpack.c.l.b16 %v1855
  %v2023 = vunpack.c.l.b16 %v1856
  %v2024 = vunpack.c.l.b16 %v1857
  %v2025 = vunpack.c.l.b16 %v1858
  %v2026 = vunpack.c.l.b16 %v1859
  %v2027 = vunpack.c.l.b16 %v1860
  %v2028 = vunpack.c.l.b16 %v1861
  %v2029 = vunpack.c.l.b16 %v1862
  %v2030 = vunpack.c.l.b16 %v1863
  %v2031 = vunpack.c.l.b16 %v1864
  %v2032 = vunpack.c.l.b16 %v1865
  %v2033 = vunpack.c.l.b16 %v1866
  %v2034 = vunpack.c.l.b16 %v1867
  %v2035 = vunpack.c.l.b16 %v1868
  %v2036 = vunpack.c.l.b16 %v1869
  %v2037 = vunpack.c.l.b16 %v1870
  %v2038 = vunpack.c.l.b16 %v1871
  %v2039 = vunpack.c.l.b16 %v1872
  %v2040 = vunpack.c.l.b16 %v1873
  %v2041 = vunpack.c.l.b16 %v1874
  %v2042 = vunpack.c.l.b16 %v1875
  %v2043 = vpack.c.b16 %v1964, %v1963
  %v2044 = vpack.c.b16 %v1966, %v1965
  %v2045 = vpack.c.b16 %v1968, %v1967
  %v2046 = vpack.c.b16 %v1970, %v1969
  %v2047 = vpack.c.b16 %v1972, %v1971
  %v2048 = vpack.c.b16 %v1974, %v1973
  %v2049 = vpack.c.b16 %v1976, %v1975
  %v2050 = vpack.c.b16 %v1978, %v1977
  %v2051 = vpack.c.b16 %v1980, %v1979
  %v2052 = vpack.c.b16 %v1982, %v1981
  %v2053 = vpack.c.b16 %v1984, %v1983
  %v2054 = vpack.c.b16 %v1986, %v1985
  %v2055 = vpack.c.b16 %v1988, %v1987
  %v2056 = vpack.c.b16 %v1990, %v1989
  %v2057 = vpack.c.b16 %v1992, %v1991
  %v2058 = vpack.c.b16 %v1994, %v1993
  %v2059 = vpack.c.b16 %v1996, %v1995
  %v2060 = vpack.c.b16 %v1998, %v1997
  %v2061 = vpack.c.b16 %v2000, %v1999
  %v2062 = vpack.c.b16 %v2002, %v2001
  %v2063 = vpack.c.b16 %v2004, %v2003
  %v2064 = vpack.c.b16 %v2006, %v2005
  %v2065 = vpack.c.b16 %v2008, %v2007
  %v2066 = vpack.c.b16 %v2010, %v2009
  %v2067 = vpack.c.b16 %v2012, %v2011
  %v2068 = vpack.c.b16 %v2014, %v2013
  %v2069 = vpack.c.b16 %v2016, %v2015
  %v2070 = vpack.c.b16 %v2018, %v2017
  %v2071 = vpack.c.b16 %v2020, %v2019
  %v2072 = vpack.c.b16 %v2022, %v2021
  %v2073 = vpack.c.b16 %v2024, %v2023
  %v2074 = vpack.c.b16 %v2026, %v2025
  %v2075 = vpack.c.b16 %v2028, %v2027
  %v2076 = vpack.c.b16 %v2030, %v2029
  %v2077 = vpack.c.b16 %v2032, %v2031
  %v2078 = vpack.c.b16 %v2034, %v2033
  %v2079 = vpack.c.b16 %v2036, %v2035
  %v2080 = vpack.c.b16 %v2038, %v2037
  %v2081 = vpack.c.b16 %v2040, %v2039
  %v2082 = vpack.c.b16 %v2042, %v2041
  %2123 = vmatprep.subr.bf16.mxu0 0
  %2124 = vmatpush1.bf16.msra.mxu0 %v2050
  %2125 = vmatprep.subr.bf16.mxu0 0
  %2126 = vmatpush1.bf16.msra.mxu0 %v2049
  %2127 = vmatprep.subr.bf16.mxu0 0
  %2128 = vmatpush1.bf16.msra.mxu0 %v2048
  %2129 = vmatprep.subr.bf16.mxu0 0
  %2130 = vmatpush1.bf16.msra.mxu0 %v2047
  %2131 = vmatprep.subr.bf16.mxu0 0
  %2132 = vmatpush1.bf16.msra.mxu0 %v2046
  %2133 = vmatprep.subr.bf16.mxu0 0
  %2134 = vmatpush1.bf16.msra.mxu0 %v2045
  %2135 = vmatprep.subr.bf16.mxu0 0
  %2136 = vmatpush1.bf16.msra.mxu0 %v2044
  %2137 = vmatprep.subr.bf16.mxu0 0
  %2138 = vmatpush1.bf16.msra.mxu0 %v2043
  %2139 = vmatprep.subr.bf16.mxu0 0
  %2140 = vmatpush2.bf16.msra.mxu0 %v2058
  %2141 = vmatprep.subr.bf16.mxu0 0
  %2142 = vmatpush2.bf16.msra.mxu0 %v2057
  %2143 = vmatprep.subr.bf16.mxu0 0
  %2144 = vmatpush2.bf16.msra.mxu0 %v2056
  %2145 = vmatprep.subr.bf16.mxu0 0
  %2146 = vmatpush2.bf16.msra.mxu0 %v2055
  %2147 = vmatprep.subr.bf16.mxu0 0
  %2148 = vmatpush2.bf16.msra.mxu0 %v2054
  %2149 = vmatprep.subr.bf16.mxu0 0
  %2150 = vmatpush2.bf16.msra.mxu0 %v2053
  %2151 = vmatprep.subr.bf16.mxu0 0
  %2152 = vmatpush2.bf16.msra.mxu0 %v2052
  %2153 = vmatprep.subr.bf16.mxu0 0
  %2154 = vmatpush2.bf16.msra.mxu0 %v2051
  %2155 = vmatprep.mubr.bf16.mxu0 %v1636
  %2156 = vmatmul.mubr.bf16.gmra.mxu0 %v1583
  %v2157 = vpop.f32.mrf.mxu0
  %v2158 = vadd.f32 %v1881, %v2157
  %v2159 = vpop.f32.mrf.mxu0
  %v2160 = vpop.f32.mrf.mxu0
  %v2161 = vadd.f32 %v1881, %v2160
  %v2162 = vpop.f32.mrf.mxu0
  %2163 = vdwg.mxu0
  %2164 = vmatprep.subr.bf16.mxu0 0
  %2165 = vmatpush1.bf16.msra.mxu0 %v2066
  %2166 = vmatprep.subr.bf16.mxu0 0
  %2167 = vmatpush1.bf16.msra.mxu0 %v2065
  %2168 = vmatprep.subr.bf16.mxu0 0
  %2169 = vmatpush1.bf16.msra.mxu0 %v2064
  %2170 = vmatprep.subr.bf16.mxu0 0
  %2171 = vmatpush1.bf16.msra.mxu0 %v2063
  %2172 = vmatprep.subr.bf16.mxu0 0
  %2173 = vmatpush1.bf16.msra.mxu0 %v2062
  %2174 = vmatprep.subr.bf16.mxu0 0
  %2175 = vmatpush1.bf16.msra.mxu0 %v2061
  %2176 = vmatprep.subr.bf16.mxu0 0
  %2177 = vmatpush1.bf16.msra.mxu0 %v2060
  %2178 = vmatprep.subr.bf16.mxu0 0
  %2179 = vmatpush1.bf16.msra.mxu0 %v2059
  %2180 = vmatprep.subr.bf16.mxu0 0
  %2181 = vmatpush2.bf16.msra.mxu0 %v2074
  %2182 = vmatprep.subr.bf16.mxu0 0
  %2183 = vmatpush2.bf16.msra.mxu0 %v2073
  %2184 = vmatprep.subr.bf16.mxu0 0
  %2185 = vmatpush2.bf16.msra.mxu0 %v2072
  %2186 = vmatprep.subr.bf16.mxu0 0
  %2187 = vmatpush2.bf16.msra.mxu0 %v2071
  %2188 = vmatprep.subr.bf16.mxu0 0
  %2189 = vmatpush2.bf16.msra.mxu0 %v2070
  %2190 = vmatprep.subr.bf16.mxu0 0
  %2191 = vmatpush2.bf16.msra.mxu0 %v2069
  %2192 = vmatprep.subr.bf16.mxu0 0
  %2193 = vmatpush2.bf16.msra.mxu0 %v2068
  %2194 = vmatprep.subr.bf16.mxu0 0
  %2195 = vmatpush2.bf16.msra.mxu0 %v2067
  %2196 = vmatprep.mubr.bf16.mxu0 %v1742
  %2197 = vmatmul.mubr.bf16.gmra.mxu0 %v1689
  %v2198 = vpop.f32.mrf.mxu0
  %v2199 = vadd.f32 %v2158, %v2198
  %v2200 = vpop.f32.mrf.mxu0
  %v2201 = vpop.f32.mrf.mxu0
  %v2202 = vadd.f32 %v2161, %v2201
  %v2203 = vpop.f32.mrf.mxu0
  %2204 = vdwg.mxu0
  %2205 = vmatprep.subr.bf16.mxu0 0
  %2206 = vmatpush1.bf16.msra.mxu0 %v2082
  %2207 = vmatprep.subr.bf16.mxu0 0
  %2208 = vmatpush1.bf16.msra.mxu0 %v2081
  %2209 = vmatprep.subr.bf16.mxu0 0
  %2210 = vmatpush1.bf16.msra.mxu0 %v2080
  %2211 = vmatprep.subr.bf16.mxu0 0
  %2212 = vmatpush1.bf16.msra.mxu0 %v2079
  %2213 = vmatprep.subr.bf16.mxu0 0
  %2214 = vmatpush1.bf16.msra.mxu0 %v2078
  %2215 = vmatprep.subr.bf16.mxu0 0
  %2216 = vmatpush1.bf16.msra.mxu0 %v2077
  %2217 = vmatprep.subr.bf16.mxu0 0
  %2218 = vmatpush1.bf16.msra.mxu0 %v2076
  %2219 = vmatprep.subr.bf16.mxu0 0
  %2220 = vmatpush1.bf16.msra.mxu0 %v2075
  %2221 = vmatprep.subr.bf16.mxu0 0
  %2222 = vmatpush2.bf16.msra.mxu0 0
  %2223 = vmatprep.subr.bf16.mxu0 0
  %2224 = vmatpush2.bf16.msra.mxu0 0
  %2225 = vmatprep.subr.bf16.mxu0 0
  %2226 = vmatpush2.bf16.msra.mxu0 0
  %2227 = vmatprep.subr.bf16.mxu0 0
  %2228 = vmatpush2.bf16.msra.mxu0 0
  %2229 = vmatprep.subr.bf16.mxu0 0
  %2230 = vmatpush2.bf16.msra.mxu0 0
  %2231 = vmatprep.subr.bf16.mxu0 0
  %2232 = vmatpush2.bf16.msra.mxu0 0
  %2233 = vmatprep.subr.bf16.mxu0 0
  %2234 = vmatpush2.bf16.msra.mxu0 0
  %2235 = vmatprep.subr.bf16.mxu0 0
  %2236 = vmatpush2.bf16.msra.mxu0 0
  %2237 = vmatprep.mubr.bf16.mxu0 0
  %2238 = vmatmul.mubr.bf16.gmra.mxu0 %v1795
  %v2239 = vpop.f32.mrf.mxu0
  %v2240 = vadd.f32 %v2199, %v2239
  %v2241 = vpop.f32.mrf.mxu0
  %v2242 = vpop.f32.mrf.mxu0
  %v2243 = vadd.f32 %v2202, %v2242
  %v2244 = vpop.f32.mrf.mxu0
  %2245 = vdwg.mxu0
  %vm2246 = vcmp.ge.f32.partialorder %v2240, 0.0
  %vm2247 = vcmp.ge.f32.partialorder %v2243, 0.0
  %v2248 = vmul.f32 %v2240, 0.01
  %v2249 = vmul.f32 %v2243, 0.01
  %v2250 = vsel %vm2246, %v2240, %v2248
  %v2251 = vsel %vm2247, %v2243, %v2249
  %v2252 = vpack.c.bf16 %v2251, %v2250
  %v2253 = vld [vmem:[%s21] sm:$0xf]
  %v2254 = vld [vmem:[%s21 + $0x4] sm:$0xf]
  %v2257 = vunpack.c.l.b16 %v2253
  %v2258 = vunpack.c.l.b16 %v2254
  %v2259 = vpack.c.b16 %v2258, %v2257
  %v2261 = vsel %vm1328, %v2259, 0
  %2263 = vmatprep.subr.bf16.mxu0 0
  %2264 = vmatpush1.bf16.msra.mxu0 0
  %2265 = vmatprep.subr.bf16.mxu0 0
  %2266 = vmatpush1.bf16.msra.mxu0 0
  %2267 = vmatprep.subr.bf16.mxu0 0
  %2268 = vmatpush1.bf16.msra.mxu0 0
  %2269 = vmatprep.subr.bf16.mxu0 0
  %2270 = vmatpush1.bf16.msra.mxu0 0
  %2271 = vmatprep.subr.bf16.mxu0 0
  %2272 = vmatpush1.bf16.msra.mxu0 0
  %2273 = vmatprep.subr.bf16.mxu0 0
  %2274 = vmatpush1.bf16.msra.mxu0 0
  %2275 = vmatprep.subr.bf16.mxu0 0
  %2276 = vmatpush1.bf16.msra.mxu0 0
  %2277 = vmatprep.subr.bf16.mxu0 0
  %2278 = vmatpush1.bf16.msra.mxu0 %v2252
  %2279 = vmatprep.subr.bf16.mxu0 0
  %2280 = vmatpush2.bf16.msra.mxu0 0
  %2281 = vmatprep.subr.bf16.mxu0 0
  %2282 = vmatpush2.bf16.msra.mxu0 0
  %2283 = vmatprep.subr.bf16.mxu0 0
  %2284 = vmatpush2.bf16.msra.mxu0 0
  %2285 = vmatprep.subr.bf16.mxu0 0
  %2286 = vmatpush2.bf16.msra.mxu0 0
  %2287 = vmatprep.subr.bf16.mxu0 0
  %2288 = vmatpush2.bf16.msra.mxu0 0
  %2289 = vmatprep.subr.bf16.mxu0 0
  %2290 = vmatpush2.bf16.msra.mxu0 0
  %2291 = vmatprep.subr.bf16.mxu0 0
  %2292 = vmatpush2.bf16.msra.mxu0 0
  %2293 = vmatprep.subr.bf16.mxu0 0
  %2294 = vmatpush2.bf16.msra.mxu0 0
  %2295 = vmatprep.mubr.bf16.mxu0 0
  %2296 = vmatmul.mubr.bf16.gmra.mxu0 %v2261
  %v2297 = vpop.f32.mrf.mxu0
  %v2298 = vadd.f32 0.0, %v2297
  %v2299 = vpop.f32.mrf.mxu0
  %v2300 = vpop.f32.mrf.mxu0
  %v2301 = vadd.f32 0.0, %v2300
  %v2302 = vpop.f32.mrf.mxu0
  %2303 = vdwg.mxu0
  %v2304 = vpack.c.bf16 %v2301, %v2298
  %s2305 = scalar_lea.vmem %s21, 8
  %v2306 = vld [vmem:[%s2305] sm:$0xf]
  %v2307 = vld [vmem:[%s2305 + $0x4] sm:$0xf]
  %v2310 = vunpack.c.l.b16 %v2306
  %v2311 = vunpack.c.l.b16 %v2307
  %v2312 = vpack.c.b16 %v2311, %v2310
  %v2314 = vsel %vm1328, %v2312, 0
  %2316 = vmatprep.subr.bf16.mxu0 0
  %2317 = vmatpush1.bf16.msra.mxu0 0
  %2318 = vmatprep.subr.bf16.mxu0 0
  %2319 = vmatpush1.bf16.msra.mxu0 0
  %2320 = vmatprep.subr.bf16.mxu0 0
  %2321 = vmatpush1.bf16.msra.mxu0 0
  %2322 = vmatprep.subr.bf16.mxu0 0
  %2323 = vmatpush1.bf16.msra.mxu0 0
  %2324 = vmatprep.subr.bf16.mxu0 0
  %2325 = vmatpush1.bf16.msra.mxu0 0
  %2326 = vmatprep.subr.bf16.mxu0 0
  %2327 = vmatpush1.bf16.msra.mxu0 0
  %2328 = vmatprep.subr.bf16.mxu0 0
  %2329 = vmatpush1.bf16.msra.mxu0 0
  %2330 = vmatprep.subr.bf16.mxu0 0
  %2331 = vmatpush1.bf16.msra.mxu0 %v2252
  %2332 = vmatprep.subr.bf16.mxu0 0
  %2333 = vmatpush2.bf16.msra.mxu0 0
  %2334 = vmatprep.subr.bf16.mxu0 0
  %2335 = vmatpush2.bf16.msra.mxu0 0
  %2336 = vmatprep.subr.bf16.mxu0 0
  %2337 = vmatpush2.bf16.msra.mxu0 0
  %2338 = vmatprep.subr.bf16.mxu0 0
  %2339 = vmatpush2.bf16.msra.mxu0 0
  %2340 = vmatprep.subr.bf16.mxu0 0
  %2341 = vmatpush2.bf16.msra.mxu0 0
  %2342 = vmatprep.subr.bf16.mxu0 0
  %2343 = vmatpush2.bf16.msra.mxu0 0
  %2344 = vmatprep.subr.bf16.mxu0 0
  %2345 = vmatpush2.bf16.msra.mxu0 0
  %2346 = vmatprep.subr.bf16.mxu0 0
  %2347 = vmatpush2.bf16.msra.mxu0 0
  %2348 = vmatprep.mubr.bf16.mxu0 0
  %2349 = vmatmul.mubr.bf16.gmra.mxu0 %v2314
  %v2350 = vpop.f32.mrf.mxu0
  %v2351 = vadd.f32 0.0, %v2350
  %v2352 = vpop.f32.mrf.mxu0
  %v2353 = vpop.f32.mrf.mxu0
  %v2354 = vadd.f32 0.0, %v2353
  %v2355 = vpop.f32.mrf.mxu0
  %2356 = vdwg.mxu0
  %v2357 = vpack.c.bf16 %v2354, %v2351
  %s2358 = scalar_lea.vmem %s21, 16
  %v2359 = vld [vmem:[%s2358] sm:$0xf]
  %v2360 = vld [vmem:[%s2358 + $0x4] sm:$0xf]
  %v2363 = vunpack.c.l.b16 %v2359
  %v2364 = vunpack.c.l.b16 %v2360
  %v2365 = vpack.c.b16 %v2364, %v2363
  %v2367 = vsel %vm1328, %v2365, 0
  %2369 = vmatprep.subr.bf16.mxu0 0
  %2370 = vmatpush1.bf16.msra.mxu0 0
  %2371 = vmatprep.subr.bf16.mxu0 0
  %2372 = vmatpush1.bf16.msra.mxu0 0
  %2373 = vmatprep.subr.bf16.mxu0 0
  %2374 = vmatpush1.bf16.msra.mxu0 0
  %2375 = vmatprep.subr.bf16.mxu0 0
  %2376 = vmatpush1.bf16.msra.mxu0 0
  %2377 = vmatprep.subr.bf16.mxu0 0
  %2378 = vmatpush1.bf16.msra.mxu0 0
  %2379 = vmatprep.subr.bf16.mxu0 0
  %2380 = vmatpush1.bf16.msra.mxu0 0
  %2381 = vmatprep.subr.bf16.mxu0 0
  %2382 = vmatpush1.bf16.msra.mxu0 0
  %2383 = vmatprep.subr.bf16.mxu0 0
  %2384 = vmatpush1.bf16.msra.mxu0 %v2252
  %2385 = vmatprep.subr.bf16.mxu0 0
  %2386 = vmatpush2.bf16.msra.mxu0 0
  %2387 = vmatprep.subr.bf16.mxu0 0
  %2388 = vmatpush2.bf16.msra.mxu0 0
  %2389 = vmatprep.subr.bf16.mxu0 0
  %2390 = vmatpush2.bf16.msra.mxu0 0
  %2391 = vmatprep.subr.bf16.mxu0 0
  %2392 = vmatpush2.bf16.msra.mxu0 0
  %2393 = vmatprep.subr.bf16.mxu0 0
  %2394 = vmatpush2.bf16.msra.mxu0 0
  %2395 = vmatprep.subr.bf16.mxu0 0
  %2396 = vmatpush2.bf16.msra.mxu0 0
  %2397 = vmatprep.subr.bf16.mxu0 0
  %2398 = vmatpush2.bf16.msra.mxu0 0
  %2399 = vmatprep.subr.bf16.mxu0 0
  %2400 = vmatpush2.bf16.msra.mxu0 0
  %2401 = vmatprep.mubr.bf16.mxu0 0
  %2402 = vmatmul.mubr.bf16.gmra.mxu0 %v2367
  %v2403 = vpop.f32.mrf.mxu0
  %v2404 = vadd.f32 0.0, %v2403
  %v2405 = vpop.f32.mrf.mxu0
  %v2406 = vpop.f32.mrf.mxu0
  %v2407 = vadd.f32 0.0, %v2406
  %v2408 = vpop.f32.mrf.mxu0
  %2409 = vdwg.mxu0
  %v2410 = vpack.c.bf16 %v2407, %v2404
  %s2411 = scalar_lea.vmem %s21, 24
  %v2412 = vld [vmem:[%s2411] sm:$0xf]
  %v2413 = vld [vmem:[%s2411 + $0x4] sm:$0xf]
  %v2416 = vunpack.c.l.b16 %v2412
  %v2417 = vunpack.c.l.b16 %v2413
  %v2418 = vpack.c.b16 %v2417, %v2416
  %v2420 = vsel %vm1328, %v2418, 0
  %2422 = vmatprep.subr.bf16.mxu0 0
  %2423 = vmatpush1.bf16.msra.mxu0 0
  %2424 = vmatprep.subr.bf16.mxu0 0
  %2425 = vmatpush1.bf16.msra.mxu0 0
  %2426 = vmatprep.subr.bf16.mxu0 0
  %2427 = vmatpush1.bf16.msra.mxu0 0
  %2428 = vmatprep.subr.bf16.mxu0 0
  %2429 = vmatpush1.bf16.msra.mxu0 0
  %2430 = vmatprep.subr.bf16.mxu0 0
  %2431 = vmatpush1.bf16.msra.mxu0 0
  %2432 = vmatprep.subr.bf16.mxu0 0
  %2433 = vmatpush1.bf16.msra.mxu0 0
  %2434 = vmatprep.subr.bf16.mxu0 0
  %2435 = vmatpush1.bf16.msra.mxu0 0
  %2436 = vmatprep.subr.bf16.mxu0 0
  %2437 = vmatpush1.bf16.msra.mxu0 %v2252
  %2438 = vmatprep.subr.bf16.mxu0 0
  %2439 = vmatpush2.bf16.msra.mxu0 0
  %2440 = vmatprep.subr.bf16.mxu0 0
  %2441 = vmatpush2.bf16.msra.mxu0 0
  %2442 = vmatprep.subr.bf16.mxu0 0
  %2443 = vmatpush2.bf16.msra.mxu0 0
  %2444 = vmatprep.subr.bf16.mxu0 0
  %2445 = vmatpush2.bf16.msra.mxu0 0
  %2446 = vmatprep.subr.bf16.mxu0 0
  %2447 = vmatpush2.bf16.msra.mxu0 0
  %2448 = vmatprep.subr.bf16.mxu0 0
  %2449 = vmatpush2.bf16.msra.mxu0 0
  %2450 = vmatprep.subr.bf16.mxu0 0
  %2451 = vmatpush2.bf16.msra.mxu0 0
  %2452 = vmatprep.subr.bf16.mxu0 0
  %2453 = vmatpush2.bf16.msra.mxu0 0
  %2454 = vmatprep.mubr.bf16.mxu0 0
  %2455 = vmatmul.mubr.bf16.gmra.mxu0 %v2420
  %v2456 = vpop.f32.mrf.mxu0
  %v2457 = vadd.f32 0.0, %v2456
  %v2458 = vpop.f32.mrf.mxu0
  %v2459 = vpop.f32.mrf.mxu0
  %v2460 = vadd.f32 0.0, %v2459
  %v2461 = vpop.f32.mrf.mxu0
  %2462 = vdwg.mxu0
  %v2463 = vpack.c.bf16 %v2460, %v2457
  %s2464 = scalar_lea.vmem %s21, 32
  %v2465 = vld [vmem:[%s2464] sm:$0xf]
  %v2466 = vld [vmem:[%s2464 + $0x4] sm:$0xf]
  %v2469 = vunpack.c.l.b16 %v2465
  %v2470 = vunpack.c.l.b16 %v2466
  %v2471 = vpack.c.b16 %v2470, %v2469
  %v2473 = vsel %vm1328, %v2471, 0
  %2475 = vmatprep.subr.bf16.mxu0 0
  %2476 = vmatpush1.bf16.msra.mxu0 0
  %2477 = vmatprep.subr.bf16.mxu0 0
  %2478 = vmatpush1.bf16.msra.mxu0 0
  %2479 = vmatprep.subr.bf16.mxu0 0
  %2480 = vmatpush1.bf16.msra.mxu0 0
  %2481 = vmatprep.subr.bf16.mxu0 0
  %2482 = vmatpush1.bf16.msra.mxu0 0
  %2483 = vmatprep.subr.bf16.mxu0 0
  %2484 = vmatpush1.bf16.msra.mxu0 0
  %2485 = vmatprep.subr.bf16.mxu0 0
  %2486 = vmatpush1.bf16.msra.mxu0 0
  %2487 = vmatprep.subr.bf16.mxu0 0
  %2488 = vmatpush1.bf16.msra.mxu0 0
  %2489 = vmatprep.subr.bf16.mxu0 0
  %2490 = vmatpush1.bf16.msra.mxu0 %v2252
  %2491 = vmatprep.subr.bf16.mxu0 0
  %2492 = vmatpush2.bf16.msra.mxu0 0
  %2493 = vmatprep.subr.bf16.mxu0 0
  %2494 = vmatpush2.bf16.msra.mxu0 0
  %2495 = vmatprep.subr.bf16.mxu0 0
  %2496 = vmatpush2.bf16.msra.mxu0 0
  %2497 = vmatprep.subr.bf16.mxu0 0
  %2498 = vmatpush2.bf16.msra.mxu0 0
  %2499 = vmatprep.subr.bf16.mxu0 0
  %2500 = vmatpush2.bf16.msra.mxu0 0
  %2501 = vmatprep.subr.bf16.mxu0 0
  %2502 = vmatpush2.bf16.msra.mxu0 0
  %2503 = vmatprep.subr.bf16.mxu0 0
  %2504 = vmatpush2.bf16.msra.mxu0 0
  %2505 = vmatprep.subr.bf16.mxu0 0
  %2506 = vmatpush2.bf16.msra.mxu0 0
  %2507 = vmatprep.mubr.bf16.mxu0 0
  %2508 = vmatmul.mubr.bf16.gmra.mxu0 %v2473
  %v2509 = vpop.f32.mrf.mxu0
  %v2510 = vadd.f32 0.0, %v2509
  %v2511 = vpop.f32.mrf.mxu0
  %v2512 = vpop.f32.mrf.mxu0
  %v2513 = vadd.f32 0.0, %v2512
  %v2514 = vpop.f32.mrf.mxu0
  %2515 = vdwg.mxu0
  %v2516 = vpack.c.bf16 %v2513, %v2510
  %2518 = vrot.lane.b32.xlu0 %v2357, 64
  %v2519 = vpop.permute.xlu0 %2518
  %2521 = vrot.lane.b32.xlu0 %v2463, 64
  %v2522 = vpop.permute.xlu0 %2521
  %v2525 = vsel %vm181, %v2304, %v2519
  %v2529 = vsel %vm181, %v2410, %v2522
  %v2531 = vld [vmem:[%s23] sm:$0xf]
  %v2532 = vld [vmem:[%s23 + $0x4] sm:$0xf]
  %v2533 = vld [vmem:[%s23 + $0x8] sm:$0xf]
  %v2534 = vld [vmem:[%s23 + $0xc] sm:$0xf]
  %v2535 = vld [vmem:[%s23 + $0x10] sm:$0xf]
  %v2536 = vld [vmem:[%s23 + $0x14] sm:$0xf]
  %v2537 = vld [vmem:[%s23 + $0x18] sm:$0xf]
  %v2538 = vld [vmem:[%s23 + $0x1c] sm:$0xf]
  %v2539 = vld [vmem:[%s23 + $0x20] sm:$0xf]
  %v2540 = vld [vmem:[%s23 + $0x24] sm:$0xf]
  %v2541 = vld [vmem:[%s23 + $0x28] sm:$0xf]
  %v2542 = vld [vmem:[%s23 + $0x2c] sm:$0xf]
  %v2543 = vld [vmem:[%s23 + $0x30] sm:$0xf]
  %v2544 = vld [vmem:[%s23 + $0x34] sm:$0xf]
  %v2545 = vld [vmem:[%s23 + $0x38] sm:$0xf]
  %v2546 = vld [vmem:[%s23 + $0x3c] sm:$0xf]
  %v2547 = vld [vmem:[%s23 + $0x40] sm:$0xf]
  %v2548 = vld [vmem:[%s23 + $0x44] sm:$0xf]
  %v2549 = vld [vmem:[%s23 + $0x48] sm:$0xf]
  %v2550 = vld [vmem:[%s23 + $0x4c] sm:$0xf]
  %v2551 = vld [vmem:[%s23 + $0x50] sm:$0xf]
  %v2552 = vld [vmem:[%s23 + $0x54] sm:$0xf]
  %v2553 = vld [vmem:[%s23 + $0x58] sm:$0xf]
  %v2554 = vld [vmem:[%s23 + $0x5c] sm:$0xf]
  %v2555 = vld [vmem:[%s23 + $0x60] sm:$0xf]
  %v2556 = vld [vmem:[%s23 + $0x64] sm:$0xf]
  %v2557 = vld [vmem:[%s23 + $0x68] sm:$0xf]
  %v2558 = vld [vmem:[%s23 + $0x6c] sm:$0xf]
  %v2559 = vld [vmem:[%s23 + $0x70] sm:$0xf]
  %v2560 = vld [vmem:[%s23 + $0x74] sm:$0xf]
  %v2561 = vld [vmem:[%s23 + $0x78] sm:$0xf]
  %v2562 = vld [vmem:[%s23 + $0x7c] sm:$0xf]
  %v2563 = vld [vmem:[%s23 + $0x80] sm:$0xf]
  %v2564 = vld [vmem:[%s23 + $0x84] sm:$0xf]
  %v2565 = vld [vmem:[%s23 + $0x88] sm:$0xf]
  %v2566 = vld [vmem:[%s23 + $0x8c] sm:$0xf]
  %v2567 = vld [vmem:[%s23 + $0x90] sm:$0xf]
  %v2568 = vld [vmem:[%s23 + $0x94] sm:$0xf]
  %v2569 = vld [vmem:[%s23 + $0x98] sm:$0xf]
  %v2570 = vld [vmem:[%s23 + $0x9c] sm:$0xf]
  %v2571 = vld [vmem:[%s25] sm:$0x1]
  %v2573 = vlaneseq
  %v2574 = vshrl.u32 %v2573, 7
  %v2575 = vsub.s32 0, %v2574
  %v2576 = vrot.slane %v2571, %v2575
  %v2618 = vunpack.c.l.b16 %v2531
  %v2619 = vunpack.c.l.b16 %v2532
  %v2620 = vunpack.c.l.b16 %v2533
  %v2621 = vunpack.c.l.b16 %v2534
  %v2622 = vunpack.c.l.b16 %v2535
  %v2623 = vunpack.c.l.b16 %v2536
  %v2624 = vunpack.c.l.b16 %v2537
  %v2625 = vunpack.c.l.b16 %v2538
  %v2626 = vunpack.c.l.b16 %v2539
  %v2627 = vunpack.c.l.b16 %v2540
  %v2628 = vunpack.c.l.b16 %v2541
  %v2629 = vunpack.c.l.b16 %v2542
  %v2630 = vunpack.c.l.b16 %v2543
  %v2631 = vunpack.c.l.b16 %v2544
  %v2632 = vunpack.c.l.b16 %v2545
  %v2633 = vunpack.c.l.b16 %v2546
  %v2634 = vunpack.c.l.b16 %v2547
  %v2635 = vunpack.c.l.b16 %v2548
  %v2636 = vunpack.c.l.b16 %v2549
  %v2637 = vunpack.c.l.b16 %v2550
  %v2638 = vunpack.c.l.b16 %v2551
  %v2639 = vunpack.c.l.b16 %v2552
  %v2640 = vunpack.c.l.b16 %v2553
  %v2641 = vunpack.c.l.b16 %v2554
  %v2642 = vunpack.c.l.b16 %v2555
  %v2643 = vunpack.c.l.b16 %v2556
  %v2644 = vunpack.c.l.b16 %v2557
  %v2645 = vunpack.c.l.b16 %v2558
  %v2646 = vunpack.c.l.b16 %v2559
  %v2647 = vunpack.c.l.b16 %v2560
  %v2648 = vunpack.c.l.b16 %v2561
  %v2649 = vunpack.c.l.b16 %v2562
  %v2650 = vunpack.c.l.b16 %v2563
  %v2651 = vunpack.c.l.b16 %v2564
  %v2652 = vunpack.c.l.b16 %v2565
  %v2653 = vunpack.c.l.b16 %v2566
  %v2654 = vunpack.c.l.b16 %v2567
  %v2655 = vunpack.c.l.b16 %v2568
  %v2656 = vunpack.c.l.b16 %v2569
  %v2657 = vunpack.c.l.b16 %v2570
  %v2658 = vpack.c.b16 %v2619, %v2618
  %v2659 = vpack.c.b16 %v2621, %v2620
  %v2660 = vpack.c.b16 %v2623, %v2622
  %v2661 = vpack.c.b16 %v2625, %v2624
  %v2662 = vpack.c.b16 %v2627, %v2626
  %v2663 = vpack.c.b16 %v2629, %v2628
  %v2664 = vpack.c.b16 %v2631, %v2630
  %v2665 = vpack.c.b16 %v2633, %v2632
  %v2666 = vpack.c.b16 %v2635, %v2634
  %v2667 = vpack.c.b16 %v2637, %v2636
  %v2668 = vpack.c.b16 %v2639, %v2638
  %v2669 = vpack.c.b16 %v2641, %v2640
  %v2670 = vpack.c.b16 %v2643, %v2642
  %v2671 = vpack.c.b16 %v2645, %v2644
  %v2672 = vpack.c.b16 %v2647, %v2646
  %v2673 = vpack.c.b16 %v2649, %v2648
  %v2674 = vpack.c.b16 %v2651, %v2650
  %v2675 = vpack.c.b16 %v2653, %v2652
  %v2676 = vpack.c.b16 %v2655, %v2654
  %v2677 = vpack.c.b16 %v2657, %v2656
  %v2699 = vsel %vm181, %v2516, 0
  %2701 = vmatprep.subr.bf16.mxu0 0
  %2702 = vmatpush1.bf16.msra.mxu0 %v2665
  %2703 = vmatprep.subr.bf16.mxu0 0
  %2704 = vmatpush1.bf16.msra.mxu0 %v2664
  %2705 = vmatprep.subr.bf16.mxu0 0
  %2706 = vmatpush1.bf16.msra.mxu0 %v2663
  %2707 = vmatprep.subr.bf16.mxu0 0
  %2708 = vmatpush1.bf16.msra.mxu0 %v2662
  %2709 = vmatprep.subr.bf16.mxu0 0
  %2710 = vmatpush1.bf16.msra.mxu0 %v2661
  %2711 = vmatprep.subr.bf16.mxu0 0
  %2712 = vmatpush1.bf16.msra.mxu0 %v2660
  %2713 = vmatprep.subr.bf16.mxu0 0
  %2714 = vmatpush1.bf16.msra.mxu0 %v2659
  %2715 = vmatprep.subr.bf16.mxu0 0
  %2716 = vmatpush1.bf16.msra.mxu0 %v2658
  %2717 = vmatprep.subr.bf16.mxu0 0
  %2718 = vmatpush2.bf16.msra.mxu0 %v2673
  %2719 = vmatprep.subr.bf16.mxu0 0
  %2720 = vmatpush2.bf16.msra.mxu0 %v2672
  %2721 = vmatprep.subr.bf16.mxu0 0
  %2722 = vmatpush2.bf16.msra.mxu0 %v2671
  %2723 = vmatprep.subr.bf16.mxu0 0
  %2724 = vmatpush2.bf16.msra.mxu0 %v2670
  %2725 = vmatprep.subr.bf16.mxu0 0
  %2726 = vmatpush2.bf16.msra.mxu0 %v2669
  %2727 = vmatprep.subr.bf16.mxu0 0
  %2728 = vmatpush2.bf16.msra.mxu0 %v2668
  %2729 = vmatprep.subr.bf16.mxu0 0
  %2730 = vmatpush2.bf16.msra.mxu0 %v2667
  %2731 = vmatprep.subr.bf16.mxu0 0
  %2732 = vmatpush2.bf16.msra.mxu0 %v2666
  %2733 = vmatprep.mubr.bf16.mxu0 %v2529
  %2734 = vmatmul.mubr.bf16.gmra.mxu0 %v2525
  %v2735 = vpop.f32.mrf.mxu0
  %v2736 = vadd.f32 %v2576, %v2735
  %v2737 = vpop.f32.mrf.mxu0
  %v2738 = vpop.f32.mrf.mxu0
  %v2739 = vadd.f32 %v2576, %v2738
  %v2740 = vpop.f32.mrf.mxu0
  %2741 = vdwg.mxu0
  %2742 = vmatprep.subr.bf16.mxu0 0
  %2743 = vmatpush1.bf16.msra.mxu0 0
  %2744 = vmatprep.subr.bf16.mxu0 0
  %2745 = vmatpush1.bf16.msra.mxu0 0
  %2746 = vmatprep.subr.bf16.mxu0 0
  %2747 = vmatpush1.bf16.msra.mxu0 0
  %2748 = vmatprep.subr.bf16.mxu0 0
  %2749 = vmatpush1.bf16.msra.mxu0 0
  %2750 = vmatprep.subr.bf16.mxu0 0
  %2751 = vmatpush1.bf16.msra.mxu0 %v2677
  %2752 = vmatprep.subr.bf16.mxu0 0
  %2753 = vmatpush1.bf16.msra.mxu0 %v2676
  %2754 = vmatprep.subr.bf16.mxu0 0
  %2755 = vmatpush1.bf16.msra.mxu0 %v2675
  %2756 = vmatprep.subr.bf16.mxu0 0
  %2757 = vmatpush1.bf16.msra.mxu0 %v2674
  %2758 = vmatprep.subr.bf16.mxu0 0
  %2759 = vmatpush2.bf16.msra.mxu0 0
  %2760 = vmatprep.subr.bf16.mxu0 0
  %2761 = vmatpush2.bf16.msra.mxu0 0
  %2762 = vmatprep.subr.bf16.mxu0 0
  %2763 = vmatpush2.bf16.msra.mxu0 0
  %2764 = vmatprep.subr.bf16.mxu0 0
  %2765 = vmatpush2.bf16.msra.mxu0 0
  %2766 = vmatprep.subr.bf16.mxu0 0
  %2767 = vmatpush2.bf16.msra.mxu0 0
  %2768 = vmatprep.subr.bf16.mxu0 0
  %2769 = vmatpush2.bf16.msra.mxu0 0
  %2770 = vmatprep.subr.bf16.mxu0 0
  %2771 = vmatpush2.bf16.msra.mxu0 0
  %2772 = vmatprep.subr.bf16.mxu0 0
  %2773 = vmatpush2.bf16.msra.mxu0 0
  %2774 = vmatprep.mubr.bf16.mxu0 0
  %2775 = vmatmul.mubr.bf16.gmra.mxu0 %v2699
  %v2776 = vpop.f32.mrf.mxu0
  %v2777 = vadd.f32 %v2736, %v2776
  %v2778 = vpop.f32.mrf.mxu0
  %v2779 = vpop.f32.mrf.mxu0
  %v2780 = vadd.f32 %v2739, %v2779
  %v2781 = vpop.f32.mrf.mxu0
  %2782 = vdwg.mxu0
  %vm2783 = vcmp.ge.f32.partialorder %v2777, 0.0
  %vm2784 = vcmp.ge.f32.partialorder %v2780, 0.0
  %v2785 = vmul.f32 %v2777, 0.01
  %v2786 = vmul.f32 %v2780, 0.01
  %v2787 = vsel %vm2783, %v2777, %v2785
  %v2788 = vsel %vm2784, %v2780, %v2786
  %v2789 = vpack.c.bf16 %v2788, %v2787
  %v2790 = vld [vmem:[%s27] sm:$0xf]
  %v2792 = vsel %vm1328, %v2790, 0
  %2794 = vmatprep.subr.bf16.mxu0 0
  %2795 = vmatpush1.bf16.msra.mxu0 0
  %2796 = vmatprep.subr.bf16.mxu0 0
  %2797 = vmatpush1.bf16.msra.mxu0 0
  %2798 = vmatprep.subr.bf16.mxu0 0
  %2799 = vmatpush1.bf16.msra.mxu0 0
  %2800 = vmatprep.subr.bf16.mxu0 0
  %2801 = vmatpush1.bf16.msra.mxu0 0
  %2802 = vmatprep.subr.bf16.mxu0 0
  %2803 = vmatpush1.bf16.msra.mxu0 0
  %2804 = vmatprep.subr.bf16.mxu0 0
  %2805 = vmatpush1.bf16.msra.mxu0 0
  %2806 = vmatprep.subr.bf16.mxu0 0
  %2807 = vmatpush1.bf16.msra.mxu0 0
  %2808 = vmatprep.subr.bf16.mxu0 0
  %2809 = vmatpush1.bf16.msra.mxu0 %v2789
  %2810 = vmatprep.subr.bf16.mxu0 0
  %2811 = vmatpush2.bf16.msra.mxu0 0
  %2812 = vmatprep.subr.bf16.mxu0 0
  %2813 = vmatpush2.bf16.msra.mxu0 0
  %2814 = vmatprep.subr.bf16.mxu0 0
  %2815 = vmatpush2.bf16.msra.mxu0 0
  %2816 = vmatprep.subr.bf16.mxu0 0
  %2817 = vmatpush2.bf16.msra.mxu0 0
  %2818 = vmatprep.subr.bf16.mxu0 0
  %2819 = vmatpush2.bf16.msra.mxu0 0
  %2820 = vmatprep.subr.bf16.mxu0 0
  %2821 = vmatpush2.bf16.msra.mxu0 0
  %2822 = vmatprep.subr.bf16.mxu0 0
  %2823 = vmatpush2.bf16.msra.mxu0 0
  %2824 = vmatprep.subr.bf16.mxu0 0
  %2825 = vmatpush2.bf16.msra.mxu0 0
  %2826 = vmatprep.mubr.bf16.mxu0 0
  %2827 = vmatmul.mubr.bf16.gmra.mxu0 %v2792
  %v2828 = vpop.f32.mrf.mxu0
  %v2829 = vadd.f32 0.0, %v2828
  %v2830 = vpop.f32.mrf.mxu0
  %v2831 = vpop.f32.mrf.mxu0
  %v2832 = vpop.f32.mrf.mxu0
  %2833 = vdwg.mxu0
  %v2834 = vpack.c.bf16 %v2829, %v2829
  %s2835 = scalar_lea.vmem %s27, 4
  %v2836 = vld [vmem:[%s2835] sm:$0xf]
  %v2838 = vsel %vm1328, %v2836, 0
  %2840 = vmatprep.subr.bf16.mxu0 0
  %2841 = vmatpush1.bf16.msra.mxu0 0
  %2842 = vmatprep.subr.bf16.mxu0 0
  %2843 = vmatpush1.bf16.msra.mxu0 0
  %2844 = vmatprep.subr.bf16.mxu0 0
  %2845 = vmatpush1.bf16.msra.mxu0 0
  %2846 = vmatprep.subr.bf16.mxu0 0
  %2847 = vmatpush1.bf16.msra.mxu0 0
  %2848 = vmatprep.subr.bf16.mxu0 0
  %2849 = vmatpush1.bf16.msra.mxu0 0
  %2850 = vmatprep.subr.bf16.mxu0 0
  %2851 = vmatpush1.bf16.msra.mxu0 0
  %2852 = vmatprep.subr.bf16.mxu0 0
  %2853 = vmatpush1.bf16.msra.mxu0 0
  %2854 = vmatprep.subr.bf16.mxu0 0
  %2855 = vmatpush1.bf16.msra.mxu0 %v2789
  %2856 = vmatprep.subr.bf16.mxu0 0
  %2857 = vmatpush2.bf16.msra.mxu0 0
  %2858 = vmatprep.subr.bf16.mxu0 0
  %2859 = vmatpush2.bf16.msra.mxu0 0
  %2860 = vmatprep.subr.bf16.mxu0 0
  %2861 = vmatpush2.bf16.msra.mxu0 0
  %2862 = vmatprep.subr.bf16.mxu0 0
  %2863 = vmatpush2.bf16.msra.mxu0 0
  %2864 = vmatprep.subr.bf16.mxu0 0
  %2865 = vmatpush2.bf16.msra.mxu0 0
  %2866 = vmatprep.subr.bf16.mxu0 0
  %2867 = vmatpush2.bf16.msra.mxu0 0
  %2868 = vmatprep.subr.bf16.mxu0 0
  %2869 = vmatpush2.bf16.msra.mxu0 0
  %2870 = vmatprep.subr.bf16.mxu0 0
  %2871 = vmatpush2.bf16.msra.mxu0 0
  %2872 = vmatprep.mubr.bf16.mxu0 0
  %2873 = vmatmul.mubr.bf16.gmra.mxu0 %v2838
  %v2874 = vpop.f32.mrf.mxu0
  %v2875 = vadd.f32 0.0, %v2874
  %v2876 = vpop.f32.mrf.mxu0
  %v2877 = vpop.f32.mrf.mxu0
  %v2878 = vpop.f32.mrf.mxu0
  %2879 = vdwg.mxu0
  %v2880 = vpack.c.bf16 %v2875, %v2875
  %s2881 = scalar_lea.vmem %s27, 8
  %v2882 = vld [vmem:[%s2881] sm:$0xf]
  %v2884 = vsel %vm1328, %v2882, 0
  %2886 = vmatprep.subr.bf16.mxu0 0
  %2887 = vmatpush1.bf16.msra.mxu0 0
  %2888 = vmatprep.subr.bf16.mxu0 0
  %2889 = vmatpush1.bf16.msra.mxu0 0
  %2890 = vmatprep.subr.bf16.mxu0 0
  %2891 = vmatpush1.bf16.msra.mxu0 0
  %2892 = vmatprep.subr.bf16.mxu0 0
  %2893 = vmatpush1.bf16.msra.mxu0 0
  %2894 = vmatprep.subr.bf16.mxu0 0
  %2895 = vmatpush1.bf16.msra.mxu0 0
  %2896 = vmatprep.subr.bf16.mxu0 0
  %2897 = vmatpush1.bf16.msra.mxu0 0
  %2898 = vmatprep.subr.bf16.mxu0 0
  %2899 = vmatpush1.bf16.msra.mxu0 0
  %2900 = vmatprep.subr.bf16.mxu0 0
  %2901 = vmatpush1.bf16.msra.mxu0 %v2789
  %2902 = vmatprep.subr.bf16.mxu0 0
  %2903 = vmatpush2.bf16.msra.mxu0 0
  %2904 = vmatprep.subr.bf16.mxu0 0
  %2905 = vmatpush2.bf16.msra.mxu0 0
  %2906 = vmatprep.subr.bf16.mxu0 0
  %2907 = vmatpush2.bf16.msra.mxu0 0
  %2908 = vmatprep.subr.bf16.mxu0 0
  %2909 = vmatpush2.bf16.msra.mxu0 0
  %2910 = vmatprep.subr.bf16.mxu0 0
  %2911 = vmatpush2.bf16.msra.mxu0 0
  %2912 = vmatprep.subr.bf16.mxu0 0
  %2913 = vmatpush2.bf16.msra.mxu0 0
  %2914 = vmatprep.subr.bf16.mxu0 0
  %2915 = vmatpush2.bf16.msra.mxu0 0
  %2916 = vmatprep.subr.bf16.mxu0 0
  %2917 = vmatpush2.bf16.msra.mxu0 0
  %2918 = vmatprep.mubr.bf16.mxu0 0
  %2919 = vmatmul.mubr.bf16.gmra.mxu0 %v2884
  %v2920 = vpop.f32.mrf.mxu0
  %v2921 = vadd.f32 0.0, %v2920
  %v2922 = vpop.f32.mrf.mxu0
  %v2923 = vpop.f32.mrf.mxu0
  %v2924 = vpop.f32.mrf.mxu0
  %2925 = vdwg.mxu0
  %v2926 = vpack.c.bf16 %v2921, %v2921
  %s2927 = scalar_lea.vmem %s27, 12
  %v2928 = vld [vmem:[%s2927] sm:$0xf]
  %v2930 = vsel %vm1328, %v2928, 0
  %2932 = vmatprep.subr.bf16.mxu0 0
  %2933 = vmatpush1.bf16.msra.mxu0 0
  %2934 = vmatprep.subr.bf16.mxu0 0
  %2935 = vmatpush1.bf16.msra.mxu0 0
  %2936 = vmatprep.subr.bf16.mxu0 0
  %2937 = vmatpush1.bf16.msra.mxu0 0
  %2938 = vmatprep.subr.bf16.mxu0 0
  %2939 = vmatpush1.bf16.msra.mxu0 0
  %2940 = vmatprep.subr.bf16.mxu0 0
  %2941 = vmatpush1.bf16.msra.mxu0 0
  %2942 = vmatprep.subr.bf16.mxu0 0
  %2943 = vmatpush1.bf16.msra.mxu0 0
  %2944 = vmatprep.subr.bf16.mxu0 0
  %2945 = vmatpush1.bf16.msra.mxu0 0
  %2946 = vmatprep.subr.bf16.mxu0 0
  %2947 = vmatpush1.bf16.msra.mxu0 %v2789
  %2948 = vmatprep.subr.bf16.mxu0 0
  %2949 = vmatpush2.bf16.msra.mxu0 0
  %2950 = vmatprep.subr.bf16.mxu0 0
  %2951 = vmatpush2.bf16.msra.mxu0 0
  %2952 = vmatprep.subr.bf16.mxu0 0
  %2953 = vmatpush2.bf16.msra.mxu0 0
  %2954 = vmatprep.subr.bf16.mxu0 0
  %2955 = vmatpush2.bf16.msra.mxu0 0
  %2956 = vmatprep.subr.bf16.mxu0 0
  %2957 = vmatpush2.bf16.msra.mxu0 0
  %2958 = vmatprep.subr.bf16.mxu0 0
  %2959 = vmatpush2.bf16.msra.mxu0 0
  %2960 = vmatprep.subr.bf16.mxu0 0
  %2961 = vmatpush2.bf16.msra.mxu0 0
  %2962 = vmatprep.subr.bf16.mxu0 0
  %2963 = vmatpush2.bf16.msra.mxu0 0
  %2964 = vmatprep.mubr.bf16.mxu0 0
  %2965 = vmatmul.mubr.bf16.gmra.mxu0 %v2930
  %v2966 = vpop.f32.mrf.mxu0
  %v2967 = vadd.f32 0.0, %v2966
  %v2968 = vpop.f32.mrf.mxu0
  %v2969 = vpop.f32.mrf.mxu0
  %v2970 = vpop.f32.mrf.mxu0
  %2971 = vdwg.mxu0
  %v2972 = vpack.c.bf16 %v2967, %v2967
  %s2973 = scalar_lea.vmem %s27, 16
  %v2974 = vld [vmem:[%s2973] sm:$0xf]
  %v2976 = vsel %vm1328, %v2974, 0
  %2978 = vmatprep.subr.bf16.mxu0 0
  %2979 = vmatpush1.bf16.msra.mxu0 0
  %2980 = vmatprep.subr.bf16.mxu0 0
  %2981 = vmatpush1.bf16.msra.mxu0 0
  %2982 = vmatprep.subr.bf16.mxu0 0
  %2983 = vmatpush1.bf16.msra.mxu0 0
  %2984 = vmatprep.subr.bf16.mxu0 0
  %2985 = vmatpush1.bf16.msra.mxu0 0
  %2986 = vmatprep.subr.bf16.mxu0 0
  %2987 = vmatpush1.bf16.msra.mxu0 0
  %2988 = vmatprep.subr.bf16.mxu0 0
  %2989 = vmatpush1.bf16.msra.mxu0 0
  %2990 = vmatprep.subr.bf16.mxu0 0
  %2991 = vmatpush1.bf16.msra.mxu0 0
  %2992 = vmatprep.subr.bf16.mxu0 0
  %2993 = vmatpush1.bf16.msra.mxu0 %v2789
  %2994 = vmatprep.subr.bf16.mxu0 0
  %2995 = vmatpush2.bf16.msra.mxu0 0
  %2996 = vmatprep.subr.bf16.mxu0 0
  %2997 = vmatpush2.bf16.msra.mxu0 0
  %2998 = vmatprep.subr.bf16.mxu0 0
  %2999 = vmatpush2.bf16.msra.mxu0 0
  %3000 = vmatprep.subr.bf16.mxu0 0
  %3001 = vmatpush2.bf16.msra.mxu0 0
  %3002 = vmatprep.subr.bf16.mxu0 0
  %3003 = vmatpush2.bf16.msra.mxu0 0
  %3004 = vmatprep.subr.bf16.mxu0 0
  %3005 = vmatpush2.bf16.msra.mxu0 0
  %3006 = vmatprep.subr.bf16.mxu0 0
  %3007 = vmatpush2.bf16.msra.mxu0 0
  %3008 = vmatprep.subr.bf16.mxu0 0
  %3009 = vmatpush2.bf16.msra.mxu0 0
  %3010 = vmatprep.mubr.bf16.mxu0 0
  %3011 = vmatmul.mubr.bf16.gmra.mxu0 %v2976
  %v3012 = vpop.f32.mrf.mxu0
  %v3013 = vadd.f32 0.0, %v3012
  %v3014 = vpop.f32.mrf.mxu0
  %v3015 = vpop.f32.mrf.mxu0
  %v3016 = vpop.f32.mrf.mxu0
  %3017 = vdwg.mxu0
  %v3018 = vpack.c.bf16 %v3013, %v3013
  %3020 = vrot.lane.b32.xlu0 %v2880, 64
  %v3021 = vpop.permute.xlu0 %3020
  %3023 = vrot.lane.b32.xlu0 %v2972, 64
  %v3024 = vpop.permute.xlu0 %3023
  %v3027 = vsel %vm181, %v2834, %v3021
  %v3031 = vsel %vm181, %v2926, %v3024
  %v3033 = vld [vmem:[%s29] sm:$0xf]
  %v3034 = vld [vmem:[%s29 + $0x4] sm:$0xf]
  %v3035 = vld [vmem:[%s29 + $0x8] sm:$0xf]
  %v3036 = vld [vmem:[%s29 + $0xc] sm:$0xf]
  %v3037 = vld [vmem:[%s29 + $0x10] sm:$0xf]
  %v3038 = vld [vmem:[%s29 + $0x14] sm:$0xf]
  %v3039 = vld [vmem:[%s29 + $0x18] sm:$0xf]
  %v3040 = vld [vmem:[%s29 + $0x1c] sm:$0xf]
  %v3041 = vld [vmem:[%s29 + $0x20] sm:$0xf]
  %v3042 = vld [vmem:[%s29 + $0x24] sm:$0xf]
  %v3043 = vld [vmem:[%s29 + $0x28] sm:$0xf]
  %v3044 = vld [vmem:[%s29 + $0x2c] sm:$0xf]
  %v3045 = vld [vmem:[%s29 + $0x30] sm:$0xf]
  %v3046 = vld [vmem:[%s29 + $0x34] sm:$0xf]
  %v3047 = vld [vmem:[%s29 + $0x38] sm:$0xf]
  %v3048 = vld [vmem:[%s29 + $0x3c] sm:$0xf]
  %v3049 = vld [vmem:[%s29 + $0x40] sm:$0xf]
  %v3050 = vld [vmem:[%s29 + $0x44] sm:$0xf]
  %v3051 = vld [vmem:[%s29 + $0x48] sm:$0xf]
  %v3052 = vld [vmem:[%s29 + $0x4c] sm:$0xf]
  %v3053 = vld [vmem:[%s29 + $0x50] sm:$0xf]
  %v3054 = vld [vmem:[%s29 + $0x54] sm:$0xf]
  %v3055 = vld [vmem:[%s29 + $0x58] sm:$0xf]
  %v3056 = vld [vmem:[%s29 + $0x5c] sm:$0xf]
  %v3057 = vld [vmem:[%s29 + $0x60] sm:$0xf]
  %v3058 = vld [vmem:[%s29 + $0x64] sm:$0xf]
  %v3059 = vld [vmem:[%s29 + $0x68] sm:$0xf]
  %v3060 = vld [vmem:[%s29 + $0x6c] sm:$0xf]
  %v3061 = vld [vmem:[%s29 + $0x70] sm:$0xf]
  %v3062 = vld [vmem:[%s29 + $0x74] sm:$0xf]
  %v3063 = vld [vmem:[%s29 + $0x78] sm:$0xf]
  %v3064 = vld [vmem:[%s29 + $0x7c] sm:$0xf]
  %v3065 = vld [vmem:[%s29 + $0x80] sm:$0xf]
  %v3066 = vld [vmem:[%s29 + $0x84] sm:$0xf]
  %v3067 = vld [vmem:[%s29 + $0x88] sm:$0xf]
  %v3068 = vld [vmem:[%s29 + $0x8c] sm:$0xf]
  %v3069 = vld [vmem:[%s29 + $0x90] sm:$0xf]
  %v3070 = vld [vmem:[%s29 + $0x94] sm:$0xf]
  %v3071 = vld [vmem:[%s29 + $0x98] sm:$0xf]
  %v3072 = vld [vmem:[%s29 + $0x9c] sm:$0xf]
  %v3073 = vld [vmem:[%s31] sm:$0x1]
  %v3075 = vlaneseq
  %v3076 = vshrl.u32 %v3075, 7
  %v3077 = vsub.s32 0, %v3076
  %v3078 = vrot.slane %v3073, %v3077
  %v3120 = vunpack.c.l.b16 %v3033
  %v3121 = vunpack.c.l.b16 %v3034
  %v3122 = vunpack.c.l.b16 %v3035
  %v3123 = vunpack.c.l.b16 %v3036
  %v3124 = vunpack.c.l.b16 %v3037
  %v3125 = vunpack.c.l.b16 %v3038
  %v3126 = vunpack.c.l.b16 %v3039
  %v3127 = vunpack.c.l.b16 %v3040
  %v3128 = vunpack.c.l.b16 %v3041
  %v3129 = vunpack.c.l.b16 %v3042
  %v3130 = vunpack.c.l.b16 %v3043
  %v3131 = vunpack.c.l.b16 %v3044
  %v3132 = vunpack.c.l.b16 %v3045
  %v3133 = vunpack.c.l.b16 %v3046
  %v3134 = vunpack.c.l.b16 %v3047
  %v3135 = vunpack.c.l.b16 %v3048
  %v3136 = vunpack.c.l.b16 %v3049
  %v3137 = vunpack.c.l.b16 %v3050
  %v3138 = vunpack.c.l.b16 %v3051
  %v3139 = vunpack.c.l.b16 %v3052
  %v3140 = vunpack.c.l.b16 %v3053
  %v3141 = vunpack.c.l.b16 %v3054
  %v3142 = vunpack.c.l.b16 %v3055
  %v3143 = vunpack.c.l.b16 %v3056
  %v3144 = vunpack.c.l.b16 %v3057
  %v3145 = vunpack.c.l.b16 %v3058
  %v3146 = vunpack.c.l.b16 %v3059
  %v3147 = vunpack.c.l.b16 %v3060
  %v3148 = vunpack.c.l.b16 %v3061
  %v3149 = vunpack.c.l.b16 %v3062
  %v3150 = vunpack.c.l.b16 %v3063
  %v3151 = vunpack.c.l.b16 %v3064
  %v3152 = vunpack.c.l.b16 %v3065
  %v3153 = vunpack.c.l.b16 %v3066
  %v3154 = vunpack.c.l.b16 %v3067
  %v3155 = vunpack.c.l.b16 %v3068
  %v3156 = vunpack.c.l.b16 %v3069
  %v3157 = vunpack.c.l.b16 %v3070
  %v3158 = vunpack.c.l.b16 %v3071
  %v3159 = vunpack.c.l.b16 %v3072
  %v3160 = vpack.c.b16 %v3121, %v3120
  %v3161 = vpack.c.b16 %v3123, %v3122
  %v3162 = vpack.c.b16 %v3125, %v3124
  %v3163 = vpack.c.b16 %v3127, %v3126
  %v3164 = vpack.c.b16 %v3129, %v3128
  %v3165 = vpack.c.b16 %v3131, %v3130
  %v3166 = vpack.c.b16 %v3133, %v3132
  %v3167 = vpack.c.b16 %v3135, %v3134
  %v3168 = vpack.c.b16 %v3137, %v3136
  %v3169 = vpack.c.b16 %v3139, %v3138
  %v3170 = vpack.c.b16 %v3141, %v3140
  %v3171 = vpack.c.b16 %v3143, %v3142
  %v3172 = vpack.c.b16 %v3145, %v3144
  %v3173 = vpack.c.b16 %v3147, %v3146
  %v3174 = vpack.c.b16 %v3149, %v3148
  %v3175 = vpack.c.b16 %v3151, %v3150
  %v3176 = vpack.c.b16 %v3153, %v3152
  %v3177 = vpack.c.b16 %v3155, %v3154
  %v3178 = vpack.c.b16 %v3157, %v3156
  %v3179 = vpack.c.b16 %v3159, %v3158
  %v3201 = vsel %vm181, %v3018, 0
  %3203 = vmatprep.subr.bf16.mxu0 0
  %3204 = vmatpush1.bf16.msra.mxu0 %v3167
  %3205 = vmatprep.subr.bf16.mxu0 0
  %3206 = vmatpush1.bf16.msra.mxu0 %v3166
  %3207 = vmatprep.subr.bf16.mxu0 0
  %3208 = vmatpush1.bf16.msra.mxu0 %v3165
  %3209 = vmatprep.subr.bf16.mxu0 0
  %3210 = vmatpush1.bf16.msra.mxu0 %v3164
  %3211 = vmatprep.subr.bf16.mxu0 0
  %3212 = vmatpush1.bf16.msra.mxu0 %v3163
  %3213 = vmatprep.subr.bf16.mxu0 0
  %3214 = vmatpush1.bf16.msra.mxu0 %v3162
  %3215 = vmatprep.subr.bf16.mxu0 0
  %3216 = vmatpush1.bf16.msra.mxu0 %v3161
  %3217 = vmatprep.subr.bf16.mxu0 0
  %3218 = vmatpush1.bf16.msra.mxu0 %v3160
  %3219 = vmatprep.subr.bf16.mxu0 0
  %3220 = vmatpush2.bf16.msra.mxu0 %v3175
  %3221 = vmatprep.subr.bf16.mxu0 0
  %3222 = vmatpush2.bf16.msra.mxu0 %v3174
  %3223 = vmatprep.subr.bf16.mxu0 0
  %3224 = vmatpush2.bf16.msra.mxu0 %v3173
  %3225 = vmatprep.subr.bf16.mxu0 0
  %3226 = vmatpush2.bf16.msra.mxu0 %v3172
  %3227 = vmatprep.subr.bf16.mxu0 0
  %3228 = vmatpush2.bf16.msra.mxu0 %v3171
  %3229 = vmatprep.subr.bf16.mxu0 0
  %3230 = vmatpush2.bf16.msra.mxu0 %v3170
  %3231 = vmatprep.subr.bf16.mxu0 0
  %3232 = vmatpush2.bf16.msra.mxu0 %v3169
  %3233 = vmatprep.subr.bf16.mxu0 0
  %3234 = vmatpush2.bf16.msra.mxu0 %v3168
  %3235 = vmatprep.mubr.bf16.mxu0 %v3031
  %3236 = vmatmul.mubr.bf16.gmra.mxu0 %v3027
  %v3237 = vpop.f32.mrf.mxu0
  %v3238 = vadd.f32 %v3078, %v3237
  %v3239 = vpop.f32.mrf.mxu0
  %v3240 = vpop.f32.mrf.mxu0
  %v3241 = vpop.f32.mrf.mxu0
  %3242 = vdwg.mxu0
  %3243 = vmatprep.subr.bf16.mxu0 0
  %3244 = vmatpush1.bf16.msra.mxu0 0
  %3245 = vmatprep.subr.bf16.mxu0 0
  %3246 = vmatpush1.bf16.msra.mxu0 0
  %3247 = vmatprep.subr.bf16.mxu0 0
  %3248 = vmatpush1.bf16.msra.mxu0 0
  %3249 = vmatprep.subr.bf16.mxu0 0
  %3250 = vmatpush1.bf16.msra.mxu0 0
  %3251 = vmatprep.subr.bf16.mxu0 0
  %3252 = vmatpush1.bf16.msra.mxu0 %v3179
  %3253 = vmatprep.subr.bf16.mxu0 0
  %3254 = vmatpush1.bf16.msra.mxu0 %v3178
  %3255 = vmatprep.subr.bf16.mxu0 0
  %3256 = vmatpush1.bf16.msra.mxu0 %v3177
  %3257 = vmatprep.subr.bf16.mxu0 0
  %3258 = vmatpush1.bf16.msra.mxu0 %v3176
  %3259 = vmatprep.subr.bf16.mxu0 0
  %3260 = vmatpush2.bf16.msra.mxu0 0
  %3261 = vmatprep.subr.bf16.mxu0 0
  %3262 = vmatpush2.bf16.msra.mxu0 0
  %3263 = vmatprep.subr.bf16.mxu0 0
  %3264 = vmatpush2.bf16.msra.mxu0 0
  %3265 = vmatprep.subr.bf16.mxu0 0
  %3266 = vmatpush2.bf16.msra.mxu0 0
  %3267 = vmatprep.subr.bf16.mxu0 0
  %3268 = vmatpush2.bf16.msra.mxu0 0
  %3269 = vmatprep.subr.bf16.mxu0 0
  %3270 = vmatpush2.bf16.msra.mxu0 0
  %3271 = vmatprep.subr.bf16.mxu0 0
  %3272 = vmatpush2.bf16.msra.mxu0 0
  %3273 = vmatprep.subr.bf16.mxu0 0
  %3274 = vmatpush2.bf16.msra.mxu0 0
  %3275 = vmatprep.mubr.bf16.mxu0 0
  %3276 = vmatmul.mubr.bf16.gmra.mxu0 %v3201
  %v3277 = vpop.f32.mrf.mxu0
  %v3278 = vadd.f32 %v3238, %v3277
  %v3279 = vpop.f32.mrf.mxu0
  %v3280 = vpop.f32.mrf.mxu0
  %v3281 = vpop.f32.mrf.mxu0
  %3282 = vdwg.mxu0
  %vm3283 = vcmp.ge.f32.partialorder %v3278, 0.0
  %v3284 = vmul.f32 %v3278, 0.01
  %v3285 = vsel %vm3283, %v3278, %v3284
  %v3286 = vpack.c.bf16 %v3285, %v3285
  %v3287 = vld [vmem:[%s33] sm:$0xf]
  %vm3288 = vcmask 64512
  %v3290 = vsel %vm3288, %v3287, 0
  %vm3292 = vcmask 1043456
  %v3294 = vsel %vm3292, %v3286, 0
  %3296 = vmatprep.subr.bf16.mxu0 0
  %3297 = vmatpush1.bf16.msra.mxu0 0
  %3298 = vmatprep.subr.bf16.mxu0 0
  %3299 = vmatpush1.bf16.msra.mxu0 0
  %3300 = vmatprep.subr.bf16.mxu0 0
  %3301 = vmatpush1.bf16.msra.mxu0 0
  %3302 = vmatprep.subr.bf16.mxu0 0
  %3303 = vmatpush1.bf16.msra.mxu0 0
  %3304 = vmatprep.subr.bf16.mxu0 0
  %3305 = vmatpush1.bf16.msra.mxu0 0
  %3306 = vmatprep.subr.bf16.mxu0 0
  %3307 = vmatpush1.bf16.msra.mxu0 0
  %3308 = vmatprep.subr.bf16.mxu0 0
  %3309 = vmatpush1.bf16.msra.mxu0 0
  %3310 = vmatprep.subr.bf16.mxu0 0
  %3311 = vmatpush1.bf16.msra.mxu0 %v3294
  %3312 = vmatprep.subr.bf16.mxu0 0
  %3313 = vmatpush2.bf16.msra.mxu0 0
  %3314 = vmatprep.subr.bf16.mxu0 0
  %3315 = vmatpush2.bf16.msra.mxu0 0
  %3316 = vmatprep.subr.bf16.mxu0 0
  %3317 = vmatpush2.bf16.msra.mxu0 0
  %3318 = vmatprep.subr.bf16.mxu0 0
  %3319 = vmatpush2.bf16.msra.mxu0 0
  %3320 = vmatprep.subr.bf16.mxu0 0
  %3321 = vmatpush2.bf16.msra.mxu0 0
  %3322 = vmatprep.subr.bf16.mxu0 0
  %3323 = vmatpush2.bf16.msra.mxu0 0
  %3324 = vmatprep.subr.bf16.mxu0 0
  %3325 = vmatpush2.bf16.msra.mxu0 0
  %3326 = vmatprep.subr.bf16.mxu0 0
  %3327 = vmatpush2.bf16.msra.mxu0 0
  %3328 = vmatprep.mubr.bf16.mxu0 0
  %3329 = vmatmul.mubr.bf16.gmra.mxu0 %v3290
  %v3330 = vpop.f32.mrf.mxu0
  %v3331 = vadd.f32 0.0, %v3330
  %v3332 = vpop.f32.mrf.mxu0
  %v3333 = vpop.f32.mrf.mxu0
  %v3334 = vpop.f32.mrf.mxu0
  %3335 = vdwg.mxu0
  %v3336 = vpack.c.bf16 %v3331, %v3331
  %s3337 = scalar_lea.vmem %s33, 4
  %v3338 = vld [vmem:[%s3337] sm:$0xf]
  %v3340 = vsel %vm3288, %v3338, 0
  %3342 = vmatprep.subr.bf16.mxu0 0
  %3343 = vmatpush1.bf16.msra.mxu0 0
  %3344 = vmatprep.subr.bf16.mxu0 0
  %3345 = vmatpush1.bf16.msra.mxu0 0
  %3346 = vmatprep.subr.bf16.mxu0 0
  %3347 = vmatpush1.bf16.msra.mxu0 0
  %3348 = vmatprep.subr.bf16.mxu0 0
  %3349 = vmatpush1.bf16.msra.mxu0 0
  %3350 = vmatprep.subr.bf16.mxu0 0
  %3351 = vmatpush1.bf16.msra.mxu0 0
  %3352 = vmatprep.subr.bf16.mxu0 0
  %3353 = vmatpush1.bf16.msra.mxu0 0
  %3354 = vmatprep.subr.bf16.mxu0 0
  %3355 = vmatpush1.bf16.msra.mxu0 0
  %3356 = vmatprep.subr.bf16.mxu0 0
  %3357 = vmatpush1.bf16.msra.mxu0 %v3294
  %3358 = vmatprep.subr.bf16.mxu0 0
  %3359 = vmatpush2.bf16.msra.mxu0 0
  %3360 = vmatprep.subr.bf16.mxu0 0
  %3361 = vmatpush2.bf16.msra.mxu0 0
  %3362 = vmatprep.subr.bf16.mxu0 0
  %3363 = vmatpush2.bf16.msra.mxu0 0
  %3364 = vmatprep.subr.bf16.mxu0 0
  %3365 = vmatpush2.bf16.msra.mxu0 0
  %3366 = vmatprep.subr.bf16.mxu0 0
  %3367 = vmatpush2.bf16.msra.mxu0 0
  %3368 = vmatprep.subr.bf16.mxu0 0
  %3369 = vmatpush2.bf16.msra.mxu0 0
  %3370 = vmatprep.subr.bf16.mxu0 0
  %3371 = vmatpush2.bf16.msra.mxu0 0
  %3372 = vmatprep.subr.bf16.mxu0 0
  %3373 = vmatpush2.bf16.msra.mxu0 0
  %3374 = vmatprep.mubr.bf16.mxu0 0
  %3375 = vmatmul.mubr.bf16.gmra.mxu0 %v3340
  %v3376 = vpop.f32.mrf.mxu0
  %v3377 = vadd.f32 0.0, %v3376
  %v3378 = vpop.f32.mrf.mxu0
  %v3379 = vpop.f32.mrf.mxu0
  %v3380 = vpop.f32.mrf.mxu0
  %3381 = vdwg.mxu0
  %v3382 = vpack.c.bf16 %v3377, %v3377
  %s3383 = scalar_lea.vmem %s33, 8
  %v3384 = vld [vmem:[%s3383] sm:$0xf]
  %v3386 = vsel %vm3288, %v3384, 0
  %3388 = vmatprep.subr.bf16.mxu0 0
  %3389 = vmatpush1.bf16.msra.mxu0 0
  %3390 = vmatprep.subr.bf16.mxu0 0
  %3391 = vmatpush1.bf16.msra.mxu0 0
  %3392 = vmatprep.subr.bf16.mxu0 0
  %3393 = vmatpush1.bf16.msra.mxu0 0
  %3394 = vmatprep.subr.bf16.mxu0 0
  %3395 = vmatpush1.bf16.msra.mxu0 0
  %3396 = vmatprep.subr.bf16.mxu0 0
  %3397 = vmatpush1.bf16.msra.mxu0 0
  %3398 = vmatprep.subr.bf16.mxu0 0
  %3399 = vmatpush1.bf16.msra.mxu0 0
  %3400 = vmatprep.subr.bf16.mxu0 0
  %3401 = vmatpush1.bf16.msra.mxu0 0
  %3402 = vmatprep.subr.bf16.mxu0 0
  %3403 = vmatpush1.bf16.msra.mxu0 %v3294
  %3404 = vmatprep.subr.bf16.mxu0 0
  %3405 = vmatpush2.bf16.msra.mxu0 0
  %3406 = vmatprep.subr.bf16.mxu0 0
  %3407 = vmatpush2.bf16.msra.mxu0 0
  %3408 = vmatprep.subr.bf16.mxu0 0
  %3409 = vmatpush2.bf16.msra.mxu0 0
  %3410 = vmatprep.subr.bf16.mxu0 0
  %3411 = vmatpush2.bf16.msra.mxu0 0
  %3412 = vmatprep.subr.bf16.mxu0 0
  %3413 = vmatpush2.bf16.msra.mxu0 0
  %3414 = vmatprep.subr.bf16.mxu0 0
  %3415 = vmatpush2.bf16.msra.mxu0 0
  %3416 = vmatprep.subr.bf16.mxu0 0
  %3417 = vmatpush2.bf16.msra.mxu0 0
  %3418 = vmatprep.subr.bf16.mxu0 0
  %3419 = vmatpush2.bf16.msra.mxu0 0
  %3420 = vmatprep.mubr.bf16.mxu0 0
  %3421 = vmatmul.mubr.bf16.gmra.mxu0 %v3386
  %v3422 = vpop.f32.mrf.mxu0
  %v3423 = vadd.f32 0.0, %v3422
  %v3424 = vpop.f32.mrf.mxu0
  %v3425 = vpop.f32.mrf.mxu0
  %v3426 = vpop.f32.mrf.mxu0
  %3427 = vdwg.mxu0
  %v3428 = vpack.c.bf16 %v3423, %v3423
  %s3429 = scalar_lea.vmem %s33, 12
  %v3430 = vld [vmem:[%s3429] sm:$0xf]
  %v3432 = vsel %vm3288, %v3430, 0
  %3434 = vmatprep.subr.bf16.mxu0 0
  %3435 = vmatpush1.bf16.msra.mxu0 0
  %3436 = vmatprep.subr.bf16.mxu0 0
  %3437 = vmatpush1.bf16.msra.mxu0 0
  %3438 = vmatprep.subr.bf16.mxu0 0
  %3439 = vmatpush1.bf16.msra.mxu0 0
  %3440 = vmatprep.subr.bf16.mxu0 0
  %3441 = vmatpush1.bf16.msra.mxu0 0
  %3442 = vmatprep.subr.bf16.mxu0 0
  %3443 = vmatpush1.bf16.msra.mxu0 0
  %3444 = vmatprep.subr.bf16.mxu0 0
  %3445 = vmatpush1.bf16.msra.mxu0 0
  %3446 = vmatprep.subr.bf16.mxu0 0
  %3447 = vmatpush1.bf16.msra.mxu0 0
  %3448 = vmatprep.subr.bf16.mxu0 0
  %3449 = vmatpush1.bf16.msra.mxu0 %v3294
  %3450 = vmatprep.subr.bf16.mxu0 0
  %3451 = vmatpush2.bf16.msra.mxu0 0
  %3452 = vmatprep.subr.bf16.mxu0 0
  %3453 = vmatpush2.bf16.msra.mxu0 0
  %3454 = vmatprep.subr.bf16.mxu0 0
  %3455 = vmatpush2.bf16.msra.mxu0 0
  %3456 = vmatprep.subr.bf16.mxu0 0
  %3457 = vmatpush2.bf16.msra.mxu0 0
  %3458 = vmatprep.subr.bf16.mxu0 0
  %3459 = vmatpush2.bf16.msra.mxu0 0
  %3460 = vmatprep.subr.bf16.mxu0 0
  %3461 = vmatpush2.bf16.msra.mxu0 0
  %3462 = vmatprep.subr.bf16.mxu0 0
  %3463 = vmatpush2.bf16.msra.mxu0 0
  %3464 = vmatprep.subr.bf16.mxu0 0
  %3465 = vmatpush2.bf16.msra.mxu0 0
  %3466 = vmatprep.mubr.bf16.mxu0 0
  %3467 = vmatmul.mubr.bf16.gmra.mxu0 %v3432
  %v3468 = vpop.f32.mrf.mxu0
  %v3469 = vadd.f32 0.0, %v3468
  %v3470 = vpop.f32.mrf.mxu0
  %v3471 = vpop.f32.mrf.mxu0
  %v3472 = vpop.f32.mrf.mxu0
  %3473 = vdwg.mxu0
  %v3474 = vpack.c.bf16 %v3469, %v3469
  %s3475 = scalar_lea.vmem %s33, 16
  %v3476 = vld [vmem:[%s3475] sm:$0xf]
  %v3478 = vsel %vm3288, %v3476, 0
  %3480 = vmatprep.subr.bf16.mxu0 0
  %3481 = vmatpush1.bf16.msra.mxu0 0
  %3482 = vmatprep.subr.bf16.mxu0 0
  %3483 = vmatpush1.bf16.msra.mxu0 0
  %3484 = vmatprep.subr.bf16.mxu0 0
  %3485 = vmatpush1.bf16.msra.mxu0 0
  %3486 = vmatprep.subr.bf16.mxu0 0
  %3487 = vmatpush1.bf16.msra.mxu0 0
  %3488 = vmatprep.subr.bf16.mxu0 0
  %3489 = vmatpush1.bf16.msra.mxu0 0
  %3490 = vmatprep.subr.bf16.mxu0 0
  %3491 = vmatpush1.bf16.msra.mxu0 0
  %3492 = vmatprep.subr.bf16.mxu0 0
  %3493 = vmatpush1.bf16.msra.mxu0 0
  %3494 = vmatprep.subr.bf16.mxu0 0
  %3495 = vmatpush1.bf16.msra.mxu0 %v3294
  %3496 = vmatprep.subr.bf16.mxu0 0
  %3497 = vmatpush2.bf16.msra.mxu0 0
  %3498 = vmatprep.subr.bf16.mxu0 0
  %3499 = vmatpush2.bf16.msra.mxu0 0
  %3500 = vmatprep.subr.bf16.mxu0 0
  %3501 = vmatpush2.bf16.msra.mxu0 0
  %3502 = vmatprep.subr.bf16.mxu0 0
  %3503 = vmatpush2.bf16.msra.mxu0 0
  %3504 = vmatprep.subr.bf16.mxu0 0
  %3505 = vmatpush2.bf16.msra.mxu0 0
  %3506 = vmatprep.subr.bf16.mxu0 0
  %3507 = vmatpush2.bf16.msra.mxu0 0
  %3508 = vmatprep.subr.bf16.mxu0 0
  %3509 = vmatpush2.bf16.msra.mxu0 0
  %3510 = vmatprep.subr.bf16.mxu0 0
  %3511 = vmatpush2.bf16.msra.mxu0 0
  %3512 = vmatprep.mubr.bf16.mxu0 0
  %3513 = vmatmul.mubr.bf16.gmra.mxu0 %v3478
  %v3514 = vpop.f32.mrf.mxu0
  %v3515 = vadd.f32 0.0, %v3514
  %v3516 = vpop.f32.mrf.mxu0
  %v3517 = vpop.f32.mrf.mxu0
  %v3518 = vpop.f32.mrf.mxu0
  %3519 = vdwg.mxu0
  %v3520 = vpack.c.bf16 %v3515, %v3515
  %3522 = vrot.lane.b32.xlu0 %v3382, 32
  %v3523 = vpop.permute.xlu0 %3522
  %3525 = vrot.lane.b32.xlu0 %v3428, 64
  %v3526 = vpop.permute.xlu0 %3525
  %3528 = vrot.lane.b32.xlu0 %v3474, 96
  %v3529 = vpop.permute.xlu0 %3528
  %v3532 = vsel %vm560, %v3336, %v3523
  %v3534 = vsel %vm181, %v3532, %v3526
  %v3536 = vsel %vm545, %v3534, %v3529
  %v3538 = vld [vmem:[%s35] sm:$0xf]
  %v3539 = vld [vmem:[%s35 + $0x4] sm:$0xf]
  %v3540 = vld [vmem:[%s35 + $0x8] sm:$0xf]
  %v3541 = vld [vmem:[%s35 + $0xc] sm:$0xf]
  %v3542 = vld [vmem:[%s35 + $0x10] sm:$0xf]
  %v3543 = vld [vmem:[%s35 + $0x14] sm:$0xf]
  %v3544 = vld [vmem:[%s35 + $0x18] sm:$0xf]
  %v3545 = vld [vmem:[%s35 + $0x1c] sm:$0xf]
  %v3546 = vld [vmem:[%s35 + $0x20] sm:$0xf]
  %v3547 = vld [vmem:[%s35 + $0x24] sm:$0xf]
  %v3548 = vld [vmem:[%s35 + $0x28] sm:$0xf]
  %v3549 = vld [vmem:[%s35 + $0x2c] sm:$0xf]
  %v3550 = vld [vmem:[%s35 + $0x30] sm:$0xf]
  %v3551 = vld [vmem:[%s35 + $0x34] sm:$0xf]
  %v3552 = vld [vmem:[%s35 + $0x38] sm:$0xf]
  %v3553 = vld [vmem:[%s35 + $0x3c] sm:$0xf]
  %v3554 = vld [vmem:[%s35 + $0x40] sm:$0xf]
  %v3555 = vld [vmem:[%s35 + $0x44] sm:$0xf]
  %v3556 = vld [vmem:[%s35 + $0x48] sm:$0xf]
  %v3557 = vld [vmem:[%s35 + $0x4c] sm:$0xf]
  %v3558 = vld [vmem:[%s37] sm:$0x1]
  %v3560 = vlaneseq
  %v3561 = vshrl.u32 %v3560, 7
  %v3562 = vsub.s32 0, %v3561
  %v3563 = vrot.slane %v3558, %v3562
  %v3585 = vunpack.c.l.b16 %v3538
  %v3586 = vunpack.c.l.b16 %v3539
  %v3587 = vunpack.c.l.b16 %v3540
  %v3588 = vunpack.c.l.b16 %v3541
  %v3589 = vunpack.c.l.b16 %v3542
  %v3590 = vunpack.c.l.b16 %v3543
  %v3591 = vunpack.c.l.b16 %v3544
  %v3592 = vunpack.c.l.b16 %v3545
  %v3593 = vunpack.c.l.b16 %v3546
  %v3594 = vunpack.c.l.b16 %v3547
  %v3595 = vunpack.c.l.b16 %v3548
  %v3596 = vunpack.c.l.b16 %v3549
  %v3597 = vunpack.c.l.b16 %v3550
  %v3598 = vunpack.c.l.b16 %v3551
  %v3599 = vunpack.c.l.b16 %v3552
  %v3600 = vunpack.c.l.b16 %v3553
  %v3601 = vunpack.c.l.b16 %v3554
  %v3602 = vunpack.c.l.b16 %v3555
  %v3603 = vunpack.c.l.b16 %v3556
  %v3604 = vunpack.c.l.b16 %v3557
  %v3605 = vpack.c.b16 %v3586, %v3585
  %v3606 = vpack.c.b16 %v3588, %v3587
  %v3607 = vpack.c.b16 %v3590, %v3589
  %v3608 = vpack.c.b16 %v3592, %v3591
  %v3609 = vpack.c.b16 %v3594, %v3593
  %v3610 = vpack.c.b16 %v3596, %v3595
  %v3611 = vpack.c.b16 %v3598, %v3597
  %v3612 = vpack.c.b16 %v3600, %v3599
  %v3613 = vpack.c.b16 %v3602, %v3601
  %v3614 = vpack.c.b16 %v3604, %v3603
  %v3626 = vsel %vm560, %v3520, 0
  %3628 = vmatprep.subr.bf16.mxu0 0
  %3629 = vmatpush1.bf16.msra.mxu0 %v3612
  %3630 = vmatprep.subr.bf16.mxu0 0
  %3631 = vmatpush1.bf16.msra.mxu0 %v3611
  %3632 = vmatprep.subr.bf16.mxu0 0
  %3633 = vmatpush1.bf16.msra.mxu0 %v3610
  %3634 = vmatprep.subr.bf16.mxu0 0
  %3635 = vmatpush1.bf16.msra.mxu0 %v3609
  %3636 = vmatprep.subr.bf16.mxu0 0
  %3637 = vmatpush1.bf16.msra.mxu0 %v3608
  %3638 = vmatprep.subr.bf16.mxu0 0
  %3639 = vmatpush1.bf16.msra.mxu0 %v3607
  %3640 = vmatprep.subr.bf16.mxu0 0
  %3641 = vmatpush1.bf16.msra.mxu0 %v3606
  %3642 = vmatprep.subr.bf16.mxu0 0
  %3643 = vmatpush1.bf16.msra.mxu0 %v3605
  %3644 = vmatprep.subr.bf16.mxu0 0
  %3645 = vmatpush2.bf16.msra.mxu0 0
  %3646 = vmatprep.subr.bf16.mxu0 0
  %3647 = vmatpush2.bf16.msra.mxu0 0
  %3648 = vmatprep.subr.bf16.mxu0 0
  %3649 = vmatpush2.bf16.msra.mxu0 0
  %3650 = vmatprep.subr.bf16.mxu0 0
  %3651 = vmatpush2.bf16.msra.mxu0 0
  %3652 = vmatprep.subr.bf16.mxu0 0
  %3653 = vmatpush2.bf16.msra.mxu0 0
  %3654 = vmatprep.subr.bf16.mxu0 0
  %3655 = vmatpush2.bf16.msra.mxu0 0
  %3656 = vmatprep.subr.bf16.mxu0 0
  %3657 = vmatpush2.bf16.msra.mxu0 %v3614
  %3658 = vmatprep.subr.bf16.mxu0 0
  %3659 = vmatpush2.bf16.msra.mxu0 %v3613
  %3660 = vmatprep.mubr.bf16.mxu0 %v3626
  %3661 = vmatmul.mubr.bf16.gmra.mxu0 %v3536
  %v3662 = vpop.f32.mrf.mxu0
  %v3663 = vadd.f32 %v3563, %v3662
  %v3664 = vpop.f32.mrf.mxu0
  %v3665 = vpop.f32.mrf.mxu0
  %v3666 = vpop.f32.mrf.mxu0
  %3667 = vdwg.mxu0
  %vm3668 = vcmp.ge.f32.partialorder %v3663, 0.0
  %v3669 = vmul.f32 %v3663, 0.01
  %v3670 = vsel %vm3668, %v3663, %v3669
  %v3671 = vpack.c.bf16 %v3670, %v3670
  %v3672 = vld [vmem:[%s39] sm:$0xf]
  %v3674 = vsel %vm3288, %v3672, 0
  %v3677 = vsel %vm3292, %v3671, 0
  %3679 = vmatprep.subr.bf16.mxu0 0
  %3680 = vmatpush1.bf16.msra.mxu0 0
  %3681 = vmatprep.subr.bf16.mxu0 0
  %3682 = vmatpush1.bf16.msra.mxu0 0
  %3683 = vmatprep.subr.bf16.mxu0 0
  %3684 = vmatpush1.bf16.msra.mxu0 0
  %3685 = vmatprep.subr.bf16.mxu0 0
  %3686 = vmatpush1.bf16.msra.mxu0 0
  %3687 = vmatprep.subr.bf16.mxu0 0
  %3688 = vmatpush1.bf16.msra.mxu0 0
  %3689 = vmatprep.subr.bf16.mxu0 0
  %3690 = vmatpush1.bf16.msra.mxu0 0
  %3691 = vmatprep.subr.bf16.mxu0 0
  %3692 = vmatpush1.bf16.msra.mxu0 0
  %3693 = vmatprep.subr.bf16.mxu0 0
  %3694 = vmatpush1.bf16.msra.mxu0 %v3677
  %3695 = vmatprep.subr.bf16.mxu0 0
  %3696 = vmatpush2.bf16.msra.mxu0 0
  %3697 = vmatprep.subr.bf16.mxu0 0
  %3698 = vmatpush2.bf16.msra.mxu0 0
  %3699 = vmatprep.subr.bf16.mxu0 0
  %3700 = vmatpush2.bf16.msra.mxu0 0
  %3701 = vmatprep.subr.bf16.mxu0 0
  %3702 = vmatpush2.bf16.msra.mxu0 0
  %3703 = vmatprep.subr.bf16.mxu0 0
  %3704 = vmatpush2.bf16.msra.mxu0 0
  %3705 = vmatprep.subr.bf16.mxu0 0
  %3706 = vmatpush2.bf16.msra.mxu0 0
  %3707 = vmatprep.subr.bf16.mxu0 0
  %3708 = vmatpush2.bf16.msra.mxu0 0
  %3709 = vmatprep.subr.bf16.mxu0 0
  %3710 = vmatpush2.bf16.msra.mxu0 0
  %3711 = vmatprep.mubr.bf16.mxu0 0
  %3712 = vmatmul.mubr.bf16.gmra.mxu0 %v3674
  %v3713 = vpop.f32.mrf.mxu0
  %v3714 = vadd.f32 0.0, %v3713
  %v3715 = vpop.f32.mrf.mxu0
  %v3716 = vpop.f32.mrf.mxu0
  %v3717 = vpop.f32.mrf.mxu0
  %3718 = vdwg.mxu0
  %v3719 = vpack.c.bf16 %v3714, %v3714
  %s3720 = scalar_lea.vmem %s39, 4
  %v3721 = vld [vmem:[%s3720] sm:$0xf]
  %v3723 = vsel %vm3288, %v3721, 0
  %3725 = vmatprep.subr.bf16.mxu0 0
  %3726 = vmatpush1.bf16.msra.mxu0 0
  %3727 = vmatprep.subr.bf16.mxu0 0
  %3728 = vmatpush1.bf16.msra.mxu0 0
  %3729 = vmatprep.subr.bf16.mxu0 0
  %3730 = vmatpush1.bf16.msra.mxu0 0
  %3731 = vmatprep.subr.bf16.mxu0 0
  %3732 = vmatpush1.bf16.msra.mxu0 0
  %3733 = vmatprep.subr.bf16.mxu0 0
  %3734 = vmatpush1.bf16.msra.mxu0 0
  %3735 = vmatprep.subr.bf16.mxu0 0
  %3736 = vmatpush1.bf16.msra.mxu0 0
  %3737 = vmatprep.subr.bf16.mxu0 0
  %3738 = vmatpush1.bf16.msra.mxu0 0
  %3739 = vmatprep.subr.bf16.mxu0 0
  %3740 = vmatpush1.bf16.msra.mxu0 %v3677
  %3741 = vmatprep.subr.bf16.mxu0 0
  %3742 = vmatpush2.bf16.msra.mxu0 0
  %3743 = vmatprep.subr.bf16.mxu0 0
  %3744 = vmatpush2.bf16.msra.mxu0 0
  %3745 = vmatprep.subr.bf16.mxu0 0
  %3746 = vmatpush2.bf16.msra.mxu0 0
  %3747 = vmatprep.subr.bf16.mxu0 0
  %3748 = vmatpush2.bf16.msra.mxu0 0
  %3749 = vmatprep.subr.bf16.mxu0 0
  %3750 = vmatpush2.bf16.msra.mxu0 0
  %3751 = vmatprep.subr.bf16.mxu0 0
  %3752 = vmatpush2.bf16.msra.mxu0 0
  %3753 = vmatprep.subr.bf16.mxu0 0
  %3754 = vmatpush2.bf16.msra.mxu0 0
  %3755 = vmatprep.subr.bf16.mxu0 0
  %3756 = vmatpush2.bf16.msra.mxu0 0
  %3757 = vmatprep.mubr.bf16.mxu0 0
  %3758 = vmatmul.mubr.bf16.gmra.mxu0 %v3723
  %v3759 = vpop.f32.mrf.mxu0
  %v3760 = vadd.f32 0.0, %v3759
  %v3761 = vpop.f32.mrf.mxu0
  %v3762 = vpop.f32.mrf.mxu0
  %v3763 = vpop.f32.mrf.mxu0
  %3764 = vdwg.mxu0
  %v3765 = vpack.c.bf16 %v3760, %v3760
  %s3766 = scalar_lea.vmem %s39, 8
  %v3767 = vld [vmem:[%s3766] sm:$0xf]
  %v3769 = vsel %vm3288, %v3767, 0
  %3771 = vmatprep.subr.bf16.mxu0 0
  %3772 = vmatpush1.bf16.msra.mxu0 0
  %3773 = vmatprep.subr.bf16.mxu0 0
  %3774 = vmatpush1.bf16.msra.mxu0 0
  %3775 = vmatprep.subr.bf16.mxu0 0
  %3776 = vmatpush1.bf16.msra.mxu0 0
  %3777 = vmatprep.subr.bf16.mxu0 0
  %3778 = vmatpush1.bf16.msra.mxu0 0
  %3779 = vmatprep.subr.bf16.mxu0 0
  %3780 = vmatpush1.bf16.msra.mxu0 0
  %3781 = vmatprep.subr.bf16.mxu0 0
  %3782 = vmatpush1.bf16.msra.mxu0 0
  %3783 = vmatprep.subr.bf16.mxu0 0
  %3784 = vmatpush1.bf16.msra.mxu0 0
  %3785 = vmatprep.subr.bf16.mxu0 0
  %3786 = vmatpush1.bf16.msra.mxu0 %v3677
  %3787 = vmatprep.subr.bf16.mxu0 0
  %3788 = vmatpush2.bf16.msra.mxu0 0
  %3789 = vmatprep.subr.bf16.mxu0 0
  %3790 = vmatpush2.bf16.msra.mxu0 0
  %3791 = vmatprep.subr.bf16.mxu0 0
  %3792 = vmatpush2.bf16.msra.mxu0 0
  %3793 = vmatprep.subr.bf16.mxu0 0
  %3794 = vmatpush2.bf16.msra.mxu0 0
  %3795 = vmatprep.subr.bf16.mxu0 0
  %3796 = vmatpush2.bf16.msra.mxu0 0
  %3797 = vmatprep.subr.bf16.mxu0 0
  %3798 = vmatpush2.bf16.msra.mxu0 0
  %3799 = vmatprep.subr.bf16.mxu0 0
  %3800 = vmatpush2.bf16.msra.mxu0 0
  %3801 = vmatprep.subr.bf16.mxu0 0
  %3802 = vmatpush2.bf16.msra.mxu0 0
  %3803 = vmatprep.mubr.bf16.mxu0 0
  %3804 = vmatmul.mubr.bf16.gmra.mxu0 %v3769
  %v3805 = vpop.f32.mrf.mxu0
  %v3806 = vadd.f32 0.0, %v3805
  %v3807 = vpop.f32.mrf.mxu0
  %v3808 = vpop.f32.mrf.mxu0
  %v3809 = vpop.f32.mrf.mxu0
  %3810 = vdwg.mxu0
  %v3811 = vpack.c.bf16 %v3806, %v3806
  %s3812 = scalar_lea.vmem %s39, 12
  %v3813 = vld [vmem:[%s3812] sm:$0xf]
  %v3815 = vsel %vm3288, %v3813, 0
  %3817 = vmatprep.subr.bf16.mxu0 0
  %3818 = vmatpush1.bf16.msra.mxu0 0
  %3819 = vmatprep.subr.bf16.mxu0 0
  %3820 = vmatpush1.bf16.msra.mxu0 0
  %3821 = vmatprep.subr.bf16.mxu0 0
  %3822 = vmatpush1.bf16.msra.mxu0 0
  %3823 = vmatprep.subr.bf16.mxu0 0
  %3824 = vmatpush1.bf16.msra.mxu0 0
  %3825 = vmatprep.subr.bf16.mxu0 0
  %3826 = vmatpush1.bf16.msra.mxu0 0
  %3827 = vmatprep.subr.bf16.mxu0 0
  %3828 = vmatpush1.bf16.msra.mxu0 0
  %3829 = vmatprep.subr.bf16.mxu0 0
  %3830 = vmatpush1.bf16.msra.mxu0 0
  %3831 = vmatprep.subr.bf16.mxu0 0
  %3832 = vmatpush1.bf16.msra.mxu0 %v3677
  %3833 = vmatprep.subr.bf16.mxu0 0
  %3834 = vmatpush2.bf16.msra.mxu0 0
  %3835 = vmatprep.subr.bf16.mxu0 0
  %3836 = vmatpush2.bf16.msra.mxu0 0
  %3837 = vmatprep.subr.bf16.mxu0 0
  %3838 = vmatpush2.bf16.msra.mxu0 0
  %3839 = vmatprep.subr.bf16.mxu0 0
  %3840 = vmatpush2.bf16.msra.mxu0 0
  %3841 = vmatprep.subr.bf16.mxu0 0
  %3842 = vmatpush2.bf16.msra.mxu0 0
  %3843 = vmatprep.subr.bf16.mxu0 0
  %3844 = vmatpush2.bf16.msra.mxu0 0
  %3845 = vmatprep.subr.bf16.mxu0 0
  %3846 = vmatpush2.bf16.msra.mxu0 0
  %3847 = vmatprep.subr.bf16.mxu0 0
  %3848 = vmatpush2.bf16.msra.mxu0 0
  %3849 = vmatprep.mubr.bf16.mxu0 0
  %3850 = vmatmul.mubr.bf16.gmra.mxu0 %v3815
  %v3851 = vpop.f32.mrf.mxu0
  %v3852 = vadd.f32 0.0, %v3851
  %v3853 = vpop.f32.mrf.mxu0
  %v3854 = vpop.f32.mrf.mxu0
  %v3855 = vpop.f32.mrf.mxu0
  %3856 = vdwg.mxu0
  %v3857 = vpack.c.bf16 %v3852, %v3852
  %s3858 = scalar_lea.vmem %s39, 16
  %v3859 = vld [vmem:[%s3858] sm:$0xf]
  %v3861 = vsel %vm3288, %v3859, 0
  %3863 = vmatprep.subr.bf16.mxu0 0
  %3864 = vmatpush1.bf16.msra.mxu0 0
  %3865 = vmatprep.subr.bf16.mxu0 0
  %3866 = vmatpush1.bf16.msra.mxu0 0
  %3867 = vmatprep.subr.bf16.mxu0 0
  %3868 = vmatpush1.bf16.msra.mxu0 0
  %3869 = vmatprep.subr.bf16.mxu0 0
  %3870 = vmatpush1.bf16.msra.mxu0 0
  %3871 = vmatprep.subr.bf16.mxu0 0
  %3872 = vmatpush1.bf16.msra.mxu0 0
  %3873 = vmatprep.subr.bf16.mxu0 0
  %3874 = vmatpush1.bf16.msra.mxu0 0
  %3875 = vmatprep.subr.bf16.mxu0 0
  %3876 = vmatpush1.bf16.msra.mxu0 0
  %3877 = vmatprep.subr.bf16.mxu0 0
  %3878 = vmatpush1.bf16.msra.mxu0 %v3677
  %3879 = vmatprep.subr.bf16.mxu0 0
  %3880 = vmatpush2.bf16.msra.mxu0 0
  %3881 = vmatprep.subr.bf16.mxu0 0
  %3882 = vmatpush2.bf16.msra.mxu0 0
  %3883 = vmatprep.subr.bf16.mxu0 0
  %3884 = vmatpush2.bf16.msra.mxu0 0
  %3885 = vmatprep.subr.bf16.mxu0 0
  %3886 = vmatpush2.bf16.msra.mxu0 0
  %3887 = vmatprep.subr.bf16.mxu0 0
  %3888 = vmatpush2.bf16.msra.mxu0 0
  %3889 = vmatprep.subr.bf16.mxu0 0
  %3890 = vmatpush2.bf16.msra.mxu0 0
  %3891 = vmatprep.subr.bf16.mxu0 0
  %3892 = vmatpush2.bf16.msra.mxu0 0
  %3893 = vmatprep.subr.bf16.mxu0 0
  %3894 = vmatpush2.bf16.msra.mxu0 0
  %3895 = vmatprep.mubr.bf16.mxu0 0
  %3896 = vmatmul.mubr.bf16.gmra.mxu0 %v3861
  %v3897 = vpop.f32.mrf.mxu0
  %v3898 = vadd.f32 0.0, %v3897
  %v3899 = vpop.f32.mrf.mxu0
  %v3900 = vpop.f32.mrf.mxu0
  %v3901 = vpop.f32.mrf.mxu0
  %3902 = vdwg.mxu0
  %v3903 = vpack.c.bf16 %v3898, %v3898
  %3905 = vrot.lane.b32.xlu0 %v3765, 16
  %v3906 = vpop.permute.xlu0 %3905
  %3908 = vrot.lane.b32.xlu0 %v3811, 32
  %v3909 = vpop.permute.xlu0 %3908
  %3911 = vrot.lane.b32.xlu0 %v3857, 48
  %v3912 = vpop.permute.xlu0 %3911
  %3914 = vrot.lane.b32.xlu0 %v3903, 64
  %v3915 = vpop.permute.xlu0 %3914
  %v3918 = vsel %vm1328, %v3719, %v3906
  %v3920 = vsel %vm560, %v3918, %v3909
  %v3922 = vsel %vm1315, %v3920, %v3912
  %v3924 = vsel %vm181, %v3922, %v3915
  %v3925 = vld [vmem:[%s41] sm:$0xf]
  %v3926 = vld [vmem:[%s41 + $0x4] sm:$0xf]
  %v3927 = vld [vmem:[%s41 + $0x8] sm:$0xf]
  %v3928 = vld [vmem:[%s41 + $0xc] sm:$0xf]
  %v3929 = vld [vmem:[%s41 + $0x10] sm:$0xf]
  %v3930 = vld [vmem:[%s41 + $0x14] sm:$0xf]
  %v3931 = vld [vmem:[%s41 + $0x18] sm:$0xf]
  %v3932 = vld [vmem:[%s41 + $0x1c] sm:$0xf]
  %v3933 = vld [vmem:[%s41 + $0x20] sm:$0xf]
  %v3934 = vld [vmem:[%s41 + $0x24] sm:$0xf]
  %v3935 = vld [vmem:[%s43] sm:$0x1]
  %v3937 = vlaneseq
  %v3938 = vshrl.u32 %v3937, 7
  %v3939 = vsub.s32 0, %v3938
  %v3940 = vrot.slane %v3935, %v3939
  %v3952 = vunpack.c.l.b16 %v3925
  %v3953 = vunpack.c.l.b16 %v3926
  %v3954 = vunpack.c.l.b16 %v3927
  %v3955 = vunpack.c.l.b16 %v3928
  %v3956 = vunpack.c.l.b16 %v3929
  %v3957 = vunpack.c.l.b16 %v3930
  %v3958 = vunpack.c.l.b16 %v3931
  %v3959 = vunpack.c.l.b16 %v3932
  %v3960 = vunpack.c.l.b16 %v3933
  %v3961 = vunpack.c.l.b16 %v3934
  %v3962 = vpack.c.b16 %v3953, %v3952
  %v3963 = vpack.c.b16 %v3955, %v3954
  %v3964 = vpack.c.b16 %v3957, %v3956
  %v3965 = vpack.c.b16 %v3959, %v3958
  %v3966 = vpack.c.b16 %v3961, %v3960
  %vm3972 = vcmask 654336
  %v3973 = vsel %vm3972, %v3924, 0
  %3975 = vmatprep.subr.bf16.mxu0 0
  %3976 = vmatpush1.bf16.msra.mxu0 0
  %3977 = vmatprep.subr.bf16.mxu0 0
  %3978 = vmatpush1.bf16.msra.mxu0 0
  %3979 = vmatprep.subr.bf16.mxu0 0
  %3980 = vmatpush1.bf16.msra.mxu0 0
  %3981 = vmatprep.subr.bf16.mxu0 0
  %3982 = vmatpush1.bf16.msra.mxu0 %v3966
  %3983 = vmatprep.subr.bf16.mxu0 0
  %3984 = vmatpush1.bf16.msra.mxu0 %v3965
  %3985 = vmatprep.subr.bf16.mxu0 0
  %3986 = vmatpush1.bf16.msra.mxu0 %v3964
  %3987 = vmatprep.subr.bf16.mxu0 0
  %3988 = vmatpush1.bf16.msra.mxu0 %v3963
  %3989 = vmatprep.subr.bf16.mxu0 0
  %3990 = vmatpush1.bf16.msra.mxu0 %v3962
  %3991 = vmatprep.subr.bf16.mxu0 0
  %3992 = vmatpush2.bf16.msra.mxu0 0
  %3993 = vmatprep.subr.bf16.mxu0 0
  %3994 = vmatpush2.bf16.msra.mxu0 0
  %3995 = vmatprep.subr.bf16.mxu0 0
  %3996 = vmatpush2.bf16.msra.mxu0 0
  %3997 = vmatprep.subr.bf16.mxu0 0
  %3998 = vmatpush2.bf16.msra.mxu0 0
  %3999 = vmatprep.subr.bf16.mxu0 0
  %4000 = vmatpush2.bf16.msra.mxu0 0
  %4001 = vmatprep.subr.bf16.mxu0 0
  %4002 = vmatpush2.bf16.msra.mxu0 0
  %4003 = vmatprep.subr.bf16.mxu0 0
  %4004 = vmatpush2.bf16.msra.mxu0 0
  %4005 = vmatprep.subr.bf16.mxu0 0
  %4006 = vmatpush2.bf16.msra.mxu0 0
  %4007 = vmatprep.mubr.bf16.mxu0 0
  %4008 = vmatmul.mubr.bf16.gmra.mxu0 %v3973
  %v4009 = vpop.f32.mrf.mxu0
  %v4010 = vadd.f32 %v3940, %v4009
  %v4011 = vpop.f32.mrf.mxu0
  %v4012 = vpop.f32.mrf.mxu0
  %v4013 = vpop.f32.mrf.mxu0
  %4014 = vdwg.mxu0
  %vm4015 = vcmp.ge.f32.partialorder %v4010, 0.0
  %v4016 = vmul.f32 %v4010, 0.01
  %v4017 = vsel %vm4015, %v4010, %v4016
  %v4018 = vpack.c.bf16 %v4017, %v4017
  %v4019 = vld [vmem:[%s45] sm:$0xf]
  %v4020 = vld [vmem:[%s45 + $0x4] sm:$0xf]
  %v4023 = vunpack.c.l.b16 %v4019
  %v4024 = vunpack.c.l.b16 %v4020
  %v4025 = vpack.c.b16 %v4024, %v4023
  %v4027 = vsel %vm3288, %v4025, 0
  %v4030 = vsel %vm3292, %v4018, 0
  %4032 = vmatprep.subr.bf16.mxu0 0
  %4033 = vmatpush1.bf16.msra.mxu0 0
  %4034 = vmatprep.subr.bf16.mxu0 0
  %4035 = vmatpush1.bf16.msra.mxu0 0
  %4036 = vmatprep.subr.bf16.mxu0 0
  %4037 = vmatpush1.bf16.msra.mxu0 0
  %4038 = vmatprep.subr.bf16.mxu0 0
  %4039 = vmatpush1.bf16.msra.mxu0 0
  %4040 = vmatprep.subr.bf16.mxu0 0
  %4041 = vmatpush1.bf16.msra.mxu0 0
  %4042 = vmatprep.subr.bf16.mxu0 0
  %4043 = vmatpush1.bf16.msra.mxu0 0
  %4044 = vmatprep.subr.bf16.mxu0 0
  %4045 = vmatpush1.bf16.msra.mxu0 0
  %4046 = vmatprep.subr.bf16.mxu0 0
  %4047 = vmatpush1.bf16.msra.mxu0 %v4030
  %4048 = vmatprep.subr.bf16.mxu0 0
  %4049 = vmatpush2.bf16.msra.mxu0 0
  %4050 = vmatprep.subr.bf16.mxu0 0
  %4051 = vmatpush2.bf16.msra.mxu0 0
  %4052 = vmatprep.subr.bf16.mxu0 0
  %4053 = vmatpush2.bf16.msra.mxu0 0
  %4054 = vmatprep.subr.bf16.mxu0 0
  %4055 = vmatpush2.bf16.msra.mxu0 0
  %4056 = vmatprep.subr.bf16.mxu0 0
  %4057 = vmatpush2.bf16.msra.mxu0 0
  %4058 = vmatprep.subr.bf16.mxu0 0
  %4059 = vmatpush2.bf16.msra.mxu0 0
  %4060 = vmatprep.subr.bf16.mxu0 0
  %4061 = vmatpush2.bf16.msra.mxu0 0
  %4062 = vmatprep.subr.bf16.mxu0 0
  %4063 = vmatpush2.bf16.msra.mxu0 0
  %4064 = vmatprep.mubr.bf16.mxu0 0
  %4065 = vmatmul.mubr.bf16.gmra.mxu0 %v4027
  %v4066 = vpop.f32.mrf.mxu0
  %v4067 = vadd.f32 0.0, %v4066
  %v4068 = vpop.f32.mrf.mxu0
  %v4069 = vpop.f32.mrf.mxu0
  %v4070 = vadd.f32 0.0, %v4069
  %v4071 = vpop.f32.mrf.mxu0
  %4072 = vdwg.mxu0
  %v4073 = vpack.c.bf16 %v4070, %v4067
  %s4074 = scalar_lea.vmem %s45, 8
  %v4075 = vld [vmem:[%s4074] sm:$0xf]
  %v4076 = vld [vmem:[%s4074 + $0x4] sm:$0xf]
  %v4079 = vunpack.c.l.b16 %v4075
  %v4080 = vunpack.c.l.b16 %v4076
  %v4081 = vpack.c.b16 %v4080, %v4079
  %v4083 = vsel %vm3288, %v4081, 0
  %4085 = vmatprep.subr.bf16.mxu0 0
  %4086 = vmatpush1.bf16.msra.mxu0 0
  %4087 = vmatprep.subr.bf16.mxu0 0
  %4088 = vmatpush1.bf16.msra.mxu0 0
  %4089 = vmatprep.subr.bf16.mxu0 0
  %4090 = vmatpush1.bf16.msra.mxu0 0
  %4091 = vmatprep.subr.bf16.mxu0 0
  %4092 = vmatpush1.bf16.msra.mxu0 0
  %4093 = vmatprep.subr.bf16.mxu0 0
  %4094 = vmatpush1.bf16.msra.mxu0 0
  %4095 = vmatprep.subr.bf16.mxu0 0
  %4096 = vmatpush1.bf16.msra.mxu0 0
  %4097 = vmatprep.subr.bf16.mxu0 0
  %4098 = vmatpush1.bf16.msra.mxu0 0
  %4099 = vmatprep.subr.bf16.mxu0 0
  %4100 = vmatpush1.bf16.msra.mxu0 %v4030
  %4101 = vmatprep.subr.bf16.mxu0 0
  %4102 = vmatpush2.bf16.msra.mxu0 0
  %4103 = vmatprep.subr.bf16.mxu0 0
  %4104 = vmatpush2.bf16.msra.mxu0 0
  %4105 = vmatprep.subr.bf16.mxu0 0
  %4106 = vmatpush2.bf16.msra.mxu0 0
  %4107 = vmatprep.subr.bf16.mxu0 0
  %4108 = vmatpush2.bf16.msra.mxu0 0
  %4109 = vmatprep.subr.bf16.mxu0 0
  %4110 = vmatpush2.bf16.msra.mxu0 0
  %4111 = vmatprep.subr.bf16.mxu0 0
  %4112 = vmatpush2.bf16.msra.mxu0 0
  %4113 = vmatprep.subr.bf16.mxu0 0
  %4114 = vmatpush2.bf16.msra.mxu0 0
  %4115 = vmatprep.subr.bf16.mxu0 0
  %4116 = vmatpush2.bf16.msra.mxu0 0
  %4117 = vmatprep.mubr.bf16.mxu0 0
  %4118 = vmatmul.mubr.bf16.gmra.mxu0 %v4083
  %v4119 = vpop.f32.mrf.mxu0
  %v4120 = vadd.f32 0.0, %v4119
  %v4121 = vpop.f32.mrf.mxu0
  %v4122 = vpop.f32.mrf.mxu0
  %v4123 = vadd.f32 0.0, %v4122
  %v4124 = vpop.f32.mrf.mxu0
  %4125 = vdwg.mxu0
  %v4126 = vpack.c.bf16 %v4123, %v4120
  %s4127 = scalar_lea.vmem %s45, 16
  %v4128 = vld [vmem:[%s4127] sm:$0xf]
  %v4129 = vld [vmem:[%s4127 + $0x4] sm:$0xf]
  %v4132 = vunpack.c.l.b16 %v4128
  %v4133 = vunpack.c.l.b16 %v4129
  %v4134 = vpack.c.b16 %v4133, %v4132
  %v4136 = vsel %vm3288, %v4134, 0
  %4138 = vmatprep.subr.bf16.mxu0 0
  %4139 = vmatpush1.bf16.msra.mxu0 0
  %4140 = vmatprep.subr.bf16.mxu0 0
  %4141 = vmatpush1.bf16.msra.mxu0 0
  %4142 = vmatprep.subr.bf16.mxu0 0
  %4143 = vmatpush1.bf16.msra.mxu0 0
  %4144 = vmatprep.subr.bf16.mxu0 0
  %4145 = vmatpush1.bf16.msra.mxu0 0
  %4146 = vmatprep.subr.bf16.mxu0 0
  %4147 = vmatpush1.bf16.msra.mxu0 0
  %4148 = vmatprep.subr.bf16.mxu0 0
  %4149 = vmatpush1.bf16.msra.mxu0 0
  %4150 = vmatprep.subr.bf16.mxu0 0
  %4151 = vmatpush1.bf16.msra.mxu0 0
  %4152 = vmatprep.subr.bf16.mxu0 0
  %4153 = vmatpush1.bf16.msra.mxu0 %v4030
  %4154 = vmatprep.subr.bf16.mxu0 0
  %4155 = vmatpush2.bf16.msra.mxu0 0
  %4156 = vmatprep.subr.bf16.mxu0 0
  %4157 = vmatpush2.bf16.msra.mxu0 0
  %4158 = vmatprep.subr.bf16.mxu0 0
  %4159 = vmatpush2.bf16.msra.mxu0 0
  %4160 = vmatprep.subr.bf16.mxu0 0
  %4161 = vmatpush2.bf16.msra.mxu0 0
  %4162 = vmatprep.subr.bf16.mxu0 0
  %4163 = vmatpush2.bf16.msra.mxu0 0
  %4164 = vmatprep.subr.bf16.mxu0 0
  %4165 = vmatpush2.bf16.msra.mxu0 0
  %4166 = vmatprep.subr.bf16.mxu0 0
  %4167 = vmatpush2.bf16.msra.mxu0 0
  %4168 = vmatprep.subr.bf16.mxu0 0
  %4169 = vmatpush2.bf16.msra.mxu0 0
  %4170 = vmatprep.mubr.bf16.mxu0 0
  %4171 = vmatmul.mubr.bf16.gmra.mxu0 %v4136
  %v4172 = vpop.f32.mrf.mxu0
  %v4173 = vadd.f32 0.0, %v4172
  %v4174 = vpop.f32.mrf.mxu0
  %v4175 = vpop.f32.mrf.mxu0
  %v4176 = vadd.f32 0.0, %v4175
  %v4177 = vpop.f32.mrf.mxu0
  %4178 = vdwg.mxu0
  %v4179 = vpack.c.bf16 %v4176, %v4173
  %s4180 = scalar_lea.vmem %s45, 24
  %v4181 = vld [vmem:[%s4180] sm:$0xf]
  %v4182 = vld [vmem:[%s4180 + $0x4] sm:$0xf]
  %v4185 = vunpack.c.l.b16 %v4181
  %v4186 = vunpack.c.l.b16 %v4182
  %v4187 = vpack.c.b16 %v4186, %v4185
  %v4189 = vsel %vm3288, %v4187, 0
  %4191 = vmatprep.subr.bf16.mxu0 0
  %4192 = vmatpush1.bf16.msra.mxu0 0
  %4193 = vmatprep.subr.bf16.mxu0 0
  %4194 = vmatpush1.bf16.msra.mxu0 0
  %4195 = vmatprep.subr.bf16.mxu0 0
  %4196 = vmatpush1.bf16.msra.mxu0 0
  %4197 = vmatprep.subr.bf16.mxu0 0
  %4198 = vmatpush1.bf16.msra.mxu0 0
  %4199 = vmatprep.subr.bf16.mxu0 0
  %4200 = vmatpush1.bf16.msra.mxu0 0
  %4201 = vmatprep.subr.bf16.mxu0 0
  %4202 = vmatpush1.bf16.msra.mxu0 0
  %4203 = vmatprep.subr.bf16.mxu0 0
  %4204 = vmatpush1.bf16.msra.mxu0 0
  %4205 = vmatprep.subr.bf16.mxu0 0
  %4206 = vmatpush1.bf16.msra.mxu0 %v4030
  %4207 = vmatprep.subr.bf16.mxu0 0
  %4208 = vmatpush2.bf16.msra.mxu0 0
  %4209 = vmatprep.subr.bf16.mxu0 0
  %4210 = vmatpush2.bf16.msra.mxu0 0
  %4211 = vmatprep.subr.bf16.mxu0 0
  %4212 = vmatpush2.bf16.msra.mxu0 0
  %4213 = vmatprep.subr.bf16.mxu0 0
  %4214 = vmatpush2.bf16.msra.mxu0 0
  %4215 = vmatprep.subr.bf16.mxu0 0
  %4216 = vmatpush2.bf16.msra.mxu0 0
  %4217 = vmatprep.subr.bf16.mxu0 0
  %4218 = vmatpush2.bf16.msra.mxu0 0
  %4219 = vmatprep.subr.bf16.mxu0 0
  %4220 = vmatpush2.bf16.msra.mxu0 0
  %4221 = vmatprep.subr.bf16.mxu0 0
  %4222 = vmatpush2.bf16.msra.mxu0 0
  %4223 = vmatprep.mubr.bf16.mxu0 0
  %4224 = vmatmul.mubr.bf16.gmra.mxu0 %v4189
  %v4225 = vpop.f32.mrf.mxu0
  %v4226 = vadd.f32 0.0, %v4225
  %v4227 = vpop.f32.mrf.mxu0
  %v4228 = vpop.f32.mrf.mxu0
  %v4229 = vadd.f32 0.0, %v4228
  %v4230 = vpop.f32.mrf.mxu0
  %4231 = vdwg.mxu0
  %v4232 = vpack.c.bf16 %v4229, %v4226
  %s4233 = scalar_lea.vmem %s45, 32
  %v4234 = vld [vmem:[%s4233] sm:$0xf]
  %v4235 = vld [vmem:[%s4233 + $0x4] sm:$0xf]
  %v4238 = vunpack.c.l.b16 %v4234
  %v4239 = vunpack.c.l.b16 %v4235
  %v4240 = vpack.c.b16 %v4239, %v4238
  %v4242 = vsel %vm3288, %v4240, 0
  %4244 = vmatprep.subr.bf16.mxu0 0
  %4245 = vmatpush1.bf16.msra.mxu0 0
  %4246 = vmatprep.subr.bf16.mxu0 0
  %4247 = vmatpush1.bf16.msra.mxu0 0
  %4248 = vmatprep.subr.bf16.mxu0 0
  %4249 = vmatpush1.bf16.msra.mxu0 0
  %4250 = vmatprep.subr.bf16.mxu0 0
  %4251 = vmatpush1.bf16.msra.mxu0 0
  %4252 = vmatprep.subr.bf16.mxu0 0
  %4253 = vmatpush1.bf16.msra.mxu0 0
  %4254 = vmatprep.subr.bf16.mxu0 0
  %4255 = vmatpush1.bf16.msra.mxu0 0
  %4256 = vmatprep.subr.bf16.mxu0 0
  %4257 = vmatpush1.bf16.msra.mxu0 0
  %4258 = vmatprep.subr.bf16.mxu0 0
  %4259 = vmatpush1.bf16.msra.mxu0 %v4030
  %4260 = vmatprep.subr.bf16.mxu0 0
  %4261 = vmatpush2.bf16.msra.mxu0 0
  %4262 = vmatprep.subr.bf16.mxu0 0
  %4263 = vmatpush2.bf16.msra.mxu0 0
  %4264 = vmatprep.subr.bf16.mxu0 0
  %4265 = vmatpush2.bf16.msra.mxu0 0
  %4266 = vmatprep.subr.bf16.mxu0 0
  %4267 = vmatpush2.bf16.msra.mxu0 0
  %4268 = vmatprep.subr.bf16.mxu0 0
  %4269 = vmatpush2.bf16.msra.mxu0 0
  %4270 = vmatprep.subr.bf16.mxu0 0
  %4271 = vmatpush2.bf16.msra.mxu0 0
  %4272 = vmatprep.subr.bf16.mxu0 0
  %4273 = vmatpush2.bf16.msra.mxu0 0
  %4274 = vmatprep.subr.bf16.mxu0 0
  %4275 = vmatpush2.bf16.msra.mxu0 0
  %4276 = vmatprep.mubr.bf16.mxu0 0
  %4277 = vmatmul.mubr.bf16.gmra.mxu0 %v4242
  %v4278 = vpop.f32.mrf.mxu0
  %v4279 = vadd.f32 0.0, %v4278
  %v4280 = vpop.f32.mrf.mxu0
  %v4281 = vpop.f32.mrf.mxu0
  %v4282 = vadd.f32 0.0, %v4281
  %v4283 = vpop.f32.mrf.mxu0
  %4284 = vdwg.mxu0
  %v4285 = vpack.c.bf16 %v4282, %v4279
  %4287 = vrot.lane.b32.xlu0 %v4126, 32
  %v4288 = vpop.permute.xlu0 %4287
  %4290 = vrot.lane.b32.xlu0 %v4179, 64
  %v4291 = vpop.permute.xlu0 %4290
  %4293 = vrot.lane.b32.xlu0 %v4232, 96
  %v4294 = vpop.permute.xlu0 %4293
  %v4297 = vsel %vm560, %v4073, %v4288
  %v4299 = vsel %vm181, %v4297, %v4291
  %v4301 = vsel %vm545, %v4299, %v4294
  %v4303 = vld [vmem:[%s47] sm:$0xf]
  %v4304 = vld [vmem:[%s47 + $0x4] sm:$0xf]
  %v4305 = vld [vmem:[%s47 + $0x8] sm:$0xf]
  %v4306 = vld [vmem:[%s47 + $0xc] sm:$0xf]
  %v4307 = vld [vmem:[%s47 + $0x10] sm:$0xf]
  %v4308 = vld [vmem:[%s47 + $0x14] sm:$0xf]
  %v4309 = vld [vmem:[%s47 + $0x18] sm:$0xf]
  %v4310 = vld [vmem:[%s47 + $0x1c] sm:$0xf]
  %v4311 = vld [vmem:[%s47 + $0x20] sm:$0xf]
  %v4312 = vld [vmem:[%s47 + $0x24] sm:$0xf]
  %v4313 = vld [vmem:[%s47 + $0x28] sm:$0xf]
  %v4314 = vld [vmem:[%s47 + $0x2c] sm:$0xf]
  %v4315 = vld [vmem:[%s47 + $0x30] sm:$0xf]
  %v4316 = vld [vmem:[%s47 + $0x34] sm:$0xf]
  %v4317 = vld [vmem:[%s47 + $0x38] sm:$0xf]
  %v4318 = vld [vmem:[%s47 + $0x3c] sm:$0xf]
  %v4319 = vld [vmem:[%s47 + $0x40] sm:$0xf]
  %v4320 = vld [vmem:[%s47 + $0x44] sm:$0xf]
  %v4321 = vld [vmem:[%s47 + $0x48] sm:$0xf]
  %v4322 = vld [vmem:[%s47 + $0x4c] sm:$0xf]
  %v4323 = vld [vmem:[%s49] sm:$0x1]
  %v4325 = vlaneseq
  %v4326 = vshrl.u32 %v4325, 7
  %v4327 = vsub.s32 0, %v4326
  %v4328 = vrot.slane %v4323, %v4327
  %v4350 = vunpack.c.l.b16 %v4303
  %v4351 = vunpack.c.l.b16 %v4304
  %v4352 = vunpack.c.l.b16 %v4305
  %v4353 = vunpack.c.l.b16 %v4306
  %v4354 = vunpack.c.l.b16 %v4307
  %v4355 = vunpack.c.l.b16 %v4308
  %v4356 = vunpack.c.l.b16 %v4309
  %v4357 = vunpack.c.l.b16 %v4310
  %v4358 = vunpack.c.l.b16 %v4311
  %v4359 = vunpack.c.l.b16 %v4312
  %v4360 = vunpack.c.l.b16 %v4313
  %v4361 = vunpack.c.l.b16 %v4314
  %v4362 = vunpack.c.l.b16 %v4315
  %v4363 = vunpack.c.l.b16 %v4316
  %v4364 = vunpack.c.l.b16 %v4317
  %v4365 = vunpack.c.l.b16 %v4318
  %v4366 = vunpack.c.l.b16 %v4319
  %v4367 = vunpack.c.l.b16 %v4320
  %v4368 = vunpack.c.l.b16 %v4321
  %v4369 = vunpack.c.l.b16 %v4322
  %v4370 = vpack.c.b16 %v4351, %v4350
  %v4371 = vpack.c.b16 %v4353, %v4352
  %v4372 = vpack.c.b16 %v4355, %v4354
  %v4373 = vpack.c.b16 %v4357, %v4356
  %v4374 = vpack.c.b16 %v4359, %v4358
  %v4375 = vpack.c.b16 %v4361, %v4360
  %v4376 = vpack.c.b16 %v4363, %v4362
  %v4377 = vpack.c.b16 %v4365, %v4364
  %v4378 = vpack.c.b16 %v4367, %v4366
  %v4379 = vpack.c.b16 %v4369, %v4368
  %v4391 = vsel %vm560, %v4285, 0
  %4393 = vmatprep.subr.bf16.mxu0 0
  %4394 = vmatpush1.bf16.msra.mxu0 %v4377
  %4395 = vmatprep.subr.bf16.mxu0 0
  %4396 = vmatpush1.bf16.msra.mxu0 %v4376
  %4397 = vmatprep.subr.bf16.mxu0 0
  %4398 = vmatpush1.bf16.msra.mxu0 %v4375
  %4399 = vmatprep.subr.bf16.mxu0 0
  %4400 = vmatpush1.bf16.msra.mxu0 %v4374
  %4401 = vmatprep.subr.bf16.mxu0 0
  %4402 = vmatpush1.bf16.msra.mxu0 %v4373
  %4403 = vmatprep.subr.bf16.mxu0 0
  %4404 = vmatpush1.bf16.msra.mxu0 %v4372
  %4405 = vmatprep.subr.bf16.mxu0 0
  %4406 = vmatpush1.bf16.msra.mxu0 %v4371
  %4407 = vmatprep.subr.bf16.mxu0 0
  %4408 = vmatpush1.bf16.msra.mxu0 %v4370
  %4409 = vmatprep.subr.bf16.mxu0 0
  %4410 = vmatpush2.bf16.msra.mxu0 0
  %4411 = vmatprep.subr.bf16.mxu0 0
  %4412 = vmatpush2.bf16.msra.mxu0 0
  %4413 = vmatprep.subr.bf16.mxu0 0
  %4414 = vmatpush2.bf16.msra.mxu0 0
  %4415 = vmatprep.subr.bf16.mxu0 0
  %4416 = vmatpush2.bf16.msra.mxu0 0
  %4417 = vmatprep.subr.bf16.mxu0 0
  %4418 = vmatpush2.bf16.msra.mxu0 0
  %4419 = vmatprep.subr.bf16.mxu0 0
  %4420 = vmatpush2.bf16.msra.mxu0 0
  %4421 = vmatprep.subr.bf16.mxu0 0
  %4422 = vmatpush2.bf16.msra.mxu0 %v4379
  %4423 = vmatprep.subr.bf16.mxu0 0
  %4424 = vmatpush2.bf16.msra.mxu0 %v4378
  %4425 = vmatprep.mubr.bf16.mxu0 %v4391
  %4426 = vmatmul.mubr.bf16.gmra.mxu0 %v4301
  %v4427 = vpop.f32.mrf.mxu0
  %v4428 = vadd.f32 %v4328, %v4427
  %v4429 = vpop.f32.mrf.mxu0
  %v4430 = vpop.f32.mrf.mxu0
  %v4431 = vadd.f32 %v4328, %v4430
  %v4432 = vpop.f32.mrf.mxu0
  %4433 = vdwg.mxu0
  %vm4434 = vcmp.ge.f32.partialorder %v4428, 0.0
  %vm4435 = vcmp.ge.f32.partialorder %v4431, 0.0
  %v4436 = vmul.f32 %v4428, 0.01
  %v4437 = vmul.f32 %v4431, 0.01
  %v4438 = vsel %vm4434, %v4428, %v4436
  %v4439 = vsel %vm4435, %v4431, %v4437
  %v4440 = vpack.c.bf16 %v4439, %v4438
  %v4441 = vld [vmem:[%s51] sm:$0xf]
  %v4442 = vld [vmem:[%s51 + $0x4] sm:$0xf]
  %v4445 = vunpack.c.l.b16 %v4441
  %v4446 = vunpack.c.l.b16 %v4442
  %v4447 = vpack.c.b16 %v4446, %v4445
  %v4449 = vsel %vm1328, %v4447, 0
  %4451 = vmatprep.subr.bf16.mxu0 0
  %4452 = vmatpush1.bf16.msra.mxu0 0
  %4453 = vmatprep.subr.bf16.mxu0 0
  %4454 = vmatpush1.bf16.msra.mxu0 0
  %4455 = vmatprep.subr.bf16.mxu0 0
  %4456 = vmatpush1.bf16.msra.mxu0 0
  %4457 = vmatprep.subr.bf16.mxu0 0
  %4458 = vmatpush1.bf16.msra.mxu0 0
  %4459 = vmatprep.subr.bf16.mxu0 0
  %4460 = vmatpush1.bf16.msra.mxu0 0
  %4461 = vmatprep.subr.bf16.mxu0 0
  %4462 = vmatpush1.bf16.msra.mxu0 0
  %4463 = vmatprep.subr.bf16.mxu0 0
  %4464 = vmatpush1.bf16.msra.mxu0 0
  %4465 = vmatprep.subr.bf16.mxu0 0
  %4466 = vmatpush1.bf16.msra.mxu0 %v4440
  %4467 = vmatprep.subr.bf16.mxu0 0
  %4468 = vmatpush2.bf16.msra.mxu0 0
  %4469 = vmatprep.subr.bf16.mxu0 0
  %4470 = vmatpush2.bf16.msra.mxu0 0
  %4471 = vmatprep.subr.bf16.mxu0 0
  %4472 = vmatpush2.bf16.msra.mxu0 0
  %4473 = vmatprep.subr.bf16.mxu0 0
  %4474 = vmatpush2.bf16.msra.mxu0 0
  %4475 = vmatprep.subr.bf16.mxu0 0
  %4476 = vmatpush2.bf16.msra.mxu0 0
  %4477 = vmatprep.subr.bf16.mxu0 0
  %4478 = vmatpush2.bf16.msra.mxu0 0
  %4479 = vmatprep.subr.bf16.mxu0 0
  %4480 = vmatpush2.bf16.msra.mxu0 0
  %4481 = vmatprep.subr.bf16.mxu0 0
  %4482 = vmatpush2.bf16.msra.mxu0 0
  %4483 = vmatprep.mubr.bf16.mxu0 0
  %4484 = vmatmul.mubr.bf16.gmra.mxu0 %v4449
  %v4485 = vpop.f32.mrf.mxu0
  %v4486 = vadd.f32 0.0, %v4485
  %v4487 = vpop.f32.mrf.mxu0
  %v4488 = vpop.f32.mrf.mxu0
  %v4489 = vadd.f32 0.0, %v4488
  %v4490 = vpop.f32.mrf.mxu0
  %4491 = vdwg.mxu0
  %v4492 = vpack.c.bf16 %v4489, %v4486
  %s4493 = scalar_lea.vmem %s51, 8
  %v4494 = vld [vmem:[%s4493] sm:$0xf]
  %v4495 = vld [vmem:[%s4493 + $0x4] sm:$0xf]
  %v4498 = vunpack.c.l.b16 %v4494
  %v4499 = vunpack.c.l.b16 %v4495
  %v4500 = vpack.c.b16 %v4499, %v4498
  %v4502 = vsel %vm1328, %v4500, 0
  %4504 = vmatprep.subr.bf16.mxu0 0
  %4505 = vmatpush1.bf16.msra.mxu0 0
  %4506 = vmatprep.subr.bf16.mxu0 0
  %4507 = vmatpush1.bf16.msra.mxu0 0
  %4508 = vmatprep.subr.bf16.mxu0 0
  %4509 = vmatpush1.bf16.msra.mxu0 0
  %4510 = vmatprep.subr.bf16.mxu0 0
  %4511 = vmatpush1.bf16.msra.mxu0 0
  %4512 = vmatprep.subr.bf16.mxu0 0
  %4513 = vmatpush1.bf16.msra.mxu0 0
  %4514 = vmatprep.subr.bf16.mxu0 0
  %4515 = vmatpush1.bf16.msra.mxu0 0
  %4516 = vmatprep.subr.bf16.mxu0 0
  %4517 = vmatpush1.bf16.msra.mxu0 0
  %4518 = vmatprep.subr.bf16.mxu0 0
  %4519 = vmatpush1.bf16.msra.mxu0 %v4440
  %4520 = vmatprep.subr.bf16.mxu0 0
  %4521 = vmatpush2.bf16.msra.mxu0 0
  %4522 = vmatprep.subr.bf16.mxu0 0
  %4523 = vmatpush2.bf16.msra.mxu0 0
  %4524 = vmatprep.subr.bf16.mxu0 0
  %4525 = vmatpush2.bf16.msra.mxu0 0
  %4526 = vmatprep.subr.bf16.mxu0 0
  %4527 = vmatpush2.bf16.msra.mxu0 0
  %4528 = vmatprep.subr.bf16.mxu0 0
  %4529 = vmatpush2.bf16.msra.mxu0 0
  %4530 = vmatprep.subr.bf16.mxu0 0
  %4531 = vmatpush2.bf16.msra.mxu0 0
  %4532 = vmatprep.subr.bf16.mxu0 0
  %4533 = vmatpush2.bf16.msra.mxu0 0
  %4534 = vmatprep.subr.bf16.mxu0 0
  %4535 = vmatpush2.bf16.msra.mxu0 0
  %4536 = vmatprep.mubr.bf16.mxu0 0
  %4537 = vmatmul.mubr.bf16.gmra.mxu0 %v4502
  %v4538 = vpop.f32.mrf.mxu0
  %v4539 = vadd.f32 0.0, %v4538
  %v4540 = vpop.f32.mrf.mxu0
  %v4541 = vpop.f32.mrf.mxu0
  %v4542 = vadd.f32 0.0, %v4541
  %v4543 = vpop.f32.mrf.mxu0
  %4544 = vdwg.mxu0
  %v4545 = vpack.c.bf16 %v4542, %v4539
  %s4546 = scalar_lea.vmem %s51, 16
  %v4547 = vld [vmem:[%s4546] sm:$0xf]
  %v4548 = vld [vmem:[%s4546 + $0x4] sm:$0xf]
  %v4551 = vunpack.c.l.b16 %v4547
  %v4552 = vunpack.c.l.b16 %v4548
  %v4553 = vpack.c.b16 %v4552, %v4551
  %v4555 = vsel %vm1328, %v4553, 0
  %4557 = vmatprep.subr.bf16.mxu0 0
  %4558 = vmatpush1.bf16.msra.mxu0 0
  %4559 = vmatprep.subr.bf16.mxu0 0
  %4560 = vmatpush1.bf16.msra.mxu0 0
  %4561 = vmatprep.subr.bf16.mxu0 0
  %4562 = vmatpush1.bf16.msra.mxu0 0
  %4563 = vmatprep.subr.bf16.mxu0 0
  %4564 = vmatpush1.bf16.msra.mxu0 0
  %4565 = vmatprep.subr.bf16.mxu0 0
  %4566 = vmatpush1.bf16.msra.mxu0 0
  %4567 = vmatprep.subr.bf16.mxu0 0
  %4568 = vmatpush1.bf16.msra.mxu0 0
  %4569 = vmatprep.subr.bf16.mxu0 0
  %4570 = vmatpush1.bf16.msra.mxu0 0
  %4571 = vmatprep.subr.bf16.mxu0 0
  %4572 = vmatpush1.bf16.msra.mxu0 %v4440
  %4573 = vmatprep.subr.bf16.mxu0 0
  %4574 = vmatpush2.bf16.msra.mxu0 0
  %4575 = vmatprep.subr.bf16.mxu0 0
  %4576 = vmatpush2.bf16.msra.mxu0 0
  %4577 = vmatprep.subr.bf16.mxu0 0
  %4578 = vmatpush2.bf16.msra.mxu0 0
  %4579 = vmatprep.subr.bf16.mxu0 0
  %4580 = vmatpush2.bf16.msra.mxu0 0
  %4581 = vmatprep.subr.bf16.mxu0 0
  %4582 = vmatpush2.bf16.msra.mxu0 0
  %4583 = vmatprep.subr.bf16.mxu0 0
  %4584 = vmatpush2.bf16.msra.mxu0 0
  %4585 = vmatprep.subr.bf16.mxu0 0
  %4586 = vmatpush2.bf16.msra.mxu0 0
  %4587 = vmatprep.subr.bf16.mxu0 0
  %4588 = vmatpush2.bf16.msra.mxu0 0
  %4589 = vmatprep.mubr.bf16.mxu0 0
  %4590 = vmatmul.mubr.bf16.gmra.mxu0 %v4555
  %v4591 = vpop.f32.mrf.mxu0
  %v4592 = vadd.f32 0.0, %v4591
  %v4593 = vpop.f32.mrf.mxu0
  %v4594 = vpop.f32.mrf.mxu0
  %v4595 = vadd.f32 0.0, %v4594
  %v4596 = vpop.f32.mrf.mxu0
  %4597 = vdwg.mxu0
  %v4598 = vpack.c.bf16 %v4595, %v4592
  %s4599 = scalar_lea.vmem %s51, 24
  %v4600 = vld [vmem:[%s4599] sm:$0xf]
  %v4601 = vld [vmem:[%s4599 + $0x4] sm:$0xf]
  %v4604 = vunpack.c.l.b16 %v4600
  %v4605 = vunpack.c.l.b16 %v4601
  %v4606 = vpack.c.b16 %v4605, %v4604
  %v4608 = vsel %vm1328, %v4606, 0
  %4610 = vmatprep.subr.bf16.mxu0 0
  %4611 = vmatpush1.bf16.msra.mxu0 0
  %4612 = vmatprep.subr.bf16.mxu0 0
  %4613 = vmatpush1.bf16.msra.mxu0 0
  %4614 = vmatprep.subr.bf16.mxu0 0
  %4615 = vmatpush1.bf16.msra.mxu0 0
  %4616 = vmatprep.subr.bf16.mxu0 0
  %4617 = vmatpush1.bf16.msra.mxu0 0
  %4618 = vmatprep.subr.bf16.mxu0 0
  %4619 = vmatpush1.bf16.msra.mxu0 0
  %4620 = vmatprep.subr.bf16.mxu0 0
  %4621 = vmatpush1.bf16.msra.mxu0 0
  %4622 = vmatprep.subr.bf16.mxu0 0
  %4623 = vmatpush1.bf16.msra.mxu0 0
  %4624 = vmatprep.subr.bf16.mxu0 0
  %4625 = vmatpush1.bf16.msra.mxu0 %v4440
  %4626 = vmatprep.subr.bf16.mxu0 0
  %4627 = vmatpush2.bf16.msra.mxu0 0
  %4628 = vmatprep.subr.bf16.mxu0 0
  %4629 = vmatpush2.bf16.msra.mxu0 0
  %4630 = vmatprep.subr.bf16.mxu0 0
  %4631 = vmatpush2.bf16.msra.mxu0 0
  %4632 = vmatprep.subr.bf16.mxu0 0
  %4633 = vmatpush2.bf16.msra.mxu0 0
  %4634 = vmatprep.subr.bf16.mxu0 0
  %4635 = vmatpush2.bf16.msra.mxu0 0
  %4636 = vmatprep.subr.bf16.mxu0 0
  %4637 = vmatpush2.bf16.msra.mxu0 0
  %4638 = vmatprep.subr.bf16.mxu0 0
  %4639 = vmatpush2.bf16.msra.mxu0 0
  %4640 = vmatprep.subr.bf16.mxu0 0
  %4641 = vmatpush2.bf16.msra.mxu0 0
  %4642 = vmatprep.mubr.bf16.mxu0 0
  %4643 = vmatmul.mubr.bf16.gmra.mxu0 %v4608
  %v4644 = vpop.f32.mrf.mxu0
  %v4645 = vadd.f32 0.0, %v4644
  %v4646 = vpop.f32.mrf.mxu0
  %v4647 = vpop.f32.mrf.mxu0
  %v4648 = vadd.f32 0.0, %v4647
  %v4649 = vpop.f32.mrf.mxu0
  %4650 = vdwg.mxu0
  %v4651 = vpack.c.bf16 %v4648, %v4645
  %s4652 = scalar_lea.vmem %s51, 32
  %v4653 = vld [vmem:[%s4652] sm:$0xf]
  %v4654 = vld [vmem:[%s4652 + $0x4] sm:$0xf]
  %v4657 = vunpack.c.l.b16 %v4653
  %v4658 = vunpack.c.l.b16 %v4654
  %v4659 = vpack.c.b16 %v4658, %v4657
  %v4661 = vsel %vm1328, %v4659, 0
  %4663 = vmatprep.subr.bf16.mxu0 0
  %4664 = vmatpush1.bf16.msra.mxu0 0
  %4665 = vmatprep.subr.bf16.mxu0 0
  %4666 = vmatpush1.bf16.msra.mxu0 0
  %4667 = vmatprep.subr.bf16.mxu0 0
  %4668 = vmatpush1.bf16.msra.mxu0 0
  %4669 = vmatprep.subr.bf16.mxu0 0
  %4670 = vmatpush1.bf16.msra.mxu0 0
  %4671 = vmatprep.subr.bf16.mxu0 0
  %4672 = vmatpush1.bf16.msra.mxu0 0
  %4673 = vmatprep.subr.bf16.mxu0 0
  %4674 = vmatpush1.bf16.msra.mxu0 0
  %4675 = vmatprep.subr.bf16.mxu0 0
  %4676 = vmatpush1.bf16.msra.mxu0 0
  %4677 = vmatprep.subr.bf16.mxu0 0
  %4678 = vmatpush1.bf16.msra.mxu0 %v4440
  %4679 = vmatprep.subr.bf16.mxu0 0
  %4680 = vmatpush2.bf16.msra.mxu0 0
  %4681 = vmatprep.subr.bf16.mxu0 0
  %4682 = vmatpush2.bf16.msra.mxu0 0
  %4683 = vmatprep.subr.bf16.mxu0 0
  %4684 = vmatpush2.bf16.msra.mxu0 0
  %4685 = vmatprep.subr.bf16.mxu0 0
  %4686 = vmatpush2.bf16.msra.mxu0 0
  %4687 = vmatprep.subr.bf16.mxu0 0
  %4688 = vmatpush2.bf16.msra.mxu0 0
  %4689 = vmatprep.subr.bf16.mxu0 0
  %4690 = vmatpush2.bf16.msra.mxu0 0
  %4691 = vmatprep.subr.bf16.mxu0 0
  %4692 = vmatpush2.bf16.msra.mxu0 0
  %4693 = vmatprep.subr.bf16.mxu0 0
  %4694 = vmatpush2.bf16.msra.mxu0 0
  %4695 = vmatprep.mubr.bf16.mxu0 0
  %4696 = vmatmul.mubr.bf16.gmra.mxu0 %v4661
  %v4697 = vpop.f32.mrf.mxu0
  %v4698 = vadd.f32 0.0, %v4697
  %v4699 = vpop.f32.mrf.mxu0
  %v4700 = vpop.f32.mrf.mxu0
  %v4701 = vadd.f32 0.0, %v4700
  %v4702 = vpop.f32.mrf.mxu0
  %4703 = vdwg.mxu0
  %v4704 = vpack.c.bf16 %v4701, %v4698
  %4706 = vrot.lane.b32.xlu0 %v4545, 64
  %v4707 = vpop.permute.xlu0 %4706
  %4709 = vrot.lane.b32.xlu0 %v4651, 64
  %v4710 = vpop.permute.xlu0 %4709
  %v4713 = vsel %vm181, %v4492, %v4707
  %v4717 = vsel %vm181, %v4598, %v4710
  %v4719 = vld [vmem:[%s53] sm:$0xf]
  %v4720 = vld [vmem:[%s53 + $0x4] sm:$0xf]
  %v4721 = vld [vmem:[%s53 + $0x8] sm:$0xf]
  %v4722 = vld [vmem:[%s53 + $0xc] sm:$0xf]
  %v4723 = vld [vmem:[%s53 + $0x10] sm:$0xf]
  %v4724 = vld [vmem:[%s53 + $0x14] sm:$0xf]
  %v4725 = vld [vmem:[%s53 + $0x18] sm:$0xf]
  %v4726 = vld [vmem:[%s53 + $0x1c] sm:$0xf]
  %v4727 = vld [vmem:[%s53 + $0x20] sm:$0xf]
  %v4728 = vld [vmem:[%s53 + $0x24] sm:$0xf]
  %v4729 = vld [vmem:[%s53 + $0x28] sm:$0xf]
  %v4730 = vld [vmem:[%s53 + $0x2c] sm:$0xf]
  %v4731 = vld [vmem:[%s53 + $0x30] sm:$0xf]
  %v4732 = vld [vmem:[%s53 + $0x34] sm:$0xf]
  %v4733 = vld [vmem:[%s53 + $0x38] sm:$0xf]
  %v4734 = vld [vmem:[%s53 + $0x3c] sm:$0xf]
  %v4735 = vld [vmem:[%s53 + $0x40] sm:$0xf]
  %v4736 = vld [vmem:[%s53 + $0x44] sm:$0xf]
  %v4737 = vld [vmem:[%s53 + $0x48] sm:$0xf]
  %v4738 = vld [vmem:[%s53 + $0x4c] sm:$0xf]
  %v4739 = vld [vmem:[%s53 + $0x50] sm:$0xf]
  %v4740 = vld [vmem:[%s53 + $0x54] sm:$0xf]
  %v4741 = vld [vmem:[%s53 + $0x58] sm:$0xf]
  %v4742 = vld [vmem:[%s53 + $0x5c] sm:$0xf]
  %v4743 = vld [vmem:[%s53 + $0x60] sm:$0xf]
  %v4744 = vld [vmem:[%s53 + $0x64] sm:$0xf]
  %v4745 = vld [vmem:[%s53 + $0x68] sm:$0xf]
  %v4746 = vld [vmem:[%s53 + $0x6c] sm:$0xf]
  %v4747 = vld [vmem:[%s53 + $0x70] sm:$0xf]
  %v4748 = vld [vmem:[%s53 + $0x74] sm:$0xf]
  %v4749 = vld [vmem:[%s53 + $0x78] sm:$0xf]
  %v4750 = vld [vmem:[%s53 + $0x7c] sm:$0xf]
  %v4751 = vld [vmem:[%s53 + $0x80] sm:$0xf]
  %v4752 = vld [vmem:[%s53 + $0x84] sm:$0xf]
  %v4753 = vld [vmem:[%s53 + $0x88] sm:$0xf]
  %v4754 = vld [vmem:[%s53 + $0x8c] sm:$0xf]
  %v4755 = vld [vmem:[%s53 + $0x90] sm:$0xf]
  %v4756 = vld [vmem:[%s53 + $0x94] sm:$0xf]
  %v4757 = vld [vmem:[%s53 + $0x98] sm:$0xf]
  %v4758 = vld [vmem:[%s53 + $0x9c] sm:$0xf]
  %v4759 = vld [vmem:[%s55] sm:$0x1]
  %v4761 = vlaneseq
  %v4762 = vshrl.u32 %v4761, 7
  %v4763 = vsub.s32 0, %v4762
  %v4764 = vrot.slane %v4759, %v4763
  %v4806 = vunpack.c.l.b16 %v4719
  %v4807 = vunpack.c.l.b16 %v4720
  %v4808 = vunpack.c.l.b16 %v4721
  %v4809 = vunpack.c.l.b16 %v4722
  %v4810 = vunpack.c.l.b16 %v4723
  %v4811 = vunpack.c.l.b16 %v4724
  %v4812 = vunpack.c.l.b16 %v4725
  %v4813 = vunpack.c.l.b16 %v4726
  %v4814 = vunpack.c.l.b16 %v4727
  %v4815 = vunpack.c.l.b16 %v4728
  %v4816 = vunpack.c.l.b16 %v4729
  %v4817 = vunpack.c.l.b16 %v4730
  %v4818 = vunpack.c.l.b16 %v4731
  %v4819 = vunpack.c.l.b16 %v4732
  %v4820 = vunpack.c.l.b16 %v4733
  %v4821 = vunpack.c.l.b16 %v4734
  %v4822 = vunpack.c.l.b16 %v4735
  %v4823 = vunpack.c.l.b16 %v4736
  %v4824 = vunpack.c.l.b16 %v4737
  %v4825 = vunpack.c.l.b16 %v4738
  %v4826 = vunpack.c.l.b16 %v4739
  %v4827 = vunpack.c.l.b16 %v4740
  %v4828 = vunpack.c.l.b16 %v4741
  %v4829 = vunpack.c.l.b16 %v4742
  %v4830 = vunpack.c.l.b16 %v4743
  %v4831 = vunpack.c.l.b16 %v4744
  %v4832 = vunpack.c.l.b16 %v4745
  %v4833 = vunpack.c.l.b16 %v4746
  %v4834 = vunpack.c.l.b16 %v4747
  %v4835 = vunpack.c.l.b16 %v4748
  %v4836 = vunpack.c.l.b16 %v4749
  %v4837 = vunpack.c.l.b16 %v4750
  %v4838 = vunpack.c.l.b16 %v4751
  %v4839 = vunpack.c.l.b16 %v4752
  %v4840 = vunpack.c.l.b16 %v4753
  %v4841 = vunpack.c.l.b16 %v4754
  %v4842 = vunpack.c.l.b16 %v4755
  %v4843 = vunpack.c.l.b16 %v4756
  %v4844 = vunpack.c.l.b16 %v4757
  %v4845 = vunpack.c.l.b16 %v4758
  %v4846 = vpack.c.b16 %v4807, %v4806
  %v4847 = vpack.c.b16 %v4809, %v4808
  %v4848 = vpack.c.b16 %v4811, %v4810
  %v4849 = vpack.c.b16 %v4813, %v4812
  %v4850 = vpack.c.b16 %v4815, %v4814
  %v4851 = vpack.c.b16 %v4817, %v4816
  %v4852 = vpack.c.b16 %v4819, %v4818
  %v4853 = vpack.c.b16 %v4821, %v4820
  %v4854 = vpack.c.b16 %v4823, %v4822
  %v4855 = vpack.c.b16 %v4825, %v4824
  %v4856 = vpack.c.b16 %v4827, %v4826
  %v4857 = vpack.c.b16 %v4829, %v4828
  %v4858 = vpack.c.b16 %v4831, %v4830
  %v4859 = vpack.c.b16 %v4833, %v4832
  %v4860 = vpack.c.b16 %v4835, %v4834
  %v4861 = vpack.c.b16 %v4837, %v4836
  %v4862 = vpack.c.b16 %v4839, %v4838
  %v4863 = vpack.c.b16 %v4841, %v4840
  %v4864 = vpack.c.b16 %v4843, %v4842
  %v4865 = vpack.c.b16 %v4845, %v4844
  %v4887 = vsel %vm181, %v4704, 0
  %4889 = vmatprep.subr.bf16.mxu0 0
  %4890 = vmatpush1.bf16.msra.mxu0 %v4853
  %4891 = vmatprep.subr.bf16.mxu0 0
  %4892 = vmatpush1.bf16.msra.mxu0 %v4852
  %4893 = vmatprep.subr.bf16.mxu0 0
  %4894 = vmatpush1.bf16.msra.mxu0 %v4851
  %4895 = vmatprep.subr.bf16.mxu0 0
  %4896 = vmatpush1.bf16.msra.mxu0 %v4850
  %4897 = vmatprep.subr.bf16.mxu0 0
  %4898 = vmatpush1.bf16.msra.mxu0 %v4849
  %4899 = vmatprep.subr.bf16.mxu0 0
  %4900 = vmatpush1.bf16.msra.mxu0 %v4848
  %4901 = vmatprep.subr.bf16.mxu0 0
  %4902 = vmatpush1.bf16.msra.mxu0 %v4847
  %4903 = vmatprep.subr.bf16.mxu0 0
  %4904 = vmatpush1.bf16.msra.mxu0 %v4846
  %4905 = vmatprep.subr.bf16.mxu0 0
  %4906 = vmatpush2.bf16.msra.mxu0 %v4861
  %4907 = vmatprep.subr.bf16.mxu0 0
  %4908 = vmatpush2.bf16.msra.mxu0 %v4860
  %4909 = vmatprep.subr.bf16.mxu0 0
  %4910 = vmatpush2.bf16.msra.mxu0 %v4859
  %4911 = vmatprep.subr.bf16.mxu0 0
  %4912 = vmatpush2.bf16.msra.mxu0 %v4858
  %4913 = vmatprep.subr.bf16.mxu0 0
  %4914 = vmatpush2.bf16.msra.mxu0 %v4857
  %4915 = vmatprep.subr.bf16.mxu0 0
  %4916 = vmatpush2.bf16.msra.mxu0 %v4856
  %4917 = vmatprep.subr.bf16.mxu0 0
  %4918 = vmatpush2.bf16.msra.mxu0 %v4855
  %4919 = vmatprep.subr.bf16.mxu0 0
  %4920 = vmatpush2.bf16.msra.mxu0 %v4854
  %4921 = vmatprep.mubr.bf16.mxu0 %v4717
  %4922 = vmatmul.mubr.bf16.gmra.mxu0 %v4713
  %v4923 = vpop.f32.mrf.mxu0
  %v4924 = vadd.f32 %v4764, %v4923
  %v4925 = vpop.f32.mrf.mxu0
  %v4926 = vpop.f32.mrf.mxu0
  %v4927 = vadd.f32 %v4764, %v4926
  %v4928 = vpop.f32.mrf.mxu0
  %4929 = vdwg.mxu0
  %4930 = vmatprep.subr.bf16.mxu0 0
  %4931 = vmatpush1.bf16.msra.mxu0 0
  %4932 = vmatprep.subr.bf16.mxu0 0
  %4933 = vmatpush1.bf16.msra.mxu0 0
  %4934 = vmatprep.subr.bf16.mxu0 0
  %4935 = vmatpush1.bf16.msra.mxu0 0
  %4936 = vmatprep.subr.bf16.mxu0 0
  %4937 = vmatpush1.bf16.msra.mxu0 0
  %4938 = vmatprep.subr.bf16.mxu0 0
  %4939 = vmatpush1.bf16.msra.mxu0 %v4865
  %4940 = vmatprep.subr.bf16.mxu0 0
  %4941 = vmatpush1.bf16.msra.mxu0 %v4864
  %4942 = vmatprep.subr.bf16.mxu0 0
  %4943 = vmatpush1.bf16.msra.mxu0 %v4863
  %4944 = vmatprep.subr.bf16.mxu0 0
  %4945 = vmatpush1.bf16.msra.mxu0 %v4862
  %4946 = vmatprep.subr.bf16.mxu0 0
  %4947 = vmatpush2.bf16.msra.mxu0 0
  %4948 = vmatprep.subr.bf16.mxu0 0
  %4949 = vmatpush2.bf16.msra.mxu0 0
  %4950 = vmatprep.subr.bf16.mxu0 0
  %4951 = vmatpush2.bf16.msra.mxu0 0
  %4952 = vmatprep.subr.bf16.mxu0 0
  %4953 = vmatpush2.bf16.msra.mxu0 0
  %4954 = vmatprep.subr.bf16.mxu0 0
  %4955 = vmatpush2.bf16.msra.mxu0 0
  %4956 = vmatprep.subr.bf16.mxu0 0
  %4957 = vmatpush2.bf16.msra.mxu0 0
  %4958 = vmatprep.subr.bf16.mxu0 0
  %4959 = vmatpush2.bf16.msra.mxu0 0
  %4960 = vmatprep.subr.bf16.mxu0 0
  %4961 = vmatpush2.bf16.msra.mxu0 0
  %4962 = vmatprep.mubr.bf16.mxu0 0
  %4963 = vmatmul.mubr.bf16.gmra.mxu0 %v4887
  %v4964 = vpop.f32.mrf.mxu0
  %v4965 = vadd.f32 %v4924, %v4964
  %v4966 = vpop.f32.mrf.mxu0
  %v4967 = vpop.f32.mrf.mxu0
  %v4968 = vadd.f32 %v4927, %v4967
  %v4969 = vpop.f32.mrf.mxu0
  %4970 = vdwg.mxu0
  %vm4971 = vcmp.ge.f32.partialorder %v4965, 0.0
  %vm4972 = vcmp.ge.f32.partialorder %v4968, 0.0
  %v4973 = vmul.f32 %v4965, 0.01
  %v4974 = vmul.f32 %v4968, 0.01
  %v4975 = vsel %vm4971, %v4965, %v4973
  %v4976 = vsel %vm4972, %v4968, %v4974
  %v4977 = vpack.c.bf16 %v4976, %v4975
  %v4978 = vld [vmem:[%s57] sm:$0xf]
  %v4979 = vld [vmem:[%s57 + $0x4] sm:$0xf]
  %v4980 = vld [vmem:[%s57 + $0x8] sm:$0xf]
  %v4981 = vld [vmem:[%s57 + $0xc] sm:$0xf]
  %v4986 = vunpack.c.l.b16 %v4978
  %v4987 = vunpack.c.l.b16 %v4979
  %v4988 = vunpack.c.l.b16 %v4980
  %v4989 = vunpack.c.l.b16 %v4981
  %v4990 = vpack.c.b16 %v4987, %v4986
  %v4991 = vpack.c.b16 %v4989, %v4988
  %v4993 = vsel %vm1328, %v4990, 0
  %v4996 = vsel %vm1328, %v4991, 0
  %4998 = vmatprep.subr.bf16.mxu0 0
  %4999 = vmatpush1.bf16.msra.mxu0 0
  %5000 = vmatprep.subr.bf16.mxu0 0
  %5001 = vmatpush1.bf16.msra.mxu0 0
  %5002 = vmatprep.subr.bf16.mxu0 0
  %5003 = vmatpush1.bf16.msra.mxu0 0
  %5004 = vmatprep.subr.bf16.mxu0 0
  %5005 = vmatpush1.bf16.msra.mxu0 0
  %5006 = vmatprep.subr.bf16.mxu0 0
  %5007 = vmatpush1.bf16.msra.mxu0 0
  %5008 = vmatprep.subr.bf16.mxu0 0
  %5009 = vmatpush1.bf16.msra.mxu0 0
  %5010 = vmatprep.subr.bf16.mxu0 0
  %5011 = vmatpush1.bf16.msra.mxu0 0
  %5012 = vmatprep.subr.bf16.mxu0 0
  %5013 = vmatpush1.bf16.msra.mxu0 %v4977
  %5014 = vmatprep.subr.bf16.mxu0 0
  %5015 = vmatpush2.bf16.msra.mxu0 0
  %5016 = vmatprep.subr.bf16.mxu0 0
  %5017 = vmatpush2.bf16.msra.mxu0 0
  %5018 = vmatprep.subr.bf16.mxu0 0
  %5019 = vmatpush2.bf16.msra.mxu0 0
  %5020 = vmatprep.subr.bf16.mxu0 0
  %5021 = vmatpush2.bf16.msra.mxu0 0
  %5022 = vmatprep.subr.bf16.mxu0 0
  %5023 = vmatpush2.bf16.msra.mxu0 0
  %5024 = vmatprep.subr.bf16.mxu0 0
  %5025 = vmatpush2.bf16.msra.mxu0 0
  %5026 = vmatprep.subr.bf16.mxu0 0
  %5027 = vmatpush2.bf16.msra.mxu0 0
  %5028 = vmatprep.subr.bf16.mxu0 0
  %5029 = vmatpush2.bf16.msra.mxu0 0
  %5030 = vmatprep.mubr.bf16.mxu0 0
  %5031 = vmatmul.mubr.bf16.gmra.mxu0 %v4993
  %v5032 = vpop.f32.mrf.mxu0
  %v5033 = vadd.f32 0.0, %v5032
  %v5034 = vpop.f32.mrf.mxu0
  %v5035 = vpop.f32.mrf.mxu0
  %v5036 = vadd.f32 0.0, %v5035
  %v5037 = vpop.f32.mrf.mxu0
  %5038 = vmatprep.mubr.bf16.mxu0 0
  %5039 = vmatmul.mubr.bf16.gmra.mxu0 %v4996
  %v5040 = vpop.f32.mrf.mxu0
  %v5041 = vadd.f32 0.0, %v5040
  %v5042 = vpop.f32.mrf.mxu0
  %v5043 = vpop.f32.mrf.mxu0
  %v5044 = vadd.f32 0.0, %v5043
  %v5045 = vpop.f32.mrf.mxu0
  %5046 = vdwg.mxu0
  %v5047 = vpack.c.bf16 %v5036, %v5033
  %v5048 = vpack.c.bf16 %v5044, %v5041
  %s5049 = scalar_lea.vmem %s57, 16
  %v5050 = vld [vmem:[%s5049] sm:$0xf]
  %v5051 = vld [vmem:[%s5049 + $0x4] sm:$0xf]
  %v5052 = vld [vmem:[%s5049 + $0x8] sm:$0xf]
  %v5053 = vld [vmem:[%s5049 + $0xc] sm:$0xf]
  %v5058 = vunpack.c.l.b16 %v5050
  %v5059 = vunpack.c.l.b16 %v5051
  %v5060 = vunpack.c.l.b16 %v5052
  %v5061 = vunpack.c.l.b16 %v5053
  %v5062 = vpack.c.b16 %v5059, %v5058
  %v5063 = vpack.c.b16 %v5061, %v5060
  %v5065 = vsel %vm1328, %v5062, 0
  %v5068 = vsel %vm1328, %v5063, 0
  %5070 = vmatprep.subr.bf16.mxu0 0
  %5071 = vmatpush1.bf16.msra.mxu0 0
  %5072 = vmatprep.subr.bf16.mxu0 0
  %5073 = vmatpush1.bf16.msra.mxu0 0
  %5074 = vmatprep.subr.bf16.mxu0 0
  %5075 = vmatpush1.bf16.msra.mxu0 0
  %5076 = vmatprep.subr.bf16.mxu0 0
  %5077 = vmatpush1.bf16.msra.mxu0 0
  %5078 = vmatprep.subr.bf16.mxu0 0
  %5079 = vmatpush1.bf16.msra.mxu0 0
  %5080 = vmatprep.subr.bf16.mxu0 0
  %5081 = vmatpush1.bf16.msra.mxu0 0
  %5082 = vmatprep.subr.bf16.mxu0 0
  %5083 = vmatpush1.bf16.msra.mxu0 0
  %5084 = vmatprep.subr.bf16.mxu0 0
  %5085 = vmatpush1.bf16.msra.mxu0 %v4977
  %5086 = vmatprep.subr.bf16.mxu0 0
  %5087 = vmatpush2.bf16.msra.mxu0 0
  %5088 = vmatprep.subr.bf16.mxu0 0
  %5089 = vmatpush2.bf16.msra.mxu0 0
  %5090 = vmatprep.subr.bf16.mxu0 0
  %5091 = vmatpush2.bf16.msra.mxu0 0
  %5092 = vmatprep.subr.bf16.mxu0 0
  %5093 = vmatpush2.bf16.msra.mxu0 0
  %5094 = vmatprep.subr.bf16.mxu0 0
  %5095 = vmatpush2.bf16.msra.mxu0 0
  %5096 = vmatprep.subr.bf16.mxu0 0
  %5097 = vmatpush2.bf16.msra.mxu0 0
  %5098 = vmatprep.subr.bf16.mxu0 0
  %5099 = vmatpush2.bf16.msra.mxu0 0
  %5100 = vmatprep.subr.bf16.mxu0 0
  %5101 = vmatpush2.bf16.msra.mxu0 0
  %5102 = vmatprep.mubr.bf16.mxu0 0
  %5103 = vmatmul.mubr.bf16.gmra.mxu0 %v5065
  %v5104 = vpop.f32.mrf.mxu0
  %v5105 = vadd.f32 0.0, %v5104
  %v5106 = vpop.f32.mrf.mxu0
  %v5107 = vpop.f32.mrf.mxu0
  %v5108 = vadd.f32 0.0, %v5107
  %v5109 = vpop.f32.mrf.mxu0
  %5110 = vmatprep.mubr.bf16.mxu0 0
  %5111 = vmatmul.mubr.bf16.gmra.mxu0 %v5068
  %v5112 = vpop.f32.mrf.mxu0
  %v5113 = vadd.f32 0.0, %v5112
  %v5114 = vpop.f32.mrf.mxu0
  %v5115 = vpop.f32.mrf.mxu0
  %v5116 = vadd.f32 0.0, %v5115
  %v5117 = vpop.f32.mrf.mxu0
  %5118 = vdwg.mxu0
  %v5119 = vpack.c.bf16 %v5108, %v5105
  %v5120 = vpack.c.bf16 %v5116, %v5113
  %s5121 = scalar_lea.vmem %s57, 32
  %v5122 = vld [vmem:[%s5121] sm:$0xf]
  %v5123 = vld [vmem:[%s5121 + $0x4] sm:$0xf]
  %v5124 = vld [vmem:[%s5121 + $0x8] sm:$0xf]
  %v5125 = vld [vmem:[%s5121 + $0xc] sm:$0xf]
  %v5130 = vunpack.c.l.b16 %v5122
  %v5131 = vunpack.c.l.b16 %v5123
  %v5132 = vunpack.c.l.b16 %v5124
  %v5133 = vunpack.c.l.b16 %v5125
  %v5134 = vpack.c.b16 %v5131, %v5130
  %v5135 = vpack.c.b16 %v5133, %v5132
  %v5137 = vsel %vm1328, %v5134, 0
  %v5140 = vsel %vm1328, %v5135, 0
  %5142 = vmatprep.subr.bf16.mxu0 0
  %5143 = vmatpush1.bf16.msra.mxu0 0
  %5144 = vmatprep.subr.bf16.mxu0 0
  %5145 = vmatpush1.bf16.msra.mxu0 0
  %5146 = vmatprep.subr.bf16.mxu0 0
  %5147 = vmatpush1.bf16.msra.mxu0 0
  %5148 = vmatprep.subr.bf16.mxu0 0
  %5149 = vmatpush1.bf16.msra.mxu0 0
  %5150 = vmatprep.subr.bf16.mxu0 0
  %5151 = vmatpush1.bf16.msra.mxu0 0
  %5152 = vmatprep.subr.bf16.mxu0 0
  %5153 = vmatpush1.bf16.msra.mxu0 0
  %5154 = vmatprep.subr.bf16.mxu0 0
  %5155 = vmatpush1.bf16.msra.mxu0 0
  %5156 = vmatprep.subr.bf16.mxu0 0
  %5157 = vmatpush1.bf16.msra.mxu0 %v4977
  %5158 = vmatprep.subr.bf16.mxu0 0
  %5159 = vmatpush2.bf16.msra.mxu0 0
  %5160 = vmatprep.subr.bf16.mxu0 0
  %5161 = vmatpush2.bf16.msra.mxu0 0
  %5162 = vmatprep.subr.bf16.mxu0 0
  %5163 = vmatpush2.bf16.msra.mxu0 0
  %5164 = vmatprep.subr.bf16.mxu0 0
  %5165 = vmatpush2.bf16.msra.mxu0 0
  %5166 = vmatprep.subr.bf16.mxu0 0
  %5167 = vmatpush2.bf16.msra.mxu0 0
  %5168 = vmatprep.subr.bf16.mxu0 0
  %5169 = vmatpush2.bf16.msra.mxu0 0
  %5170 = vmatprep.subr.bf16.mxu0 0
  %5171 = vmatpush2.bf16.msra.mxu0 0
  %5172 = vmatprep.subr.bf16.mxu0 0
  %5173 = vmatpush2.bf16.msra.mxu0 0
  %5174 = vmatprep.mubr.bf16.mxu0 0
  %5175 = vmatmul.mubr.bf16.gmra.mxu0 %v5137
  %v5176 = vpop.f32.mrf.mxu0
  %v5177 = vadd.f32 0.0, %v5176
  %v5178 = vpop.f32.mrf.mxu0
  %v5179 = vpop.f32.mrf.mxu0
  %v5180 = vadd.f32 0.0, %v5179
  %v5181 = vpop.f32.mrf.mxu0
  %5182 = vmatprep.mubr.bf16.mxu0 0
  %5183 = vmatmul.mubr.bf16.gmra.mxu0 %v5140
  %v5184 = vpop.f32.mrf.mxu0
  %v5185 = vadd.f32 0.0, %v5184
  %v5186 = vpop.f32.mrf.mxu0
  %v5187 = vpop.f32.mrf.mxu0
  %v5188 = vadd.f32 0.0, %v5187
  %v5189 = vpop.f32.mrf.mxu0
  %5190 = vdwg.mxu0
  %v5191 = vpack.c.bf16 %v5180, %v5177
  %v5192 = vpack.c.bf16 %v5188, %v5185
  %s5193 = scalar_lea.vmem %s57, 48
  %v5194 = vld [vmem:[%s5193] sm:$0xf]
  %v5195 = vld [vmem:[%s5193 + $0x4] sm:$0xf]
  %v5196 = vld [vmem:[%s5193 + $0x8] sm:$0xf]
  %v5197 = vld [vmem:[%s5193 + $0xc] sm:$0xf]
  %v5202 = vunpack.c.l.b16 %v5194
  %v5203 = vunpack.c.l.b16 %v5195
  %v5204 = vunpack.c.l.b16 %v5196
  %v5205 = vunpack.c.l.b16 %v5197
  %v5206 = vpack.c.b16 %v5203, %v5202
  %v5207 = vpack.c.b16 %v5205, %v5204
  %v5209 = vsel %vm1328, %v5206, 0
  %v5212 = vsel %vm1328, %v5207, 0
  %5214 = vmatprep.subr.bf16.mxu0 0
  %5215 = vmatpush1.bf16.msra.mxu0 0
  %5216 = vmatprep.subr.bf16.mxu0 0
  %5217 = vmatpush1.bf16.msra.mxu0 0
  %5218 = vmatprep.subr.bf16.mxu0 0
  %5219 = vmatpush1.bf16.msra.mxu0 0
  %5220 = vmatprep.subr.bf16.mxu0 0
  %5221 = vmatpush1.bf16.msra.mxu0 0
  %5222 = vmatprep.subr.bf16.mxu0 0
  %5223 = vmatpush1.bf16.msra.mxu0 0
  %5224 = vmatprep.subr.bf16.mxu0 0
  %5225 = vmatpush1.bf16.msra.mxu0 0
  %5226 = vmatprep.subr.bf16.mxu0 0
  %5227 = vmatpush1.bf16.msra.mxu0 0
  %5228 = vmatprep.subr.bf16.mxu0 0
  %5229 = vmatpush1.bf16.msra.mxu0 %v4977
  %5230 = vmatprep.subr.bf16.mxu0 0
  %5231 = vmatpush2.bf16.msra.mxu0 0
  %5232 = vmatprep.subr.bf16.mxu0 0
  %5233 = vmatpush2.bf16.msra.mxu0 0
  %5234 = vmatprep.subr.bf16.mxu0 0
  %5235 = vmatpush2.bf16.msra.mxu0 0
  %5236 = vmatprep.subr.bf16.mxu0 0
  %5237 = vmatpush2.bf16.msra.mxu0 0
  %5238 = vmatprep.subr.bf16.mxu0 0
  %5239 = vmatpush2.bf16.msra.mxu0 0
  %5240 = vmatprep.subr.bf16.mxu0 0
  %5241 = vmatpush2.bf16.msra.mxu0 0
  %5242 = vmatprep.subr.bf16.mxu0 0
  %5243 = vmatpush2.bf16.msra.mxu0 0
  %5244 = vmatprep.subr.bf16.mxu0 0
  %5245 = vmatpush2.bf16.msra.mxu0 0
  %5246 = vmatprep.mubr.bf16.mxu0 0
  %5247 = vmatmul.mubr.bf16.gmra.mxu0 %v5209
  %v5248 = vpop.f32.mrf.mxu0
  %v5249 = vadd.f32 0.0, %v5248
  %v5250 = vpop.f32.mrf.mxu0
  %v5251 = vpop.f32.mrf.mxu0
  %v5252 = vadd.f32 0.0, %v5251
  %v5253 = vpop.f32.mrf.mxu0
  %5254 = vmatprep.mubr.bf16.mxu0 0
  %5255 = vmatmul.mubr.bf16.gmra.mxu0 %v5212
  %v5256 = vpop.f32.mrf.mxu0
  %v5257 = vadd.f32 0.0, %v5256
  %v5258 = vpop.f32.mrf.mxu0
  %v5259 = vpop.f32.mrf.mxu0
  %v5260 = vadd.f32 0.0, %v5259
  %v5261 = vpop.f32.mrf.mxu0
  %5262 = vdwg.mxu0
  %v5263 = vpack.c.bf16 %v5252, %v5249
  %v5264 = vpack.c.bf16 %v5260, %v5257
  %s5265 = scalar_lea.vmem %s57, 64
  %v5266 = vld [vmem:[%s5265] sm:$0xf]
  %v5267 = vld [vmem:[%s5265 + $0x4] sm:$0xf]
  %v5268 = vld [vmem:[%s5265 + $0x8] sm:$0xf]
  %v5269 = vld [vmem:[%s5265 + $0xc] sm:$0xf]
  %v5274 = vunpack.c.l.b16 %v5266
  %v5275 = vunpack.c.l.b16 %v5267
  %v5276 = vunpack.c.l.b16 %v5268
  %v5277 = vunpack.c.l.b16 %v5269
  %v5278 = vpack.c.b16 %v5275, %v5274
  %v5279 = vpack.c.b16 %v5277, %v5276
  %v5281 = vsel %vm1328, %v5278, 0
  %v5284 = vsel %vm1328, %v5279, 0
  %5286 = vmatprep.subr.bf16.mxu0 0
  %5287 = vmatpush1.bf16.msra.mxu0 0
  %5288 = vmatprep.subr.bf16.mxu0 0
  %5289 = vmatpush1.bf16.msra.mxu0 0
  %5290 = vmatprep.subr.bf16.mxu0 0
  %5291 = vmatpush1.bf16.msra.mxu0 0
  %5292 = vmatprep.subr.bf16.mxu0 0
  %5293 = vmatpush1.bf16.msra.mxu0 0
  %5294 = vmatprep.subr.bf16.mxu0 0
  %5295 = vmatpush1.bf16.msra.mxu0 0
  %5296 = vmatprep.subr.bf16.mxu0 0
  %5297 = vmatpush1.bf16.msra.mxu0 0
  %5298 = vmatprep.subr.bf16.mxu0 0
  %5299 = vmatpush1.bf16.msra.mxu0 0
  %5300 = vmatprep.subr.bf16.mxu0 0
  %5301 = vmatpush1.bf16.msra.mxu0 %v4977
  %5302 = vmatprep.subr.bf16.mxu0 0
  %5303 = vmatpush2.bf16.msra.mxu0 0
  %5304 = vmatprep.subr.bf16.mxu0 0
  %5305 = vmatpush2.bf16.msra.mxu0 0
  %5306 = vmatprep.subr.bf16.mxu0 0
  %5307 = vmatpush2.bf16.msra.mxu0 0
  %5308 = vmatprep.subr.bf16.mxu0 0
  %5309 = vmatpush2.bf16.msra.mxu0 0
  %5310 = vmatprep.subr.bf16.mxu0 0
  %5311 = vmatpush2.bf16.msra.mxu0 0
  %5312 = vmatprep.subr.bf16.mxu0 0
  %5313 = vmatpush2.bf16.msra.mxu0 0
  %5314 = vmatprep.subr.bf16.mxu0 0
  %5315 = vmatpush2.bf16.msra.mxu0 0
  %5316 = vmatprep.subr.bf16.mxu0 0
  %5317 = vmatpush2.bf16.msra.mxu0 0
  %5318 = vmatprep.mubr.bf16.mxu0 0
  %5319 = vmatmul.mubr.bf16.gmra.mxu0 %v5281
  %v5320 = vpop.f32.mrf.mxu0
  %v5321 = vadd.f32 0.0, %v5320
  %v5322 = vpop.f32.mrf.mxu0
  %v5323 = vpop.f32.mrf.mxu0
  %v5324 = vadd.f32 0.0, %v5323
  %v5325 = vpop.f32.mrf.mxu0
  %5326 = vmatprep.mubr.bf16.mxu0 0
  %5327 = vmatmul.mubr.bf16.gmra.mxu0 %v5284
  %v5328 = vpop.f32.mrf.mxu0
  %v5329 = vadd.f32 0.0, %v5328
  %v5330 = vpop.f32.mrf.mxu0
  %v5331 = vpop.f32.mrf.mxu0
  %v5332 = vadd.f32 0.0, %v5331
  %v5333 = vpop.f32.mrf.mxu0
  %5334 = vdwg.mxu0
  %v5335 = vpack.c.bf16 %v5324, %v5321
  %v5336 = vpack.c.bf16 %v5332, %v5329
  %5339 = vrot.lane.b32.xlu0 %v5119, 64
  %v5340 = vpop.permute.xlu0 %5339
  %5341 = vrot.lane.b32.xlu0 %v5120, 64
  %v5342 = vpop.permute.xlu0 %5341
  %5345 = vrot.lane.b32.xlu0 %v5263, 64
  %v5346 = vpop.permute.xlu0 %5345
  %5347 = vrot.lane.b32.xlu0 %v5264, 64
  %v5348 = vpop.permute.xlu0 %5347
  %v5351 = vsel %vm181, %v5047, %v5340
  %v5355 = vsel %vm181, %v5048, %v5342
  %v5359 = vsel %vm181, %v5191, %v5346
  %v5363 = vsel %vm181, %v5192, %v5348
  %v5365 = vld [vmem:[%s59] sm:$0xf]
  %v5366 = vld [vmem:[%s59 + $0x4] sm:$0xf]
  %v5367 = vld [vmem:[%s59 + $0x8] sm:$0xf]
  %v5368 = vld [vmem:[%s59 + $0xc] sm:$0xf]
  %v5369 = vld [vmem:[%s59 + $0x10] sm:$0xf]
  %v5370 = vld [vmem:[%s59 + $0x14] sm:$0xf]
  %v5371 = vld [vmem:[%s59 + $0x18] sm:$0xf]
  %v5372 = vld [vmem:[%s59 + $0x1c] sm:$0xf]
  %v5373 = vld [vmem:[%s59 + $0x20] sm:$0xf]
  %v5374 = vld [vmem:[%s59 + $0x24] sm:$0xf]
  %v5375 = vld [vmem:[%s59 + $0x28] sm:$0xf]
  %v5376 = vld [vmem:[%s59 + $0x2c] sm:$0xf]
  %v5377 = vld [vmem:[%s59 + $0x30] sm:$0xf]
  %v5378 = vld [vmem:[%s59 + $0x34] sm:$0xf]
  %v5379 = vld [vmem:[%s59 + $0x38] sm:$0xf]
  %v5380 = vld [vmem:[%s59 + $0x3c] sm:$0xf]
  %v5381 = vld [vmem:[%s59 + $0x40] sm:$0xf]
  %v5382 = vld [vmem:[%s59 + $0x44] sm:$0xf]
  %v5383 = vld [vmem:[%s59 + $0x48] sm:$0xf]
  %v5384 = vld [vmem:[%s59 + $0x4c] sm:$0xf]
  %v5385 = vld [vmem:[%s59 + $0x50] sm:$0xf]
  %v5386 = vld [vmem:[%s59 + $0x54] sm:$0xf]
  %v5387 = vld [vmem:[%s59 + $0x58] sm:$0xf]
  %v5388 = vld [vmem:[%s59 + $0x5c] sm:$0xf]
  %v5389 = vld [vmem:[%s59 + $0x60] sm:$0xf]
  %v5390 = vld [vmem:[%s59 + $0x64] sm:$0xf]
  %v5391 = vld [vmem:[%s59 + $0x68] sm:$0xf]
  %v5392 = vld [vmem:[%s59 + $0x6c] sm:$0xf]
  %v5393 = vld [vmem:[%s59 + $0x70] sm:$0xf]
  %v5394 = vld [vmem:[%s59 + $0x74] sm:$0xf]
  %v5395 = vld [vmem:[%s59 + $0x78] sm:$0xf]
  %v5396 = vld [vmem:[%s59 + $0x7c] sm:$0xf]
  %v5397 = vld [vmem:[%s59 + $0x80] sm:$0xf]
  %v5398 = vld [vmem:[%s59 + $0x84] sm:$0xf]
  %v5399 = vld [vmem:[%s59 + $0x88] sm:$0xf]
  %v5400 = vld [vmem:[%s59 + $0x8c] sm:$0xf]
  %v5401 = vld [vmem:[%s59 + $0x90] sm:$0xf]
  %v5402 = vld [vmem:[%s59 + $0x94] sm:$0xf]
  %v5403 = vld [vmem:[%s59 + $0x98] sm:$0xf]
  %v5404 = vld [vmem:[%s59 + $0x9c] sm:$0xf]
  %v5405 = vld [vmem:[%s61] sm:$0x1]
  %v5407 = vlaneseq
  %v5408 = vshrl.u32 %v5407, 7
  %v5409 = vsub.s32 0, %v5408
  %v5410 = vrot.slane %v5405, %v5409
  %v5452 = vunpack.c.l.b16 %v5365
  %v5453 = vunpack.c.l.b16 %v5366
  %v5454 = vunpack.c.l.b16 %v5367
  %v5455 = vunpack.c.l.b16 %v5368
  %v5456 = vunpack.c.l.b16 %v5369
  %v5457 = vunpack.c.l.b16 %v5370
  %v5458 = vunpack.c.l.b16 %v5371
  %v5459 = vunpack.c.l.b16 %v5372
  %v5460 = vunpack.c.l.b16 %v5373
  %v5461 = vunpack.c.l.b16 %v5374
  %v5462 = vunpack.c.l.b16 %v5375
  %v5463 = vunpack.c.l.b16 %v5376
  %v5464 = vunpack.c.l.b16 %v5377
  %v5465 = vunpack.c.l.b16 %v5378
  %v5466 = vunpack.c.l.b16 %v5379
  %v5467 = vunpack.c.l.b16 %v5380
  %v5468 = vunpack.c.l.b16 %v5381
  %v5469 = vunpack.c.l.b16 %v5382
  %v5470 = vunpack.c.l.b16 %v5383
  %v5471 = vunpack.c.l.b16 %v5384
  %v5472 = vunpack.c.l.b16 %v5385
  %v5473 = vunpack.c.l.b16 %v5386
  %v5474 = vunpack.c.l.b16 %v5387
  %v5475 = vunpack.c.l.b16 %v5388
  %v5476 = vunpack.c.l.b16 %v5389
  %v5477 = vunpack.c.l.b16 %v5390
  %v5478 = vunpack.c.l.b16 %v5391
  %v5479 = vunpack.c.l.b16 %v5392
  %v5480 = vunpack.c.l.b16 %v5393
  %v5481 = vunpack.c.l.b16 %v5394
  %v5482 = vunpack.c.l.b16 %v5395
  %v5483 = vunpack.c.l.b16 %v5396
  %v5484 = vunpack.c.l.b16 %v5397
  %v5485 = vunpack.c.l.b16 %v5398
  %v5486 = vunpack.c.l.b16 %v5399
  %v5487 = vunpack.c.l.b16 %v5400
  %v5488 = vunpack.c.l.b16 %v5401
  %v5489 = vunpack.c.l.b16 %v5402
  %v5490 = vunpack.c.l.b16 %v5403
  %v5491 = vunpack.c.l.b16 %v5404
  %v5492 = vpack.c.b16 %v5453, %v5452
  %v5493 = vpack.c.b16 %v5455, %v5454
  %v5494 = vpack.c.b16 %v5457, %v5456
  %v5495 = vpack.c.b16 %v5459, %v5458
  %v5496 = vpack.c.b16 %v5461, %v5460
  %v5497 = vpack.c.b16 %v5463, %v5462
  %v5498 = vpack.c.b16 %v5465, %v5464
  %v5499 = vpack.c.b16 %v5467, %v5466
  %v5500 = vpack.c.b16 %v5469, %v5468
  %v5501 = vpack.c.b16 %v5471, %v5470
  %v5502 = vpack.c.b16 %v5473, %v5472
  %v5503 = vpack.c.b16 %v5475, %v5474
  %v5504 = vpack.c.b16 %v5477, %v5476
  %v5505 = vpack.c.b16 %v5479, %v5478
  %v5506 = vpack.c.b16 %v5481, %v5480
  %v5507 = vpack.c.b16 %v5483, %v5482
  %v5508 = vpack.c.b16 %v5485, %v5484
  %v5509 = vpack.c.b16 %v5487, %v5486
  %v5510 = vpack.c.b16 %v5489, %v5488
  %v5511 = vpack.c.b16 %v5491, %v5490
  %v5533 = vsel %vm181, %v5335, 0
  %v5536 = vsel %vm181, %v5336, 0
  %5538 = vmatprep.subr.bf16.mxu0 0
  %5539 = vmatpush1.bf16.msra.mxu0 %v5499
  %5540 = vmatprep.subr.bf16.mxu0 0
  %5541 = vmatpush1.bf16.msra.mxu0 %v5498
  %5542 = vmatprep.subr.bf16.mxu0 0
  %5543 = vmatpush1.bf16.msra.mxu0 %v5497
  %5544 = vmatprep.subr.bf16.mxu0 0
  %5545 = vmatpush1.bf16.msra.mxu0 %v5496
  %5546 = vmatprep.subr.bf16.mxu0 0
  %5547 = vmatpush1.bf16.msra.mxu0 %v5495
  %5548 = vmatprep.subr.bf16.mxu0 0
  %5549 = vmatpush1.bf16.msra.mxu0 %v5494
  %5550 = vmatprep.subr.bf16.mxu0 0
  %5551 = vmatpush1.bf16.msra.mxu0 %v5493
  %5552 = vmatprep.subr.bf16.mxu0 0
  %5553 = vmatpush1.bf16.msra.mxu0 %v5492
  %5554 = vmatprep.subr.bf16.mxu0 0
  %5555 = vmatpush2.bf16.msra.mxu0 %v5507
  %5556 = vmatprep.subr.bf16.mxu0 0
  %5557 = vmatpush2.bf16.msra.mxu0 %v5506
  %5558 = vmatprep.subr.bf16.mxu0 0
  %5559 = vmatpush2.bf16.msra.mxu0 %v5505
  %5560 = vmatprep.subr.bf16.mxu0 0
  %5561 = vmatpush2.bf16.msra.mxu0 %v5504
  %5562 = vmatprep.subr.bf16.mxu0 0
  %5563 = vmatpush2.bf16.msra.mxu0 %v5503
  %5564 = vmatprep.subr.bf16.mxu0 0
  %5565 = vmatpush2.bf16.msra.mxu0 %v5502
  %5566 = vmatprep.subr.bf16.mxu0 0
  %5567 = vmatpush2.bf16.msra.mxu0 %v5501
  %5568 = vmatprep.subr.bf16.mxu0 0
  %5569 = vmatpush2.bf16.msra.mxu0 %v5500
  %5570 = vmatprep.mubr.bf16.mxu0 %v5359
  %5571 = vmatmul.mubr.bf16.gmra.mxu0 %v5351
  %v5572 = vpop.f32.mrf.mxu0
  %v5573 = vadd.f32 %v5410, %v5572
  %v5574 = vpop.f32.mrf.mxu0
  %v5575 = vpop.f32.mrf.mxu0
  %v5576 = vadd.f32 %v5410, %v5575
  %v5577 = vpop.f32.mrf.mxu0
  %5578 = vmatprep.mubr.bf16.mxu0 %v5363
  %5579 = vmatmul.mubr.bf16.gmra.mxu0 %v5355
  %v5580 = vpop.f32.mrf.mxu0
  %v5581 = vadd.f32 %v5410, %v5580
  %v5582 = vpop.f32.mrf.mxu0
  %v5583 = vpop.f32.mrf.mxu0
  %v5584 = vadd.f32 %v5410, %v5583
  %v5585 = vpop.f32.mrf.mxu0
  %5586 = vdwg.mxu0
  %5587 = vmatprep.subr.bf16.mxu0 0
  %5588 = vmatpush1.bf16.msra.mxu0 0
  %5589 = vmatprep.subr.bf16.mxu0 0
  %5590 = vmatpush1.bf16.msra.mxu0 0
  %5591 = vmatprep.subr.bf16.mxu0 0
  %5592 = vmatpush1.bf16.msra.mxu0 0
  %5593 = vmatprep.subr.bf16.mxu0 0
  %5594 = vmatpush1.bf16.msra.mxu0 0
  %5595 = vmatprep.subr.bf16.mxu0 0
  %5596 = vmatpush1.bf16.msra.mxu0 %v5511
  %5597 = vmatprep.subr.bf16.mxu0 0
  %5598 = vmatpush1.bf16.msra.mxu0 %v5510
  %5599 = vmatprep.subr.bf16.mxu0 0
  %5600 = vmatpush1.bf16.msra.mxu0 %v5509
  %5601 = vmatprep.subr.bf16.mxu0 0
  %5602 = vmatpush1.bf16.msra.mxu0 %v5508
  %5603 = vmatprep.subr.bf16.mxu0 0
  %5604 = vmatpush2.bf16.msra.mxu0 0
  %5605 = vmatprep.subr.bf16.mxu0 0
  %5606 = vmatpush2.bf16.msra.mxu0 0
  %5607 = vmatprep.subr.bf16.mxu0 0
  %5608 = vmatpush2.bf16.msra.mxu0 0
  %5609 = vmatprep.subr.bf16.mxu0 0
  %5610 = vmatpush2.bf16.msra.mxu0 0
  %5611 = vmatprep.subr.bf16.mxu0 0
  %5612 = vmatpush2.bf16.msra.mxu0 0
  %5613 = vmatprep.subr.bf16.mxu0 0
  %5614 = vmatpush2.bf16.msra.mxu0 0
  %5615 = vmatprep.subr.bf16.mxu0 0
  %5616 = vmatpush2.bf16.msra.mxu0 0
  %5617 = vmatprep.subr.bf16.mxu0 0
  %5618 = vmatpush2.bf16.msra.mxu0 0
  %5619 = vmatprep.mubr.bf16.mxu0 0
  %5620 = vmatmul.mubr.bf16.gmra.mxu0 %v5533
  %v5621 = vpop.f32.mrf.mxu0
  %v5622 = vadd.f32 %v5573, %v5621
  %v5623 = vpop.f32.mrf.mxu0
  %v5624 = vpop.f32.mrf.mxu0
  %v5625 = vadd.f32 %v5576, %v5624
  %v5626 = vpop.f32.mrf.mxu0
  %5627 = vmatprep.mubr.bf16.mxu0 0
  %5628 = vmatmul.mubr.bf16.gmra.mxu0 %v5536
  %v5629 = vpop.f32.mrf.mxu0
  %v5630 = vadd.f32 %v5581, %v5629
  %v5631 = vpop.f32.mrf.mxu0
  %v5632 = vpop.f32.mrf.mxu0
  %v5633 = vadd.f32 %v5584, %v5632
  %v5634 = vpop.f32.mrf.mxu0
  %5635 = vdwg.mxu0
  %vm5636 = vcmp.ge.f32.partialorder %v5622, 0.0
  %vm5637 = vcmp.ge.f32.partialorder %v5625, 0.0
  %vm5638 = vcmp.ge.f32.partialorder %v5630, 0.0
  %vm5639 = vcmp.ge.f32.partialorder %v5633, 0.0
  %v5640 = vmul.f32 %v5622, 0.01
  %v5641 = vmul.f32 %v5625, 0.01
  %v5642 = vmul.f32 %v5630, 0.01
  %v5643 = vmul.f32 %v5633, 0.01
  %v5644 = vsel %vm5636, %v5622, %v5640
  %v5645 = vsel %vm5637, %v5625, %v5641
  %v5646 = vsel %vm5638, %v5630, %v5642
  %v5647 = vsel %vm5639, %v5633, %v5643
  %v5648 = vpack.c.bf16 %v5645, %v5644
  %v5649 = vpack.c.bf16 %v5647, %v5646
  %v5650 = vld [vmem:[%s63] sm:$0xf]
  %v5651 = vld [vmem:[%s63 + $0x4] sm:$0xf]
  %v5652 = vld [vmem:[%s63 + $0x8] sm:$0xf]
  %v5653 = vld [vmem:[%s63 + $0xc] sm:$0xf]
  %v5658 = vunpack.c.l.b16 %v5650
  %v5659 = vunpack.c.l.b16 %v5651
  %v5660 = vunpack.c.l.b16 %v5652
  %v5661 = vunpack.c.l.b16 %v5653
  %v5662 = vpack.c.b16 %v5659, %v5658
  %v5663 = vpack.c.b16 %v5661, %v5660
  %v5665 = vsel %vm560, %v5662, 0
  %v5668 = vsel %vm560, %v5663, 0
  %5670 = vmatprep.subr.bf16.mxu0 0
  %5671 = vmatpush1.bf16.msra.mxu0 0
  %5672 = vmatprep.subr.bf16.mxu0 0
  %5673 = vmatpush1.bf16.msra.mxu0 0
  %5674 = vmatprep.subr.bf16.mxu0 0
  %5675 = vmatpush1.bf16.msra.mxu0 0
  %5676 = vmatprep.subr.bf16.mxu0 0
  %5677 = vmatpush1.bf16.msra.mxu0 0
  %5678 = vmatprep.subr.bf16.mxu0 0
  %5679 = vmatpush1.bf16.msra.mxu0 0
  %5680 = vmatprep.subr.bf16.mxu0 0
  %5681 = vmatpush1.bf16.msra.mxu0 0
  %5682 = vmatprep.subr.bf16.mxu0 0
  %5683 = vmatpush1.bf16.msra.mxu0 %v5649
  %5684 = vmatprep.subr.bf16.mxu0 0
  %5685 = vmatpush1.bf16.msra.mxu0 %v5648
  %5686 = vmatprep.subr.bf16.mxu0 0
  %5687 = vmatpush2.bf16.msra.mxu0 0
  %5688 = vmatprep.subr.bf16.mxu0 0
  %5689 = vmatpush2.bf16.msra.mxu0 0
  %5690 = vmatprep.subr.bf16.mxu0 0
  %5691 = vmatpush2.bf16.msra.mxu0 0
  %5692 = vmatprep.subr.bf16.mxu0 0
  %5693 = vmatpush2.bf16.msra.mxu0 0
  %5694 = vmatprep.subr.bf16.mxu0 0
  %5695 = vmatpush2.bf16.msra.mxu0 0
  %5696 = vmatprep.subr.bf16.mxu0 0
  %5697 = vmatpush2.bf16.msra.mxu0 0
  %5698 = vmatprep.subr.bf16.mxu0 0
  %5699 = vmatpush2.bf16.msra.mxu0 0
  %5700 = vmatprep.subr.bf16.mxu0 0
  %5701 = vmatpush2.bf16.msra.mxu0 0
  %5702 = vmatprep.mubr.bf16.mxu0 0
  %5703 = vmatmul.mubr.bf16.gmra.mxu0 %v5665
  %v5704 = vpop.f32.mrf.mxu0
  %v5705 = vadd.f32 0.0, %v5704
  %v5706 = vpop.f32.mrf.mxu0
  %v5707 = vpop.f32.mrf.mxu0
  %v5708 = vadd.f32 0.0, %v5707
  %v5709 = vpop.f32.mrf.mxu0
  %5710 = vmatprep.mubr.bf16.mxu0 0
  %5711 = vmatmul.mubr.bf16.gmra.mxu0 %v5668
  %v5712 = vpop.f32.mrf.mxu0
  %v5713 = vadd.f32 0.0, %v5712
  %v5714 = vpop.f32.mrf.mxu0
  %v5715 = vpop.f32.mrf.mxu0
  %v5716 = vadd.f32 0.0, %v5715
  %v5717 = vpop.f32.mrf.mxu0
  %5718 = vdwg.mxu0
  %v5719 = vpack.c.bf16 %v5708, %v5705
  %v5720 = vpack.c.bf16 %v5716, %v5713
  %s5721 = scalar_lea.vmem %s63, 16
  %v5722 = vld [vmem:[%s5721] sm:$0xf]
  %v5723 = vld [vmem:[%s5721 + $0x4] sm:$0xf]
  %v5724 = vld [vmem:[%s5721 + $0x8] sm:$0xf]
  %v5725 = vld [vmem:[%s5721 + $0xc] sm:$0xf]
  %v5730 = vunpack.c.l.b16 %v5722
  %v5731 = vunpack.c.l.b16 %v5723
  %v5732 = vunpack.c.l.b16 %v5724
  %v5733 = vunpack.c.l.b16 %v5725
  %v5734 = vpack.c.b16 %v5731, %v5730
  %v5735 = vpack.c.b16 %v5733, %v5732
  %v5737 = vsel %vm560, %v5734, 0
  %v5740 = vsel %vm560, %v5735, 0
  %5742 = vmatprep.subr.bf16.mxu0 0
  %5743 = vmatpush1.bf16.msra.mxu0 0
  %5744 = vmatprep.subr.bf16.mxu0 0
  %5745 = vmatpush1.bf16.msra.mxu0 0
  %5746 = vmatprep.subr.bf16.mxu0 0
  %5747 = vmatpush1.bf16.msra.mxu0 0
  %5748 = vmatprep.subr.bf16.mxu0 0
  %5749 = vmatpush1.bf16.msra.mxu0 0
  %5750 = vmatprep.subr.bf16.mxu0 0
  %5751 = vmatpush1.bf16.msra.mxu0 0
  %5752 = vmatprep.subr.bf16.mxu0 0
  %5753 = vmatpush1.bf16.msra.mxu0 0
  %5754 = vmatprep.subr.bf16.mxu0 0
  %5755 = vmatpush1.bf16.msra.mxu0 %v5649
  %5756 = vmatprep.subr.bf16.mxu0 0
  %5757 = vmatpush1.bf16.msra.mxu0 %v5648
  %5758 = vmatprep.subr.bf16.mxu0 0
  %5759 = vmatpush2.bf16.msra.mxu0 0
  %5760 = vmatprep.subr.bf16.mxu0 0
  %5761 = vmatpush2.bf16.msra.mxu0 0
  %5762 = vmatprep.subr.bf16.mxu0 0
  %5763 = vmatpush2.bf16.msra.mxu0 0
  %5764 = vmatprep.subr.bf16.mxu0 0
  %5765 = vmatpush2.bf16.msra.mxu0 0
  %5766 = vmatprep.subr.bf16.mxu0 0
  %5767 = vmatpush2.bf16.msra.mxu0 0
  %5768 = vmatprep.subr.bf16.mxu0 0
  %5769 = vmatpush2.bf16.msra.mxu0 0
  %5770 = vmatprep.subr.bf16.mxu0 0
  %5771 = vmatpush2.bf16.msra.mxu0 0
  %5772 = vmatprep.subr.bf16.mxu0 0
  %5773 = vmatpush2.bf16.msra.mxu0 0
  %5774 = vmatprep.mubr.bf16.mxu0 0
  %5775 = vmatmul.mubr.bf16.gmra.mxu0 %v5737
  %v5776 = vpop.f32.mrf.mxu0
  %v5777 = vadd.f32 0.0, %v5776
  %v5778 = vpop.f32.mrf.mxu0
  %v5779 = vpop.f32.mrf.mxu0
  %v5780 = vadd.f32 0.0, %v5779
  %v5781 = vpop.f32.mrf.mxu0
  %5782 = vmatprep.mubr.bf16.mxu0 0
  %5783 = vmatmul.mubr.bf16.gmra.mxu0 %v5740
  %v5784 = vpop.f32.mrf.mxu0
  %v5785 = vadd.f32 0.0, %v5784
  %v5786 = vpop.f32.mrf.mxu0
  %v5787 = vpop.f32.mrf.mxu0
  %v5788 = vadd.f32 0.0, %v5787
  %v5789 = vpop.f32.mrf.mxu0
  %5790 = vdwg.mxu0
  %v5791 = vpack.c.bf16 %v5780, %v5777
  %v5792 = vpack.c.bf16 %v5788, %v5785
  %s5793 = scalar_lea.vmem %s63, 32
  %v5794 = vld [vmem:[%s5793] sm:$0xf]
  %v5795 = vld [vmem:[%s5793 + $0x4] sm:$0xf]
  %v5796 = vld [vmem:[%s5793 + $0x8] sm:$0xf]
  %v5797 = vld [vmem:[%s5793 + $0xc] sm:$0xf]
  %v5802 = vunpack.c.l.b16 %v5794
  %v5803 = vunpack.c.l.b16 %v5795
  %v5804 = vunpack.c.l.b16 %v5796
  %v5805 = vunpack.c.l.b16 %v5797
  %v5806 = vpack.c.b16 %v5803, %v5802
  %v5807 = vpack.c.b16 %v5805, %v5804
  %v5809 = vsel %vm560, %v5806, 0
  %v5812 = vsel %vm560, %v5807, 0
  %5814 = vmatprep.subr.bf16.mxu0 0
  %5815 = vmatpush1.bf16.msra.mxu0 0
  %5816 = vmatprep.subr.bf16.mxu0 0
  %5817 = vmatpush1.bf16.msra.mxu0 0
  %5818 = vmatprep.subr.bf16.mxu0 0
  %5819 = vmatpush1.bf16.msra.mxu0 0
  %5820 = vmatprep.subr.bf16.mxu0 0
  %5821 = vmatpush1.bf16.msra.mxu0 0
  %5822 = vmatprep.subr.bf16.mxu0 0
  %5823 = vmatpush1.bf16.msra.mxu0 0
  %5824 = vmatprep.subr.bf16.mxu0 0
  %5825 = vmatpush1.bf16.msra.mxu0 0
  %5826 = vmatprep.subr.bf16.mxu0 0
  %5827 = vmatpush1.bf16.msra.mxu0 %v5649
  %5828 = vmatprep.subr.bf16.mxu0 0
  %5829 = vmatpush1.bf16.msra.mxu0 %v5648
  %5830 = vmatprep.subr.bf16.mxu0 0
  %5831 = vmatpush2.bf16.msra.mxu0 0
  %5832 = vmatprep.subr.bf16.mxu0 0
  %5833 = vmatpush2.bf16.msra.mxu0 0
  %5834 = vmatprep.subr.bf16.mxu0 0
  %5835 = vmatpush2.bf16.msra.mxu0 0
  %5836 = vmatprep.subr.bf16.mxu0 0
  %5837 = vmatpush2.bf16.msra.mxu0 0
  %5838 = vmatprep.subr.bf16.mxu0 0
  %5839 = vmatpush2.bf16.msra.mxu0 0
  %5840 = vmatprep.subr.bf16.mxu0 0
  %5841 = vmatpush2.bf16.msra.mxu0 0
  %5842 = vmatprep.subr.bf16.mxu0 0
  %5843 = vmatpush2.bf16.msra.mxu0 0
  %5844 = vmatprep.subr.bf16.mxu0 0
  %5845 = vmatpush2.bf16.msra.mxu0 0
  %5846 = vmatprep.mubr.bf16.mxu0 0
  %5847 = vmatmul.mubr.bf16.gmra.mxu0 %v5809
  %v5848 = vpop.f32.mrf.mxu0
  %v5849 = vadd.f32 0.0, %v5848
  %v5850 = vpop.f32.mrf.mxu0
  %v5851 = vpop.f32.mrf.mxu0
  %v5852 = vadd.f32 0.0, %v5851
  %v5853 = vpop.f32.mrf.mxu0
  %5854 = vmatprep.mubr.bf16.mxu0 0
  %5855 = vmatmul.mubr.bf16.gmra.mxu0 %v5812
  %v5856 = vpop.f32.mrf.mxu0
  %v5857 = vadd.f32 0.0, %v5856
  %v5858 = vpop.f32.mrf.mxu0
  %v5859 = vpop.f32.mrf.mxu0
  %v5860 = vadd.f32 0.0, %v5859
  %v5861 = vpop.f32.mrf.mxu0
  %5862 = vdwg.mxu0
  %v5863 = vpack.c.bf16 %v5852, %v5849
  %v5864 = vpack.c.bf16 %v5860, %v5857
  %s5865 = scalar_lea.vmem %s63, 48
  %v5866 = vld [vmem:[%s5865] sm:$0xf]
  %v5867 = vld [vmem:[%s5865 + $0x4] sm:$0xf]
  %v5868 = vld [vmem:[%s5865 + $0x8] sm:$0xf]
  %v5869 = vld [vmem:[%s5865 + $0xc] sm:$0xf]
  %v5874 = vunpack.c.l.b16 %v5866
  %v5875 = vunpack.c.l.b16 %v5867
  %v5876 = vunpack.c.l.b16 %v5868
  %v5877 = vunpack.c.l.b16 %v5869
  %v5878 = vpack.c.b16 %v5875, %v5874
  %v5879 = vpack.c.b16 %v5877, %v5876
  %v5881 = vsel %vm560, %v5878, 0
  %v5884 = vsel %vm560, %v5879, 0
  %5886 = vmatprep.subr.bf16.mxu0 0
  %5887 = vmatpush1.bf16.msra.mxu0 0
  %5888 = vmatprep.subr.bf16.mxu0 0
  %5889 = vmatpush1.bf16.msra.mxu0 0
  %5890 = vmatprep.subr.bf16.mxu0 0
  %5891 = vmatpush1.bf16.msra.mxu0 0
  %5892 = vmatprep.subr.bf16.mxu0 0
  %5893 = vmatpush1.bf16.msra.mxu0 0
  %5894 = vmatprep.subr.bf16.mxu0 0
  %5895 = vmatpush1.bf16.msra.mxu0 0
  %5896 = vmatprep.subr.bf16.mxu0 0
  %5897 = vmatpush1.bf16.msra.mxu0 0
  %5898 = vmatprep.subr.bf16.mxu0 0
  %5899 = vmatpush1.bf16.msra.mxu0 %v5649
  %5900 = vmatprep.subr.bf16.mxu0 0
  %5901 = vmatpush1.bf16.msra.mxu0 %v5648
  %5902 = vmatprep.subr.bf16.mxu0 0
  %5903 = vmatpush2.bf16.msra.mxu0 0
  %5904 = vmatprep.subr.bf16.mxu0 0
  %5905 = vmatpush2.bf16.msra.mxu0 0
  %5906 = vmatprep.subr.bf16.mxu0 0
  %5907 = vmatpush2.bf16.msra.mxu0 0
  %5908 = vmatprep.subr.bf16.mxu0 0
  %5909 = vmatpush2.bf16.msra.mxu0 0
  %5910 = vmatprep.subr.bf16.mxu0 0
  %5911 = vmatpush2.bf16.msra.mxu0 0
  %5912 = vmatprep.subr.bf16.mxu0 0
  %5913 = vmatpush2.bf16.msra.mxu0 0
  %5914 = vmatprep.subr.bf16.mxu0 0
  %5915 = vmatpush2.bf16.msra.mxu0 0
  %5916 = vmatprep.subr.bf16.mxu0 0
  %5917 = vmatpush2.bf16.msra.mxu0 0
  %5918 = vmatprep.mubr.bf16.mxu0 0
  %5919 = vmatmul.mubr.bf16.gmra.mxu0 %v5881
  %v5920 = vpop.f32.mrf.mxu0
  %v5921 = vadd.f32 0.0, %v5920
  %v5922 = vpop.f32.mrf.mxu0
  %v5923 = vpop.f32.mrf.mxu0
  %v5924 = vadd.f32 0.0, %v5923
  %v5925 = vpop.f32.mrf.mxu0
  %5926 = vmatprep.mubr.bf16.mxu0 0
  %5927 = vmatmul.mubr.bf16.gmra.mxu0 %v5884
  %v5928 = vpop.f32.mrf.mxu0
  %v5929 = vadd.f32 0.0, %v5928
  %v5930 = vpop.f32.mrf.mxu0
  %v5931 = vpop.f32.mrf.mxu0
  %v5932 = vadd.f32 0.0, %v5931
  %v5933 = vpop.f32.mrf.mxu0
  %5934 = vdwg.mxu0
  %v5935 = vpack.c.bf16 %v5924, %v5921
  %v5936 = vpack.c.bf16 %v5932, %v5929
  %s5937 = scalar_lea.vmem %s63, 64
  %v5938 = vld [vmem:[%s5937] sm:$0xf]
  %v5939 = vld [vmem:[%s5937 + $0x4] sm:$0xf]
  %v5940 = vld [vmem:[%s5937 + $0x8] sm:$0xf]
  %v5941 = vld [vmem:[%s5937 + $0xc] sm:$0xf]
  %v5946 = vunpack.c.l.b16 %v5938
  %v5947 = vunpack.c.l.b16 %v5939
  %v5948 = vunpack.c.l.b16 %v5940
  %v5949 = vunpack.c.l.b16 %v5941
  %v5950 = vpack.c.b16 %v5947, %v5946
  %v5951 = vpack.c.b16 %v5949, %v5948
  %v5953 = vsel %vm560, %v5950, 0
  %v5956 = vsel %vm560, %v5951, 0
  %5958 = vmatprep.subr.bf16.mxu0 0
  %5959 = vmatpush1.bf16.msra.mxu0 0
  %5960 = vmatprep.subr.bf16.mxu0 0
  %5961 = vmatpush1.bf16.msra.mxu0 0
  %5962 = vmatprep.subr.bf16.mxu0 0
  %5963 = vmatpush1.bf16.msra.mxu0 0
  %5964 = vmatprep.subr.bf16.mxu0 0
  %5965 = vmatpush1.bf16.msra.mxu0 0
  %5966 = vmatprep.subr.bf16.mxu0 0
  %5967 = vmatpush1.bf16.msra.mxu0 0
  %5968 = vmatprep.subr.bf16.mxu0 0
  %5969 = vmatpush1.bf16.msra.mxu0 0
  %5970 = vmatprep.subr.bf16.mxu0 0
  %5971 = vmatpush1.bf16.msra.mxu0 %v5649
  %5972 = vmatprep.subr.bf16.mxu0 0
  %5973 = vmatpush1.bf16.msra.mxu0 %v5648
  %5974 = vmatprep.subr.bf16.mxu0 0
  %5975 = vmatpush2.bf16.msra.mxu0 0
  %5976 = vmatprep.subr.bf16.mxu0 0
  %5977 = vmatpush2.bf16.msra.mxu0 0
  %5978 = vmatprep.subr.bf16.mxu0 0
  %5979 = vmatpush2.bf16.msra.mxu0 0
  %5980 = vmatprep.subr.bf16.mxu0 0
  %5981 = vmatpush2.bf16.msra.mxu0 0
  %5982 = vmatprep.subr.bf16.mxu0 0
  %5983 = vmatpush2.bf16.msra.mxu0 0
  %5984 = vmatprep.subr.bf16.mxu0 0
  %5985 = vmatpush2.bf16.msra.mxu0 0
  %5986 = vmatprep.subr.bf16.mxu0 0
  %5987 = vmatpush2.bf16.msra.mxu0 0
  %5988 = vmatprep.subr.bf16.mxu0 0
  %5989 = vmatpush2.bf16.msra.mxu0 0
  %5990 = vmatprep.mubr.bf16.mxu0 0
  %5991 = vmatmul.mubr.bf16.gmra.mxu0 %v5953
  %v5992 = vpop.f32.mrf.mxu0
  %v5993 = vadd.f32 0.0, %v5992
  %v5994 = vpop.f32.mrf.mxu0
  %v5995 = vpop.f32.mrf.mxu0
  %v5996 = vadd.f32 0.0, %v5995
  %v5997 = vpop.f32.mrf.mxu0
  %5998 = vmatprep.mubr.bf16.mxu0 0
  %5999 = vmatmul.mubr.bf16.gmra.mxu0 %v5956
  %v6000 = vpop.f32.mrf.mxu0
  %v6001 = vadd.f32 0.0, %v6000
  %v6002 = vpop.f32.mrf.mxu0
  %v6003 = vpop.f32.mrf.mxu0
  %v6004 = vadd.f32 0.0, %v6003
  %v6005 = vpop.f32.mrf.mxu0
  %6006 = vdwg.mxu0
  %v6007 = vpack.c.bf16 %v5996, %v5993
  %v6008 = vpack.c.bf16 %v6004, %v6001
  %v6009 = vld [vmem:[%s65] sm:$0xf]
  %v6010 = vld [vmem:[%s65 + $0x4] sm:$0xf]
  %v6011 = vld [vmem:[%s65 + $0x8] sm:$0xf]
  %v6012 = vld [vmem:[%s65 + $0xc] sm:$0xf]
  %v6013 = vld [vmem:[%s65 + $0x10] sm:$0xf]
  %v6014 = vld [vmem:[%s65 + $0x14] sm:$0xf]
  %v6015 = vld [vmem:[%s65 + $0x18] sm:$0xf]
  %v6016 = vld [vmem:[%s65 + $0x1c] sm:$0xf]
  %v6017 = vld [vmem:[%s65 + $0x20] sm:$0xf]
  %v6018 = vld [vmem:[%s65 + $0x24] sm:$0xf]
  %v6019 = vld [vmem:[%s65 + $0x28] sm:$0xf]
  %v6020 = vld [vmem:[%s65 + $0x2c] sm:$0xf]
  %v6021 = vld [vmem:[%s65 + $0x30] sm:$0xf]
  %v6022 = vld [vmem:[%s65 + $0x34] sm:$0xf]
  %v6023 = vld [vmem:[%s65 + $0x38] sm:$0xf]
  %v6024 = vld [vmem:[%s65 + $0x3c] sm:$0xf]
  %v6025 = vld [vmem:[%s65 + $0x40] sm:$0xf]
  %v6026 = vld [vmem:[%s65 + $0x44] sm:$0xf]
  %v6027 = vld [vmem:[%s65 + $0x48] sm:$0xf]
  %v6028 = vld [vmem:[%s65 + $0x4c] sm:$0xf]
  %v6029 = vld [vmem:[%s65 + $0x50] sm:$0xf]
  %v6030 = vld [vmem:[%s65 + $0x54] sm:$0xf]
  %v6031 = vld [vmem:[%s65 + $0x58] sm:$0xf]
  %v6032 = vld [vmem:[%s65 + $0x5c] sm:$0xf]
  %v6033 = vld [vmem:[%s65 + $0x60] sm:$0xf]
  %v6034 = vld [vmem:[%s65 + $0x64] sm:$0xf]
  %v6035 = vld [vmem:[%s65 + $0x68] sm:$0xf]
  %v6036 = vld [vmem:[%s65 + $0x6c] sm:$0xf]
  %v6037 = vld [vmem:[%s65 + $0x70] sm:$0xf]
  %v6038 = vld [vmem:[%s65 + $0x74] sm:$0xf]
  %v6039 = vld [vmem:[%s65 + $0x78] sm:$0xf]
  %v6040 = vld [vmem:[%s65 + $0x7c] sm:$0xf]
  %v6041 = vld [vmem:[%s65 + $0x80] sm:$0xf]
  %v6042 = vld [vmem:[%s65 + $0x84] sm:$0xf]
  %v6043 = vld [vmem:[%s65 + $0x88] sm:$0xf]
  %v6044 = vld [vmem:[%s65 + $0x8c] sm:$0xf]
  %v6045 = vld [vmem:[%s65 + $0x90] sm:$0xf]
  %v6046 = vld [vmem:[%s65 + $0x94] sm:$0xf]
  %v6047 = vld [vmem:[%s65 + $0x98] sm:$0xf]
  %v6048 = vld [vmem:[%s65 + $0x9c] sm:$0xf]
  %v6049 = vld [vmem:[%s65 + $0xa0] sm:$0xf]
  %v6050 = vld [vmem:[%s65 + $0xa4] sm:$0xf]
  %v6051 = vld [vmem:[%s65 + $0xa8] sm:$0xf]
  %v6052 = vld [vmem:[%s65 + $0xac] sm:$0xf]
  %v6053 = vld [vmem:[%s65 + $0xb0] sm:$0xf]
  %v6054 = vld [vmem:[%s65 + $0xb4] sm:$0xf]
  %v6055 = vld [vmem:[%s65 + $0xb8] sm:$0xf]
  %v6056 = vld [vmem:[%s65 + $0xbc] sm:$0xf]
  %v6057 = vld [vmem:[%s65 + $0xc0] sm:$0xf]
  %v6058 = vld [vmem:[%s65 + $0xc4] sm:$0xf]
  %v6059 = vld [vmem:[%s65 + $0xc8] sm:$0xf]
  %v6060 = vld [vmem:[%s65 + $0xcc] sm:$0xf]
  %v6061 = vld [vmem:[%s65 + $0xd0] sm:$0xf]
  %v6062 = vld [vmem:[%s65 + $0xd4] sm:$0xf]
  %v6063 = vld [vmem:[%s65 + $0xd8] sm:$0xf]
  %v6064 = vld [vmem:[%s65 + $0xdc] sm:$0xf]
  %v6065 = vld [vmem:[%s65 + $0xe0] sm:$0xf]
  %v6066 = vld [vmem:[%s65 + $0xe4] sm:$0xf]
  %v6067 = vld [vmem:[%s65 + $0xe8] sm:$0xf]
  %v6068 = vld [vmem:[%s65 + $0xec] sm:$0xf]
  %v6069 = vld [vmem:[%s65 + $0xf0] sm:$0xf]
  %v6070 = vld [vmem:[%s65 + $0xf4] sm:$0xf]
  %v6071 = vld [vmem:[%s65 + $0xf8] sm:$0xf]
  %v6072 = vld [vmem:[%s65 + $0xfc] sm:$0xf]
  %v6073 = vld [vmem:[%s65 + $0x100] sm:$0xf]
  %v6074 = vld [vmem:[%s65 + $0x104] sm:$0xf]
  %v6075 = vld [vmem:[%s65 + $0x108] sm:$0xf]
  %v6076 = vld [vmem:[%s65 + $0x10c] sm:$0xf]
  %v6077 = vld [vmem:[%s65 + $0x110] sm:$0xf]
  %v6078 = vld [vmem:[%s65 + $0x114] sm:$0xf]
  %v6079 = vld [vmem:[%s65 + $0x118] sm:$0xf]
  %v6080 = vld [vmem:[%s65 + $0x11c] sm:$0xf]
  %v6081 = vld [vmem:[%s65 + $0x120] sm:$0xf]
  %v6082 = vld [vmem:[%s65 + $0x124] sm:$0xf]
  %v6083 = vld [vmem:[%s65 + $0x128] sm:$0xf]
  %v6084 = vld [vmem:[%s65 + $0x12c] sm:$0xf]
  %v6085 = vld [vmem:[%s65 + $0x130] sm:$0xf]
  %v6086 = vld [vmem:[%s65 + $0x134] sm:$0xf]
  %v6087 = vld [vmem:[%s65 + $0x138] sm:$0xf]
  %v6088 = vld [vmem:[%s65 + $0x13c] sm:$0xf]
  %v6089 = vld [vmem:[%s67] sm:$0x1]
  %v6091 = vlaneseq
  %v6092 = vshrl.u32 %v6091, 7
  %v6093 = vsub.s32 0, %v6092
  %v6094 = vrot.slane %v6089, %v6093
  %v6176 = vunpack.c.l.b16 %v6009
  %v6177 = vunpack.c.l.b16 %v6010
  %v6178 = vunpack.c.l.b16 %v6011
  %v6179 = vunpack.c.l.b16 %v6012
  %v6180 = vunpack.c.l.b16 %v6013
  %v6181 = vunpack.c.l.b16 %v6014
  %v6182 = vunpack.c.l.b16 %v6015
  %v6183 = vunpack.c.l.b16 %v6016
  %v6184 = vunpack.c.l.b16 %v6017
  %v6185 = vunpack.c.l.b16 %v6018
  %v6186 = vunpack.c.l.b16 %v6019
  %v6187 = vunpack.c.l.b16 %v6020
  %v6188 = vunpack.c.l.b16 %v6021
  %v6189 = vunpack.c.l.b16 %v6022
  %v6190 = vunpack.c.l.b16 %v6023
  %v6191 = vunpack.c.l.b16 %v6024
  %v6192 = vunpack.c.l.b16 %v6025
  %v6193 = vunpack.c.l.b16 %v6026
  %v6194 = vunpack.c.l.b16 %v6027
  %v6195 = vunpack.c.l.b16 %v6028
  %v6196 = vunpack.c.l.b16 %v6029
  %v6197 = vunpack.c.l.b16 %v6030
  %v6198 = vunpack.c.l.b16 %v6031
  %v6199 = vunpack.c.l.b16 %v6032
  %v6200 = vunpack.c.l.b16 %v6033
  %v6201 = vunpack.c.l.b16 %v6034
  %v6202 = vunpack.c.l.b16 %v6035
  %v6203 = vunpack.c.l.b16 %v6036
  %v6204 = vunpack.c.l.b16 %v6037
  %v6205 = vunpack.c.l.b16 %v6038
  %v6206 = vunpack.c.l.b16 %v6039
  %v6207 = vunpack.c.l.b16 %v6040
  %v6208 = vunpack.c.l.b16 %v6041
  %v6209 = vunpack.c.l.b16 %v6042
  %v6210 = vunpack.c.l.b16 %v6043
  %v6211 = vunpack.c.l.b16 %v6044
  %v6212 = vunpack.c.l.b16 %v6045
  %v6213 = vunpack.c.l.b16 %v6046
  %v6214 = vunpack.c.l.b16 %v6047
  %v6215 = vunpack.c.l.b16 %v6048
  %v6216 = vunpack.c.l.b16 %v6049
  %v6217 = vunpack.c.l.b16 %v6050
  %v6218 = vunpack.c.l.b16 %v6051
  %v6219 = vunpack.c.l.b16 %v6052
  %v6220 = vunpack.c.l.b16 %v6053
  %v6221 = vunpack.c.l.b16 %v6054
  %v6222 = vunpack.c.l.b16 %v6055
  %v6223 = vunpack.c.l.b16 %v6056
  %v6224 = vunpack.c.l.b16 %v6057
  %v6225 = vunpack.c.l.b16 %v6058
  %v6226 = vunpack.c.l.b16 %v6059
  %v6227 = vunpack.c.l.b16 %v6060
  %v6228 = vunpack.c.l.b16 %v6061
  %v6229 = vunpack.c.l.b16 %v6062
  %v6230 = vunpack.c.l.b16 %v6063
  %v6231 = vunpack.c.l.b16 %v6064
  %v6232 = vunpack.c.l.b16 %v6065
  %v6233 = vunpack.c.l.b16 %v6066
  %v6234 = vunpack.c.l.b16 %v6067
  %v6235 = vunpack.c.l.b16 %v6068
  %v6236 = vunpack.c.l.b16 %v6069
  %v6237 = vunpack.c.l.b16 %v6070
  %v6238 = vunpack.c.l.b16 %v6071
  %v6239 = vunpack.c.l.b16 %v6072
  %v6240 = vunpack.c.l.b16 %v6073
  %v6241 = vunpack.c.l.b16 %v6074
  %v6242 = vunpack.c.l.b16 %v6075
  %v6243 = vunpack.c.l.b16 %v6076
  %v6244 = vunpack.c.l.b16 %v6077
  %v6245 = vunpack.c.l.b16 %v6078
  %v6246 = vunpack.c.l.b16 %v6079
  %v6247 = vunpack.c.l.b16 %v6080
  %v6248 = vunpack.c.l.b16 %v6081
  %v6249 = vunpack.c.l.b16 %v6082
  %v6250 = vunpack.c.l.b16 %v6083
  %v6251 = vunpack.c.l.b16 %v6084
  %v6252 = vunpack.c.l.b16 %v6085
  %v6253 = vunpack.c.l.b16 %v6086
  %v6254 = vunpack.c.l.b16 %v6087
  %v6255 = vunpack.c.l.b16 %v6088
  %v6256 = vpack.c.b16 %v6177, %v6176
  %v6257 = vpack.c.b16 %v6179, %v6178
  %v6258 = vpack.c.b16 %v6181, %v6180
  %v6259 = vpack.c.b16 %v6183, %v6182
  %v6260 = vpack.c.b16 %v6185, %v6184
  %v6261 = vpack.c.b16 %v6187, %v6186
  %v6262 = vpack.c.b16 %v6189, %v6188
  %v6263 = vpack.c.b16 %v6191, %v6190
  %v6264 = vpack.c.b16 %v6193, %v6192
  %v6265 = vpack.c.b16 %v6195, %v6194
  %v6266 = vpack.c.b16 %v6197, %v6196
  %v6267 = vpack.c.b16 %v6199, %v6198
  %v6268 = vpack.c.b16 %v6201, %v6200
  %v6269 = vpack.c.b16 %v6203, %v6202
  %v6270 = vpack.c.b16 %v6205, %v6204
  %v6271 = vpack.c.b16 %v6207, %v6206
  %v6272 = vpack.c.b16 %v6209, %v6208
  %v6273 = vpack.c.b16 %v6211, %v6210
  %v6274 = vpack.c.b16 %v6213, %v6212
  %v6275 = vpack.c.b16 %v6215, %v6214
  %v6276 = vpack.c.b16 %v6217, %v6216
  %v6277 = vpack.c.b16 %v6219, %v6218
  %v6278 = vpack.c.b16 %v6221, %v6220
  %v6279 = vpack.c.b16 %v6223, %v6222
  %v6280 = vpack.c.b16 %v6225, %v6224
  %v6281 = vpack.c.b16 %v6227, %v6226
  %v6282 = vpack.c.b16 %v6229, %v6228
  %v6283 = vpack.c.b16 %v6231, %v6230
  %v6284 = vpack.c.b16 %v6233, %v6232
  %v6285 = vpack.c.b16 %v6235, %v6234
  %v6286 = vpack.c.b16 %v6237, %v6236
  %v6287 = vpack.c.b16 %v6239, %v6238
  %v6288 = vpack.c.b16 %v6241, %v6240
  %v6289 = vpack.c.b16 %v6243, %v6242
  %v6290 = vpack.c.b16 %v6245, %v6244
  %v6291 = vpack.c.b16 %v6247, %v6246
  %v6292 = vpack.c.b16 %v6249, %v6248
  %v6293 = vpack.c.b16 %v6251, %v6250
  %v6294 = vpack.c.b16 %v6253, %v6252
  %v6295 = vpack.c.b16 %v6255, %v6254
  %6336 = vmatprep.subr.bf16.mxu0 0
  %6337 = vmatpush1.bf16.msra.mxu0 %v6263
  %6338 = vmatprep.subr.bf16.mxu0 0
  %6339 = vmatpush1.bf16.msra.mxu0 %v6262
  %6340 = vmatprep.subr.bf16.mxu0 0
  %6341 = vmatpush1.bf16.msra.mxu0 %v6261
  %6342 = vmatprep.subr.bf16.mxu0 0
  %6343 = vmatpush1.bf16.msra.mxu0 %v6260
  %6344 = vmatprep.subr.bf16.mxu0 0
  %6345 = vmatpush1.bf16.msra.mxu0 %v6259
  %6346 = vmatprep.subr.bf16.mxu0 0
  %6347 = vmatpush1.bf16.msra.mxu0 %v6258
  %6348 = vmatprep.subr.bf16.mxu0 0
  %6349 = vmatpush1.bf16.msra.mxu0 %v6257
  %6350 = vmatprep.subr.bf16.mxu0 0
  %6351 = vmatpush1.bf16.msra.mxu0 %v6256
  %6352 = vmatprep.subr.bf16.mxu0 0
  %6353 = vmatpush2.bf16.msra.mxu0 %v6271
  %6354 = vmatprep.subr.bf16.mxu0 0
  %6355 = vmatpush2.bf16.msra.mxu0 %v6270
  %6356 = vmatprep.subr.bf16.mxu0 0
  %6357 = vmatpush2.bf16.msra.mxu0 %v6269
  %6358 = vmatprep.subr.bf16.mxu0 0
  %6359 = vmatpush2.bf16.msra.mxu0 %v6268
  %6360 = vmatprep.subr.bf16.mxu0 0
  %6361 = vmatpush2.bf16.msra.mxu0 %v6267
  %6362 = vmatprep.subr.bf16.mxu0 0
  %6363 = vmatpush2.bf16.msra.mxu0 %v6266
  %6364 = vmatprep.subr.bf16.mxu0 0
  %6365 = vmatpush2.bf16.msra.mxu0 %v6265
  %6366 = vmatprep.subr.bf16.mxu0 0
  %6367 = vmatpush2.bf16.msra.mxu0 %v6264
  %6368 = vmatprep.mubr.bf16.mxu0 %v5791
  %6369 = vmatmul.mubr.bf16.gmra.mxu0 %v5719
  %v6370 = vpop.f32.mrf.mxu0
  %v6371 = vadd.f32 %v6094, %v6370
  %v6372 = vpop.f32.mrf.mxu0
  %v6373 = vpop.f32.mrf.mxu0
  %v6374 = vadd.f32 %v6094, %v6373
  %v6375 = vpop.f32.mrf.mxu0
  %6376 = vmatprep.mubr.bf16.mxu0 %v5792
  %6377 = vmatmul.mubr.bf16.gmra.mxu0 %v5720
  %v6378 = vpop.f32.mrf.mxu0
  %v6379 = vadd.f32 %v6094, %v6378
  %v6380 = vpop.f32.mrf.mxu0
  %v6381 = vpop.f32.mrf.mxu0
  %v6382 = vadd.f32 %v6094, %v6381
  %v6383 = vpop.f32.mrf.mxu0
  %6384 = vdwg.mxu0
  %6385 = vmatprep.subr.bf16.mxu0 0
  %6386 = vmatpush1.bf16.msra.mxu0 %v6279
  %6387 = vmatprep.subr.bf16.mxu0 0
  %6388 = vmatpush1.bf16.msra.mxu0 %v6278
  %6389 = vmatprep.subr.bf16.mxu0 0
  %6390 = vmatpush1.bf16.msra.mxu0 %v6277
  %6391 = vmatprep.subr.bf16.mxu0 0
  %6392 = vmatpush1.bf16.msra.mxu0 %v6276
  %6393 = vmatprep.subr.bf16.mxu0 0
  %6394 = vmatpush1.bf16.msra.mxu0 %v6275
  %6395 = vmatprep.subr.bf16.mxu0 0
  %6396 = vmatpush1.bf16.msra.mxu0 %v6274
  %6397 = vmatprep.subr.bf16.mxu0 0
  %6398 = vmatpush1.bf16.msra.mxu0 %v6273
  %6399 = vmatprep.subr.bf16.mxu0 0
  %6400 = vmatpush1.bf16.msra.mxu0 %v6272
  %6401 = vmatprep.subr.bf16.mxu0 0
  %6402 = vmatpush2.bf16.msra.mxu0 %v6287
  %6403 = vmatprep.subr.bf16.mxu0 0
  %6404 = vmatpush2.bf16.msra.mxu0 %v6286
  %6405 = vmatprep.subr.bf16.mxu0 0
  %6406 = vmatpush2.bf16.msra.mxu0 %v6285
  %6407 = vmatprep.subr.bf16.mxu0 0
  %6408 = vmatpush2.bf16.msra.mxu0 %v6284
  %6409 = vmatprep.subr.bf16.mxu0 0
  %6410 = vmatpush2.bf16.msra.mxu0 %v6283
  %6411 = vmatprep.subr.bf16.mxu0 0
  %6412 = vmatpush2.bf16.msra.mxu0 %v6282
  %6413 = vmatprep.subr.bf16.mxu0 0
  %6414 = vmatpush2.bf16.msra.mxu0 %v6281
  %6415 = vmatprep.subr.bf16.mxu0 0
  %6416 = vmatpush2.bf16.msra.mxu0 %v6280
  %6417 = vmatprep.mubr.bf16.mxu0 %v5935
  %6418 = vmatmul.mubr.bf16.gmra.mxu0 %v5863
  %v6419 = vpop.f32.mrf.mxu0
  %v6420 = vadd.f32 %v6371, %v6419
  %v6421 = vpop.f32.mrf.mxu0
  %v6422 = vpop.f32.mrf.mxu0
  %v6423 = vadd.f32 %v6374, %v6422
  %v6424 = vpop.f32.mrf.mxu0
  %6425 = vmatprep.mubr.bf16.mxu0 %v5936
  %6426 = vmatmul.mubr.bf16.gmra.mxu0 %v5864
  %v6427 = vpop.f32.mrf.mxu0
  %v6428 = vadd.f32 %v6379, %v6427
  %v6429 = vpop.f32.mrf.mxu0
  %v6430 = vpop.f32.mrf.mxu0
  %v6431 = vadd.f32 %v6382, %v6430
  %v6432 = vpop.f32.mrf.mxu0
  %6433 = vdwg.mxu0
  %6434 = vmatprep.subr.bf16.mxu0 0
  %6435 = vmatpush1.bf16.msra.mxu0 %v6295
  %6436 = vmatprep.subr.bf16.mxu0 0
  %6437 = vmatpush1.bf16.msra.mxu0 %v6294
  %6438 = vmatprep.subr.bf16.mxu0 0
  %6439 = vmatpush1.bf16.msra.mxu0 %v6293
  %6440 = vmatprep.subr.bf16.mxu0 0
  %6441 = vmatpush1.bf16.msra.mxu0 %v6292
  %6442 = vmatprep.subr.bf16.mxu0 0
  %6443 = vmatpush1.bf16.msra.mxu0 %v6291
  %6444 = vmatprep.subr.bf16.mxu0 0
  %6445 = vmatpush1.bf16.msra.mxu0 %v6290
  %6446 = vmatprep.subr.bf16.mxu0 0
  %6447 = vmatpush1.bf16.msra.mxu0 %v6289
  %6448 = vmatprep.subr.bf16.mxu0 0
  %6449 = vmatpush1.bf16.msra.mxu0 %v6288
  %6450 = vmatprep.subr.bf16.mxu0 0
  %6451 = vmatpush2.bf16.msra.mxu0 0
  %6452 = vmatprep.subr.bf16.mxu0 0
  %6453 = vmatpush2.bf16.msra.mxu0 0
  %6454 = vmatprep.subr.bf16.mxu0 0
  %6455 = vmatpush2.bf16.msra.mxu0 0
  %6456 = vmatprep.subr.bf16.mxu0 0
  %6457 = vmatpush2.bf16.msra.mxu0 0
  %6458 = vmatprep.subr.bf16.mxu0 0
  %6459 = vmatpush2.bf16.msra.mxu0 0
  %6460 = vmatprep.subr.bf16.mxu0 0
  %6461 = vmatpush2.bf16.msra.mxu0 0
  %6462 = vmatprep.subr.bf16.mxu0 0
  %6463 = vmatpush2.bf16.msra.mxu0 0
  %6464 = vmatprep.subr.bf16.mxu0 0
  %6465 = vmatpush2.bf16.msra.mxu0 0
  %6466 = vmatprep.mubr.bf16.mxu0 0
  %6467 = vmatmul.mubr.bf16.gmra.mxu0 %v6007
  %v6468 = vpop.f32.mrf.mxu0
  %v6469 = vadd.f32 %v6420, %v6468
  %v6470 = vpop.f32.mrf.mxu0
  %v6471 = vpop.f32.mrf.mxu0
  %v6472 = vadd.f32 %v6423, %v6471
  %v6473 = vpop.f32.mrf.mxu0
  %6474 = vmatprep.mubr.bf16.mxu0 0
  %6475 = vmatmul.mubr.bf16.gmra.mxu0 %v6008
  %v6476 = vpop.f32.mrf.mxu0
  %v6477 = vadd.f32 %v6428, %v6476
  %v6478 = vpop.f32.mrf.mxu0
  %v6479 = vpop.f32.mrf.mxu0
  %v6480 = vadd.f32 %v6431, %v6479
  %v6481 = vpop.f32.mrf.mxu0
  %6482 = vdwg.mxu0
  %vm6483 = vcmp.ge.f32.partialorder %v6469, 0.0
  %vm6484 = vcmp.ge.f32.partialorder %v6472, 0.0
  %vm6485 = vcmp.ge.f32.partialorder %v6477, 0.0
  %vm6486 = vcmp.ge.f32.partialorder %v6480, 0.0
  %v6487 = vmul.f32 %v6469, 0.01
  %v6488 = vmul.f32 %v6472, 0.01
  %v6489 = vmul.f32 %v6477, 0.01
  %v6490 = vmul.f32 %v6480, 0.01
  %v6491 = vsel %vm6483, %v6469, %v6487
  %v6492 = vsel %vm6484, %v6472, %v6488
  %v6493 = vsel %vm6485, %v6477, %v6489
  %v6494 = vsel %vm6486, %v6480, %v6490
  %v6495 = vpack.c.bf16 %v6492, %v6491
  %v6496 = vpack.c.bf16 %v6494, %v6493
  %v6497 = vld [vmem:[%s69] sm:$0xf]
  %v6498 = vld [vmem:[%s69 + $0x4] sm:$0xf]
  %v6499 = vld [vmem:[%s69 + $0x8] sm:$0xf]
  %v6500 = vld [vmem:[%s69 + $0xc] sm:$0xf]
  %v6501 = vld [vmem:[%s69 + $0x10] sm:$0xf]
  %v6502 = vld [vmem:[%s69 + $0x14] sm:$0xf]
  %v6503 = vld [vmem:[%s69 + $0x18] sm:$0xf]
  %v6504 = vld [vmem:[%s69 + $0x1c] sm:$0xf]
  %v6513 = vunpack.c.l.b16 %v6497
  %v6514 = vunpack.c.l.b16 %v6498
  %v6515 = vunpack.c.l.b16 %v6499
  %v6516 = vunpack.c.l.b16 %v6500
  %v6517 = vunpack.c.l.b16 %v6501
  %v6518 = vunpack.c.l.b16 %v6502
  %v6519 = vunpack.c.l.b16 %v6503
  %v6520 = vunpack.c.l.b16 %v6504
  %v6521 = vpack.c.b16 %v6514, %v6513
  %v6522 = vpack.c.b16 %v6516, %v6515
  %v6523 = vpack.c.b16 %v6518, %v6517
  %v6524 = vpack.c.b16 %v6520, %v6519
  %v6526 = vsel %vm560, %v6521, 0
  %v6529 = vsel %vm560, %v6522, 0
  %v6532 = vsel %vm560, %v6523, 0
  %v6535 = vsel %vm560, %v6524, 0
  %6537 = vmatprep.subr.bf16.mxu0 0
  %6538 = vmatpush1.bf16.msra.mxu0 0
  %6539 = vmatprep.subr.bf16.mxu0 0
  %6540 = vmatpush1.bf16.msra.mxu0 0
  %6541 = vmatprep.subr.bf16.mxu0 0
  %6542 = vmatpush1.bf16.msra.mxu0 0
  %6543 = vmatprep.subr.bf16.mxu0 0
  %6544 = vmatpush1.bf16.msra.mxu0 0
  %6545 = vmatprep.subr.bf16.mxu0 0
  %6546 = vmatpush1.bf16.msra.mxu0 0
  %6547 = vmatprep.subr.bf16.mxu0 0
  %6548 = vmatpush1.bf16.msra.mxu0 0
  %6549 = vmatprep.subr.bf16.mxu0 0
  %6550 = vmatpush1.bf16.msra.mxu0 %v6496
  %6551 = vmatprep.subr.bf16.mxu0 0
  %6552 = vmatpush1.bf16.msra.mxu0 %v6495
  %6553 = vmatprep.subr.bf16.mxu0 0
  %6554 = vmatpush2.bf16.msra.mxu0 0
  %6555 = vmatprep.subr.bf16.mxu0 0
  %6556 = vmatpush2.bf16.msra.mxu0 0
  %6557 = vmatprep.subr.bf16.mxu0 0
  %6558 = vmatpush2.bf16.msra.mxu0 0
  %6559 = vmatprep.subr.bf16.mxu0 0
  %6560 = vmatpush2.bf16.msra.mxu0 0
  %6561 = vmatprep.subr.bf16.mxu0 0
  %6562 = vmatpush2.bf16.msra.mxu0 0
  %6563 = vmatprep.subr.bf16.mxu0 0
  %6564 = vmatpush2.bf16.msra.mxu0 0
  %6565 = vmatprep.subr.bf16.mxu0 0
  %6566 = vmatpush2.bf16.msra.mxu0 0
  %6567 = vmatprep.subr.bf16.mxu0 0
  %6568 = vmatpush2.bf16.msra.mxu0 0
  %6569 = vmatprep.mubr.bf16.mxu0 0
  %6570 = vmatmul.mubr.bf16.gmra.mxu0 %v6526
  %v6571 = vpop.f32.mrf.mxu0
  %v6572 = vadd.f32 0.0, %v6571
  %v6573 = vpop.f32.mrf.mxu0
  %v6574 = vpop.f32.mrf.mxu0
  %v6575 = vadd.f32 0.0, %v6574
  %v6576 = vpop.f32.mrf.mxu0
  %6577 = vmatprep.mubr.bf16.mxu0 0
  %6578 = vmatmul.mubr.bf16.gmra.mxu0 %v6529
  %v6579 = vpop.f32.mrf.mxu0
  %v6580 = vadd.f32 0.0, %v6579
  %v6581 = vpop.f32.mrf.mxu0
  %v6582 = vpop.f32.mrf.mxu0
  %v6583 = vadd.f32 0.0, %v6582
  %v6584 = vpop.f32.mrf.mxu0
  %6585 = vmatprep.mubr.bf16.mxu0 0
  %6586 = vmatmul.mubr.bf16.gmra.mxu0 %v6532
  %v6587 = vpop.f32.mrf.mxu0
  %v6588 = vadd.f32 0.0, %v6587
  %v6589 = vpop.f32.mrf.mxu0
  %v6590 = vpop.f32.mrf.mxu0
  %v6591 = vadd.f32 0.0, %v6590
  %v6592 = vpop.f32.mrf.mxu0
  %6593 = vmatprep.mubr.bf16.mxu0 0
  %6594 = vmatmul.mubr.bf16.gmra.mxu0 %v6535
  %v6595 = vpop.f32.mrf.mxu0
  %v6596 = vadd.f32 0.0, %v6595
  %v6597 = vpop.f32.mrf.mxu0
  %v6598 = vpop.f32.mrf.mxu0
  %v6599 = vadd.f32 0.0, %v6598
  %v6600 = vpop.f32.mrf.mxu0
  %6601 = vdwg.mxu0
  %v6602 = vpack.c.bf16 %v6575, %v6572
  %v6603 = vpack.c.bf16 %v6583, %v6580
  %v6604 = vpack.c.bf16 %v6591, %v6588
  %v6605 = vpack.c.bf16 %v6599, %v6596
  %s6606 = scalar_lea.vmem %s69, 32
  %v6607 = vld [vmem:[%s6606] sm:$0xf]
  %v6608 = vld [vmem:[%s6606 + $0x4] sm:$0xf]
  %v6609 = vld [vmem:[%s6606 + $0x8] sm:$0xf]
  %v6610 = vld [vmem:[%s6606 + $0xc] sm:$0xf]
  %v6611 = vld [vmem:[%s6606 + $0x10] sm:$0xf]
  %v6612 = vld [vmem:[%s6606 + $0x14] sm:$0xf]
  %v6613 = vld [vmem:[%s6606 + $0x18] sm:$0xf]
  %v6614 = vld [vmem:[%s6606 + $0x1c] sm:$0xf]
  %v6623 = vunpack.c.l.b16 %v6607
  %v6624 = vunpack.c.l.b16 %v6608
  %v6625 = vunpack.c.l.b16 %v6609
  %v6626 = vunpack.c.l.b16 %v6610
  %v6627 = vunpack.c.l.b16 %v6611
  %v6628 = vunpack.c.l.b16 %v6612
  %v6629 = vunpack.c.l.b16 %v6613
  %v6630 = vunpack.c.l.b16 %v6614
  %v6631 = vpack.c.b16 %v6624, %v6623
  %v6632 = vpack.c.b16 %v6626, %v6625
  %v6633 = vpack.c.b16 %v6628, %v6627
  %v6634 = vpack.c.b16 %v6630, %v6629
  %v6636 = vsel %vm560, %v6631, 0
  %v6639 = vsel %vm560, %v6632, 0
  %v6642 = vsel %vm560, %v6633, 0
  %v6645 = vsel %vm560, %v6634, 0
  %6647 = vmatprep.subr.bf16.mxu0 0
  %6648 = vmatpush1.bf16.msra.mxu0 0
  %6649 = vmatprep.subr.bf16.mxu0 0
  %6650 = vmatpush1.bf16.msra.mxu0 0
  %6651 = vmatprep.subr.bf16.mxu0 0
  %6652 = vmatpush1.bf16.msra.mxu0 0
  %6653 = vmatprep.subr.bf16.mxu0 0
  %6654 = vmatpush1.bf16.msra.mxu0 0
  %6655 = vmatprep.subr.bf16.mxu0 0
  %6656 = vmatpush1.bf16.msra.mxu0 0
  %6657 = vmatprep.subr.bf16.mxu0 0
  %6658 = vmatpush1.bf16.msra.mxu0 0
  %6659 = vmatprep.subr.bf16.mxu0 0
  %6660 = vmatpush1.bf16.msra.mxu0 %v6496
  %6661 = vmatprep.subr.bf16.mxu0 0
  %6662 = vmatpush1.bf16.msra.mxu0 %v6495
  %6663 = vmatprep.subr.bf16.mxu0 0
  %6664 = vmatpush2.bf16.msra.mxu0 0
  %6665 = vmatprep.subr.bf16.mxu0 0
  %6666 = vmatpush2.bf16.msra.mxu0 0
  %6667 = vmatprep.subr.bf16.mxu0 0
  %6668 = vmatpush2.bf16.msra.mxu0 0
  %6669 = vmatprep.subr.bf16.mxu0 0
  %6670 = vmatpush2.bf16.msra.mxu0 0
  %6671 = vmatprep.subr.bf16.mxu0 0
  %6672 = vmatpush2.bf16.msra.mxu0 0
  %6673 = vmatprep.subr.bf16.mxu0 0
  %6674 = vmatpush2.bf16.msra.mxu0 0
  %6675 = vmatprep.subr.bf16.mxu0 0
  %6676 = vmatpush2.bf16.msra.mxu0 0
  %6677 = vmatprep.subr.bf16.mxu0 0
  %6678 = vmatpush2.bf16.msra.mxu0 0
  %6679 = vmatprep.mubr.bf16.mxu0 0
  %6680 = vmatmul.mubr.bf16.gmra.mxu0 %v6636
  %v6681 = vpop.f32.mrf.mxu0
  %v6682 = vadd.f32 0.0, %v6681
  %v6683 = vpop.f32.mrf.mxu0
  %v6684 = vpop.f32.mrf.mxu0
  %v6685 = vadd.f32 0.0, %v6684
  %v6686 = vpop.f32.mrf.mxu0
  %6687 = vmatprep.mubr.bf16.mxu0 0
  %6688 = vmatmul.mubr.bf16.gmra.mxu0 %v6639
  %v6689 = vpop.f32.mrf.mxu0
  %v6690 = vadd.f32 0.0, %v6689
  %v6691 = vpop.f32.mrf.mxu0
  %v6692 = vpop.f32.mrf.mxu0
  %v6693 = vadd.f32 0.0, %v6692
  %v6694 = vpop.f32.mrf.mxu0
  %6695 = vmatprep.mubr.bf16.mxu0 0
  %6696 = vmatmul.mubr.bf16.gmra.mxu0 %v6642
  %v6697 = vpop.f32.mrf.mxu0
  %v6698 = vadd.f32 0.0, %v6697
  %v6699 = vpop.f32.mrf.mxu0
  %v6700 = vpop.f32.mrf.mxu0
  %v6701 = vadd.f32 0.0, %v6700
  %v6702 = vpop.f32.mrf.mxu0
  %6703 = vmatprep.mubr.bf16.mxu0 0
  %6704 = vmatmul.mubr.bf16.gmra.mxu0 %v6645
  %v6705 = vpop.f32.mrf.mxu0
  %v6706 = vadd.f32 0.0, %v6705
  %v6707 = vpop.f32.mrf.mxu0
  %v6708 = vpop.f32.mrf.mxu0
  %v6709 = vadd.f32 0.0, %v6708
  %v6710 = vpop.f32.mrf.mxu0
  %6711 = vdwg.mxu0
  %v6712 = vpack.c.bf16 %v6685, %v6682
  %v6713 = vpack.c.bf16 %v6693, %v6690
  %v6714 = vpack.c.bf16 %v6701, %v6698
  %v6715 = vpack.c.bf16 %v6709, %v6706
  %s6716 = scalar_lea.vmem %s69, 64
  %v6717 = vld [vmem:[%s6716] sm:$0xf]
  %v6718 = vld [vmem:[%s6716 + $0x4] sm:$0xf]
  %v6719 = vld [vmem:[%s6716 + $0x8] sm:$0xf]
  %v6720 = vld [vmem:[%s6716 + $0xc] sm:$0xf]
  %v6721 = vld [vmem:[%s6716 + $0x10] sm:$0xf]
  %v6722 = vld [vmem:[%s6716 + $0x14] sm:$0xf]
  %v6723 = vld [vmem:[%s6716 + $0x18] sm:$0xf]
  %v6724 = vld [vmem:[%s6716 + $0x1c] sm:$0xf]
  %v6733 = vunpack.c.l.b16 %v6717
  %v6734 = vunpack.c.l.b16 %v6718
  %v6735 = vunpack.c.l.b16 %v6719
  %v6736 = vunpack.c.l.b16 %v6720
  %v6737 = vunpack.c.l.b16 %v6721
  %v6738 = vunpack.c.l.b16 %v6722
  %v6739 = vunpack.c.l.b16 %v6723
  %v6740 = vunpack.c.l.b16 %v6724
  %v6741 = vpack.c.b16 %v6734, %v6733
  %v6742 = vpack.c.b16 %v6736, %v6735
  %v6743 = vpack.c.b16 %v6738, %v6737
  %v6744 = vpack.c.b16 %v6740, %v6739
  %v6746 = vsel %vm560, %v6741, 0
  %v6749 = vsel %vm560, %v6742, 0
  %v6752 = vsel %vm560, %v6743, 0
  %v6755 = vsel %vm560, %v6744, 0
  %6757 = vmatprep.subr.bf16.mxu0 0
  %6758 = vmatpush1.bf16.msra.mxu0 0
  %6759 = vmatprep.subr.bf16.mxu0 0
  %6760 = vmatpush1.bf16.msra.mxu0 0
  %6761 = vmatprep.subr.bf16.mxu0 0
  %6762 = vmatpush1.bf16.msra.mxu0 0
  %6763 = vmatprep.subr.bf16.mxu0 0
  %6764 = vmatpush1.bf16.msra.mxu0 0
  %6765 = vmatprep.subr.bf16.mxu0 0
  %6766 = vmatpush1.bf16.msra.mxu0 0
  %6767 = vmatprep.subr.bf16.mxu0 0
  %6768 = vmatpush1.bf16.msra.mxu0 0
  %6769 = vmatprep.subr.bf16.mxu0 0
  %6770 = vmatpush1.bf16.msra.mxu0 %v6496
  %6771 = vmatprep.subr.bf16.mxu0 0
  %6772 = vmatpush1.bf16.msra.mxu0 %v6495
  %6773 = vmatprep.subr.bf16.mxu0 0
  %6774 = vmatpush2.bf16.msra.mxu0 0
  %6775 = vmatprep.subr.bf16.mxu0 0
  %6776 = vmatpush2.bf16.msra.mxu0 0
  %6777 = vmatprep.subr.bf16.mxu0 0
  %6778 = vmatpush2.bf16.msra.mxu0 0
  %6779 = vmatprep.subr.bf16.mxu0 0
  %6780 = vmatpush2.bf16.msra.mxu0 0
  %6781 = vmatprep.subr.bf16.mxu0 0
  %6782 = vmatpush2.bf16.msra.mxu0 0
  %6783 = vmatprep.subr.bf16.mxu0 0
  %6784 = vmatpush2.bf16.msra.mxu0 0
  %6785 = vmatprep.subr.bf16.mxu0 0
  %6786 = vmatpush2.bf16.msra.mxu0 0
  %6787 = vmatprep.subr.bf16.mxu0 0
  %6788 = vmatpush2.bf16.msra.mxu0 0
  %6789 = vmatprep.mubr.bf16.mxu0 0
  %6790 = vmatmul.mubr.bf16.gmra.mxu0 %v6746
  %v6791 = vpop.f32.mrf.mxu0
  %v6792 = vadd.f32 0.0, %v6791
  %v6793 = vpop.f32.mrf.mxu0
  %v6794 = vpop.f32.mrf.mxu0
  %v6795 = vadd.f32 0.0, %v6794
  %v6796 = vpop.f32.mrf.mxu0
  %6797 = vmatprep.mubr.bf16.mxu0 0
  %6798 = vmatmul.mubr.bf16.gmra.mxu0 %v6749
  %v6799 = vpop.f32.mrf.mxu0
  %v6800 = vadd.f32 0.0, %v6799
  %v6801 = vpop.f32.mrf.mxu0
  %v6802 = vpop.f32.mrf.mxu0
  %v6803 = vadd.f32 0.0, %v6802
  %v6804 = vpop.f32.mrf.mxu0
  %6805 = vmatprep.mubr.bf16.mxu0 0
  %6806 = vmatmul.mubr.bf16.gmra.mxu0 %v6752
  %v6807 = vpop.f32.mrf.mxu0
  %v6808 = vadd.f32 0.0, %v6807
  %v6809 = vpop.f32.mrf.mxu0
  %v6810 = vpop.f32.mrf.mxu0
  %v6811 = vadd.f32 0.0, %v6810
  %v6812 = vpop.f32.mrf.mxu0
  %6813 = vmatprep.mubr.bf16.mxu0 0
  %6814 = vmatmul.mubr.bf16.gmra.mxu0 %v6755
  %v6815 = vpop.f32.mrf.mxu0
  %v6816 = vadd.f32 0.0, %v6815
  %v6817 = vpop.f32.mrf.mxu0
  %v6818 = vpop.f32.mrf.mxu0
  %v6819 = vadd.f32 0.0, %v6818
  %v6820 = vpop.f32.mrf.mxu0
  %6821 = vdwg.mxu0
  %v6822 = vpack.c.bf16 %v6795, %v6792
  %v6823 = vpack.c.bf16 %v6803, %v6800
  %v6824 = vpack.c.bf16 %v6811, %v6808
  %v6825 = vpack.c.bf16 %v6819, %v6816
  %s6826 = scalar_lea.vmem %s69, 96
  %v6827 = vld [vmem:[%s6826] sm:$0xf]
  %v6828 = vld [vmem:[%s6826 + $0x4] sm:$0xf]
  %v6829 = vld [vmem:[%s6826 + $0x8] sm:$0xf]
  %v6830 = vld [vmem:[%s6826 + $0xc] sm:$0xf]
  %v6831 = vld [vmem:[%s6826 + $0x10] sm:$0xf]
  %v6832 = vld [vmem:[%s6826 + $0x14] sm:$0xf]
  %v6833 = vld [vmem:[%s6826 + $0x18] sm:$0xf]
  %v6834 = vld [vmem:[%s6826 + $0x1c] sm:$0xf]
  %v6843 = vunpack.c.l.b16 %v6827
  %v6844 = vunpack.c.l.b16 %v6828
  %v6845 = vunpack.c.l.b16 %v6829
  %v6846 = vunpack.c.l.b16 %v6830
  %v6847 = vunpack.c.l.b16 %v6831
  %v6848 = vunpack.c.l.b16 %v6832
  %v6849 = vunpack.c.l.b16 %v6833
  %v6850 = vunpack.c.l.b16 %v6834
  %v6851 = vpack.c.b16 %v6844, %v6843
  %v6852 = vpack.c.b16 %v6846, %v6845
  %v6853 = vpack.c.b16 %v6848, %v6847
  %v6854 = vpack.c.b16 %v6850, %v6849
  %v6856 = vsel %vm560, %v6851, 0
  %v6859 = vsel %vm560, %v6852, 0
  %v6862 = vsel %vm560, %v6853, 0
  %v6865 = vsel %vm560, %v6854, 0
  %6867 = vmatprep.subr.bf16.mxu0 0
  %6868 = vmatpush1.bf16.msra.mxu0 0
  %6869 = vmatprep.subr.bf16.mxu0 0
  %6870 = vmatpush1.bf16.msra.mxu0 0
  %6871 = vmatprep.subr.bf16.mxu0 0
  %6872 = vmatpush1.bf16.msra.mxu0 0
  %6873 = vmatprep.subr.bf16.mxu0 0
  %6874 = vmatpush1.bf16.msra.mxu0 0
  %6875 = vmatprep.subr.bf16.mxu0 0
  %6876 = vmatpush1.bf16.msra.mxu0 0
  %6877 = vmatprep.subr.bf16.mxu0 0
  %6878 = vmatpush1.bf16.msra.mxu0 0
  %6879 = vmatprep.subr.bf16.mxu0 0
  %6880 = vmatpush1.bf16.msra.mxu0 %v6496
  %6881 = vmatprep.subr.bf16.mxu0 0
  %6882 = vmatpush1.bf16.msra.mxu0 %v6495
  %6883 = vmatprep.subr.bf16.mxu0 0
  %6884 = vmatpush2.bf16.msra.mxu0 0
  %6885 = vmatprep.subr.bf16.mxu0 0
  %6886 = vmatpush2.bf16.msra.mxu0 0
  %6887 = vmatprep.subr.bf16.mxu0 0
  %6888 = vmatpush2.bf16.msra.mxu0 0
  %6889 = vmatprep.subr.bf16.mxu0 0
  %6890 = vmatpush2.bf16.msra.mxu0 0
  %6891 = vmatprep.subr.bf16.mxu0 0
  %6892 = vmatpush2.bf16.msra.mxu0 0
  %6893 = vmatprep.subr.bf16.mxu0 0
  %6894 = vmatpush2.bf16.msra.mxu0 0
  %6895 = vmatprep.subr.bf16.mxu0 0
  %6896 = vmatpush2.bf16.msra.mxu0 0
  %6897 = vmatprep.subr.bf16.mxu0 0
  %6898 = vmatpush2.bf16.msra.mxu0 0
  %6899 = vmatprep.mubr.bf16.mxu0 0
  %6900 = vmatmul.mubr.bf16.gmra.mxu0 %v6856
  %v6901 = vpop.f32.mrf.mxu0
  %v6902 = vadd.f32 0.0, %v6901
  %v6903 = vpop.f32.mrf.mxu0
  %v6904 = vpop.f32.mrf.mxu0
  %v6905 = vadd.f32 0.0, %v6904
  %v6906 = vpop.f32.mrf.mxu0
  %6907 = vmatprep.mubr.bf16.mxu0 0
  %6908 = vmatmul.mubr.bf16.gmra.mxu0 %v6859
  %v6909 = vpop.f32.mrf.mxu0
  %v6910 = vadd.f32 0.0, %v6909
  %v6911 = vpop.f32.mrf.mxu0
  %v6912 = vpop.f32.mrf.mxu0
  %v6913 = vadd.f32 0.0, %v6912
  %v6914 = vpop.f32.mrf.mxu0
  %6915 = vmatprep.mubr.bf16.mxu0 0
  %6916 = vmatmul.mubr.bf16.gmra.mxu0 %v6862
  %v6917 = vpop.f32.mrf.mxu0
  %v6918 = vadd.f32 0.0, %v6917
  %v6919 = vpop.f32.mrf.mxu0
  %v6920 = vpop.f32.mrf.mxu0
  %v6921 = vadd.f32 0.0, %v6920
  %v6922 = vpop.f32.mrf.mxu0
  %6923 = vmatprep.mubr.bf16.mxu0 0
  %6924 = vmatmul.mubr.bf16.gmra.mxu0 %v6865
  %v6925 = vpop.f32.mrf.mxu0
  %v6926 = vadd.f32 0.0, %v6925
  %v6927 = vpop.f32.mrf.mxu0
  %v6928 = vpop.f32.mrf.mxu0
  %v6929 = vadd.f32 0.0, %v6928
  %v6930 = vpop.f32.mrf.mxu0
  %6931 = vdwg.mxu0
  %v6932 = vpack.c.bf16 %v6905, %v6902
  %v6933 = vpack.c.bf16 %v6913, %v6910
  %v6934 = vpack.c.bf16 %v6921, %v6918
  %v6935 = vpack.c.bf16 %v6929, %v6926
  %s6936 = scalar_lea.vmem %s69, 128
  %v6937 = vld [vmem:[%s6936] sm:$0xf]
  %v6938 = vld [vmem:[%s6936 + $0x4] sm:$0xf]
  %v6939 = vld [vmem:[%s6936 + $0x8] sm:$0xf]
  %v6940 = vld [vmem:[%s6936 + $0xc] sm:$0xf]
  %v6941 = vld [vmem:[%s6936 + $0x10] sm:$0xf]
  %v6942 = vld [vmem:[%s6936 + $0x14] sm:$0xf]
  %v6943 = vld [vmem:[%s6936 + $0x18] sm:$0xf]
  %v6944 = vld [vmem:[%s6936 + $0x1c] sm:$0xf]
  %v6953 = vunpack.c.l.b16 %v6937
  %v6954 = vunpack.c.l.b16 %v6938
  %v6955 = vunpack.c.l.b16 %v6939
  %v6956 = vunpack.c.l.b16 %v6940
  %v6957 = vunpack.c.l.b16 %v6941
  %v6958 = vunpack.c.l.b16 %v6942
  %v6959 = vunpack.c.l.b16 %v6943
  %v6960 = vunpack.c.l.b16 %v6944
  %v6961 = vpack.c.b16 %v6954, %v6953
  %v6962 = vpack.c.b16 %v6956, %v6955
  %v6963 = vpack.c.b16 %v6958, %v6957
  %v6964 = vpack.c.b16 %v6960, %v6959
  %v6966 = vsel %vm560, %v6961, 0
  %v6969 = vsel %vm560, %v6962, 0
  %v6972 = vsel %vm560, %v6963, 0
  %v6975 = vsel %vm560, %v6964, 0
  %6977 = vmatprep.subr.bf16.mxu0 0
  %6978 = vmatpush1.bf16.msra.mxu0 0
  %6979 = vmatprep.subr.bf16.mxu0 0
  %6980 = vmatpush1.bf16.msra.mxu0 0
  %6981 = vmatprep.subr.bf16.mxu0 0
  %6982 = vmatpush1.bf16.msra.mxu0 0
  %6983 = vmatprep.subr.bf16.mxu0 0
  %6984 = vmatpush1.bf16.msra.mxu0 0
  %6985 = vmatprep.subr.bf16.mxu0 0
  %6986 = vmatpush1.bf16.msra.mxu0 0
  %6987 = vmatprep.subr.bf16.mxu0 0
  %6988 = vmatpush1.bf16.msra.mxu0 0
  %6989 = vmatprep.subr.bf16.mxu0 0
  %6990 = vmatpush1.bf16.msra.mxu0 %v6496
  %6991 = vmatprep.subr.bf16.mxu0 0
  %6992 = vmatpush1.bf16.msra.mxu0 %v6495
  %6993 = vmatprep.subr.bf16.mxu0 0
  %6994 = vmatpush2.bf16.msra.mxu0 0
  %6995 = vmatprep.subr.bf16.mxu0 0
  %6996 = vmatpush2.bf16.msra.mxu0 0
  %6997 = vmatprep.subr.bf16.mxu0 0
  %6998 = vmatpush2.bf16.msra.mxu0 0
  %6999 = vmatprep.subr.bf16.mxu0 0
  %7000 = vmatpush2.bf16.msra.mxu0 0
  %7001 = vmatprep.subr.bf16.mxu0 0
  %7002 = vmatpush2.bf16.msra.mxu0 0
  %7003 = vmatprep.subr.bf16.mxu0 0
  %7004 = vmatpush2.bf16.msra.mxu0 0
  %7005 = vmatprep.subr.bf16.mxu0 0
  %7006 = vmatpush2.bf16.msra.mxu0 0
  %7007 = vmatprep.subr.bf16.mxu0 0
  %7008 = vmatpush2.bf16.msra.mxu0 0
  %7009 = vmatprep.mubr.bf16.mxu0 0
  %7010 = vmatmul.mubr.bf16.gmra.mxu0 %v6966
  %v7011 = vpop.f32.mrf.mxu0
  %v7012 = vadd.f32 0.0, %v7011
  %v7013 = vpop.f32.mrf.mxu0
  %v7014 = vpop.f32.mrf.mxu0
  %v7015 = vadd.f32 0.0, %v7014
  %v7016 = vpop.f32.mrf.mxu0
  %7017 = vmatprep.mubr.bf16.mxu0 0
  %7018 = vmatmul.mubr.bf16.gmra.mxu0 %v6969
  %v7019 = vpop.f32.mrf.mxu0
  %v7020 = vadd.f32 0.0, %v7019
  %v7021 = vpop.f32.mrf.mxu0
  %v7022 = vpop.f32.mrf.mxu0
  %v7023 = vadd.f32 0.0, %v7022
  %v7024 = vpop.f32.mrf.mxu0
  %7025 = vmatprep.mubr.bf16.mxu0 0
  %7026 = vmatmul.mubr.bf16.gmra.mxu0 %v6972
  %v7027 = vpop.f32.mrf.mxu0
  %v7028 = vadd.f32 0.0, %v7027
  %v7029 = vpop.f32.mrf.mxu0
  %v7030 = vpop.f32.mrf.mxu0
  %v7031 = vadd.f32 0.0, %v7030
  %v7032 = vpop.f32.mrf.mxu0
  %7033 = vmatprep.mubr.bf16.mxu0 0
  %7034 = vmatmul.mubr.bf16.gmra.mxu0 %v6975
  %v7035 = vpop.f32.mrf.mxu0
  %v7036 = vadd.f32 0.0, %v7035
  %v7037 = vpop.f32.mrf.mxu0
  %v7038 = vpop.f32.mrf.mxu0
  %v7039 = vadd.f32 0.0, %v7038
  %v7040 = vpop.f32.mrf.mxu0
  %7041 = vdwg.mxu0
  %v7042 = vpack.c.bf16 %v7015, %v7012
  %v7043 = vpack.c.bf16 %v7023, %v7020
  %v7044 = vpack.c.bf16 %v7031, %v7028
  %v7045 = vpack.c.bf16 %v7039, %v7036
  %7050 = vrot.lane.b32.xlu0 %v6712, 48
  %v7051 = vpop.permute.xlu0 %7050
  %7052 = vrot.lane.b32.xlu0 %v6713, 48
  %v7053 = vpop.permute.xlu0 %7052
  %7054 = vrot.lane.b32.xlu0 %v6714, 48
  %v7055 = vpop.permute.xlu0 %7054
  %7056 = vrot.lane.b32.xlu0 %v6715, 48
  %v7057 = vpop.permute.xlu0 %7056
  %7062 = vrot.lane.b32.xlu0 %v6822, 96
  %v7063 = vpop.permute.xlu0 %7062
  %7064 = vrot.lane.b32.xlu0 %v6823, 96
  %v7065 = vpop.permute.xlu0 %7064
  %7066 = vrot.lane.b32.xlu0 %v6824, 96
  %v7067 = vpop.permute.xlu0 %7066
  %7068 = vrot.lane.b32.xlu0 %v6825, 96
  %v7069 = vpop.permute.xlu0 %7068
  %7074 = vrot.lane.b32.xlu0 %v6932, 16
  %v7075 = vpop.permute.xlu0 %7074
  %7076 = vrot.lane.b32.xlu0 %v6933, 16
  %v7077 = vpop.permute.xlu0 %7076
  %7078 = vrot.lane.b32.xlu0 %v6934, 16
  %v7079 = vpop.permute.xlu0 %7078
  %7080 = vrot.lane.b32.xlu0 %v6935, 16
  %v7081 = vpop.permute.xlu0 %7080
  %7086 = vrot.lane.b32.xlu0 %v7042, 64
  %v7087 = vpop.permute.xlu0 %7086
  %7088 = vrot.lane.b32.xlu0 %v7043, 64
  %v7089 = vpop.permute.xlu0 %7088
  %7090 = vrot.lane.b32.xlu0 %v7044, 64
  %v7091 = vpop.permute.xlu0 %7090
  %7092 = vrot.lane.b32.xlu0 %v7045, 64
  %v7093 = vpop.permute.xlu0 %7092
  %v7096 = vsel %vm1315, %v6602, %v7051
  %v7099 = vsel %vm1315, %v6603, %v7053
  %v7102 = vsel %vm1315, %v6604, %v7055
  %v7105 = vsel %vm1315, %v6605, %v7057
  %v7107 = vsel %vm545, %v7096, %v7063
  %v7110 = vsel %vm545, %v7099, %v7065
  %v7113 = vsel %vm545, %v7102, %v7067
  %v7116 = vsel %vm545, %v7105, %v7069
  %v7119 = vsel %vm1328, %v7063, %v7075
  %v7121 = vsel %vm1328, %v7065, %v7077
  %v7123 = vsel %vm1328, %v7067, %v7079
  %v7125 = vsel %vm1328, %v7069, %v7081
  %v7127 = vsel %vm181, %v7119, %v7087
  %v7129 = vsel %vm181, %v7121, %v7089
  %v7131 = vsel %vm181, %v7123, %v7091
  %v7133 = vsel %vm181, %v7125, %v7093
  %v7134 = vld [vmem:[%s71] sm:$0xf]
  %v7135 = vld [vmem:[%s71 + $0x4] sm:$0xf]
  %v7136 = vld [vmem:[%s71 + $0x8] sm:$0xf]
  %v7137 = vld [vmem:[%s71 + $0xc] sm:$0xf]
  %v7138 = vld [vmem:[%s71 + $0x10] sm:$0xf]
  %v7139 = vld [vmem:[%s71 + $0x14] sm:$0xf]
  %v7140 = vld [vmem:[%s71 + $0x18] sm:$0xf]
  %v7141 = vld [vmem:[%s71 + $0x1c] sm:$0xf]
  %v7142 = vld [vmem:[%s71 + $0x20] sm:$0xf]
  %v7143 = vld [vmem:[%s71 + $0x24] sm:$0xf]
  %v7144 = vld [vmem:[%s71 + $0x28] sm:$0xf]
  %v7145 = vld [vmem:[%s71 + $0x2c] sm:$0xf]
  %v7146 = vld [vmem:[%s71 + $0x30] sm:$0xf]
  %v7147 = vld [vmem:[%s71 + $0x34] sm:$0xf]
  %v7148 = vld [vmem:[%s71 + $0x38] sm:$0xf]
  %v7149 = vld [vmem:[%s71 + $0x3c] sm:$0xf]
  %v7150 = vld [vmem:[%s71 + $0x40] sm:$0xf]
  %v7151 = vld [vmem:[%s71 + $0x44] sm:$0xf]
  %v7152 = vld [vmem:[%s71 + $0x48] sm:$0xf]
  %v7153 = vld [vmem:[%s71 + $0x4c] sm:$0xf]
  %v7154 = vld [vmem:[%s71 + $0x50] sm:$0xf]
  %v7155 = vld [vmem:[%s71 + $0x54] sm:$0xf]
  %v7156 = vld [vmem:[%s71 + $0x58] sm:$0xf]
  %v7157 = vld [vmem:[%s71 + $0x5c] sm:$0xf]
  %v7158 = vld [vmem:[%s71 + $0x60] sm:$0xf]
  %v7159 = vld [vmem:[%s71 + $0x64] sm:$0xf]
  %v7160 = vld [vmem:[%s71 + $0x68] sm:$0xf]
  %v7161 = vld [vmem:[%s71 + $0x6c] sm:$0xf]
  %v7162 = vld [vmem:[%s71 + $0x70] sm:$0xf]
  %v7163 = vld [vmem:[%s71 + $0x74] sm:$0xf]
  %v7164 = vld [vmem:[%s73] sm:$0x1]
  %v7166 = vlaneseq
  %v7167 = vshrl.u32 %v7166, 7
  %v7168 = vsub.s32 0, %v7167
  %v7169 = vrot.slane %v7164, %v7168
  %v7201 = vunpack.c.l.b16 %v7134
  %v7202 = vunpack.c.l.b16 %v7135
  %v7203 = vunpack.c.l.b16 %v7136
  %v7204 = vunpack.c.l.b16 %v7137
  %v7205 = vunpack.c.l.b16 %v7138
  %v7206 = vunpack.c.l.b16 %v7139
  %v7207 = vunpack.c.l.b16 %v7140
  %v7208 = vunpack.c.l.b16 %v7141
  %v7209 = vunpack.c.l.b16 %v7142
  %v7210 = vunpack.c.l.b16 %v7143
  %v7211 = vunpack.c.l.b16 %v7144
  %v7212 = vunpack.c.l.b16 %v7145
  %v7213 = vunpack.c.l.b16 %v7146
  %v7214 = vunpack.c.l.b16 %v7147
  %v7215 = vunpack.c.l.b16 %v7148
  %v7216 = vunpack.c.l.b16 %v7149
  %v7217 = vunpack.c.l.b16 %v7150
  %v7218 = vunpack.c.l.b16 %v7151
  %v7219 = vunpack.c.l.b16 %v7152
  %v7220 = vunpack.c.l.b16 %v7153
  %v7221 = vunpack.c.l.b16 %v7154
  %v7222 = vunpack.c.l.b16 %v7155
  %v7223 = vunpack.c.l.b16 %v7156
  %v7224 = vunpack.c.l.b16 %v7157
  %v7225 = vunpack.c.l.b16 %v7158
  %v7226 = vunpack.c.l.b16 %v7159
  %v7227 = vunpack.c.l.b16 %v7160
  %v7228 = vunpack.c.l.b16 %v7161
  %v7229 = vunpack.c.l.b16 %v7162
  %v7230 = vunpack.c.l.b16 %v7163
  %v7231 = vpack.c.b16 %v7202, %v7201
  %v7232 = vpack.c.b16 %v7204, %v7203
  %v7233 = vpack.c.b16 %v7206, %v7205
  %v7234 = vpack.c.b16 %v7208, %v7207
  %v7235 = vpack.c.b16 %v7210, %v7209
  %v7236 = vpack.c.b16 %v7212, %v7211
  %v7237 = vpack.c.b16 %v7214, %v7213
  %v7238 = vpack.c.b16 %v7216, %v7215
  %v7239 = vpack.c.b16 %v7218, %v7217
  %v7240 = vpack.c.b16 %v7220, %v7219
  %v7241 = vpack.c.b16 %v7222, %v7221
  %v7242 = vpack.c.b16 %v7224, %v7223
  %v7243 = vpack.c.b16 %v7226, %v7225
  %v7244 = vpack.c.b16 %v7228, %v7227
  %v7245 = vpack.c.b16 %v7230, %v7229
  %v7261 = vsel %vm1464, %v7127, 0
  %v7263 = vsel %vm1464, %v7129, 0
  %v7265 = vsel %vm1464, %v7131, 0
  %v7267 = vsel %vm1464, %v7133, 0
  %7269 = vmatprep.subr.bf16.mxu0 0
  %7270 = vmatpush1.bf16.msra.mxu0 %v7238
  %7271 = vmatprep.subr.bf16.mxu0 0
  %7272 = vmatpush1.bf16.msra.mxu0 %v7237
  %7273 = vmatprep.subr.bf16.mxu0 0
  %7274 = vmatpush1.bf16.msra.mxu0 %v7236
  %7275 = vmatprep.subr.bf16.mxu0 0
  %7276 = vmatpush1.bf16.msra.mxu0 %v7235
  %7277 = vmatprep.subr.bf16.mxu0 0
  %7278 = vmatpush1.bf16.msra.mxu0 %v7234
  %7279 = vmatprep.subr.bf16.mxu0 0
  %7280 = vmatpush1.bf16.msra.mxu0 %v7233
  %7281 = vmatprep.subr.bf16.mxu0 0
  %7282 = vmatpush1.bf16.msra.mxu0 %v7232
  %7283 = vmatprep.subr.bf16.mxu0 0
  %7284 = vmatpush1.bf16.msra.mxu0 %v7231
  %7285 = vmatprep.subr.bf16.mxu0 0
  %7286 = vmatpush2.bf16.msra.mxu0 0
  %7287 = vmatprep.subr.bf16.mxu0 0
  %7288 = vmatpush2.bf16.msra.mxu0 %v7245
  %7289 = vmatprep.subr.bf16.mxu0 0
  %7290 = vmatpush2.bf16.msra.mxu0 %v7244
  %7291 = vmatprep.subr.bf16.mxu0 0
  %7292 = vmatpush2.bf16.msra.mxu0 %v7243
  %7293 = vmatprep.subr.bf16.mxu0 0
  %7294 = vmatpush2.bf16.msra.mxu0 %v7242
  %7295 = vmatprep.subr.bf16.mxu0 0
  %7296 = vmatpush2.bf16.msra.mxu0 %v7241
  %7297 = vmatprep.subr.bf16.mxu0 0
  %7298 = vmatpush2.bf16.msra.mxu0 %v7240
  %7299 = vmatprep.subr.bf16.mxu0 0
  %7300 = vmatpush2.bf16.msra.mxu0 %v7239
  %7301 = vmatprep.mubr.bf16.mxu0 %v7261
  %7302 = vmatmul.mubr.bf16.gmra.mxu0 %v7107
  %v7303 = vpop.f32.mrf.mxu0
  %v7304 = vadd.f32 %v7169, %v7303
  %v7305 = vpop.f32.mrf.mxu0
  %v7306 = vpop.f32.mrf.mxu0
  %v7307 = vadd.f32 %v7169, %v7306
  %v7308 = vpop.f32.mrf.mxu0
  %7309 = vmatprep.mubr.bf16.mxu0 %v7263
  %7310 = vmatmul.mubr.bf16.gmra.mxu0 %v7110
  %v7311 = vpop.f32.mrf.mxu0
  %v7312 = vadd.f32 %v7169, %v7311
  %v7313 = vpop.f32.mrf.mxu0
  %v7314 = vpop.f32.mrf.mxu0
  %v7315 = vadd.f32 %v7169, %v7314
  %v7316 = vpop.f32.mrf.mxu0
  %7317 = vmatprep.mubr.bf16.mxu0 %v7265
  %7318 = vmatmul.mubr.bf16.gmra.mxu0 %v7113
  %v7319 = vpop.f32.mrf.mxu0
  %v7320 = vadd.f32 %v7169, %v7319
  %v7321 = vpop.f32.mrf.mxu0
  %v7322 = vpop.f32.mrf.mxu0
  %v7323 = vadd.f32 %v7169, %v7322
  %v7324 = vpop.f32.mrf.mxu0
  %7325 = vmatprep.mubr.bf16.mxu0 %v7267
  %7326 = vmatmul.mubr.bf16.gmra.mxu0 %v7116
  %v7327 = vpop.f32.mrf.mxu0
  %v7328 = vadd.f32 %v7169, %v7327
  %v7329 = vpop.f32.mrf.mxu0
  %v7330 = vpop.f32.mrf.mxu0
  %v7331 = vadd.f32 %v7169, %v7330
  %v7332 = vpop.f32.mrf.mxu0
  %7333 = vdwg.mxu0
  %vm7334 = vcmp.ge.f32.partialorder %v7304, 0.0
  %vm7335 = vcmp.ge.f32.partialorder %v7307, 0.0
  %vm7336 = vcmp.ge.f32.partialorder %v7312, 0.0
  %vm7337 = vcmp.ge.f32.partialorder %v7315, 0.0
  %vm7338 = vcmp.ge.f32.partialorder %v7320, 0.0
  %vm7339 = vcmp.ge.f32.partialorder %v7323, 0.0
  %vm7340 = vcmp.ge.f32.partialorder %v7328, 0.0
  %vm7341 = vcmp.ge.f32.partialorder %v7331, 0.0
  %v7342 = vmul.f32 %v7304, 0.01
  %v7343 = vmul.f32 %v7307, 0.01
  %v7344 = vmul.f32 %v7312, 0.01
  %v7345 = vmul.f32 %v7315, 0.01
  %v7346 = vmul.f32 %v7320, 0.01
  %v7347 = vmul.f32 %v7323, 0.01
  %v7348 = vmul.f32 %v7328, 0.01
  %v7349 = vmul.f32 %v7331, 0.01
  %v7350 = vsel %vm7334, %v7304, %v7342
  %v7351 = vsel %vm7335, %v7307, %v7343
  %v7352 = vsel %vm7336, %v7312, %v7344
  %v7353 = vsel %vm7337, %v7315, %v7345
  %v7354 = vsel %vm7338, %v7320, %v7346
  %v7355 = vsel %vm7339, %v7323, %v7347
  %v7356 = vsel %vm7340, %v7328, %v7348
  %v7357 = vsel %vm7341, %v7331, %v7349
  %7358 = vst.msk [vmem:[%s75] sm:$0xff] %vm545, %v7350
  %7359 = vst.msk [vmem:[%s75 + $0x8] sm:$0xff] %vm545, %v7351
  %7360 = vst.msk [vmem:[%s75 + $0x10] sm:$0xff] %vm545, %v7352
  %7361 = vst.msk [vmem:[%s75 + $0x18] sm:$0xff] %vm545, %v7353
  %7362 = vst.msk [vmem:[%s75 + $0x20] sm:$0xff] %vm545, %v7354
  %7363 = vst.msk [vmem:[%s75 + $0x28] sm:$0xff] %vm545, %v7355
  %7364 = vst.msk [vmem:[%s75 + $0x30] sm:$0xff] %vm545, %v7356
  %7365 = vst.msk [vmem:[%s75 + $0x38] sm:$0xff] %vm545, %v7357
  // Predicated region
  $region150: #{forward.1} parent=0 // pred_check
    _
  $region151: #{forward.1} parent=0 // pred_check_branch
    %7367 = sbr.rel (0) target = $region153
  $region152: #{forward.1} parent=0 // pred_region
    _
  $region153: #{forward.1} parent=0 // pred_fallthru
    _
  // Predicated region
  $region154: #{forward.1} parent=0 // pred_check
    _
  $region155: #{forward.1} parent=0 // pred_check_branch
    %7369 = sbr.rel (0) target = $region157
  $region156: #{forward.1} parent=0 // pred_region
    _
  $region157: #{forward.1} parent=0 // pred_fallthru
    _

</llo_original>
